<compile_context>
chip_gen: v7x
topology: tpu7x:2x2x1
jax: 0.10.0
libtpu: 0.0.40
codegen_flags: <defaults>
</compile_context>

<pallas_src>
import jax
import jax.numpy as jnp
import numpy as np
from jax import lax
from jax.experimental import pallas as pl
from jax.experimental.pallas import tpu as pltpu

BN_EPS = 1e-5
LANE = 128
SUBLANE = 8
VMEM_LIMIT = 48 * 1024 * 1024


def _round_up(x, m):
    return (x + m - 1) // m * m


def _largest_divisor_leq(n, target):
    for d in range(min(n, target), 0, -1):
        if n % d == 0:
            return d
    return 1


# ---------------------------------------------------------------------------
# Kernel 1: ConvTranspose2d(kernel_size=2, stride=2), fused scatter layout.
# Each input pixel produces an independent 2x2 output block; the kernel writes
# rows interleaved as [row, a, col, (b, cout)], so the final NHWC upsampled
# tensor is obtained with a free reshape (no transpose).
# ---------------------------------------------------------------------------
def _deconv_kernel(x_ref, w_ref, b_ref, o_ref):
    # x_ref: [TR, W, Cin_p]; w_ref: [2, Cin_p, 2*Cup_p]; b_ref: [1, 2*Cup_p]
    # o_ref: [TR, 2, W, 2*Cup_p]
    tr, w, cin = x_ref.shape
    xf = x_ref[...].reshape(tr * w, cin)
    for a in range(2):
        y = jnp.dot(xf, w_ref[a], preferred_element_type=jnp.float32)
        y = y + b_ref[...]
        o_ref[:, a, :, :] = y.reshape(tr, w, y.shape[-1])


def conv_transpose_2x2_s2(x_nhwc, w_pt, b):
    """PyTorch ConvTranspose2d(Cin, Cup, kernel_size=2, stride=2); NHWC in/out."""
    N, H, W, Cin = x_nhwc.shape
    Cup = w_pt.shape[1]
    Cin_p = _round_up(Cin, LANE)
    Cup_p = _round_up(Cup, LANE)
    R = N * H
    TR = _largest_divisor_leq(R, SUBLANE)

    x2 = jnp.pad(x_nhwc.astype(jnp.float32),
                 ((0, 0), (0, 0), (0, 0), (0, Cin_p - Cin))).reshape(R, W, Cin_p)

    # PyTorch weight [Cin, Cup, kh, kw] -> w_k[a, ci, kw*Cup_p + c]
    wt = jnp.zeros((2, 2, Cin_p, Cup_p), jnp.float32)
    wt = wt.at[:, :, :Cin, :Cup].set(
        jnp.transpose(w_pt.astype(jnp.float32), (2, 3, 0, 1)))
    w_k = jnp.transpose(wt, (0, 2, 1, 3)).reshape(2, Cin_p, 2 * Cup_p)
    b_k = jnp.tile(jnp.zeros((Cup_p,), jnp.float32).at[:Cup].set(
        b.astype(jnp.float32)), 2).reshape(1, 2 * Cup_p)

    flops = 2 * (R * W) * Cin_p * (4 * Cup_p)
    bytes_accessed = 4 * (R * W * Cin_p + 2 * Cin_p * 2 * Cup_p
                          + R * 2 * W * 2 * Cup_p)

    y = pl.pallas_call(
        _deconv_kernel,
        grid=(R // TR,),
        in_specs=[
            pl.BlockSpec((TR, W, Cin_p), lambda i: (i, 0, 0)),
            pl.BlockSpec((2, Cin_p, 2 * Cup_p), lambda i: (0, 0, 0)),
            pl.BlockSpec((1, 2 * Cup_p), lambda i: (0, 0)),
        ],
        out_specs=pl.BlockSpec((TR, 2, W, 2 * Cup_p), lambda i: (i, 0, 0, 0)),
        out_shape=jax.ShapeDtypeStruct((R, 2, W, 2 * Cup_p), jnp.float32),
        compiler_params=pltpu.CompilerParams(
            dimension_semantics=("parallel",),
            vmem_limit_bytes=VMEM_LIMIT),
        cost_estimate=pl.CostEstimate(flops=flops, transcendentals=0,
                                      bytes_accessed=bytes_accessed),
    )(x2, w_k, b_k)

    # [R, 2, W, 2*Cup_p] == [N, H, 2, W, 2, Cup_p] == [N, 2H, 2W, Cup_p]  (free)
    u = y.reshape(N, H, 2, W, 2, Cup_p).reshape(N, 2 * H, 2 * W, Cup_p)
    return u[:, :, :, :Cup]


# ---------------------------------------------------------------------------
# Kernel 2: Conv3x3(pad=1) + per-block BN partial sums (two-phase BatchNorm).
# Row-tiled with a 1-row halo fetched by an explicit DMA.  The conv bias is
# omitted: training-mode BN subtracts the batch mean, which cancels it exactly.
# ---------------------------------------------------------------------------
def _make_conv_stats_kernel(TH, Wp, Wout, Cin_p, Cout_p):
    L = TH * Wp

    def kernel(xp_hbm, w_ref, z_ref, s1_ref, s2_ref, xbuf, acc_ref):
        n = pl.program_id(0)
        rb = pl.program_id(1)
        r0 = pl.multiple_of(rb * TH, TH)

        # Halo row window [rb*TH, rb*TH + TH + 2) of the spatially padded input.
        pltpu.sync_copy(xp_hbm.at[n, pl.ds(r0, TH + 2)], xbuf)

        for kh in range(3):
            # Row-offset load is tile aligned (rows are an outer dim); the
            # reshape is free because Wp is a multiple of 8.
            row = xbuf[kh:kh + TH, :, :].reshape(L, Cin_p)
            for kw in range(3):
                contrib = jnp.dot(row, w_ref[3 * kh + kw],
                                  preferred_element_type=jnp.float32)
                if kh == 0:
                    acc_ref[kw] = contrib
                else:
                    acc_ref[kw] += contrib

        a0 = acc_ref[0].reshape(TH, Wp, Cout_p)
        a1 = acc_ref[1].reshape(TH, Wp, Cout_p)
        a2 = acc_ref[2].reshape(TH, Wp, Cout_p)
        # Combine the three kw accumulators with their 0/+1/+2 column offsets.
        z = a0[:, 0:Wout, :] + a1[:, 1:Wout + 1, :] + a2[:, 2:Wout + 2, :]

        zf = z.reshape(TH * Wout, Cout_p)
        s1_ref[0, 0] = jnp.sum(zf, axis=0, keepdims=True)
        s2_ref[0, 0] = jnp.sum(zf * zf, axis=0, keepdims=True)
        z_ref[0] = z

    return kernel


def _bn_relu_kernel(z_ref, scale_ref, shift_ref, o_ref):
    o_ref[0] = jnp.maximum(z_ref[0] * scale_ref[...] + shift_ref[...], 0.0)


def conv_block(x_nhwc, w_pt, gamma, beta):
    """ConvBlock: Conv2d(3x3, pad=1) + BatchNorm2d (training stats) + ReLU.

    Input may already be channel padded (extra channels are zero or hit zero
    weight rows).  Returns [N, H, W, Cout_p] with zero in the padded channels.
    """
    N, Ho, Wo, Cx = x_nhwc.shape
    Cout, Cin = w_pt.shape[0], w_pt.shape[1]
    Cin_p = _round_up(max(Cx, Cin), LANE)
    Cout_p = _round_up(Cout, LANE)
    Wp = _round_up(Wo + 2, SUBLANE)          # padded width (multiple of 8)
    TH = _largest_divisor_leq(Ho, SUBLANE)   # output rows per grid step
    RB = Ho // TH

    xp = jnp.pad(x_nhwc.astype(jnp.float32),
                 ((0, 0), (1, 1), (1, Wp - Wo - 1), (0, Cin_p - Cx)))

    # PyTorch weight [Cout, Cin, 3, 3] -> [9, Cin_p, Cout_p], tap on leading dim.
    w_k = jnp.zeros((3, 3, Cin_p, Cout_p), jnp.float32)
    w_k = w_k.at[:, :, :Cin, :Cout].set(
        jnp.transpose(w_pt.astype(jnp.float32), (2, 3, 1, 0)))
    w_k = w_k.reshape(9, Cin_p, Cout_p)

    flops = 2 * 9 * N * Ho * Wp * Cin_p * Cout_p
    bytes_accessed = 4 * (N * (Ho + 2) * Wp * Cin_p + 9 * Cin_p * Cout_p
                          + N * Ho * Wo * Cout_p)

    kernel = _make_conv_stats_kernel(TH, Wp, Wo, Cin_p, Cout_p)
    z, ssum, ssq = pl.pallas_call(
        kernel,
        grid=(N, RB),
        in_specs=[
            pl.BlockSpec(memory_space=pl.ANY),                    # halo DMA source
            pl.BlockSpec((9, Cin_p, Cout_p), lambda n, rb: (0, 0, 0)),
        ],
        out_specs=(
            pl.BlockSpec((1, TH, Wo, Cout_p), lambda n, rb: (n, rb, 0, 0)),
            pl.BlockSpec((1, 1, 1, Cout_p), lambda n, rb: (n, rb, 0, 0)),
            pl.BlockSpec((1, 1, 1, Cout_p), lambda n, rb: (n, rb, 0, 0)),
        ),
        out_shape=(
            jax.ShapeDtypeStruct((N, Ho, Wo, Cout_p), jnp.float32),
            jax.ShapeDtypeStruct((N, RB, 1, Cout_p), jnp.float32),
            jax.ShapeDtypeStruct((N, RB, 1, Cout_p), jnp.float32),
        ),
        scratch_shapes=[
            pltpu.VMEM((TH + 2, Wp, Cin_p), jnp.float32),    # halo row buffer
            pltpu.VMEM((3, TH * Wp, Cout_p), jnp.float32),   # per-kw accumulators
        ],
        compiler_params=pltpu.CompilerParams(
            dimension_semantics=("parallel", "parallel"),
            vmem_limit_bytes=VMEM_LIMIT),
        cost_estimate=pl.CostEstimate(flops=flops, transcendentals=0,
                                      bytes_accessed=bytes_accessed),
    )(xp, w_k)

    # Finalize BatchNorm2d training statistics (biased batch variance).
    count = float(N * Ho * Wo)
    s1 = jnp.sum(ssum[:, :, 0, :], axis=(0, 1))
    s2 = jnp.sum(ssq[:, :, 0, :], axis=(0, 1))
    mean = s1 / count
    var = jnp.maximum(s2 / count - mean * mean, 0.0)
    g = jnp.zeros((Cout_p,), jnp.float32).at[:Cout].set(gamma.astype(jnp.float32))
    bt = jnp.zeros((Cout_p,), jnp.float32).at[:Cout].set(beta.astype(jnp.float32))
    scale_v = g * lax.rsqrt(var + BN_EPS)
    shift_v = bt - mean * scale_v
    scale = scale_v.reshape(1, Cout_p)
    shift = shift_v.reshape(1, Cout_p)

    a = pl.pallas_call(
        _bn_relu_kernel,
        grid=(N, RB),
        in_specs=[
            pl.BlockSpec((1, TH, Wo, Cout_p), lambda n, rb: (n, rb, 0, 0)),
            pl.BlockSpec((1, Cout_p), lambda n, rb: (0, 0)),
            pl.BlockSpec((1, Cout_p), lambda n, rb: (0, 0)),
        ],
        out_specs=pl.BlockSpec((1, TH, Wo, Cout_p), lambda n, rb: (n, rb, 0, 0)),
        out_shape=jax.ShapeDtypeStruct((N, Ho, Wo, Cout_p), jnp.float32),
        compiler_params=pltpu.CompilerParams(
            dimension_semantics=("parallel", "parallel"),
            vmem_limit_bytes=VMEM_LIMIT),
    )(z, scale, shift)
    return a


# ---------------------------------------------------------------------------
# Full module forward (wrapper takes / returns NCHW like PyTorch).
# ---------------------------------------------------------------------------
def multi_up_block_forward(up_x_nchw, down_x_nchw, params):
    up = jnp.transpose(up_x_nchw, (0, 2, 3, 1)).astype(jnp.float32)
    down = jnp.transpose(down_x_nchw, (0, 2, 3, 1)).astype(jnp.float32)

    u = conv_transpose_2x2_s2(up, params['up_w'], params['up_b'])
    # torch.cat(dim=1) == NHWC channel concat.  (Folding this concat into the
    # first conv kernel via split-K is a possible further fusion.)
    x = jnp.concatenate([u, down], axis=-1)
    # Conv biases c1_b / c2_b are intentionally unused: training-mode BN
    # cancels per-channel constant biases exactly.
    a1 = conv_block(x, params['c1_w'], params['c1_g'], params['c1_beta'])
    a2 = conv_block(a1, params['c2_w'], params['c2_g'], params['c2_beta'])
    cout = params['c2_b'].shape[0]
    out = a2[:, :, :, :cout]
    return jnp.transpose(out, (0, 3, 1, 2))


# ---------------------------------------------------------------------------
# Pure-JAX NCHW reference (mirrors the PyTorch math directly) for validation.
# ---------------------------------------------------------------------------
def _ref_convblock(x, w, b, g, beta):
    N, C, H, W = x.shape
    Cout = w.shape[0]
    xp = jnp.pad(x, ((0, 0), (0, 0), (1, 1), (1, 1)))
    acc = jnp.zeros((N, Cout, H, W), jnp.float32)
    for kh in range(3):
        for kw in range(3):
            acc = acc + jnp.einsum('nchw,oc->nohw',
                                   xp[:, :, kh:kh + H, kw:kw + W], w[:, :, kh, kw])
    acc = acc + b[None, :, None, None]
    mean = jnp.mean(acc, axis=(0, 2, 3), keepdims=True)
    var = jnp.mean((acc - mean) ** 2, axis=(0, 2, 3), keepdims=True)
    y = (acc - mean) / jnp.sqrt(var + BN_EPS)
    y = y * g[None, :, None, None] + beta[None, :, None, None]
    return jnp.maximum(y, 0.0)


def ref_forward(up_x, down_x, p):
    N, Cin, H, W = up_x.shape
    Cout = p['up_b'].shape[0]
    y = jnp.einsum('nchw,cokl->nohwkl', up_x, p['up_w'])
    y = jnp.transpose(y, (0, 1, 2, 4, 3, 5)).reshape(N, Cout, 2 * H, 2 * W)
    y = y + p['up_b'][None, :, None, None]
    x = jnp.concatenate([y, down_x], axis=1)
    x = _ref_convblock(x, p['c1_w'], p['c1_b'], p['c1_g'], p['c1_beta'])
    x = _ref_convblock(x, p['c2_w'], p['c2_b'], p['c2_g'], p['c2_beta'])
    return x


if __name__ == "__main__":
    key = jax.random.PRNGKey(0)
    in_channels, out_channels = 8, 4
    N, H, W = 2, 16, 16                      # up_x spatial; upsampled to 32x32
    down_C = in_channels - out_channels      # cat([upsampled, down_x]) -> in_channels

    k = jax.random.split(key, 12)
    up_x = jax.random.normal(k[0], (N, in_channels, H, W), jnp.float32)
    down_x = jax.random.normal(k[1], (N, down_C, 2 * H, 2 * W), jnp.float32)

    params = {
        # ConvTranspose2d(in_channels, out_channels, kernel_size=2, stride=2)
        'up_w': 0.1 * jax.random.normal(k[2], (in_channels, out_channels, 2, 2), jnp.float32),
        'up_b': 0.1 * jax.random.normal(k[3], (out_channels,), jnp.float32),
        # ConvBlock(in_channels, out_channels)
        'c1_w': 0.1 * jax.random.normal(k[4], (out_channels, in_channels, 3, 3), jnp.float32),
        'c1_b': 0.1 * jax.random.normal(k[5], (out_channels,), jnp.float32),
        'c1_g': 1.0 + 0.1 * jax.random.normal(k[6], (out_channels,), jnp.float32),
        'c1_beta': 0.1 * jax.random.normal(k[7], (out_channels,), jnp.float32),
        # ConvBlock(out_channels, out_channels)
        'c2_w': 0.1 * jax.random.normal(k[8], (out_channels, out_channels, 3, 3), jnp.float32),
        'c2_b': 0.1 * jax.random.normal(k[9], (out_channels,), jnp.float32),
        'c2_g': 1.0 + 0.1 * jax.random.normal(k[10], (out_channels,), jnp.float32),
        'c2_beta': 0.1 * jax.random.normal(k[11], (out_channels,), jnp.float32),
    }

    fwd = jax.jit(multi_up_block_forward)
    out = jax.block_until_ready(fwd(up_x, down_x, params))
    assert out.shape == (N, out_channels, 2 * H, 2 * W), out.shape

    ref = jax.block_until_ready(ref_forward(up_x, down_x, params))
    np.testing.assert_allclose(np.asarray(out), np.asarray(ref), rtol=2e-3, atol=2e-3)

    print("KERNEL_OK")
</pallas_src>

<mosaic_0001>
module attributes {stable_mosaic.version = 11 : i64} {
  func.func @_deconv_kernel(%arg0: i32, %arg1: memref<8x16x128xf32, #tpu.memory_space<vmem>>, %arg2: memref<2x128x256xf32, #tpu.memory_space<vmem>>, %arg3: memref<1x256xf32, #tpu.memory_space<vmem>>, %arg4: memref<8x2x16x256xf32, #tpu.memory_space<vmem>>) attributes {dimension_semantics = [#tpu.dimension_semantics<parallel>], iteration_bounds = array<i64: 4>, scalar_prefetch = 0 : i64, scratch_operands = 0 : i64, tpu.core_type = #tpu.core_type<tc>, window_params = [{transform_indices = @transform_0, window_bounds = array<i64: 8, 16, 128>}, {pipeline_mode = #tpu.pipeline_mode<synchronous>, transform_indices = @transform_1, window_bounds = array<i64: 2, 128, 256>}, {pipeline_mode = #tpu.pipeline_mode<synchronous>, transform_indices = @transform_2, window_bounds = array<i64: 1, 256>}, {transform_indices = @transform_3, window_bounds = array<i64: 8, 2, 16, 256>}]} {
    %c0 = arith.constant 0 : index
    %c0_0 = arith.constant 0 : index
    %c0_1 = arith.constant 0 : index
    %0 = vector.load %arg1[%c0, %c0_0, %c0_1] : memref<8x16x128xf32, #tpu.memory_space<vmem>>, vector<8x16x128xf32>
    %1 = vector.shape_cast %0 : vector<8x16x128xf32> to vector<128x128xf32>
    %c0_2 = arith.constant 0 : index
    %c0_3 = arith.constant 0 : index
    %c0_4 = arith.constant 0 : index
    %2 = vector.load %arg2[%c0_2, %c0_3, %c0_4] : memref<2x128x256xf32, #tpu.memory_space<vmem>>, vector<1x128x256xf32>
    %3 = vector.shape_cast %2 : vector<1x128x256xf32> to vector<128x256xf32>
    %cst = arith.constant dense<0.000000e+00> : vector<128x256xf32>
    %4 = tpu.matmul %1, %3, %cst {dimension_numbers = #tpu.dot_dimension_numbers<[1], [0], [0], [1], [0, 0, 1, 1], [], []>} : vector<128x128xf32>, vector<128x256xf32>, vector<128x256xf32> -> vector<128x256xf32>
    %c0_5 = arith.constant 0 : index
    %c0_6 = arith.constant 0 : index
    %5 = vector.load %arg3[%c0_5, %c0_6] : memref<1x256xf32, #tpu.memory_space<vmem>>, vector<1x256xf32>
    %6 = vector.broadcast %5 : vector<1x256xf32> to vector<128x256xf32>
    %7 = arith.addf %4, %6 : vector<128x256xf32>
    %8 = vector.shape_cast %7 : vector<128x256xf32> to vector<8x16x256xf32>
    %c0_7 = arith.constant 0 : index
    %c0_8 = arith.constant 0 : index
    %c0_9 = arith.constant 0 : index
    %c0_10 = arith.constant 0 : index
    %9 = vector.load %arg4[%c0_7, %c0_8, %c0_9, %c0_10] : memref<8x2x16x256xf32, #tpu.memory_space<vmem>>, vector<8x1x16x256xf32>
    %10 = vector.shape_cast %9 : vector<8x1x16x256xf32> to vector<8x16x256xf32>
    %11 = vector.shape_cast %8 : vector<8x16x256xf32> to vector<8x1x16x256xf32>
    tpu.vector_store %arg4[%c0_7, %c0_8, %c0_9, %c0_10], %11 {strides = array<i32>} : memref<8x2x16x256xf32, #tpu.memory_space<vmem>>, vector<8x1x16x256xf32>,
    %c1 = arith.constant 1 : index
    %c0_11 = arith.constant 0 : index
    %c0_12 = arith.constant 0 : index
    %12 = vector.load %arg2[%c1, %c0_11, %c0_12] : memref<2x128x256xf32, #tpu.memory_space<vmem>>, vector<1x128x256xf32>
    %13 = vector.shape_cast %12 : vector<1x128x256xf32> to vector<128x256xf32>
    %cst_13 = arith.constant dense<0.000000e+00> : vector<128x256xf32>
    %14 = tpu.matmul %1, %13, %cst_13 {dimension_numbers = #tpu.dot_dimension_numbers<[1], [0], [0], [1], [0, 0, 1, 1], [], []>} : vector<128x128xf32>, vector<128x256xf32>, vector<128x256xf32> -> vector<128x256xf32>
    %c0_14 = arith.constant 0 : index
    %c0_15 = arith.constant 0 : index
    %15 = vector.load %arg3[%c0_14, %c0_15] : memref<1x256xf32, #tpu.memory_space<vmem>>, vector<1x256xf32>
    %16 = vector.broadcast %15 : vector<1x256xf32> to vector<128x256xf32>
    %17 = arith.addf %14, %16 : vector<128x256xf32>
    %18 = vector.shape_cast %17 : vector<128x256xf32> to vector<8x16x256xf32>
    %c0_16 = arith.constant 0 : index
    %c1_17 = arith.constant 1 : index
    %c0_18 = arith.constant 0 : index
    %c0_19 = arith.constant 0 : index
    %19 = vector.load %arg4[%c0_16, %c1_17, %c0_18, %c0_19] : memref<8x2x16x256xf32, #tpu.memory_space<vmem>>, vector<8x1x16x256xf32>
    %20 = vector.shape_cast %19 : vector<8x1x16x256xf32> to vector<8x16x256xf32>
    %21 = vector.shape_cast %18 : vector<8x16x256xf32> to vector<8x1x16x256xf32>
    tpu.vector_store %arg4[%c0_16, %c1_17, %c0_18, %c0_19], %21 {strides = array<i32>} : memref<8x2x16x256xf32, #tpu.memory_space<vmem>>, vector<8x1x16x256xf32>,
    return
  }
  func.func @transform_0(%arg0: i32) -> (i32, i32, i32) {
    %c0_i32 = arith.constant 0 : i32
    %c0_i32_0 = arith.constant 0 : i32
    %c0_i32_1 = arith.constant 0 : i32
    return %arg0, %c0_i32, %c0_i32_0 : i32, i32, i32
  }
  func.func @transform_1(%arg0: i32) -> (i32, i32, i32) {
    %c0_i32 = arith.constant 0 : i32
    %c0_i32_0 = arith.constant 0 : i32
    %c0_i32_1 = arith.constant 0 : i32
    %c0_i32_2 = arith.constant 0 : i32
    return %c0_i32, %c0_i32_0, %c0_i32_1 : i32, i32, i32
  }
  func.func @transform_2(%arg0: i32) -> (i32, i32) {
    %c0_i32 = arith.constant 0 : i32
    %c0_i32_0 = arith.constant 0 : i32
    %c0_i32_1 = arith.constant 0 : i32
    return %c0_i32, %c0_i32_0 : i32, i32
  }
  func.func @transform_3(%arg0: i32) -> (i32, i32, i32, i32) {
    %c0_i32 = arith.constant 0 : i32
    %c0_i32_0 = arith.constant 0 : i32
    %c0_i32_1 = arith.constant 0 : i32
    %c0_i32_2 = arith.constant 0 : i32
    return %arg0, %c0_i32, %c0_i32_0, %c0_i32_1 : i32, i32, i32, i32
  }
}

module attributes {stable_mosaic.version = 11 : i64} {
  func.func @_bn_relu_kernel(%arg0: i32, %arg1: i32, %arg2: memref<1x8x32x128xf32, #tpu.memory_space<vmem>>, %arg3: memref<1x128xf32, #tpu.memory_space<vmem>>, %arg4: memref<1x128xf32, #tpu.memory_space<vmem>>, %arg5: memref<1x8x32x128xf32, #tpu.memory_space<vmem>>) attributes {dimension_semantics = [#tpu.dimension_semantics<parallel>, #tpu.dimension_semantics<parallel>], iteration_bounds = array<i64: 2, 4>, scalar_prefetch = 0 : i64, scratch_operands = 0 : i64, tpu.core_type = #tpu.core_type<tc>, window_params = [{transform_indices = @transform_0, window_bounds = array<i64: 1, 8, 32, 128>}, {pipeline_mode = #tpu.pipeline_mode<synchronous>, transform_indices = @transform_1, window_bounds = array<i64: 1, 128>}, {pipeline_mode = #tpu.pipeline_mode<synchronous>, transform_indices = @transform_2, window_bounds = array<i64: 1, 128>}, {transform_indices = @transform_3, window_bounds = array<i64: 1, 8, 32, 128>}]} {
    %c0 = arith.constant 0 : index
    %c0_0 = arith.constant 0 : index
    %c0_1 = arith.constant 0 : index
    %c0_2 = arith.constant 0 : index
    %0 = vector.load %arg2[%c0, %c0_0, %c0_1, %c0_2] : memref<1x8x32x128xf32, #tpu.memory_space<vmem>>, vector<1x8x32x128xf32>
    %1 = vector.shape_cast %0 : vector<1x8x32x128xf32> to vector<8x32x128xf32>
    %c0_3 = arith.constant 0 : index
    %c0_4 = arith.constant 0 : index
    %2 = vector.load %arg3[%c0_3, %c0_4] : memref<1x128xf32, #tpu.memory_space<vmem>>, vector<1x128xf32>
    %3 = vector.shape_cast %2 : vector<1x128xf32> to vector<1x1x128xf32>
    %4 = vector.broadcast %3 : vector<1x1x128xf32> to vector<8x32x128xf32>
    %5 = arith.mulf %1, %4 : vector<8x32x128xf32>
    %c0_5 = arith.constant 0 : index
    %c0_6 = arith.constant 0 : index
    %6 = vector.load %arg4[%c0_5, %c0_6] : memref<1x128xf32, #tpu.memory_space<vmem>>, vector<1x128xf32>
    %7 = vector.shape_cast %6 : vector<1x128xf32> to vector<1x1x128xf32>
    %8 = vector.broadcast %7 : vector<1x1x128xf32> to vector<8x32x128xf32>
    %9 = arith.addf %5, %8 : vector<8x32x128xf32>
    %cst = arith.constant 0.000000e+00 : f32
    %10 = vector.broadcast %cst : f32 to vector<8x32x128xf32>
    %11 = arith.maximumf %9, %10 : vector<8x32x128xf32>
    %c0_7 = arith.constant 0 : index
    %c0_8 = arith.constant 0 : index
    %c0_9 = arith.constant 0 : index
    %c0_10 = arith.constant 0 : index
    %12 = vector.load %arg5[%c0_7, %c0_8, %c0_9, %c0_10] : memref<1x8x32x128xf32, #tpu.memory_space<vmem>>, vector<1x8x32x128xf32>
    %13 = vector.shape_cast %12 : vector<1x8x32x128xf32> to vector<8x32x128xf32>
    %14 = vector.shape_cast %11 : vector<8x32x128xf32> to vector<1x8x32x128xf32>
    tpu.vector_store %arg5[%c0_7, %c0_8, %c0_9, %c0_10], %14 {strides = array<i32>} : memref<1x8x32x128xf32, #tpu.memory_space<vmem>>, vector<1x8x32x128xf32>,
    return
  }
  func.func @transform_0(%arg0: i32, %arg1: i32) -> (i32, i32, i32, i32) {
    %c0_i32 = arith.constant 0 : i32
    %c0_i32_0 = arith.constant 0 : i32
    %c0_i32_1 = arith.constant 0 : i32
    return %arg0, %arg1, %c0_i32, %c0_i32_0 : i32, i32, i32, i32
  }
  func.func @transform_1(%arg0: i32, %arg1: i32) -> (i32, i32) {
    %c0_i32 = arith.constant 0 : i32
    %c0_i32_0 = arith.constant 0 : i32
    %c0_i32_1 = arith.constant 0 : i32
    return %c0_i32, %c0_i32_0 : i32, i32
  }
  func.func @transform_2(%arg0: i32, %arg1: i32) -> (i32, i32) {
    %c0_i32 = arith.constant 0 : i32
    %c0_i32_0 = arith.constant 0 : i32
    %c0_i32_1 = arith.constant 0 : i32
    return %c0_i32, %c0_i32_0 : i32, i32
  }
  func.func @transform_3(%arg0: i32, %arg1: i32) -> (i32, i32, i32, i32) {
    %c0_i32 = arith.constant 0 : i32
    %c0_i32_0 = arith.constant 0 : i32
    %c0_i32_1 = arith.constant 0 : i32
    return %arg0, %arg1, %c0_i32, %c0_i32_0 : i32, i32, i32, i32
  }
}

module attributes {stable_mosaic.version = 11 : i64} {
  func.func @kernel(%arg0: i32, %arg1: i32, %arg2: memref<2x34x40x128xf32, #tpu.memory_space<any>>, %arg3: memref<9x128x128xf32, #tpu.memory_space<vmem>>, %arg4: memref<1x8x32x128xf32, #tpu.memory_space<vmem>>, %arg5: memref<1x1x1x128xf32, #tpu.memory_space<vmem>>, %arg6: memref<1x1x1x128xf32, #tpu.memory_space<vmem>>, %arg7: memref<10x40x128xf32, #tpu.memory_space<vmem>>, %arg8: memref<3x320x128xf32, #tpu.memory_space<vmem>>) attributes {dimension_semantics = [#tpu.dimension_semantics<parallel>, #tpu.dimension_semantics<parallel>], iteration_bounds = array<i64: 2, 4>, scalar_prefetch = 0 : i64, scratch_operands = 2 : i64, tpu.core_type = #tpu.core_type<tc>, window_params = [{}, {pipeline_mode = #tpu.pipeline_mode<synchronous>, transform_indices = @transform_1, window_bounds = array<i64: 9, 128, 128>}, {transform_indices = @transform_2, window_bounds = array<i64: 1, 8, 32, 128>}, {transform_indices = @transform_3, window_bounds = array<i64: 1, 1, 1, 128>}, {transform_indices = @transform_4, window_bounds = array<i64: 1, 1, 1, 128>}]} {
    %c8_i32 = arith.constant 8 : i32
    %0 = arith.muli %arg1, %c8_i32 : i32
    %1 = tpu.assume_multiple %0, 8 : i32
    "tpu.region"() ({
      %109 = tpu.sem_alloc : memref<!tpu.dma_semaphore, #tpu.memory_space<semaphore_mem>>
      %c0_i32 = arith.constant 0 : i32
      %c0_i32_103 = arith.constant 0 : i32
      %110 = tpu.memref_slice %arg2[%arg0, %1, %c0_i32, %c0_i32_103] : memref<2x34x40x128xf32, #tpu.memory_space<any>> -> memref<1x10x40x128xf32, #tpu.memory_space<any>>
      %111 = tpu.memref_squeeze %110 : memref<1x10x40x128xf32, #tpu.memory_space<any>> -> memref<10x40x128xf32, #tpu.memory_space<any>>
      tpu.enqueue_dma source(%111 : memref<10x40x128xf32, #tpu.memory_space<any>>) target(%arg7 : memref<10x40x128xf32, #tpu.memory_space<vmem>>) target_semaphore(%109 : memref<!tpu.dma_semaphore, #tpu.memory_space<semaphore_mem>>)
      %c0_i32_104 = arith.constant 0 : i32
      %c0_i32_105 = arith.constant 0 : i32
      %112 = tpu.memref_slice %arg2[%arg0, %1, %c0_i32_104, %c0_i32_105] : memref<2x34x40x128xf32, #tpu.memory_space<any>> -> memref<1x10x40x128xf32, #tpu.memory_space<any>>
      %113 = tpu.memref_squeeze %112 : memref<1x10x40x128xf32, #tpu.memory_space<any>> -> memref<10x40x128xf32, #tpu.memory_space<any>>
      tpu.wait_dma2 semaphore(%109 : memref<!tpu.dma_semaphore, #tpu.memory_space<semaphore_mem>>) src(%113 : memref<10x40x128xf32, #tpu.memory_space<any>>) dst(%arg7 : memref<10x40x128xf32, #tpu.memory_space<vmem>>)
      tpu.yield
    }) : () -> ()
    %c0 = arith.constant 0 : index
    %c0_0 = arith.constant 0 : index
    %c0_1 = arith.constant 0 : index
    %2 = vector.load %arg7[%c0, %c0_0, %c0_1] : memref<10x40x128xf32, #tpu.memory_space<vmem>>, vector<8x40x128xf32>
    %3 = vector.shape_cast %2 : vector<8x40x128xf32> to vector<320x128xf32>
    %c0_2 = arith.constant 0 : index
    %c0_3 = arith.constant 0 : index
    %c0_4 = arith.constant 0 : index
    %4 = vector.load %arg3[%c0_2, %c0_3, %c0_4] : memref<9x128x128xf32, #tpu.memory_space<vmem>>, vector<1x128x128xf32>
    %5 = vector.shape_cast %4 : vector<1x128x128xf32> to vector<128x128xf32>
    %cst = arith.constant dense<0.000000e+00> : vector<320x128xf32>
    %6 = tpu.matmul %3, %5, %cst {dimension_numbers = #tpu.dot_dimension_numbers<[1], [0], [0], [1], [0, 0, 1, 1], [], []>} : vector<320x128xf32>, vector<128x128xf32>, vector<320x128xf32> -> vector<320x128xf32>
    %c0_5 = arith.constant 0 : index
    %c0_6 = arith.constant 0 : index
    %c0_7 = arith.constant 0 : index
    %7 = vector.load %arg8[%c0_5, %c0_6, %c0_7] : memref<3x320x128xf32, #tpu.memory_space<vmem>>, vector<1x320x128xf32>
    %8 = vector.shape_cast %7 : vector<1x320x128xf32> to vector<320x128xf32>
    %9 = vector.shape_cast %6 : vector<320x128xf32> to vector<1x320x128xf32>
    tpu.vector_store %arg8[%c0_5, %c0_6, %c0_7], %9 {strides = array<i32>} : memref<3x320x128xf32, #tpu.memory_space<vmem>>, vector<1x320x128xf32>,
    %c1 = arith.constant 1 : index
    %c0_8 = arith.constant 0 : index
    %c0_9 = arith.constant 0 : index
    %10 = vector.load %arg3[%c1, %c0_8, %c0_9] : memref<9x128x128xf32, #tpu.memory_space<vmem>>, vector<1x128x128xf32>
    %11 = vector.shape_cast %10 : vector<1x128x128xf32> to vector<128x128xf32>
    %cst_10 = arith.constant dense<0.000000e+00> : vector<320x128xf32>
    %12 = tpu.matmul %3, %11, %cst_10 {dimension_numbers = #tpu.dot_dimension_numbers<[1], [0], [0], [1], [0, 0, 1, 1], [], []>} : vector<320x128xf32>, vector<128x128xf32>, vector<320x128xf32> -> vector<320x128xf32>
    %c1_11 = arith.constant 1 : index
    %c0_12 = arith.constant 0 : index
    %c0_13 = arith.constant 0 : index
    %13 = vector.load %arg8[%c1_11, %c0_12, %c0_13] : memref<3x320x128xf32, #tpu.memory_space<vmem>>, vector<1x320x128xf32>
    %14 = vector.shape_cast %13 : vector<1x320x128xf32> to vector<320x128xf32>
    %15 = vector.shape_cast %12 : vector<320x128xf32> to vector<1x320x128xf32>
    tpu.vector_store %arg8[%c1_11, %c0_12, %c0_13], %15 {strides = array<i32>} : memref<3x320x128xf32, #tpu.memory_space<vmem>>, vector<1x320x128xf32>,
    %c2 = arith.constant 2 : index
    %c0_14 = arith.constant 0 : index
    %c0_15 = arith.constant 0 : index
    %16 = vector.load %arg3[%c2, %c0_14, %c0_15] : memref<9x128x128xf32, #tpu.memory_space<vmem>>, vector<1x128x128xf32>
    %17 = vector.shape_cast %16 : vector<1x128x128xf32> to vector<128x128xf32>
    %cst_16 = arith.constant dense<0.000000e+00> : vector<320x128xf32>
    %18 = tpu.matmul %3, %17, %cst_16 {dimension_numbers = #tpu.dot_dimension_numbers<[1], [0], [0], [1], [0, 0, 1, 1], [], []>} : vector<320x128xf32>, vector<128x128xf32>, vector<320x128xf32> -> vector<320x128xf32>
    %c2_17 = arith.constant 2 : index
    %c0_18 = arith.constant 0 : index
    %c0_19 = arith.constant 0 : index
    %19 = vector.load %arg8[%c2_17, %c0_18, %c0_19] : memref<3x320x128xf32, #tpu.memory_space<vmem>>, vector<1x320x128xf32>
    %20 = vector.shape_cast %19 : vector<1x320x128xf32> to vector<320x128xf32>
    %21 = vector.shape_cast %18 : vector<320x128xf32> to vector<1x320x128xf32>
    tpu.vector_store %arg8[%c2_17, %c0_18, %c0_19], %21 {strides = array<i32>} : memref<3x320x128xf32, #tpu.memory_space<vmem>>, vector<1x320x128xf32>,
    %c1_20 = arith.constant 1 : index
    %c0_21 = arith.constant 0 : index
    %c0_22 = arith.constant 0 : index
    %22 = vector.load %arg7[%c1_20, %c0_21, %c0_22] : memref<10x40x128xf32, #tpu.memory_space<vmem>>, vector<8x40x128xf32>
    %23 = vector.shape_cast %22 : vector<8x40x128xf32> to vector<320x128xf32>
    %c3 = arith.constant 3 : index
    %c0_23 = arith.constant 0 : index
    %c0_24 = arith.constant 0 : index
    %24 = vector.load %arg3[%c3, %c0_23, %c0_24] : memref<9x128x128xf32, #tpu.memory_space<vmem>>, vector<1x128x128xf32>
    %25 = vector.shape_cast %24 : vector<1x128x128xf32> to vector<128x128xf32>
    %cst_25 = arith.constant dense<0.000000e+00> : vector<320x128xf32>
    %26 = tpu.matmul %23, %25, %cst_25 {dimension_numbers = #tpu.dot_dimension_numbers<[1], [0], [0], [1], [0, 0, 1, 1], [], []>} : vector<320x128xf32>, vector<128x128xf32>, vector<320x128xf32> -> vector<320x128xf32>
    %c0_26 = arith.constant 0 : index
    %c0_27 = arith.constant 0 : index
    %c0_28 = arith.constant 0 : index
    %27 = vector.load %arg8[%c0_26, %c0_27, %c0_28] : memref<3x320x128xf32, #tpu.memory_space<vmem>>, vector<1x320x128xf32>
    %28 = vector.shape_cast %27 : vector<1x320x128xf32> to vector<320x128xf32>
    %29 = arith.addf %28, %26 : vector<320x128xf32>
    %c0_29 = arith.constant 0 : index
    %c0_30 = arith.constant 0 : index
    %c0_31 = arith.constant 0 : index
    %30 = vector.load %arg8[%c0_29, %c0_30, %c0_31] : memref<3x320x128xf32, #tpu.memory_space<vmem>>, vector<1x320x128xf32>
    %31 = vector.shape_cast %30 : vector<1x320x128xf32> to vector<320x128xf32>
    %32 = vector.shape_cast %29 : vector<320x128xf32> to vector<1x320x128xf32>
    tpu.vector_store %arg8[%c0_29, %c0_30, %c0_31], %32 {strides = array<i32>} : memref<3x320x128xf32, #tpu.memory_space<vmem>>, vector<1x320x128xf32>,
    %c4 = arith.constant 4 : index
    %c0_32 = arith.constant 0 : index
    %c0_33 = arith.constant 0 : index
    %33 = vector.load %arg3[%c4, %c0_32, %c0_33] : memref<9x128x128xf32, #tpu.memory_space<vmem>>, vector<1x128x128xf32>
    %34 = vector.shape_cast %33 : vector<1x128x128xf32> to vector<128x128xf32>
    %cst_34 = arith.constant dense<0.000000e+00> : vector<320x128xf32>
    %35 = tpu.matmul %23, %34, %cst_34 {dimension_numbers = #tpu.dot_dimension_numbers<[1], [0], [0], [1], [0, 0, 1, 1], [], []>} : vector<320x128xf32>, vector<128x128xf32>, vector<320x128xf32> -> vector<320x128xf32>
    %c1_35 = arith.constant 1 : index
    %c0_36 = arith.constant 0 : index
    %c0_37 = arith.constant 0 : index
    %36 = vector.load %arg8[%c1_35, %c0_36, %c0_37] : memref<3x320x128xf32, #tpu.memory_space<vmem>>, vector<1x320x128xf32>
    %37 = vector.shape_cast %36 : vector<1x320x128xf32> to vector<320x128xf32>
    %38 = arith.addf %37, %35 : vector<320x128xf32>
    %c1_38 = arith.constant 1 : index
    %c0_39 = arith.constant 0 : index
    %c0_40 = arith.constant 0 : index
    %39 = vector.load %arg8[%c1_38, %c0_39, %c0_40] : memref<3x320x128xf32, #tpu.memory_space<vmem>>, vector<1x320x128xf32>
    %40 = vector.shape_cast %39 : vector<1x320x128xf32> to vector<320x128xf32>
    %41 = vector.shape_cast %38 : vector<320x128xf32> to vector<1x320x128xf32>
    tpu.vector_store %arg8[%c1_38, %c0_39, %c0_40], %41 {strides = array<i32>} : memref<3x320x128xf32, #tpu.memory_space<vmem>>, vector<1x320x128xf32>,
    %c5 = arith.constant 5 : index
    %c0_41 = arith.constant 0 : index
    %c0_42 = arith.constant 0 : index
    %42 = vector.load %arg3[%c5, %c0_41, %c0_42] : memref<9x128x128xf32, #tpu.memory_space<vmem>>, vector<1x128x128xf32>
    %43 = vector.shape_cast %42 : vector<1x128x128xf32> to vector<128x128xf32>
    %cst_43 = arith.constant dense<0.000000e+00> : vector<320x128xf32>
    %44 = tpu.matmul %23, %43, %cst_43 {dimension_numbers = #tpu.dot_dimension_numbers<[1], [0], [0], [1], [0, 0, 1, 1], [], []>} : vector<320x128xf32>, vector<128x128xf32>, vector<320x128xf32> -> vector<320x128xf32>
    %c2_44 = arith.constant 2 : index
    %c0_45 = arith.constant 0 : index
    %c0_46 = arith.constant 0 : index
    %45 = vector.load %arg8[%c2_44, %c0_45, %c0_46] : memref<3x320x128xf32, #tpu.memory_space<vmem>>, vector<1x320x128xf32>
    %46 = vector.shape_cast %45 : vector<1x320x128xf32> to vector<320x128xf32>
    %47 = arith.addf %46, %44 : vector<320x128xf32>
    %c2_47 = arith.constant 2 : index
    %c0_48 = arith.constant 0 : index
    %c0_49 = arith.constant 0 : index
    %48 = vector.load %arg8[%c2_47, %c0_48, %c0_49] : memref<3x320x128xf32, #tpu.memory_space<vmem>>, vector<1x320x128xf32>
    %49 = vector.shape_cast %48 : vector<1x320x128xf32> to vector<320x128xf32>
    %50 = vector.shape_cast %47 : vector<320x128xf32> to vector<1x320x128xf32>
    tpu.vector_store %arg8[%c2_47, %c0_48, %c0_49], %50 {strides = array<i32>} : memref<3x320x128xf32, #tpu.memory_space<vmem>>, vector<1x320x128xf32>,
    %c2_50 = arith.constant 2 : index
    %c0_51 = arith.constant 0 : index
    %c0_52 = arith.constant 0 : index
    %51 = vector.load %arg7[%c2_50, %c0_51, %c0_52] : memref<10x40x128xf32, #tpu.memory_space<vmem>>, vector<8x40x128xf32>
    %52 = vector.shape_cast %51 : vector<8x40x128xf32> to vector<320x128xf32>
    %c6 = arith.constant 6 : index
    %c0_53 = arith.constant 0 : index
    %c0_54 = arith.constant 0 : index
    %53 = vector.load %arg3[%c6, %c0_53, %c0_54] : memref<9x128x128xf32, #tpu.memory_space<vmem>>, vector<1x128x128xf32>
    %54 = vector.shape_cast %53 : vector<1x128x128xf32> to vector<128x128xf32>
    %cst_55 = arith.constant dense<0.000000e+00> : vector<320x128xf32>
    %55 = tpu.matmul %52, %54, %cst_55 {dimension_numbers = #tpu.dot_dimension_numbers<[1], [0], [0], [1], [0, 0, 1, 1], [], []>} : vector<320x128xf32>, vector<128x128xf32>, vector<320x128xf32> -> vector<320x128xf32>
    %c0_56 = arith.constant 0 : index
    %c0_57 = arith.constant 0 : index
    %c0_58 = arith.constant 0 : index
    %56 = vector.load %arg8[%c0_56, %c0_57, %c0_58] : memref<3x320x128xf32, #tpu.memory_space<vmem>>, vector<1x320x128xf32>
    %57 = vector.shape_cast %56 : vector<1x320x128xf32> to vector<320x128xf32>
    %58 = arith.addf %57, %55 : vector<320x128xf32>
    %c0_59 = arith.constant 0 : index
    %c0_60 = arith.constant 0 : index
    %c0_61 = arith.constant 0 : index
    %59 = vector.load %arg8[%c0_59, %c0_60, %c0_61] : memref<3x320x128xf32, #tpu.memory_space<vmem>>, vector<1x320x128xf32>
    %60 = vector.shape_cast %59 : vector<1x320x128xf32> to vector<320x128xf32>
    %61 = vector.shape_cast %58 : vector<320x128xf32> to vector<1x320x128xf32>
    tpu.vector_store %arg8[%c0_59, %c0_60, %c0_61], %61 {strides = array<i32>} : memref<3x320x128xf32, #tpu.memory_space<vmem>>, vector<1x320x128xf32>,
    %c7 = arith.constant 7 : index
    %c0_62 = arith.constant 0 : index
    %c0_63 = arith.constant 0 : index
    %62 = vector.load %arg3[%c7, %c0_62, %c0_63] : memref<9x128x128xf32, #tpu.memory_space<vmem>>, vector<1x128x128xf32>
    %63 = vector.shape_cast %62 : vector<1x128x128xf32> to vector<128x128xf32>
    %cst_64 = arith.constant dense<0.000000e+00> : vector<320x128xf32>
    %64 = tpu.matmul %52, %63, %cst_64 {dimension_numbers = #tpu.dot_dimension_numbers<[1], [0], [0], [1], [0, 0, 1, 1], [], []>} : vector<320x128xf32>, vector<128x128xf32>, vector<320x128xf32> -> vector<320x128xf32>
    %c1_65 = arith.constant 1 : index
    %c0_66 = arith.constant 0 : index
    %c0_67 = arith.constant 0 : index
    %65 = vector.load %arg8[%c1_65, %c0_66, %c0_67] : memref<3x320x128xf32, #tpu.memory_space<vmem>>, vector<1x320x128xf32>
    %66 = vector.shape_cast %65 : vector<1x320x128xf32> to vector<320x128xf32>
    %67 = arith.addf %66, %64 : vector<320x128xf32>
    %c1_68 = arith.constant 1 : index
    %c0_69 = arith.constant 0 : index
    %c0_70 = arith.constant 0 : index
    %68 = vector.load %arg8[%c1_68, %c0_69, %c0_70] : memref<3x320x128xf32, #tpu.memory_space<vmem>>, vector<1x320x128xf32>
    %69 = vector.shape_cast %68 : vector<1x320x128xf32> to vector<320x128xf32>
    %70 = vector.shape_cast %67 : vector<320x128xf32> to vector<1x320x128xf32>
    tpu.vector_store %arg8[%c1_68, %c0_69, %c0_70], %70 {strides = array<i32>} : memref<3x320x128xf32, #tpu.memory_space<vmem>>, vector<1x320x128xf32>,
    %c8 = arith.constant 8 : index
    %c0_71 = arith.constant 0 : index
    %c0_72 = arith.constant 0 : index
    %71 = vector.load %arg3[%c8, %c0_71, %c0_72] : memref<9x128x128xf32, #tpu.memory_space<vmem>>, vector<1x128x128xf32>
    %72 = vector.shape_cast %71 : vector<1x128x128xf32> to vector<128x128xf32>
    %cst_73 = arith.constant dense<0.000000e+00> : vector<320x128xf32>
    %73 = tpu.matmul %52, %72, %cst_73 {dimension_numbers = #tpu.dot_dimension_numbers<[1], [0], [0], [1], [0, 0, 1, 1], [], []>} : vector<320x128xf32>, vector<128x128xf32>, vector<320x128xf32> -> vector<320x128xf32>
    %c2_74 = arith.constant 2 : index
    %c0_75 = arith.constant 0 : index
    %c0_76 = arith.constant 0 : index
    %74 = vector.load %arg8[%c2_74, %c0_75, %c0_76] : memref<3x320x128xf32, #tpu.memory_space<vmem>>, vector<1x320x128xf32>
    %75 = vector.shape_cast %74 : vector<1x320x128xf32> to vector<320x128xf32>
    %76 = arith.addf %75, %73 : vector<320x128xf32>
    %c2_77 = arith.constant 2 : index
    %c0_78 = arith.constant 0 : index
    %c0_79 = arith.constant 0 : index
    %77 = vector.load %arg8[%c2_77, %c0_78, %c0_79] : memref<3x320x128xf32, #tpu.memory_space<vmem>>, vector<1x320x128xf32>
    %78 = vector.shape_cast %77 : vector<1x320x128xf32> to vector<320x128xf32>
    %79 = vector.shape_cast %76 : vector<320x128xf32> to vector<1x320x128xf32>
    tpu.vector_store %arg8[%c2_77, %c0_78, %c0_79], %79 {strides = array<i32>} : memref<3x320x128xf32, #tpu.memory_space<vmem>>, vector<1x320x128xf32>,
    %c0_80 = arith.constant 0 : index
    %c0_81 = arith.constant 0 : index
    %c0_82 = arith.constant 0 : index
    %80 = vector.load %arg8[%c0_80, %c0_81, %c0_82] : memref<3x320x128xf32, #tpu.memory_space<vmem>>, vector<1x320x128xf32>
    %81 = vector.shape_cast %80 : vector<1x320x128xf32> to vector<320x128xf32>
    %82 = vector.shape_cast %81 : vector<320x128xf32> to vector<8x40x128xf32>
    %c1_83 = arith.constant 1 : index
    %c0_84 = arith.constant 0 : index
    %c0_85 = arith.constant 0 : index
    %83 = vector.load %arg8[%c1_83, %c0_84, %c0_85] : memref<3x320x128xf32, #tpu.memory_space<vmem>>, vector<1x320x128xf32>
    %84 = vector.shape_cast %83 : vector<1x320x128xf32> to vector<320x128xf32>
    %85 = vector.shape_cast %84 : vector<320x128xf32> to vector<8x40x128xf32>
    %c2_86 = arith.constant 2 : index
    %c0_87 = arith.constant 0 : index
    %c0_88 = arith.constant 0 : index
    %86 = vector.load %arg8[%c2_86, %c0_87, %c0_88] : memref<3x320x128xf32, #tpu.memory_space<vmem>>, vector<1x320x128xf32>
    %87 = vector.shape_cast %86 : vector<1x320x128xf32> to vector<320x128xf32>
    %88 = vector.shape_cast %87 : vector<320x128xf32> to vector<8x40x128xf32>
    %89 = vector.extract_strided_slice %82 {offsets = [0, 0, 0], sizes = [8, 32, 128], strides = [1, 1, 1]} : vector<8x40x128xf32> to vector<8x32x128xf32>
    %90 = vector.extract_strided_slice %85 {offsets = [0, 1, 0], sizes = [8, 32, 128], strides = [1, 1, 1]} : vector<8x40x128xf32> to vector<8x32x128xf32>
    %91 = arith.addf %89, %90 : vector<8x32x128xf32>
    %92 = vector.extract_strided_slice %88 {offsets = [0, 2, 0], sizes = [8, 32, 128], strides = [1, 1, 1]} : vector<8x40x128xf32> to vector<8x32x128xf32>
    %93 = arith.addf %91, %92 : vector<8x32x128xf32>
    %94 = vector.shape_cast %93 : vector<8x32x128xf32> to vector<256x128xf32>
    %cst_89 = arith.constant dense<0.000000e+00> : vector<128xf32>
    %95 = vector.multi_reduction <add>, %94, %cst_89 [0] : vector<256x128xf32> to vector<128xf32>
    %96 = vector.shape_cast %95 : vector<128xf32> to vector<1x128xf32>
    %c0_90 = arith.constant 0 : index
    %c0_91 = arith.constant 0 : index
    %c0_92 = arith.constant 0 : index
    %c0_93 = arith.constant 0 : index
    %97 = vector.load %arg5[%c0_90, %c0_91, %c0_92, %c0_93] : memref<1x1x1x128xf32, #tpu.memory_space<vmem>>, vector<1x1x1x128xf32>
    %98 = vector.shape_cast %97 : vector<1x1x1x128xf32> to vector<1x128xf32>
    %99 = vector.shape_cast %96 : vector<1x128xf32> to vector<1x1x1x128xf32>
    tpu.vector_store %arg5[%c0_90, %c0_91, %c0_92, %c0_93], %99 {strides = array<i32>} : memref<1x1x1x128xf32, #tpu.memory_space<vmem>>, vector<1x1x1x128xf32>,
    %100 = arith.mulf %94, %94 : vector<256x128xf32>
    %cst_94 = arith.constant dense<0.000000e+00> : vector<128xf32>
    %101 = vector.multi_reduction <add>, %100, %cst_94 [0] : vector<256x128xf32> to vector<128xf32>
    %102 = vector.shape_cast %101 : vector<128xf32> to vector<1x128xf32>
    %c0_95 = arith.constant 0 : index
    %c0_96 = arith.constant 0 : index
    %c0_97 = arith.constant 0 : index
    %c0_98 = arith.constant 0 : index
    %103 = vector.load %arg6[%c0_95, %c0_96, %c0_97, %c0_98] : memref<1x1x1x128xf32, #tpu.memory_space<vmem>>, vector<1x1x1x128xf32>
    %104 = vector.shape_cast %103 : vector<1x1x1x128xf32> to vector<1x128xf32>
    %105 = vector.shape_cast %102 : vector<1x128xf32> to vector<1x1x1x128xf32>
    tpu.vector_store %arg6[%c0_95, %c0_96, %c0_97, %c0_98], %105 {strides = array<i32>} : memref<1x1x1x128xf32, #tpu.memory_space<vmem>>, vector<1x1x1x128xf32>,
    %c0_99 = arith.constant 0 : index
    %c0_100 = arith.constant 0 : index
    %c0_101 = arith.constant 0 : index
    %c0_102 = arith.constant 0 : index
    %106 = vector.load %arg4[%c0_99, %c0_100, %c0_101, %c0_102] : memref<1x8x32x128xf32, #tpu.memory_space<vmem>>, vector<1x8x32x128xf32>
    %107 = vector.shape_cast %106 : vector<1x8x32x128xf32> to vector<8x32x128xf32>
    %108 = vector.shape_cast %93 : vector<8x32x128xf32> to vector<1x8x32x128xf32>
    tpu.vector_store %arg4[%c0_99, %c0_100, %c0_101, %c0_102], %108 {strides = array<i32>} : memref<1x8x32x128xf32, #tpu.memory_space<vmem>>, vector<1x8x32x128xf32>,
    return
  }
  func.func @transform_1(%arg0: i32, %arg1: i32) -> (i32, i32, i32) {
    %c0_i32 = arith.constant 0 : i32
    %c0_i32_0 = arith.constant 0 : i32
    %c0_i32_1 = arith.constant 0 : i32
    %c0_i32_2 = arith.constant 0 : i32
    return %c0_i32, %c0_i32_0, %c0_i32_1 : i32, i32, i32
  }
  func.func @transform_2(%arg0: i32, %arg1: i32) -> (i32, i32, i32, i32) {
    %c0_i32 = arith.constant 0 : i32
    %c0_i32_0 = arith.constant 0 : i32
    %c0_i32_1 = arith.constant 0 : i32
    return %arg0, %arg1, %c0_i32, %c0_i32_0 : i32, i32, i32, i32
  }
  func.func @transform_3(%arg0: i32, %arg1: i32) -> (i32, i32, i32, i32) {
    %c0_i32 = arith.constant 0 : i32
    %c0_i32_0 = arith.constant 0 : i32
    %c0_i32_1 = arith.constant 0 : i32
    return %arg0, %arg1, %c0_i32, %c0_i32_0 : i32, i32, i32, i32
  }
  func.func @transform_4(%arg0: i32, %arg1: i32) -> (i32, i32, i32, i32) {
    %c0_i32 = arith.constant 0 : i32
    %c0_i32_0 = arith.constant 0 : i32
    %c0_i32_1 = arith.constant 0 : i32
    return %arg0, %arg1, %c0_i32, %c0_i32_0 : i32, i32, i32, i32
  }
}

</mosaic_0001>

<llo_original>
// kernel: tile.8
$region0: #{tile.8}
  #allocation0 [shape = 's32[1]{0}', space=sflag, size = 0x4, scoped, tag = 'scoped memory for tile.8']
  %s0 = inlined_call_operand.vmem [shape: f32[128], index: 0, kind: input, shape index: {}]
  %s1 = inlined_call_operand.vmem [shape: f32[2,128], index: 1, kind: output, shape index: {}]
  // Predicated region
  $region2: #{tile.8} parent=0 // pred_check
    _
  $region3: #{tile.8} parent=0 // pred_check_branch
    %3 = sbr.rel (0) target = $region5
  $region4: #{tile.8} parent=0 // pred_region
    _
  $region5: #{tile.8} parent=0 // pred_fallthru
    _
  %v4 = vld [vmem:[%s0] ss:$0 sm:$0xff]
  %5 = vst [vmem:[%s1] sm:$0x3] %v4

// kernel: multi_up_block_forward.5
$region0: #{multi_up_block_forward.5}
  #allocation0 [shape = 'u32[]', space=smem, size = 0x4, offset = 0x4, fixed_abs, tag = 'smem constant byte address 0x4 - core index']
  #allocation1 [shape = 'u32[144,128]{1,0:T(1,128)}', space=vmem, size = 0x12000, scoped, tag = 'internal scratch']
  %s0 = inlined_call_operand.vmem [shape: f32[32,16,128], index: 0, kind: input, shape index: {}]
  %s1 = inlined_call_operand.vmem [shape: f32[2,128,256], index: 1, kind: input, shape index: {}]
  %s2 = inlined_call_operand.vmem [shape: f32[1,256], index: 2, kind: input, shape index: {}]
  %s3 = inlined_call_operand.vmem [shape: f32[32,2,16,256], index: 3, kind: output, shape index: {}]
  %s4 = sld [smem:[#allocation0]]
  $region45: #{multi_up_block_forward.5} parent=0
    _
  %s6 = ssub.s32 1, %s4
  %s7 = scalar_select 0, %s6, %s4
  loop: start=0, step=1, limit=6
  $region2: #{multi_up_block_forward.5} parent=0 // loop_pre_header
    _
  $region3: #{multi_up_block_forward.5} parent=0 // loop_header
    %s9 = sphi 0, %s13
    %p10 = scmp.ge.s32.totalorder %s9, 6
    %s19 = sphi 0, %s21
    %s22 = sphi 0, %s19
    %s23 = sphi 0, %s22
    %s39 = sphi 0, %s23
    %s43 = sphi 0, %s43
    %s45 = sphi 0, %s43
    %s46 = sphi 0, %s45
    %s60 = sphi 0, %s46
    %s64 = sphi 0, %s64
    %s66 = sphi 0, %s64
    %s67 = sphi 0, %s66
    %s81 = sphi 0, %s67
    %s87 = sphi 0, %s89
    %s90 = sphi 0, %s87
    %s91 = sphi 0, %s90
    %s107 = sphi 0, %s91
  $region4: #{multi_up_block_forward.5} parent=0 // loop_header_branch
    %12 = sbr.rel (%p10) target = $region8
  $region5: #{multi_up_block_forward.5} parent=0 // loop_body
    %s14 = ssub.s32 %s9, 1
    %s15 = ssub.s32 %s9, 2
    %s16 = sadd.s32 %s9, 1
    %s17 = ssub.s32 %s9, %s16
    %p18 = scmp.eq.s32.totalorder %s17, 0
    %s20 = sadd.s32 %s19, 1
    %s21 = scalar_select %p18, %s19, %s20
    %p24 = pneg %p18
    %p25 = scmp.eq.s32.totalorder %s9, 3
    %p26 = por %p24, %p25
    %p27 = scmp.ne.s32.totalorder %s19, %s22
    %p28 = scmp.eq.s32.totalorder %s9, 0
    %p29 = por %p27, %p28
    %p30 = scmp.ne.s32.totalorder %s19, %s22
    %p31 = scmp.eq.s32.totalorder %s14, 3
    %p32 = por %p30, %p31
    %p33 = scmp.ne.s32.totalorder %s22, %s23
    %p34 = scmp.eq.s32.totalorder %s14, 0
    %p35 = por %p33, %p34
    %p36 = scmp.ne.s32.totalorder %s22, %s23
    %p37 = scmp.eq.s32.totalorder %s15, 3
    %p38 = por %p36, %p37
    %p40 = scmp.ne.s32.totalorder %s23, %s39
    %p41 = scmp.eq.s32.totalorder %s15, 0
    %p42 = por %p40, %p41
    %s44 = sadd.s32 %s43, 1
    %p47 = scmp.eq.s32.totalorder %s9, 3
    %p48 = scmp.ne.s32.totalorder %s43, %s45
    %p49 = scmp.eq.s32.totalorder %s9, 0
    %p50 = por %p48, %p49
    %p51 = scmp.ne.s32.totalorder %s43, %s45
    %p52 = scmp.eq.s32.totalorder %s14, 3
    %p53 = por %p51, %p52
    %p54 = scmp.ne.s32.totalorder %s45, %s46
    %p55 = scmp.eq.s32.totalorder %s14, 0
    %p56 = por %p54, %p55
    %p57 = scmp.ne.s32.totalorder %s45, %s46
    %p58 = scmp.eq.s32.totalorder %s15, 3
    %p59 = por %p57, %p58
    %p61 = scmp.ne.s32.totalorder %s46, %s60
    %p62 = scmp.eq.s32.totalorder %s15, 0
    %p63 = por %p61, %p62
    %s65 = sadd.s32 %s64, 1
    %p68 = scmp.eq.s32.totalorder %s9, 3
    %p69 = scmp.ne.s32.totalorder %s64, %s66
    %p70 = scmp.eq.s32.totalorder %s9, 0
    %p71 = por %p69, %p70
    %p72 = scmp.ne.s32.totalorder %s64, %s66
    %p73 = scmp.eq.s32.totalorder %s14, 3
    %p74 = por %p72, %p73
    %p75 = scmp.ne.s32.totalorder %s66, %s67
    %p76 = scmp.eq.s32.totalorder %s14, 0
    %p77 = por %p75, %p76
    %p78 = scmp.ne.s32.totalorder %s66, %s67
    %p79 = scmp.eq.s32.totalorder %s15, 3
    %p80 = por %p78, %p79
    %p82 = scmp.ne.s32.totalorder %s67, %s81
    %p83 = scmp.eq.s32.totalorder %s15, 0
    %p84 = por %p82, %p83
    %s85 = ssub.s32 %s9, %s16
    %p86 = scmp.eq.s32.totalorder %s85, 0
    %s88 = sadd.s32 %s87, 1
    %s89 = scalar_select %p86, %s87, %s88
    %p92 = pneg %p86
    %p93 = scmp.eq.s32.totalorder %s9, 3
    %p94 = por %p92, %p93
    %p95 = scmp.ne.s32.totalorder %s87, %s90
    %p96 = scmp.eq.s32.totalorder %s9, 0
    %p97 = por %p95, %p96
    %p98 = scmp.ne.s32.totalorder %s87, %s90
    %p99 = scmp.eq.s32.totalorder %s14, 3
    %p100 = por %p98, %p99
    %p101 = scmp.ne.s32.totalorder %s90, %s91
    %p102 = scmp.eq.s32.totalorder %s14, 0
    %p103 = por %p101, %p102
    %p104 = scmp.ne.s32.totalorder %s90, %s91
    %p105 = scmp.eq.s32.totalorder %s15, 3
    %p106 = por %p104, %p105
    %p108 = scmp.ne.s32.totalorder %s91, %s107
    %p109 = scmp.eq.s32.totalorder %s15, 0
    %p110 = por %p108, %p109
    %p111 = scmp.le.s32.totalorder 1, %s9
    %p112 = scmp.lt.s32.totalorder %s9, 5
    %p113 = pnand %p111, %p112
    %p114 = pneg %p113
    // Predicated region
    $region9: #{multi_up_block_forward.5} parent=5 // pred_check
      _
    $region10: #{multi_up_block_forward.5} parent=5 // pred_check_branch
      %116 = sbr.rel (%p113) target = $region12
    $region11: #{multi_up_block_forward.5} parent=5 // pred_region
      %s117 = ssub.s32 %s9, 1
      // Predicated region
      $region13: #{multi_up_block_forward.5} parent=11 // pred_check
        %p118 = pneg %p56
      $region14: #{multi_up_block_forward.5} parent=11 // pred_check_branch
        %120 = sbr.rel (%p118) target = $region16
      $region15: #{multi_up_block_forward.5} parent=11 // pred_region
        _
      $region16: #{multi_up_block_forward.5} parent=11 // pred_fallthru
        _
      // Predicated region
      $region17: #{multi_up_block_forward.5} parent=11 // pred_check
        %p121 = pneg %p77
      $region18: #{multi_up_block_forward.5} parent=11 // pred_check_branch
        %123 = sbr.rel (%p121) target = $region20
      $region19: #{multi_up_block_forward.5} parent=11 // pred_region
        _
      $region20: #{multi_up_block_forward.5} parent=11 // pred_fallthru
        _
    $region12: #{multi_up_block_forward.5} parent=5 // pred_fallthru
      _
    %p124 = scmp.lt.s32.totalorder %s9, 4
    // Predicated region
    $region21: #{multi_up_block_forward.5} parent=5 // pred_check
      %p125 = pneg %p124
    $region22: #{multi_up_block_forward.5} parent=5 // pred_check_branch
      %127 = sbr.rel (%p125) target = $region24
    $region23: #{multi_up_block_forward.5} parent=5 // pred_region
      // Predicated region
      $region25: #{multi_up_block_forward.5} parent=23 // pred_check
        %p128 = pneg %p29
      $region26: #{multi_up_block_forward.5} parent=23 // pred_check_branch
        %130 = sbr.rel (%p128) target = $region28
      $region27: #{multi_up_block_forward.5} parent=23 // pred_region
        %s131 = smul.u32 8, %s9
        %p132 = scmp.lt.s32.totalorder %s131, 31
        %s133 = scalar_select %p132, %s131, 31
        %s134 = smul.addr %s133, 2
        %s135 = smul.addr %s134, 8
        %s136 = scalar_lea.vmem %s0, %s135
        %s137 = smul.u32 8, %s9
      $region28: #{multi_up_block_forward.5} parent=23 // pred_fallthru
        _
    $region24: #{multi_up_block_forward.5} parent=5 // pred_fallthru
      _
    %p138 = scmp.le.s32.totalorder 1, %s9
    %p139 = scmp.lt.s32.totalorder %s9, 5
    %p140 = pnand %p138, %p139
    %p141 = pneg %p140
    // Predicated region
    $region29: #{multi_up_block_forward.5} parent=5 // pred_check
      _
    $region30: #{multi_up_block_forward.5} parent=5 // pred_check_branch
      %143 = sbr.rel (%p140) target = $region32
    $region31: #{multi_up_block_forward.5} parent=5 // pred_region
      %s144 = ssub.s32 %s9, 1
      %s145 = smul.u32 8, %s14
      %p146 = scmp.lt.s32.totalorder %s145, 31
      %s147 = scalar_select %p146, %s145, 31
      %s148 = smul.addr %s147, 2
      %s149 = smul.addr %s148, 8
      %s150 = scalar_lea.vmem %s0, %s149
      %p151 = pneg %p35
      %p152 = pneg %p32
      %p153 = pneg %p56
      %p154 = pneg %p53
      %p155 = pneg %p77
      %p156 = pneg %p74
      %p157 = pneg %p103
      %p158 = pneg %p100
      %s159 = smul.u32 8, %s14
      %p160 = scmp.lt.s32.totalorder %s159, 31
      %s161 = scalar_select %p160, %s159, 31
      %s162 = smul.addr %s161, 8
      %s163 = smul.addr %s162, 8
      %s164 = scalar_lea.vmem %s3, %s163
      %s165 = smul.u32 8, %s14
      %p166 = scmp.lt.s32.totalorder %s165, 31
      %s167 = scalar_select %p166, %s165, 31
      %s168 = smul.addr %s167, 2
      %s169 = smul.addr %s168, 8
      %s170 = scalar_lea.vmem %s0, %s169
      %s171 = smul.u32 8, %s14
      %s172 = smul.u32 8, %s14
      %p173 = scmp.lt.s32.totalorder %s172, 31
      %s174 = scalar_select %p173, %s172, 31
      %s175 = smul.addr %s174, 8
      %s176 = smul.addr %s175, 8
      %s177 = scalar_lea.vmem %s3, %s176
      %s178 = smul.u32 8, %s14
      %v179 = vld [vmem:[%s170] sm:$0xff]
      %v180 = vld [vmem:[%s170 + $0x8] sm:$0xff]
      %v181 = vld [vmem:[%s170 + $0x10] sm:$0xff]
      %v182 = vld [vmem:[%s170 + $0x18] sm:$0xff]
      %v183 = vld [vmem:[%s170 + $0x20] sm:$0xff]
      %v184 = vld [vmem:[%s170 + $0x28] sm:$0xff]
      %v185 = vld [vmem:[%s170 + $0x30] sm:$0xff]
      %v186 = vld [vmem:[%s170 + $0x38] sm:$0xff]
      %v187 = vld [vmem:[%s170 + $0x40] sm:$0xff]
      %v188 = vld [vmem:[%s170 + $0x48] sm:$0xff]
      %v189 = vld [vmem:[%s170 + $0x50] sm:$0xff]
      %v190 = vld [vmem:[%s170 + $0x58] sm:$0xff]
      %v191 = vld [vmem:[%s170 + $0x60] sm:$0xff]
      %v192 = vld [vmem:[%s170 + $0x68] sm:$0xff]
      %v193 = vld [vmem:[%s170 + $0x70] sm:$0xff]
      %v194 = vld [vmem:[%s170 + $0x78] sm:$0xff]
      %v195 = vld [vmem:[%s1] sm:$0xff]
      %v196 = vld [vmem:[%s1 + $0x8] sm:$0xff]
      %v197 = vld [vmem:[%s1 + $0x10] sm:$0xff]
      %v198 = vld [vmem:[%s1 + $0x18] sm:$0xff]
      %v199 = vld [vmem:[%s1 + $0x20] sm:$0xff]
      %v200 = vld [vmem:[%s1 + $0x28] sm:$0xff]
      %v201 = vld [vmem:[%s1 + $0x30] sm:$0xff]
      %v202 = vld [vmem:[%s1 + $0x38] sm:$0xff]
      %v203 = vld [vmem:[%s1 + $0x40] sm:$0xff]
      %v204 = vld [vmem:[%s1 + $0x48] sm:$0xff]
      %v205 = vld [vmem:[%s1 + $0x50] sm:$0xff]
      %v206 = vld [vmem:[%s1 + $0x58] sm:$0xff]
      %v207 = vld [vmem:[%s1 + $0x60] sm:$0xff]
      %v208 = vld [vmem:[%s1 + $0x68] sm:$0xff]
      %v209 = vld [vmem:[%s1 + $0x70] sm:$0xff]
      %v210 = vld [vmem:[%s1 + $0x78] sm:$0xff]
      %v211 = vld [vmem:[%s1 + $0x80] sm:$0xff]
      %v212 = vld [vmem:[%s1 + $0x88] sm:$0xff]
      %v213 = vld [vmem:[%s1 + $0x90] sm:$0xff]
      %v214 = vld [vmem:[%s1 + $0x98] sm:$0xff]
      %v215 = vld [vmem:[%s1 + $0xa0] sm:$0xff]
      %v216 = vld [vmem:[%s1 + $0xa8] sm:$0xff]
      %v217 = vld [vmem:[%s1 + $0xb0] sm:$0xff]
      %v218 = vld [vmem:[%s1 + $0xb8] sm:$0xff]
      %v219 = vld [vmem:[%s1 + $0xc0] sm:$0xff]
      %v220 = vld [vmem:[%s1 + $0xc8] sm:$0xff]
      %v221 = vld [vmem:[%s1 + $0xd0] sm:$0xff]
      %v222 = vld [vmem:[%s1 + $0xd8] sm:$0xff]
      %v223 = vld [vmem:[%s1 + $0xe0] sm:$0xff]
      %v224 = vld [vmem:[%s1 + $0xe8] sm:$0xff]
      %v225 = vld [vmem:[%s1 + $0xf0] sm:$0xff]
      %v226 = vld [vmem:[%s1 + $0xf8] sm:$0xff]
      %v227 = vld [vmem:[%s2] sm:$0x3]
      %v229 = vlaneseq
      %v230 = vshrl.u32 %v229, 7
      %v231 = vsub.s32 0, %v230
      %v232 = vrot.slane %v227, %v231
      %v233 = vlaneseq
      %v234 = vshrl.u32 %v233, 7
      %v235 = vsub.s32 1, %v234
      %v236 = vrot.slane %v227, %v235
      %239 = vmatprep.subr.mxu0 %v196
      %240 = vmatpush1.msra.mxu0 %v195
      %241 = vmatprep.subr.mxu0 %v198
      %242 = vmatpush1.msra.mxu0 %v197
      %243 = vmatprep.subr.mxu0 %v200
      %244 = vmatpush1.msra.mxu0 %v199
      %245 = vmatprep.subr.mxu0 %v202
      %246 = vmatpush1.msra.mxu0 %v201
      %247 = vmatprep.subr.mxu0 %v204
      %248 = vmatpush1.msra.mxu0 %v203
      %249 = vmatprep.subr.mxu0 %v206
      %250 = vmatpush1.msra.mxu0 %v205
      %251 = vmatprep.subr.mxu0 %v208
      %252 = vmatpush1.msra.mxu0 %v207
      %253 = vmatprep.subr.mxu0 %v210
      %254 = vmatpush1.msra.mxu0 %v209
      %255 = vmatprep.subr.mxu0 %v212
      %256 = vmatpush1.msra.mxu0 %v211
      %257 = vmatprep.subr.mxu0 %v214
      %258 = vmatpush1.msra.mxu0 %v213
      %259 = vmatprep.subr.mxu0 %v216
      %260 = vmatpush1.msra.mxu0 %v215
      %261 = vmatprep.subr.mxu0 %v218
      %262 = vmatpush1.msra.mxu0 %v217
      %263 = vmatprep.subr.mxu0 %v220
      %264 = vmatpush1.msra.mxu0 %v219
      %265 = vmatprep.subr.mxu0 %v222
      %266 = vmatpush1.msra.mxu0 %v221
      %267 = vmatprep.subr.mxu0 %v224
      %268 = vmatpush1.msra.mxu0 %v223
      %269 = vmatprep.subr.mxu0 %v226
      %270 = vmatpush1.msra.mxu0 %v225
      %271 = vmatprep.subr.mxu0 0.0
      %272 = vmatpush1.msra.mxu0 0.0
      %273 = vmatprep.subr.mxu0 0.0
      %274 = vmatpush1.msra.mxu0 0.0
      %275 = vmatprep.subr.mxu0 0.0
      %276 = vmatpush1.msra.mxu0 0.0
      %277 = vmatprep.subr.mxu0 0.0
      %278 = vmatpush1.msra.mxu0 0.0
      %279 = vmatprep.subr.mxu0 0.0
      %280 = vmatpush1.msra.mxu0 0.0
      %281 = vmatprep.subr.mxu0 0.0
      %282 = vmatpush1.msra.mxu0 0.0
      %283 = vmatprep.subr.mxu0 0.0
      %284 = vmatpush1.msra.mxu0 0.0
      %285 = vmatprep.subr.mxu0 0.0
      %286 = vmatpush1.msra.mxu0 0.0
      %287 = vmatprep.subr.mxu0 0.0
      %288 = vmatpush1.msra.mxu0 0.0
      %289 = vmatprep.subr.mxu0 0.0
      %290 = vmatpush1.msra.mxu0 0.0
      %291 = vmatprep.subr.mxu0 0.0
      %292 = vmatpush1.msra.mxu0 0.0
      %293 = vmatprep.subr.mxu0 0.0
      %294 = vmatpush1.msra.mxu0 0.0
      %295 = vmatprep.subr.mxu0 0.0
      %296 = vmatpush1.msra.mxu0 0.0
      %297 = vmatprep.subr.mxu0 0.0
      %298 = vmatpush1.msra.mxu0 0.0
      %299 = vmatprep.subr.mxu0 0.0
      %300 = vmatpush1.msra.mxu0 0.0
      %301 = vmatprep.subr.mxu0 0.0
      %302 = vmatpush1.msra.mxu0 0.0
      %303 = vmatprep.mubr.f32.mxu0 0.0
      %304 = vmatmul.mubr.f32.gmra.mrb[0].mxu0 %v179
      %v305 = vpop.f32.mrb[0].mxu0
      %v306 = vadd.f32 %v232, %v305
      %v307 = vpop.f32.mrb[0].mxu0
      %v308 = vadd.f32 %v236, %v307
      %309 = vmatprep.mubr.f32.mxu0 0.0
      %310 = vmatmul.mubr.f32.gmra.mrb[0].mxu0 %v180
      %v311 = vpop.f32.mrb[0].mxu0
      %v312 = vadd.f32 %v232, %v311
      %v313 = vpop.f32.mrb[0].mxu0
      %v314 = vadd.f32 %v236, %v313
      %315 = vmatprep.mubr.f32.mxu0 0.0
      %316 = vmatmul.mubr.f32.gmra.mrb[0].mxu0 %v181
      %v317 = vpop.f32.mrb[0].mxu0
      %v318 = vadd.f32 %v232, %v317
      %v319 = vpop.f32.mrb[0].mxu0
      %v320 = vadd.f32 %v236, %v319
      %321 = vmatprep.mubr.f32.mxu0 0.0
      %322 = vmatmul.mubr.f32.gmra.mrb[0].mxu0 %v182
      %v323 = vpop.f32.mrb[0].mxu0
      %v324 = vadd.f32 %v232, %v323
      %v325 = vpop.f32.mrb[0].mxu0
      %v326 = vadd.f32 %v236, %v325
      %327 = vmatprep.mubr.f32.mxu0 0.0
      %328 = vmatmul.mubr.f32.gmra.mrb[0].mxu0 %v183
      %v329 = vpop.f32.mrb[0].mxu0
      %v330 = vadd.f32 %v232, %v329
      %v331 = vpop.f32.mrb[0].mxu0
      %v332 = vadd.f32 %v236, %v331
      %333 = vmatprep.mubr.f32.mxu0 0.0
      %334 = vmatmul.mubr.f32.gmra.mrb[0].mxu0 %v184
      %v335 = vpop.f32.mrb[0].mxu0
      %v336 = vadd.f32 %v232, %v335
      %v337 = vpop.f32.mrb[0].mxu0
      %v338 = vadd.f32 %v236, %v337
      %339 = vmatprep.mubr.f32.mxu0 0.0
      %340 = vmatmul.mubr.f32.gmra.mrb[0].mxu0 %v185
      %v341 = vpop.f32.mrb[0].mxu0
      %v342 = vadd.f32 %v232, %v341
      %v343 = vpop.f32.mrb[0].mxu0
      %v344 = vadd.f32 %v236, %v343
      %345 = vmatprep.mubr.f32.mxu0 0.0
      %346 = vmatmul.mubr.f32.gmra.mrb[0].mxu0 %v186
      %v347 = vpop.f32.mrb[0].mxu0
      %v348 = vadd.f32 %v232, %v347
      %v349 = vpop.f32.mrb[0].mxu0
      %v350 = vadd.f32 %v236, %v349
      %351 = vmatprep.mubr.f32.mxu0 0.0
      %352 = vmatmul.mubr.f32.gmra.mrb[0].mxu0 %v187
      %v353 = vpop.f32.mrb[0].mxu0
      %v354 = vadd.f32 %v232, %v353
      %v355 = vpop.f32.mrb[0].mxu0
      %v356 = vadd.f32 %v236, %v355
      %357 = vmatprep.mubr.f32.mxu0 0.0
      %358 = vmatmul.mubr.f32.gmra.mrb[0].mxu0 %v188
      %v359 = vpop.f32.mrb[0].mxu0
      %v360 = vadd.f32 %v232, %v359
      %v361 = vpop.f32.mrb[0].mxu0
      %v362 = vadd.f32 %v236, %v361
      %363 = vmatprep.mubr.f32.mxu0 0.0
      %364 = vmatmul.mubr.f32.gmra.mrb[0].mxu0 %v189
      %v365 = vpop.f32.mrb[0].mxu0
      %v366 = vadd.f32 %v232, %v365
      %v367 = vpop.f32.mrb[0].mxu0
      %v368 = vadd.f32 %v236, %v367
      %369 = vmatprep.mubr.f32.mxu0 0.0
      %370 = vmatmul.mubr.f32.gmra.mrb[0].mxu0 %v190
      %v371 = vpop.f32.mrb[0].mxu0
      %v372 = vadd.f32 %v232, %v371
      %v373 = vpop.f32.mrb[0].mxu0
      %v374 = vadd.f32 %v236, %v373
      %375 = vmatprep.mubr.f32.mxu0 0.0
      %376 = vmatmul.mubr.f32.gmra.mrb[0].mxu0 %v191
      %v377 = vpop.f32.mrb[0].mxu0
      %v378 = vadd.f32 %v232, %v377
      %v379 = vpop.f32.mrb[0].mxu0
      %v380 = vadd.f32 %v236, %v379
      %381 = vmatprep.mubr.f32.mxu0 0.0
      %382 = vmatmul.mubr.f32.gmra.mrb[0].mxu0 %v192
      %v383 = vpop.f32.mrb[0].mxu0
      %v384 = vadd.f32 %v232, %v383
      %v385 = vpop.f32.mrb[0].mxu0
      %v386 = vadd.f32 %v236, %v385
      %387 = vmatprep.mubr.f32.mxu0 0.0
      %388 = vmatmul.mubr.f32.gmra.mrb[0].mxu0 %v193
      %v389 = vpop.f32.mrb[0].mxu0
      %v390 = vadd.f32 %v232, %v389
      %v391 = vpop.f32.mrb[0].mxu0
      %v392 = vadd.f32 %v236, %v391
      %393 = vmatprep.mubr.f32.mxu0 0.0
      %394 = vmatmul.mubr.f32.gmra.mrb[0].mxu0 %v194
      %v395 = vpop.f32.mrb[0].mxu0
      %v396 = vadd.f32 %v232, %v395
      %v397 = vpop.f32.mrb[0].mxu0
      %v398 = vadd.f32 %v236, %v397
      %399 = vdwg.mxu0
      %400 = vst [vmem:[%s177] sm:$0xff] %v306
      %401 = vst [vmem:[%s177 + $0x8] sm:$0xff] %v308
      %402 = vst [vmem:[%s177 + $0x10] sm:$0xff] %v312
      %403 = vst [vmem:[%s177 + $0x18] sm:$0xff] %v314
      %404 = vst [vmem:[%s177 + $0x40] sm:$0xff] %v318
      %405 = vst [vmem:[%s177 + $0x48] sm:$0xff] %v320
      %406 = vst [vmem:[%s177 + $0x50] sm:$0xff] %v324
      %407 = vst [vmem:[%s177 + $0x58] sm:$0xff] %v326
      %408 = vst [vmem:[%s177 + $0x80] sm:$0xff] %v330
      %409 = vst [vmem:[%s177 + $0x88] sm:$0xff] %v332
      %410 = vst [vmem:[%s177 + $0x90] sm:$0xff] %v336
      %411 = vst [vmem:[%s177 + $0x98] sm:$0xff] %v338
      %412 = vst [vmem:[%s177 + $0xc0] sm:$0xff] %v342
      %413 = vst [vmem:[%s177 + $0xc8] sm:$0xff] %v344
      %414 = vst [vmem:[%s177 + $0xd0] sm:$0xff] %v348
      %415 = vst [vmem:[%s177 + $0xd8] sm:$0xff] %v350
      %416 = vst [vmem:[%s177 + $0x100] sm:$0xff] %v354
      %417 = vst [vmem:[%s177 + $0x108] sm:$0xff] %v356
      %418 = vst [vmem:[%s177 + $0x110] sm:$0xff] %v360
      %419 = vst [vmem:[%s177 + $0x118] sm:$0xff] %v362
      %420 = vst [vmem:[%s177 + $0x140] sm:$0xff] %v366
      %421 = vst [vmem:[%s177 + $0x148] sm:$0xff] %v368
      %422 = vst [vmem:[%s177 + $0x150] sm:$0xff] %v372
      %423 = vst [vmem:[%s177 + $0x158] sm:$0xff] %v374
      %424 = vst [vmem:[%s177 + $0x180] sm:$0xff] %v378
      %425 = vst [vmem:[%s177 + $0x188] sm:$0xff] %v380
      %426 = vst [vmem:[%s177 + $0x190] sm:$0xff] %v384
      %427 = vst [vmem:[%s177 + $0x198] sm:$0xff] %v386
      %428 = vst [vmem:[%s177 + $0x1c0] sm:$0xff] %v390
      %429 = vst [vmem:[%s177 + $0x1c8] sm:$0xff] %v392
      %430 = vst [vmem:[%s177 + $0x1d0] sm:$0xff] %v396
      %431 = vst [vmem:[%s177 + $0x1d8] sm:$0xff] %v398
      %s432 = scalar_lea.vmem %s1, 256
      %v433 = vld [vmem:[%s432] sm:$0xff]
      %v434 = vld [vmem:[%s432 + $0x8] sm:$0xff]
      %v435 = vld [vmem:[%s432 + $0x10] sm:$0xff]
      %v436 = vld [vmem:[%s432 + $0x18] sm:$0xff]
      %v437 = vld [vmem:[%s432 + $0x20] sm:$0xff]
      %v438 = vld [vmem:[%s432 + $0x28] sm:$0xff]
      %v439 = vld [vmem:[%s432 + $0x30] sm:$0xff]
      %v440 = vld [vmem:[%s432 + $0x38] sm:$0xff]
      %v441 = vld [vmem:[%s432 + $0x40] sm:$0xff]
      %v442 = vld [vmem:[%s432 + $0x48] sm:$0xff]
      %v443 = vld [vmem:[%s432 + $0x50] sm:$0xff]
      %v444 = vld [vmem:[%s432 + $0x58] sm:$0xff]
      %v445 = vld [vmem:[%s432 + $0x60] sm:$0xff]
      %v446 = vld [vmem:[%s432 + $0x68] sm:$0xff]
      %v447 = vld [vmem:[%s432 + $0x70] sm:$0xff]
      %v448 = vld [vmem:[%s432 + $0x78] sm:$0xff]
      %v449 = vld [vmem:[%s432 + $0x80] sm:$0xff]
      %v450 = vld [vmem:[%s432 + $0x88] sm:$0xff]
      %v451 = vld [vmem:[%s432 + $0x90] sm:$0xff]
      %v452 = vld [vmem:[%s432 + $0x98] sm:$0xff]
      %v453 = vld [vmem:[%s432 + $0xa0] sm:$0xff]
      %v454 = vld [vmem:[%s432 + $0xa8] sm:$0xff]
      %v455 = vld [vmem:[%s432 + $0xb0] sm:$0xff]
      %v456 = vld [vmem:[%s432 + $0xb8] sm:$0xff]
      %v457 = vld [vmem:[%s432 + $0xc0] sm:$0xff]
      %v458 = vld [vmem:[%s432 + $0xc8] sm:$0xff]
      %v459 = vld [vmem:[%s432 + $0xd0] sm:$0xff]
      %v460 = vld [vmem:[%s432 + $0xd8] sm:$0xff]
      %v461 = vld [vmem:[%s432 + $0xe0] sm:$0xff]
      %v462 = vld [vmem:[%s432 + $0xe8] sm:$0xff]
      %v463 = vld [vmem:[%s432 + $0xf0] sm:$0xff]
      %v464 = vld [vmem:[%s432 + $0xf8] sm:$0xff]
      %v465 = vld [vmem:[%s2] sm:$0x3]
      %v467 = vlaneseq
      %v468 = vshrl.u32 %v467, 7
      %v469 = vsub.s32 0, %v468
      %v470 = vrot.slane %v465, %v469
      %v471 = vlaneseq
      %v472 = vshrl.u32 %v471, 7
      %v473 = vsub.s32 1, %v472
      %v474 = vrot.slane %v465, %v473
      %477 = vmatprep.subr.mxu0 %v434
      %478 = vmatpush1.msra.mxu0 %v433
      %479 = vmatprep.subr.mxu0 %v436
      %480 = vmatpush1.msra.mxu0 %v435
      %481 = vmatprep.subr.mxu0 %v438
      %482 = vmatpush1.msra.mxu0 %v437
      %483 = vmatprep.subr.mxu0 %v440
      %484 = vmatpush1.msra.mxu0 %v439
      %485 = vmatprep.subr.mxu0 %v442
      %486 = vmatpush1.msra.mxu0 %v441
      %487 = vmatprep.subr.mxu0 %v444
      %488 = vmatpush1.msra.mxu0 %v443
      %489 = vmatprep.subr.mxu0 %v446
      %490 = vmatpush1.msra.mxu0 %v445
      %491 = vmatprep.subr.mxu0 %v448
      %492 = vmatpush1.msra.mxu0 %v447
      %493 = vmatprep.subr.mxu0 %v450
      %494 = vmatpush1.msra.mxu0 %v449
      %495 = vmatprep.subr.mxu0 %v452
      %496 = vmatpush1.msra.mxu0 %v451
      %497 = vmatprep.subr.mxu0 %v454
      %498 = vmatpush1.msra.mxu0 %v453
      %499 = vmatprep.subr.mxu0 %v456
      %500 = vmatpush1.msra.mxu0 %v455
      %501 = vmatprep.subr.mxu0 %v458
      %502 = vmatpush1.msra.mxu0 %v457
      %503 = vmatprep.subr.mxu0 %v460
      %504 = vmatpush1.msra.mxu0 %v459
      %505 = vmatprep.subr.mxu0 %v462
      %506 = vmatpush1.msra.mxu0 %v461
      %507 = vmatprep.subr.mxu0 %v464
      %508 = vmatpush1.msra.mxu0 %v463
      %509 = vmatprep.subr.mxu0 0.0
      %510 = vmatpush1.msra.mxu0 0.0
      %511 = vmatprep.subr.mxu0 0.0
      %512 = vmatpush1.msra.mxu0 0.0
      %513 = vmatprep.subr.mxu0 0.0
      %514 = vmatpush1.msra.mxu0 0.0
      %515 = vmatprep.subr.mxu0 0.0
      %516 = vmatpush1.msra.mxu0 0.0
      %517 = vmatprep.subr.mxu0 0.0
      %518 = vmatpush1.msra.mxu0 0.0
      %519 = vmatprep.subr.mxu0 0.0
      %520 = vmatpush1.msra.mxu0 0.0
      %521 = vmatprep.subr.mxu0 0.0
      %522 = vmatpush1.msra.mxu0 0.0
      %523 = vmatprep.subr.mxu0 0.0
      %524 = vmatpush1.msra.mxu0 0.0
      %525 = vmatprep.subr.mxu0 0.0
      %526 = vmatpush1.msra.mxu0 0.0
      %527 = vmatprep.subr.mxu0 0.0
      %528 = vmatpush1.msra.mxu0 0.0
      %529 = vmatprep.subr.mxu0 0.0
      %530 = vmatpush1.msra.mxu0 0.0
      %531 = vmatprep.subr.mxu0 0.0
      %532 = vmatpush1.msra.mxu0 0.0
      %533 = vmatprep.subr.mxu0 0.0
      %534 = vmatpush1.msra.mxu0 0.0
      %535 = vmatprep.subr.mxu0 0.0
      %536 = vmatpush1.msra.mxu0 0.0
      %537 = vmatprep.subr.mxu0 0.0
      %538 = vmatpush1.msra.mxu0 0.0
      %539 = vmatprep.subr.mxu0 0.0
      %540 = vmatpush1.msra.mxu0 0.0
      %541 = vmatprep.mubr.f32.mxu0 0.0
      %542 = vmatmul.mubr.f32.gmra.mrb[0].mxu0 %v179
      %v543 = vpop.f32.mrb[0].mxu0
      %v544 = vadd.f32 %v470, %v543
      %v545 = vpop.f32.mrb[0].mxu0
      %v546 = vadd.f32 %v474, %v545
      %547 = vmatprep.mubr.f32.mxu0 0.0
      %548 = vmatmul.mubr.f32.gmra.mrb[0].mxu0 %v180
      %v549 = vpop.f32.mrb[0].mxu0
      %v550 = vadd.f32 %v470, %v549
      %v551 = vpop.f32.mrb[0].mxu0
      %v552 = vadd.f32 %v474, %v551
      %553 = vmatprep.mubr.f32.mxu0 0.0
      %554 = vmatmul.mubr.f32.gmra.mrb[0].mxu0 %v181
      %v555 = vpop.f32.mrb[0].mxu0
      %v556 = vadd.f32 %v470, %v555
      %v557 = vpop.f32.mrb[0].mxu0
      %v558 = vadd.f32 %v474, %v557
      %559 = vmatprep.mubr.f32.mxu0 0.0
      %560 = vmatmul.mubr.f32.gmra.mrb[0].mxu0 %v182
      %v561 = vpop.f32.mrb[0].mxu0
      %v562 = vadd.f32 %v470, %v561
      %v563 = vpop.f32.mrb[0].mxu0
      %v564 = vadd.f32 %v474, %v563
      %565 = vmatprep.mubr.f32.mxu0 0.0
      %566 = vmatmul.mubr.f32.gmra.mrb[0].mxu0 %v183
      %v567 = vpop.f32.mrb[0].mxu0
      %v568 = vadd.f32 %v470, %v567
      %v569 = vpop.f32.mrb[0].mxu0
      %v570 = vadd.f32 %v474, %v569
      %571 = vmatprep.mubr.f32.mxu0 0.0
      %572 = vmatmul.mubr.f32.gmra.mrb[0].mxu0 %v184
      %v573 = vpop.f32.mrb[0].mxu0
      %v574 = vadd.f32 %v470, %v573
      %v575 = vpop.f32.mrb[0].mxu0
      %v576 = vadd.f32 %v474, %v575
      %577 = vmatprep.mubr.f32.mxu0 0.0
      %578 = vmatmul.mubr.f32.gmra.mrb[0].mxu0 %v185
      %v579 = vpop.f32.mrb[0].mxu0
      %v580 = vadd.f32 %v470, %v579
      %v581 = vpop.f32.mrb[0].mxu0
      %v582 = vadd.f32 %v474, %v581
      %583 = vmatprep.mubr.f32.mxu0 0.0
      %584 = vmatmul.mubr.f32.gmra.mrb[0].mxu0 %v186
      %v585 = vpop.f32.mrb[0].mxu0
      %v586 = vadd.f32 %v470, %v585
      %v587 = vpop.f32.mrb[0].mxu0
      %v588 = vadd.f32 %v474, %v587
      %589 = vmatprep.mubr.f32.mxu0 0.0
      %590 = vmatmul.mubr.f32.gmra.mrb[0].mxu0 %v187
      %v591 = vpop.f32.mrb[0].mxu0
      %v592 = vadd.f32 %v470, %v591
      %v593 = vpop.f32.mrb[0].mxu0
      %v594 = vadd.f32 %v474, %v593
      %595 = vmatprep.mubr.f32.mxu0 0.0
      %596 = vmatmul.mubr.f32.gmra.mrb[0].mxu0 %v188
      %v597 = vpop.f32.mrb[0].mxu0
      %v598 = vadd.f32 %v470, %v597
      %v599 = vpop.f32.mrb[0].mxu0
      %v600 = vadd.f32 %v474, %v599
      %601 = vmatprep.mubr.f32.mxu0 0.0
      %602 = vmatmul.mubr.f32.gmra.mrb[0].mxu0 %v189
      %v603 = vpop.f32.mrb[0].mxu0
      %v604 = vadd.f32 %v470, %v603
      %v605 = vpop.f32.mrb[0].mxu0
      %v606 = vadd.f32 %v474, %v605
      %607 = vmatprep.mubr.f32.mxu0 0.0
      %608 = vmatmul.mubr.f32.gmra.mrb[0].mxu0 %v190
      %v609 = vpop.f32.mrb[0].mxu0
      %v610 = vadd.f32 %v470, %v609
      %v611 = vpop.f32.mrb[0].mxu0
      %v612 = vadd.f32 %v474, %v611
      %613 = vmatprep.mubr.f32.mxu0 0.0
      %614 = vmatmul.mubr.f32.gmra.mrb[0].mxu0 %v191
      %v615 = vpop.f32.mrb[0].mxu0
      %v616 = vadd.f32 %v470, %v615
      %v617 = vpop.f32.mrb[0].mxu0
      %v618 = vadd.f32 %v474, %v617
      %619 = vmatprep.mubr.f32.mxu0 0.0
      %620 = vmatmul.mubr.f32.gmra.mrb[0].mxu0 %v192
      %v621 = vpop.f32.mrb[0].mxu0
      %v622 = vadd.f32 %v470, %v621
      %v623 = vpop.f32.mrb[0].mxu0
      %v624 = vadd.f32 %v474, %v623
      %625 = vmatprep.mubr.f32.mxu0 0.0
      %626 = vmatmul.mubr.f32.gmra.mrb[0].mxu0 %v193
      %v627 = vpop.f32.mrb[0].mxu0
      %v628 = vadd.f32 %v470, %v627
      %v629 = vpop.f32.mrb[0].mxu0
      %v630 = vadd.f32 %v474, %v629
      %631 = vmatprep.mubr.f32.mxu0 0.0
      %632 = vmatmul.mubr.f32.gmra.mrb[0].mxu0 %v194
      %v633 = vpop.f32.mrb[0].mxu0
      %v634 = vadd.f32 %v470, %v633
      %v635 = vpop.f32.mrb[0].mxu0
      %v636 = vadd.f32 %v474, %v635
      %637 = vdwg.mxu0
      %s638 = scalar_lea.vmem %s177, 32
      %639 = vst [vmem:[%s638] sm:$0xff] %v544
      %640 = vst [vmem:[%s638 + $0x8] sm:$0xff] %v546
      %641 = vst [vmem:[%s638 + $0x10] sm:$0xff] %v550
      %642 = vst [vmem:[%s638 + $0x18] sm:$0xff] %v552
      %643 = vst [vmem:[%s638 + $0x40] sm:$0xff] %v556
      %644 = vst [vmem:[%s638 + $0x48] sm:$0xff] %v558
      %645 = vst [vmem:[%s638 + $0x50] sm:$0xff] %v562
      %646 = vst [vmem:[%s638 + $0x58] sm:$0xff] %v564
      %647 = vst [vmem:[%s638 + $0x80] sm:$0xff] %v568
      %648 = vst [vmem:[%s638 + $0x88] sm:$0xff] %v570
      %649 = vst [vmem:[%s638 + $0x90] sm:$0xff] %v574
      %650 = vst [vmem:[%s638 + $0x98] sm:$0xff] %v576
      %651 = vst [vmem:[%s638 + $0xc0] sm:$0xff] %v580
      %652 = vst [vmem:[%s638 + $0xc8] sm:$0xff] %v582
      %653 = vst [vmem:[%s638 + $0xd0] sm:$0xff] %v586
      %654 = vst [vmem:[%s638 + $0xd8] sm:$0xff] %v588
      %655 = vst [vmem:[%s638 + $0x100] sm:$0xff] %v592
      %656 = vst [vmem:[%s638 + $0x108] sm:$0xff] %v594
      %657 = vst [vmem:[%s638 + $0x110] sm:$0xff] %v598
      %658 = vst [vmem:[%s638 + $0x118] sm:$0xff] %v600
      %659 = vst [vmem:[%s638 + $0x140] sm:$0xff] %v604
      %660 = vst [vmem:[%s638 + $0x148] sm:$0xff] %v606
      %661 = vst [vmem:[%s638 + $0x150] sm:$0xff] %v610
      %662 = vst [vmem:[%s638 + $0x158] sm:$0xff] %v612
      %663 = vst [vmem:[%s638 + $0x180] sm:$0xff] %v616
      %664 = vst [vmem:[%s638 + $0x188] sm:$0xff] %v618
      %665 = vst [vmem:[%s638 + $0x190] sm:$0xff] %v622
      %666 = vst [vmem:[%s638 + $0x198] sm:$0xff] %v624
      %667 = vst [vmem:[%s638 + $0x1c0] sm:$0xff] %v628
      %668 = vst [vmem:[%s638 + $0x1c8] sm:$0xff] %v630
      %669 = vst [vmem:[%s638 + $0x1d0] sm:$0xff] %v634
      %670 = vst [vmem:[%s638 + $0x1d8] sm:$0xff] %v636
      %s671 = smul.u32 8, %s14
      %p672 = scmp.lt.s32.totalorder %s671, 31
      %s673 = scalar_select %p672, %s671, 31
      %s674 = smul.addr %s673, 8
      %s675 = smul.addr %s674, 8
      %s676 = scalar_lea.vmem %s3, %s675
      // Predicated region
      $region33: #{multi_up_block_forward.5} parent=31 // pred_check
        %p677 = pneg %p100
      $region34: #{multi_up_block_forward.5} parent=31 // pred_check_branch
        %679 = sbr.rel (%p677) target = $region36
      $region35: #{multi_up_block_forward.5} parent=31 // pred_region
        %s680 = smul.u32 8, %s14
      $region36: #{multi_up_block_forward.5} parent=31 // pred_fallthru
        _
    $region32: #{multi_up_block_forward.5} parent=5 // pred_fallthru
      _
    %p681 = scmp.le.s32.totalorder 2, %s9
    // Predicated region
    $region37: #{multi_up_block_forward.5} parent=5 // pred_check
      %p682 = pneg %p681
    $region38: #{multi_up_block_forward.5} parent=5 // pred_check_branch
      %684 = sbr.rel (%p682) target = $region40
    $region39: #{multi_up_block_forward.5} parent=5 // pred_region
      %s685 = ssub.s32 %s9, 2
      // Predicated region
      $region41: #{multi_up_block_forward.5} parent=39 // pred_check
        %p686 = pneg %p106
      $region42: #{multi_up_block_forward.5} parent=39 // pred_check_branch
        %688 = sbr.rel (%p686) target = $region44
      $region43: #{multi_up_block_forward.5} parent=39 // pred_region
        %s689 = smul.u32 8, %s15
        %p690 = scmp.lt.s32.totalorder %s689, 31
        %s691 = scalar_select %p690, %s689, 31
        %s692 = smul.addr %s691, 8
        %s693 = smul.addr %s692, 8
        %s694 = scalar_lea.vmem %s3, %s693
      $region44: #{multi_up_block_forward.5} parent=39 // pred_fallthru
        _
    $region40: #{multi_up_block_forward.5} parent=5 // pred_fallthru
      _
  $region6: #{multi_up_block_forward.5} parent=0 // loop_footer
    %s13 = sadd.s32 1, %s9
  $region7: #{multi_up_block_forward.5} parent=0 // loop_footer_branch
    %8 = sbr.rel target = $region3
  $region8: #{multi_up_block_forward.5} parent=0 // loop_exit
    _

// kernel: multi_up_block_forward.7
$region0: #{multi_up_block_forward.7}
  #allocation0 [shape = 'u32[]', space=smem, size = 0x4, offset = 0x4, fixed_abs, tag = 'smem constant byte address 0x4 - core index']
  #allocation1 [shape = 'u32[144,128]{1,0:T(1,128)}', space=vmem, size = 0x12000, scoped, tag = 'internal scratch']
  %s0 = inlined_call_operand.vmem [shape: f32[2,32,32,128], index: 0, kind: input, shape index: {}]
  %s1 = inlined_call_operand.vmem [shape: f32[1,128], index: 1, kind: input, shape index: {}]
  %s2 = inlined_call_operand.vmem [shape: f32[1,128], index: 2, kind: input, shape index: {}]
  %s3 = inlined_call_operand.vmem [shape: f32[2,32,32,128], index: 3, kind: output, shape index: {}]
  %s4 = sld [smem:[#allocation0]]
  $region45: #{multi_up_block_forward.7} parent=0
    _
  %s6 = ssub.s32 1, %s4
  %s7 = scalar_select 0, %s6, %s4
  loop: start=0, step=1, limit=10
  $region2: #{multi_up_block_forward.7} parent=0 // loop_pre_header
    _
  $region3: #{multi_up_block_forward.7} parent=0 // loop_header
    %s9 = sphi 0, %s13
    %p10 = scmp.ge.s32.totalorder %s9, 10
    %s16 = sphi 0, %s28
    %s17 = sphi 0, %s24
    %s18 = sphi 0, %s16
    %s19 = sphi 0, %s17
    %s20 = sphi 0, %s18
    %s21 = sphi 0, %s19
    %s33 = sphi 0, %s35
    %s36 = sphi 0, %s33
    %s37 = sphi 0, %s36
    %s53 = sphi 0, %s37
    %s57 = sphi 0, %s57
    %s59 = sphi 0, %s57
    %s60 = sphi 0, %s59
    %s74 = sphi 0, %s60
    %s78 = sphi 0, %s78
    %s80 = sphi 0, %s78
    %s81 = sphi 0, %s80
    %s95 = sphi 0, %s81
    %s103 = sphi 0, %s105
    %s106 = sphi 0, %s103
    %s107 = sphi 0, %s106
    %s123 = sphi 0, %s107
  $region4: #{multi_up_block_forward.7} parent=0 // loop_header_branch
    %12 = sbr.rel (%p10) target = $region8
  $region5: #{multi_up_block_forward.7} parent=0 // loop_body
    %s14 = ssub.s32 %s9, 1
    %s15 = ssub.s32 %s9, 2
    %s22 = sadd.s32 1, %s17
    %p23 = scmp.ge.s32.totalorder %s22, 4
    %s24 = scalar_select %p23, 0, %s22
    %s25 = sadd.s32 1, %s16
    %s26 = scalar_select %p23, %s25, %s16
    %p27 = scmp.ge.s32.totalorder %s26, 2
    %s28 = scalar_select %p27, 0, %s26
    %s29 = ssub.s32 %s16, %s28
    %s30 = ssub.s32 %s17, %s24
    %s31 = sor.u32 %s29, %s30
    %p32 = scmp.eq.s32.totalorder %s31, 0
    %s34 = sadd.s32 %s33, 1
    %s35 = scalar_select %p32, %s33, %s34
    %p38 = pneg %p32
    %p39 = scmp.eq.s32.totalorder %s9, 7
    %p40 = por %p38, %p39
    %p41 = scmp.ne.s32.totalorder %s33, %s36
    %p42 = scmp.eq.s32.totalorder %s9, 0
    %p43 = por %p41, %p42
    %p44 = scmp.ne.s32.totalorder %s33, %s36
    %p45 = scmp.eq.s32.totalorder %s14, 7
    %p46 = por %p44, %p45
    %p47 = scmp.ne.s32.totalorder %s36, %s37
    %p48 = scmp.eq.s32.totalorder %s14, 0
    %p49 = por %p47, %p48
    %p50 = scmp.ne.s32.totalorder %s36, %s37
    %p51 = scmp.eq.s32.totalorder %s15, 7
    %p52 = por %p50, %p51
    %p54 = scmp.ne.s32.totalorder %s37, %s53
    %p55 = scmp.eq.s32.totalorder %s15, 0
    %p56 = por %p54, %p55
    %s58 = sadd.s32 %s57, 1
    %p61 = scmp.eq.s32.totalorder %s9, 7
    %p62 = scmp.ne.s32.totalorder %s57, %s59
    %p63 = scmp.eq.s32.totalorder %s9, 0
    %p64 = por %p62, %p63
    %p65 = scmp.ne.s32.totalorder %s57, %s59
    %p66 = scmp.eq.s32.totalorder %s14, 7
    %p67 = por %p65, %p66
    %p68 = scmp.ne.s32.totalorder %s59, %s60
    %p69 = scmp.eq.s32.totalorder %s14, 0
    %p70 = por %p68, %p69
    %p71 = scmp.ne.s32.totalorder %s59, %s60
    %p72 = scmp.eq.s32.totalorder %s15, 7
    %p73 = por %p71, %p72
    %p75 = scmp.ne.s32.totalorder %s60, %s74
    %p76 = scmp.eq.s32.totalorder %s15, 0
    %p77 = por %p75, %p76
    %s79 = sadd.s32 %s78, 1
    %p82 = scmp.eq.s32.totalorder %s9, 7
    %p83 = scmp.ne.s32.totalorder %s78, %s80
    %p84 = scmp.eq.s32.totalorder %s9, 0
    %p85 = por %p83, %p84
    %p86 = scmp.ne.s32.totalorder %s78, %s80
    %p87 = scmp.eq.s32.totalorder %s14, 7
    %p88 = por %p86, %p87
    %p89 = scmp.ne.s32.totalorder %s80, %s81
    %p90 = scmp.eq.s32.totalorder %s14, 0
    %p91 = por %p89, %p90
    %p92 = scmp.ne.s32.totalorder %s80, %s81
    %p93 = scmp.eq.s32.totalorder %s15, 7
    %p94 = por %p92, %p93
    %p96 = scmp.ne.s32.totalorder %s81, %s95
    %p97 = scmp.eq.s32.totalorder %s15, 0
    %p98 = por %p96, %p97
    %s99 = ssub.s32 %s16, %s28
    %s100 = ssub.s32 %s17, %s24
    %s101 = sor.u32 %s99, %s100
    %p102 = scmp.eq.s32.totalorder %s101, 0
    %s104 = sadd.s32 %s103, 1
    %s105 = scalar_select %p102, %s103, %s104
    %p108 = pneg %p102
    %p109 = scmp.eq.s32.totalorder %s9, 7
    %p110 = por %p108, %p109
    %p111 = scmp.ne.s32.totalorder %s103, %s106
    %p112 = scmp.eq.s32.totalorder %s9, 0
    %p113 = por %p111, %p112
    %p114 = scmp.ne.s32.totalorder %s103, %s106
    %p115 = scmp.eq.s32.totalorder %s14, 7
    %p116 = por %p114, %p115
    %p117 = scmp.ne.s32.totalorder %s106, %s107
    %p118 = scmp.eq.s32.totalorder %s14, 0
    %p119 = por %p117, %p118
    %p120 = scmp.ne.s32.totalorder %s106, %s107
    %p121 = scmp.eq.s32.totalorder %s15, 7
    %p122 = por %p120, %p121
    %p124 = scmp.ne.s32.totalorder %s107, %s123
    %p125 = scmp.eq.s32.totalorder %s15, 0
    %p126 = por %p124, %p125
    %p127 = scmp.le.s32.totalorder 1, %s9
    %p128 = scmp.lt.s32.totalorder %s9, 9
    %p129 = pnand %p127, %p128
    %p130 = pneg %p129
    // Predicated region
    $region9: #{multi_up_block_forward.7} parent=5 // pred_check
      _
    $region10: #{multi_up_block_forward.7} parent=5 // pred_check_branch
      %132 = sbr.rel (%p129) target = $region12
    $region11: #{multi_up_block_forward.7} parent=5 // pred_region
      %s133 = ssub.s32 %s9, 1
      // Predicated region
      $region13: #{multi_up_block_forward.7} parent=11 // pred_check
        %p134 = pneg %p70
      $region14: #{multi_up_block_forward.7} parent=11 // pred_check_branch
        %136 = sbr.rel (%p134) target = $region16
      $region15: #{multi_up_block_forward.7} parent=11 // pred_region
        _
      $region16: #{multi_up_block_forward.7} parent=11 // pred_fallthru
        _
      // Predicated region
      $region17: #{multi_up_block_forward.7} parent=11 // pred_check
        %p137 = pneg %p91
      $region18: #{multi_up_block_forward.7} parent=11 // pred_check_branch
        %139 = sbr.rel (%p137) target = $region20
      $region19: #{multi_up_block_forward.7} parent=11 // pred_region
        _
      $region20: #{multi_up_block_forward.7} parent=11 // pred_fallthru
        _
    $region12: #{multi_up_block_forward.7} parent=5 // pred_fallthru
      _
    %p140 = scmp.lt.s32.totalorder %s9, 8
    // Predicated region
    $region21: #{multi_up_block_forward.7} parent=5 // pred_check
      %p141 = pneg %p140
    $region22: #{multi_up_block_forward.7} parent=5 // pred_check_branch
      %143 = sbr.rel (%p141) target = $region24
    $region23: #{multi_up_block_forward.7} parent=5 // pred_region
      // Predicated region
      $region25: #{multi_up_block_forward.7} parent=23 // pred_check
        %p144 = pneg %p43
      $region26: #{multi_up_block_forward.7} parent=23 // pred_check_branch
        %146 = sbr.rel (%p144) target = $region28
      $region27: #{multi_up_block_forward.7} parent=23 // pred_region
        %s147 = smul.u32 8, %s17
        %p148 = scmp.lt.s32.totalorder %s16, 1
        %s149 = scalar_select %p148, %s16, 1
        %p150 = scmp.lt.s32.totalorder %s147, 31
        %s151 = scalar_select %p150, %s147, 31
        %s152 = smul.addr %s151, 4
        %s153 = smul.addr %s149, 128
        %s154 = sadd.s32 %s152, %s153
        %s155 = smul.addr %s154, 8
        %s156 = scalar_lea.vmem %s0, %s155
        %s157 = smul.u32 8, %s17
      $region28: #{multi_up_block_forward.7} parent=23 // pred_fallthru
        _
    $region24: #{multi_up_block_forward.7} parent=5 // pred_fallthru
      _
    %p158 = scmp.le.s32.totalorder 1, %s9
    %p159 = scmp.lt.s32.totalorder %s9, 9
    %p160 = pnand %p158, %p159
    %p161 = pneg %p160
    // Predicated region
    $region29: #{multi_up_block_forward.7} parent=5 // pred_check
      _
    $region30: #{multi_up_block_forward.7} parent=5 // pred_check_branch
      %163 = sbr.rel (%p160) target = $region32
    $region31: #{multi_up_block_forward.7} parent=5 // pred_region
      %s164 = ssub.s32 %s9, 1
      %s165 = smul.u32 8, %s19
      %p166 = scmp.lt.s32.totalorder %s18, 1
      %s167 = scalar_select %p166, %s18, 1
      %p168 = scmp.lt.s32.totalorder %s165, 31
      %s169 = scalar_select %p168, %s165, 31
      %s170 = smul.addr %s169, 4
      %s171 = smul.addr %s167, 128
      %s172 = sadd.s32 %s170, %s171
      %s173 = smul.addr %s172, 8
      %s174 = scalar_lea.vmem %s0, %s173
      %p175 = pneg %p49
      %p176 = pneg %p46
      %p177 = pneg %p70
      %p178 = pneg %p67
      %p179 = pneg %p91
      %p180 = pneg %p88
      %p181 = pneg %p119
      %p182 = pneg %p116
      %s183 = smul.u32 8, %s19
      %p184 = scmp.lt.s32.totalorder %s18, 1
      %s185 = scalar_select %p184, %s18, 1
      %p186 = scmp.lt.s32.totalorder %s183, 31
      %s187 = scalar_select %p186, %s183, 31
      %s188 = smul.addr %s187, 4
      %s189 = smul.addr %s185, 128
      %s190 = sadd.s32 %s188, %s189
      %s191 = smul.addr %s190, 8
      %s192 = scalar_lea.vmem %s3, %s191
      %s193 = smul.u32 8, %s19
      %p194 = scmp.lt.s32.totalorder %s18, 1
      %s195 = scalar_select %p194, %s18, 1
      %p196 = scmp.lt.s32.totalorder %s193, 31
      %s197 = scalar_select %p196, %s193, 31
      %s198 = smul.addr %s197, 4
      %s199 = smul.addr %s195, 128
      %s200 = sadd.s32 %s198, %s199
      %s201 = smul.addr %s200, 8
      %s202 = scalar_lea.vmem %s0, %s201
      %s203 = smul.u32 8, %s19
      %s204 = smul.u32 8, %s19
      %p205 = scmp.lt.s32.totalorder %s18, 1
      %s206 = scalar_select %p205, %s18, 1
      %p207 = scmp.lt.s32.totalorder %s204, 31
      %s208 = scalar_select %p207, %s204, 31
      %s209 = smul.addr %s208, 4
      %s210 = smul.addr %s206, 128
      %s211 = sadd.s32 %s209, %s210
      %s212 = smul.addr %s211, 8
      %s213 = scalar_lea.vmem %s3, %s212
      %s214 = smul.u32 8, %s19
      %v215 = vld [vmem:[%s202] sm:$0xff]
      %v216 = vld [vmem:[%s202 + $0x8] sm:$0xff]
      %v217 = vld [vmem:[%s202 + $0x10] sm:$0xff]
      %v218 = vld [vmem:[%s202 + $0x18] sm:$0xff]
      %v219 = vld [vmem:[%s202 + $0x20] sm:$0xff]
      %v220 = vld [vmem:[%s202 + $0x28] sm:$0xff]
      %v221 = vld [vmem:[%s202 + $0x30] sm:$0xff]
      %v222 = vld [vmem:[%s202 + $0x38] sm:$0xff]
      %v223 = vld [vmem:[%s202 + $0x40] sm:$0xff]
      %v224 = vld [vmem:[%s202 + $0x48] sm:$0xff]
      %v225 = vld [vmem:[%s202 + $0x50] sm:$0xff]
      %v226 = vld [vmem:[%s202 + $0x58] sm:$0xff]
      %v227 = vld [vmem:[%s202 + $0x60] sm:$0xff]
      %v228 = vld [vmem:[%s202 + $0x68] sm:$0xff]
      %v229 = vld [vmem:[%s202 + $0x70] sm:$0xff]
      %v230 = vld [vmem:[%s202 + $0x78] sm:$0xff]
      %v231 = vld [vmem:[%s202 + $0x80] sm:$0xff]
      %v232 = vld [vmem:[%s202 + $0x88] sm:$0xff]
      %v233 = vld [vmem:[%s202 + $0x90] sm:$0xff]
      %v234 = vld [vmem:[%s202 + $0x98] sm:$0xff]
      %v235 = vld [vmem:[%s202 + $0xa0] sm:$0xff]
      %v236 = vld [vmem:[%s202 + $0xa8] sm:$0xff]
      %v237 = vld [vmem:[%s202 + $0xb0] sm:$0xff]
      %v238 = vld [vmem:[%s202 + $0xb8] sm:$0xff]
      %v239 = vld [vmem:[%s202 + $0xc0] sm:$0xff]
      %v240 = vld [vmem:[%s202 + $0xc8] sm:$0xff]
      %v241 = vld [vmem:[%s202 + $0xd0] sm:$0xff]
      %v242 = vld [vmem:[%s202 + $0xd8] sm:$0xff]
      %v243 = vld [vmem:[%s202 + $0xe0] sm:$0xff]
      %v244 = vld [vmem:[%s202 + $0xe8] sm:$0xff]
      %v245 = vld [vmem:[%s202 + $0xf0] sm:$0xff]
      %v246 = vld [vmem:[%s202 + $0xf8] sm:$0xff]
      %v247 = vld [vmem:[%s1] sm:$0x1]
      %v249 = vlaneseq
      %v250 = vshrl.u32 %v249, 7
      %v251 = vsub.s32 0, %v250
      %v252 = vrot.slane %v247, %v251
      %v254 = vmul.f32 %v215, %v252
      %v255 = vmul.f32 %v216, %v252
      %v256 = vmul.f32 %v217, %v252
      %v257 = vmul.f32 %v218, %v252
      %v258 = vmul.f32 %v219, %v252
      %v259 = vmul.f32 %v220, %v252
      %v260 = vmul.f32 %v221, %v252
      %v261 = vmul.f32 %v222, %v252
      %v262 = vmul.f32 %v223, %v252
      %v263 = vmul.f32 %v224, %v252
      %v264 = vmul.f32 %v225, %v252
      %v265 = vmul.f32 %v226, %v252
      %v266 = vmul.f32 %v227, %v252
      %v267 = vmul.f32 %v228, %v252
      %v268 = vmul.f32 %v229, %v252
      %v269 = vmul.f32 %v230, %v252
      %v270 = vmul.f32 %v231, %v252
      %v271 = vmul.f32 %v232, %v252
      %v272 = vmul.f32 %v233, %v252
      %v273 = vmul.f32 %v234, %v252
      %v274 = vmul.f32 %v235, %v252
      %v275 = vmul.f32 %v236, %v252
      %v276 = vmul.f32 %v237, %v252
      %v277 = vmul.f32 %v238, %v252
      %v278 = vmul.f32 %v239, %v252
      %v279 = vmul.f32 %v240, %v252
      %v280 = vmul.f32 %v241, %v252
      %v281 = vmul.f32 %v242, %v252
      %v282 = vmul.f32 %v243, %v252
      %v283 = vmul.f32 %v244, %v252
      %v284 = vmul.f32 %v245, %v252
      %v285 = vmul.f32 %v246, %v252
      %v286 = vld [vmem:[%s2] sm:$0x1]
      %v288 = vlaneseq
      %v289 = vshrl.u32 %v288, 7
      %v290 = vsub.s32 0, %v289
      %v291 = vrot.slane %v286, %v290
      %v293 = vadd.f32 %v254, %v291
      %v294 = vadd.f32 %v255, %v291
      %v295 = vadd.f32 %v256, %v291
      %v296 = vadd.f32 %v257, %v291
      %v297 = vadd.f32 %v258, %v291
      %v298 = vadd.f32 %v259, %v291
      %v299 = vadd.f32 %v260, %v291
      %v300 = vadd.f32 %v261, %v291
      %v301 = vadd.f32 %v262, %v291
      %v302 = vadd.f32 %v263, %v291
      %v303 = vadd.f32 %v264, %v291
      %v304 = vadd.f32 %v265, %v291
      %v305 = vadd.f32 %v266, %v291
      %v306 = vadd.f32 %v267, %v291
      %v307 = vadd.f32 %v268, %v291
      %v308 = vadd.f32 %v269, %v291
      %v309 = vadd.f32 %v270, %v291
      %v310 = vadd.f32 %v271, %v291
      %v311 = vadd.f32 %v272, %v291
      %v312 = vadd.f32 %v273, %v291
      %v313 = vadd.f32 %v274, %v291
      %v314 = vadd.f32 %v275, %v291
      %v315 = vadd.f32 %v276, %v291
      %v316 = vadd.f32 %v277, %v291
      %v317 = vadd.f32 %v278, %v291
      %v318 = vadd.f32 %v279, %v291
      %v319 = vadd.f32 %v280, %v291
      %v320 = vadd.f32 %v281, %v291
      %v321 = vadd.f32 %v282, %v291
      %v322 = vadd.f32 %v283, %v291
      %v323 = vadd.f32 %v284, %v291
      %v324 = vadd.f32 %v285, %v291
      %v325 = vmax.f32 %v293, 0.0
      %v326 = vmax.f32 %v294, 0.0
      %v327 = vmax.f32 %v295, 0.0
      %v328 = vmax.f32 %v296, 0.0
      %v329 = vmax.f32 %v297, 0.0
      %v330 = vmax.f32 %v298, 0.0
      %v331 = vmax.f32 %v299, 0.0
      %v332 = vmax.f32 %v300, 0.0
      %v333 = vmax.f32 %v301, 0.0
      %v334 = vmax.f32 %v302, 0.0
      %v335 = vmax.f32 %v303, 0.0
      %v336 = vmax.f32 %v304, 0.0
      %v337 = vmax.f32 %v305, 0.0
      %v338 = vmax.f32 %v306, 0.0
      %v339 = vmax.f32 %v307, 0.0
      %v340 = vmax.f32 %v308, 0.0
      %v341 = vmax.f32 %v309, 0.0
      %v342 = vmax.f32 %v310, 0.0
      %v343 = vmax.f32 %v311, 0.0
      %v344 = vmax.f32 %v312, 0.0
      %v345 = vmax.f32 %v313, 0.0
      %v346 = vmax.f32 %v314, 0.0
      %v347 = vmax.f32 %v315, 0.0
      %v348 = vmax.f32 %v316, 0.0
      %v349 = vmax.f32 %v317, 0.0
      %v350 = vmax.f32 %v318, 0.0
      %v351 = vmax.f32 %v319, 0.0
      %v352 = vmax.f32 %v320, 0.0
      %v353 = vmax.f32 %v321, 0.0
      %v354 = vmax.f32 %v322, 0.0
      %v355 = vmax.f32 %v323, 0.0
      %v356 = vmax.f32 %v324, 0.0
      %357 = vst [vmem:[%s213] sm:$0xff] %v325
      %358 = vst [vmem:[%s213 + $0x8] sm:$0xff] %v326
      %359 = vst [vmem:[%s213 + $0x10] sm:$0xff] %v327
      %360 = vst [vmem:[%s213 + $0x18] sm:$0xff] %v328
      %361 = vst [vmem:[%s213 + $0x20] sm:$0xff] %v329
      %362 = vst [vmem:[%s213 + $0x28] sm:$0xff] %v330
      %363 = vst [vmem:[%s213 + $0x30] sm:$0xff] %v331
      %364 = vst [vmem:[%s213 + $0x38] sm:$0xff] %v332
      %365 = vst [vmem:[%s213 + $0x40] sm:$0xff] %v333
      %366 = vst [vmem:[%s213 + $0x48] sm:$0xff] %v334
      %367 = vst [vmem:[%s213 + $0x50] sm:$0xff] %v335
      %368 = vst [vmem:[%s213 + $0x58] sm:$0xff] %v336
      %369 = vst [vmem:[%s213 + $0x60] sm:$0xff] %v337
      %370 = vst [vmem:[%s213 + $0x68] sm:$0xff] %v338
      %371 = vst [vmem:[%s213 + $0x70] sm:$0xff] %v339
      %372 = vst [vmem:[%s213 + $0x78] sm:$0xff] %v340
      %373 = vst [vmem:[%s213 + $0x80] sm:$0xff] %v341
      %374 = vst [vmem:[%s213 + $0x88] sm:$0xff] %v342
      %375 = vst [vmem:[%s213 + $0x90] sm:$0xff] %v343
      %376 = vst [vmem:[%s213 + $0x98] sm:$0xff] %v344
      %377 = vst [vmem:[%s213 + $0xa0] sm:$0xff] %v345
      %378 = vst [vmem:[%s213 + $0xa8] sm:$0xff] %v346
      %379 = vst [vmem:[%s213 + $0xb0] sm:$0xff] %v347
      %380 = vst [vmem:[%s213 + $0xb8] sm:$0xff] %v348
      %381 = vst [vmem:[%s213 + $0xc0] sm:$0xff] %v349
      %382 = vst [vmem:[%s213 + $0xc8] sm:$0xff] %v350
      %383 = vst [vmem:[%s213 + $0xd0] sm:$0xff] %v351
      %384 = vst [vmem:[%s213 + $0xd8] sm:$0xff] %v352
      %385 = vst [vmem:[%s213 + $0xe0] sm:$0xff] %v353
      %386 = vst [vmem:[%s213 + $0xe8] sm:$0xff] %v354
      %387 = vst [vmem:[%s213 + $0xf0] sm:$0xff] %v355
      %388 = vst [vmem:[%s213 + $0xf8] sm:$0xff] %v356
      %s389 = smul.u32 8, %s19
      %p390 = scmp.lt.s32.totalorder %s18, 1
      %s391 = scalar_select %p390, %s18, 1
      %p392 = scmp.lt.s32.totalorder %s389, 31
      %s393 = scalar_select %p392, %s389, 31
      %s394 = smul.addr %s393, 4
      %s395 = smul.addr %s391, 128
      %s396 = sadd.s32 %s394, %s395
      %s397 = smul.addr %s396, 8
      %s398 = scalar_lea.vmem %s3, %s397
      // Predicated region
      $region33: #{multi_up_block_forward.7} parent=31 // pred_check
        %p399 = pneg %p116
      $region34: #{multi_up_block_forward.7} parent=31 // pred_check_branch
        %401 = sbr.rel (%p399) target = $region36
      $region35: #{multi_up_block_forward.7} parent=31 // pred_region
        %s402 = smul.u32 8, %s19
      $region36: #{multi_up_block_forward.7} parent=31 // pred_fallthru
        _
    $region32: #{multi_up_block_forward.7} parent=5 // pred_fallthru
      _
    %p403 = scmp.le.s32.totalorder 2, %s9
    // Predicated region
    $region37: #{multi_up_block_forward.7} parent=5 // pred_check
      %p404 = pneg %p403
    $region38: #{multi_up_block_forward.7} parent=5 // pred_check_branch
      %406 = sbr.rel (%p404) target = $region40
    $region39: #{multi_up_block_forward.7} parent=5 // pred_region
      %s407 = ssub.s32 %s9, 2
      // Predicated region
      $region41: #{multi_up_block_forward.7} parent=39 // pred_check
        %p408 = pneg %p122
      $region42: #{multi_up_block_forward.7} parent=39 // pred_check_branch
        %410 = sbr.rel (%p408) target = $region44
      $region43: #{multi_up_block_forward.7} parent=39 // pred_region
        %s411 = smul.u32 8, %s21
        %p412 = scmp.lt.s32.totalorder %s20, 1
        %s413 = scalar_select %p412, %s20, 1
        %p414 = scmp.lt.s32.totalorder %s411, 31
        %s415 = scalar_select %p414, %s411, 31
        %s416 = smul.addr %s415, 4
        %s417 = smul.addr %s413, 128
        %s418 = sadd.s32 %s416, %s417
        %s419 = smul.addr %s418, 8
        %s420 = scalar_lea.vmem %s3, %s419
      $region44: #{multi_up_block_forward.7} parent=39 // pred_fallthru
        _
    $region40: #{multi_up_block_forward.7} parent=5 // pred_fallthru
      _
  $region6: #{multi_up_block_forward.7} parent=0 // loop_footer
    %s13 = sadd.s32 1, %s9
  $region7: #{multi_up_block_forward.7} parent=0 // loop_footer_branch
    %8 = sbr.rel target = $region3
  $region8: #{multi_up_block_forward.7} parent=0 // loop_exit
    _

// kernel: multi_up_block_forward.6
$region0: #{multi_up_block_forward.6}
  #allocation0 [shape = 'u32[]', space=smem, size = 0x4, offset = 0x4, fixed_abs, tag = 'smem constant byte address 0x4 - core index']
  #allocation1 [shape = 'u32[144,128]{1,0:T(1,128)}', space=vmem, size = 0x12000, scoped, tag = 'internal scratch']
  #allocation2 [shape = 'f32[10,40,128]{2,1,0:T(8,128)}', space=vmem, size = 0x32000, scoped, tag = 'scratch operand']
  #allocation3 [shape = 'f32[3,320,128]{2,1,0:T(8,128)}', space=vmem, size = 0x78000, scoped, tag = 'scratch operand']
  #allocation5 [shape = 's32[]', space=sflag, size = 0x4, offset = 0, fixed_abs, tag = 'sflag constant byte address 0x0 - dummy sync flag']
  %s0 = inlined_call_operand.vmem [shape: f32[2,34,40,128], index: 0, kind: input, shape index: {}]
  %s1 = inlined_call_operand.vmem [shape: f32[9,128,128], index: 1, kind: input, shape index: {}]
  %s2 = inlined_call_operand.vmem [shape: f32[2,32,32,128], index: 2, kind: output, shape index: {0}]
  %s3 = inlined_call_operand.vmem [shape: f32[2,4,1,128], index: 3, kind: output, shape index: {1}]
  %s4 = inlined_call_operand.vmem [shape: f32[2,4,1,128], index: 4, kind: output, shape index: {2}]
  %5 = xla_tuple %s2, %s3, %s4
  %s6 = sld [smem:[#allocation0]]
  $region88: #{multi_up_block_forward.6} parent=0
    _
  %s8 = ssub.s32 1, %s6
  %s9 = scalar_select 0, %s8, %s6
  loop: start=0, step=1, limit=10
  $region2: #{multi_up_block_forward.6} parent=0 // loop_pre_header
    _
  $region3: #{multi_up_block_forward.6} parent=0 // loop_header
    %s11 = sphi 0, %s15
    %p12 = scmp.ge.s32.totalorder %s11, 10
    %s18 = sphi 0, %s30
    %s19 = sphi 0, %s26
    %s20 = sphi 0, %s18
    %s21 = sphi 0, %s19
    %s22 = sphi 0, %s20
    %s23 = sphi 0, %s21
    %s31 = sphi 0, %s31
    %s33 = sphi 0, %s31
    %s34 = sphi 0, %s33
    %s48 = sphi 0, %s34
    %s56 = sphi 0, %s58
    %s59 = sphi 0, %s56
    %s60 = sphi 0, %s59
    %s76 = sphi 0, %s60
    %s84 = sphi 0, %s86
    %s87 = sphi 0, %s84
    %s88 = sphi 0, %s87
    %s104 = sphi 0, %s88
    %s112 = sphi 0, %s114
    %s115 = sphi 0, %s112
    %s116 = sphi 0, %s115
    %s132 = sphi 0, %s116
  $region4: #{multi_up_block_forward.6} parent=0 // loop_header_branch
    %14 = sbr.rel (%p12) target = $region8
  $region5: #{multi_up_block_forward.6} parent=0 // loop_body
    %s16 = ssub.s32 %s11, 1
    %s17 = ssub.s32 %s11, 2
    %s24 = sadd.s32 1, %s19
    %p25 = scmp.ge.s32.totalorder %s24, 4
    %s26 = scalar_select %p25, 0, %s24
    %s27 = sadd.s32 1, %s18
    %s28 = scalar_select %p25, %s27, %s18
    %p29 = scmp.ge.s32.totalorder %s28, 2
    %s30 = scalar_select %p29, 0, %s28
    %s32 = sadd.s32 %s31, 1
    %p35 = scmp.eq.s32.totalorder %s11, 7
    %p36 = scmp.ne.s32.totalorder %s31, %s33
    %p37 = scmp.eq.s32.totalorder %s11, 0
    %p38 = por %p36, %p37
    %p39 = scmp.ne.s32.totalorder %s31, %s33
    %p40 = scmp.eq.s32.totalorder %s16, 7
    %p41 = por %p39, %p40
    %p42 = scmp.ne.s32.totalorder %s33, %s34
    %p43 = scmp.eq.s32.totalorder %s16, 0
    %p44 = por %p42, %p43
    %p45 = scmp.ne.s32.totalorder %s33, %s34
    %p46 = scmp.eq.s32.totalorder %s17, 7
    %p47 = por %p45, %p46
    %p49 = scmp.ne.s32.totalorder %s34, %s48
    %p50 = scmp.eq.s32.totalorder %s17, 0
    %p51 = por %p49, %p50
    %s52 = ssub.s32 %s18, %s30
    %s53 = ssub.s32 %s19, %s26
    %s54 = sor.u32 %s52, %s53
    %p55 = scmp.eq.s32.totalorder %s54, 0
    %s57 = sadd.s32 %s56, 1
    %s58 = scalar_select %p55, %s56, %s57
    %p61 = pneg %p55
    %p62 = scmp.eq.s32.totalorder %s11, 7
    %p63 = por %p61, %p62
    %p64 = scmp.ne.s32.totalorder %s56, %s59
    %p65 = scmp.eq.s32.totalorder %s11, 0
    %p66 = por %p64, %p65
    %p67 = scmp.ne.s32.totalorder %s56, %s59
    %p68 = scmp.eq.s32.totalorder %s16, 7
    %p69 = por %p67, %p68
    %p70 = scmp.ne.s32.totalorder %s59, %s60
    %p71 = scmp.eq.s32.totalorder %s16, 0
    %p72 = por %p70, %p71
    %p73 = scmp.ne.s32.totalorder %s59, %s60
    %p74 = scmp.eq.s32.totalorder %s17, 7
    %p75 = por %p73, %p74
    %p77 = scmp.ne.s32.totalorder %s60, %s76
    %p78 = scmp.eq.s32.totalorder %s17, 0
    %p79 = por %p77, %p78
    %s80 = ssub.s32 %s18, %s30
    %s81 = ssub.s32 %s19, %s26
    %s82 = sor.u32 %s80, %s81
    %p83 = scmp.eq.s32.totalorder %s82, 0
    %s85 = sadd.s32 %s84, 1
    %s86 = scalar_select %p83, %s84, %s85
    %p89 = pneg %p83
    %p90 = scmp.eq.s32.totalorder %s11, 7
    %p91 = por %p89, %p90
    %p92 = scmp.ne.s32.totalorder %s84, %s87
    %p93 = scmp.eq.s32.totalorder %s11, 0
    %p94 = por %p92, %p93
    %p95 = scmp.ne.s32.totalorder %s84, %s87
    %p96 = scmp.eq.s32.totalorder %s16, 7
    %p97 = por %p95, %p96
    %p98 = scmp.ne.s32.totalorder %s87, %s88
    %p99 = scmp.eq.s32.totalorder %s16, 0
    %p100 = por %p98, %p99
    %p101 = scmp.ne.s32.totalorder %s87, %s88
    %p102 = scmp.eq.s32.totalorder %s17, 7
    %p103 = por %p101, %p102
    %p105 = scmp.ne.s32.totalorder %s88, %s104
    %p106 = scmp.eq.s32.totalorder %s17, 0
    %p107 = por %p105, %p106
    %s108 = ssub.s32 %s18, %s30
    %s109 = ssub.s32 %s19, %s26
    %s110 = sor.u32 %s108, %s109
    %p111 = scmp.eq.s32.totalorder %s110, 0
    %s113 = sadd.s32 %s112, 1
    %s114 = scalar_select %p111, %s112, %s113
    %p117 = pneg %p111
    %p118 = scmp.eq.s32.totalorder %s11, 7
    %p119 = por %p117, %p118
    %p120 = scmp.ne.s32.totalorder %s112, %s115
    %p121 = scmp.eq.s32.totalorder %s11, 0
    %p122 = por %p120, %p121
    %p123 = scmp.ne.s32.totalorder %s112, %s115
    %p124 = scmp.eq.s32.totalorder %s16, 7
    %p125 = por %p123, %p124
    %p126 = scmp.ne.s32.totalorder %s115, %s116
    %p127 = scmp.eq.s32.totalorder %s16, 0
    %p128 = por %p126, %p127
    %p129 = scmp.ne.s32.totalorder %s115, %s116
    %p130 = scmp.eq.s32.totalorder %s17, 7
    %p131 = por %p129, %p130
    %p133 = scmp.ne.s32.totalorder %s116, %s132
    %p134 = scmp.eq.s32.totalorder %s17, 0
    %p135 = por %p133, %p134
    %p136 = scmp.le.s32.totalorder 1, %s11
    %p137 = scmp.lt.s32.totalorder %s11, 9
    %p138 = pnand %p136, %p137
    %p139 = pneg %p138
    // Predicated region
    $region9: #{multi_up_block_forward.6} parent=5 // pred_check
      _
    $region10: #{multi_up_block_forward.6} parent=5 // pred_check_branch
      %141 = sbr.rel (%p138) target = $region12
    $region11: #{multi_up_block_forward.6} parent=5 // pred_region
      %s142 = ssub.s32 %s11, 1
      // Predicated region
      $region13: #{multi_up_block_forward.6} parent=11 // pred_check
        %p143 = pneg %p44
      $region14: #{multi_up_block_forward.6} parent=11 // pred_check_branch
        %145 = sbr.rel (%p143) target = $region16
      $region15: #{multi_up_block_forward.6} parent=11 // pred_region
        _
      $region16: #{multi_up_block_forward.6} parent=11 // pred_fallthru
        _
    $region12: #{multi_up_block_forward.6} parent=5 // pred_fallthru
      _
    %p146 = scmp.lt.s32.totalorder %s11, 8
    // Predicated region
    $region17: #{multi_up_block_forward.6} parent=5 // pred_check
      %p147 = pneg %p146
    $region18: #{multi_up_block_forward.6} parent=5 // pred_check_branch
      %149 = sbr.rel (%p147) target = $region20
    $region19: #{multi_up_block_forward.6} parent=5 // pred_region
      _
    $region20: #{multi_up_block_forward.6} parent=5 // pred_fallthru
      _
    %p150 = scmp.le.s32.totalorder 1, %s11
    %p151 = scmp.lt.s32.totalorder %s11, 9
    %p152 = pnand %p150, %p151
    %p153 = pneg %p152
    // Predicated region
    $region21: #{multi_up_block_forward.6} parent=5 // pred_check
      _
    $region22: #{multi_up_block_forward.6} parent=5 // pred_check_branch
      %155 = sbr.rel (%p152) target = $region24
    $region23: #{multi_up_block_forward.6} parent=5 // pred_region
      %s156 = ssub.s32 %s11, 1
      %p157 = pneg %p44
      %p158 = pneg %p41
      %p159 = pneg %p72
      %p160 = pneg %p69
      %s161 = smul.u32 8, %s21
      %p162 = scmp.lt.s32.totalorder %s20, 1
      %s163 = scalar_select %p162, %s20, 1
      %p164 = scmp.lt.s32.totalorder %s161, 31
      %s165 = scalar_select %p164, %s161, 31
      %s166 = smul.addr %s165, 4
      %s167 = smul.addr %s163, 128
      %s168 = sadd.s32 %s166, %s167
      %s169 = smul.addr %s168, 8
      %s170 = scalar_lea.vmem %s2, %s169
      %p171 = pneg %p100
      %p172 = pneg %p97
      %p173 = scmp.lt.s32.totalorder %s20, 1
      %s174 = scalar_select %p173, %s20, 1
      %p175 = scmp.lt.s32.totalorder %s21, 3
      %s176 = scalar_select %p175, %s21, 3
      %s177 = smul.addr %s174, 4
      %s178 = sadd.s32 %s176, %s177
      %s179 = scalar_lea.vmem %s3, %s178
      %p180 = pneg %p128
      %p181 = pneg %p125
      %p182 = scmp.lt.s32.totalorder %s20, 1
      %s183 = scalar_select %p182, %s20, 1
      %p184 = scmp.lt.s32.totalorder %s21, 3
      %s185 = scalar_select %p184, %s21, 3
      %s186 = smul.addr %s183, 4
      %s187 = sadd.s32 %s185, %s186
      %s188 = scalar_lea.vmem %s4, %s187
      %s189 = smul.u32 8, %s21
      %p190 = scmp.lt.s32.totalorder %s20, 1
      %s191 = scalar_select %p190, %s20, 1
      %p192 = scmp.lt.s32.totalorder %s189, 31
      %s193 = scalar_select %p192, %s189, 31
      %s194 = smul.addr %s193, 4
      %s195 = smul.addr %s191, 128
      %s196 = sadd.s32 %s194, %s195
      %s197 = smul.addr %s196, 8
      %s198 = scalar_lea.vmem %s2, %s197
      %s199 = smul.u32 8, %s21
      %p200 = scmp.lt.s32.totalorder %s20, 1
      %s201 = scalar_select %p200, %s20, 1
      %p202 = scmp.lt.s32.totalorder %s21, 3
      %s203 = scalar_select %p202, %s21, 3
      %s204 = smul.addr %s201, 4
      %s205 = sadd.s32 %s203, %s204
      %s206 = scalar_lea.vmem %s3, %s205
      %p207 = scmp.lt.s32.totalorder %s20, 1
      %s208 = scalar_select %p207, %s20, 1
      %p209 = scmp.lt.s32.totalorder %s21, 3
      %s210 = scalar_select %p209, %s21, 3
      %s211 = smul.addr %s208, 4
      %s212 = sadd.s32 %s210, %s211
      %s213 = scalar_lea.vmem %s4, %s212
      %s214 = smul.u32 %s21, 8
      $region25: #{multi_up_block_forward.6} parent=23
        #allocation4 [shape = 's32[1]{0}', space=sflag, size = 0x4, scoped, tag = 'scoped memory for multi_up_block_forward.6']
        %s215 = smul.u32 %s214, 40
        %s216 = smul.u32 %s20, 1360
        %s217 = sadd.s32 %s215, %s216
        %s218 = scalar_lea.vmem %s0, %s217
        %p220 = scmp.lt.u32.totalorder 400, 8
        %p221 = pneg %p220
        // Predicated region
        $region26: #{multi_up_block_forward.6} parent=25 // pred_check
          _
        $region27: #{multi_up_block_forward.6} parent=25 // pred_check_branch
          %223 = sbr.rel (%p220) target = $region29
        $region28: #{multi_up_block_forward.6} parent=25 // pred_region
          %s238 = sand.u32 400, 7
          %p239 = scmp.eq.s32.totalorder %s238, 0
          // Predicated region
          $region41: #{multi_up_block_forward.6} parent=28 // pred_check
            %p240 = pneg %p239
          $region42: #{multi_up_block_forward.6} parent=28 // pred_check_branch
            %242 = sbr.rel (%p240) target = $region44
          $region43: #{multi_up_block_forward.6} parent=28 // pred_region
            loop: start=0, step=1, limit=1
            $region45: #{multi_up_block_forward.6} parent=43 // loop_pre_header
              _
            $region46: #{multi_up_block_forward.6} parent=43 // loop_header
              %s244 = sphi 0, %s248
              %p245 = scmp.ge.s32.totalorder %s244, 1
              %s249 = sphi %s218, %s218
              %s250 = sphi [#allocation2], [#allocation2]
            $region47: #{multi_up_block_forward.6} parent=43 // loop_header_branch
              %247 = sbr.rel (%p245) target = $region51
            $region48: #{multi_up_block_forward.6} parent=43 // loop_body
              %v251 = vld [vmem:[%s249] sm:$0xff]
              %252 = vst [vmem:[%s250] sm:$0xff] %v251
              %v253 = vld [vmem:[%s249 + $0x8] sm:$0xff]
              %254 = vst [vmem:[%s250 + $0x8] sm:$0xff] %v253
              %v255 = vld [vmem:[%s249 + $0x10] sm:$0xff]
              %256 = vst [vmem:[%s250 + $0x10] sm:$0xff] %v255
              %v257 = vld [vmem:[%s249 + $0x18] sm:$0xff]
              %258 = vst [vmem:[%s250 + $0x18] sm:$0xff] %v257
              %v259 = vld [vmem:[%s249 + $0x20] sm:$0xff]
              %260 = vst [vmem:[%s250 + $0x20] sm:$0xff] %v259
              %v261 = vld [vmem:[%s249 + $0x28] sm:$0xff]
              %262 = vst [vmem:[%s250 + $0x28] sm:$0xff] %v261
              %v263 = vld [vmem:[%s249 + $0x30] sm:$0xff]
              %264 = vst [vmem:[%s250 + $0x30] sm:$0xff] %v263
              %v265 = vld [vmem:[%s249 + $0x38] sm:$0xff]
              %266 = vst [vmem:[%s250 + $0x38] sm:$0xff] %v265
              %v267 = vld [vmem:[%s249 + $0x40] sm:$0xff]
              %268 = vst [vmem:[%s250 + $0x40] sm:$0xff] %v267
              %v269 = vld [vmem:[%s249 + $0x48] sm:$0xff]
              %270 = vst [vmem:[%s250 + $0x48] sm:$0xff] %v269
              %v271 = vld [vmem:[%s249 + $0x50] sm:$0xff]
              %272 = vst [vmem:[%s250 + $0x50] sm:$0xff] %v271
              %v273 = vld [vmem:[%s249 + $0x58] sm:$0xff]
              %274 = vst [vmem:[%s250 + $0x58] sm:$0xff] %v273
              %v275 = vld [vmem:[%s249 + $0x60] sm:$0xff]
              %276 = vst [vmem:[%s250 + $0x60] sm:$0xff] %v275
              %v277 = vld [vmem:[%s249 + $0x68] sm:$0xff]
              %278 = vst [vmem:[%s250 + $0x68] sm:$0xff] %v277
              %v279 = vld [vmem:[%s249 + $0x70] sm:$0xff]
              %280 = vst [vmem:[%s250 + $0x70] sm:$0xff] %v279
              %v281 = vld [vmem:[%s249 + $0x78] sm:$0xff]
              %282 = vst [vmem:[%s250 + $0x78] sm:$0xff] %v281
              %v283 = vld [vmem:[%s249 + $0x80] sm:$0xff]
              %284 = vst [vmem:[%s250 + $0x80] sm:$0xff] %v283
              %v285 = vld [vmem:[%s249 + $0x88] sm:$0xff]
              %286 = vst [vmem:[%s250 + $0x88] sm:$0xff] %v285
              %v287 = vld [vmem:[%s249 + $0x90] sm:$0xff]
              %288 = vst [vmem:[%s250 + $0x90] sm:$0xff] %v287
              %v289 = vld [vmem:[%s249 + $0x98] sm:$0xff]
              %290 = vst [vmem:[%s250 + $0x98] sm:$0xff] %v289
              %v291 = vld [vmem:[%s249 + $0xa0] sm:$0xff]
              %292 = vst [vmem:[%s250 + $0xa0] sm:$0xff] %v291
              %v293 = vld [vmem:[%s249 + $0xa8] sm:$0xff]
              %294 = vst [vmem:[%s250 + $0xa8] sm:$0xff] %v293
              %v295 = vld [vmem:[%s249 + $0xb0] sm:$0xff]
              %296 = vst [vmem:[%s250 + $0xb0] sm:$0xff] %v295
              %v297 = vld [vmem:[%s249 + $0xb8] sm:$0xff]
              %298 = vst [vmem:[%s250 + $0xb8] sm:$0xff] %v297
              %v299 = vld [vmem:[%s249 + $0xc0] sm:$0xff]
              %300 = vst [vmem:[%s250 + $0xc0] sm:$0xff] %v299
              %v301 = vld [vmem:[%s249 + $0xc8] sm:$0xff]
              %302 = vst [vmem:[%s250 + $0xc8] sm:$0xff] %v301
              %v303 = vld [vmem:[%s249 + $0xd0] sm:$0xff]
              %304 = vst [vmem:[%s250 + $0xd0] sm:$0xff] %v303
              %v305 = vld [vmem:[%s249 + $0xd8] sm:$0xff]
              %306 = vst [vmem:[%s250 + $0xd8] sm:$0xff] %v305
              %v307 = vld [vmem:[%s249 + $0xe0] sm:$0xff]
              %308 = vst [vmem:[%s250 + $0xe0] sm:$0xff] %v307
              %v309 = vld [vmem:[%s249 + $0xe8] sm:$0xff]
              %310 = vst [vmem:[%s250 + $0xe8] sm:$0xff] %v309
              %v311 = vld [vmem:[%s249 + $0xf0] sm:$0xff]
              %312 = vst [vmem:[%s250 + $0xf0] sm:$0xff] %v311
              %v313 = vld [vmem:[%s249 + $0xf8] sm:$0xff]
              %314 = vst [vmem:[%s250 + $0xf8] sm:$0xff] %v313
              %v315 = vld [vmem:[%s249 + $0x100] sm:$0xff]
              %316 = vst [vmem:[%s250 + $0x100] sm:$0xff] %v315
              %v317 = vld [vmem:[%s249 + $0x108] sm:$0xff]
              %318 = vst [vmem:[%s250 + $0x108] sm:$0xff] %v317
              %v319 = vld [vmem:[%s249 + $0x110] sm:$0xff]
              %320 = vst [vmem:[%s250 + $0x110] sm:$0xff] %v319
              %v321 = vld [vmem:[%s249 + $0x118] sm:$0xff]
              %322 = vst [vmem:[%s250 + $0x118] sm:$0xff] %v321
              %v323 = vld [vmem:[%s249 + $0x120] sm:$0xff]
              %324 = vst [vmem:[%s250 + $0x120] sm:$0xff] %v323
              %v325 = vld [vmem:[%s249 + $0x128] sm:$0xff]
              %326 = vst [vmem:[%s250 + $0x128] sm:$0xff] %v325
              %v327 = vld [vmem:[%s249 + $0x130] sm:$0xff]
              %328 = vst [vmem:[%s250 + $0x130] sm:$0xff] %v327
              %v329 = vld [vmem:[%s249 + $0x138] sm:$0xff]
              %330 = vst [vmem:[%s250 + $0x138] sm:$0xff] %v329
              %v331 = vld [vmem:[%s249 + $0x140] sm:$0xff]
              %332 = vst [vmem:[%s250 + $0x140] sm:$0xff] %v331
              %v333 = vld [vmem:[%s249 + $0x148] sm:$0xff]
              %334 = vst [vmem:[%s250 + $0x148] sm:$0xff] %v333
              %v335 = vld [vmem:[%s249 + $0x150] sm:$0xff]
              %336 = vst [vmem:[%s250 + $0x150] sm:$0xff] %v335
              %v337 = vld [vmem:[%s249 + $0x158] sm:$0xff]
              %338 = vst [vmem:[%s250 + $0x158] sm:$0xff] %v337
              %v339 = vld [vmem:[%s249 + $0x160] sm:$0xff]
              %340 = vst [vmem:[%s250 + $0x160] sm:$0xff] %v339
              %v341 = vld [vmem:[%s249 + $0x168] sm:$0xff]
              %342 = vst [vmem:[%s250 + $0x168] sm:$0xff] %v341
              %v343 = vld [vmem:[%s249 + $0x170] sm:$0xff]
              %344 = vst [vmem:[%s250 + $0x170] sm:$0xff] %v343
              %v345 = vld [vmem:[%s249 + $0x178] sm:$0xff]
              %346 = vst [vmem:[%s250 + $0x178] sm:$0xff] %v345
              %v347 = vld [vmem:[%s249 + $0x180] sm:$0xff]
              %348 = vst [vmem:[%s250 + $0x180] sm:$0xff] %v347
              %v349 = vld [vmem:[%s249 + $0x188] sm:$0xff]
              %350 = vst [vmem:[%s250 + $0x188] sm:$0xff] %v349
            $region49: #{multi_up_block_forward.6} parent=43 // loop_footer
              %s248 = sadd.s32 1, %s244
            $region50: #{multi_up_block_forward.6} parent=43 // loop_footer_branch
              %243 = sbr.rel target = $region46
            $region51: #{multi_up_block_forward.6} parent=43 // loop_exit
              _
          $region44: #{multi_up_block_forward.6} parent=28 // pred_fallthru
            _
          %p351 = pneg %p239
          // Predicated region
          $region52: #{multi_up_block_forward.6} parent=28 // pred_check
            _
          $region53: #{multi_up_block_forward.6} parent=28 // pred_check_branch
            %353 = sbr.rel (%p239) target = $region55
          $region54: #{multi_up_block_forward.6} parent=28 // pred_region
            %s354 = sand.u32 400, 7
          $region55: #{multi_up_block_forward.6} parent=28 // pred_fallthru
            _
        $region29: #{multi_up_block_forward.6} parent=25 // pred_fallthru
          _
        // Predicated region
        $region30: #{multi_up_block_forward.6} parent=25 // pred_check
          %p224 = pneg %p220
        $region31: #{multi_up_block_forward.6} parent=25 // pred_check_branch
          %226 = sbr.rel (%p224) target = $region33
        $region32: #{multi_up_block_forward.6} parent=25 // pred_region
          %s227 = sshllo.u32 0, 400
          loop: start=0, step=1, limit=1
          $region34: #{multi_up_block_forward.6} parent=32 // loop_pre_header
            _
          $region35: #{multi_up_block_forward.6} parent=32 // loop_header
            %s229 = sphi 0, %s233
            %p230 = scmp.ge.s32.totalorder %s229, 1
            %s234 = sphi %s218, %s218
            %s235 = sphi [#allocation2], [#allocation2]
          $region36: #{multi_up_block_forward.6} parent=32 // loop_header_branch
            %232 = sbr.rel (%p230) target = $region40
          $region37: #{multi_up_block_forward.6} parent=32 // loop_body
            %v236 = vld [vmem:[%s234] sm:%s227]
            %237 = vst [vmem:[%s235] sm:%s227] %v236
          $region38: #{multi_up_block_forward.6} parent=32 // loop_footer
            %s233 = sadd.s32 1, %s229
          $region39: #{multi_up_block_forward.6} parent=32 // loop_footer_branch
            %228 = sbr.rel target = $region35
          $region40: #{multi_up_block_forward.6} parent=32 // loop_exit
            _
        $region33: #{multi_up_block_forward.6} parent=25 // pred_fallthru
          _
        // Predicated region
        $region56: #{multi_up_block_forward.6} parent=25 // pred_check
          _
        $region57: #{multi_up_block_forward.6} parent=25 // pred_check_branch
          %357 = sbr.rel (0) target = $region59
        $region58: #{multi_up_block_forward.6} parent=25 // pred_region
          %358 = vsyncadd [#allocation4], 6400
        $region59: #{multi_up_block_forward.6} parent=25 // pred_fallthru
          _
        %s359 = smul.u32 10, 40
        %s360 = smul.u32 %s359, 1
        %s361 = sshll.u32 %s360, 4
        %362 = dma.done [#allocation4], %s361
      %v363 = vld [vmem:[#allocation2] sm:$0xff]
      %v364 = vld [vmem:[#allocation2 + $0x8] sm:$0xff]
      %v365 = vld [vmem:[#allocation2 + $0x10] sm:$0xff]
      %v366 = vld [vmem:[#allocation2 + $0x18] sm:$0xff]
      %v367 = vld [vmem:[#allocation2 + $0x20] sm:$0xff]
      %v368 = vld [vmem:[#allocation2 + $0x28] sm:$0xff]
      %v369 = vld [vmem:[#allocation2 + $0x30] sm:$0xff]
      %v370 = vld [vmem:[#allocation2 + $0x38] sm:$0xff]
      %v371 = vld [vmem:[#allocation2 + $0x40] sm:$0xff]
      %v372 = vld [vmem:[#allocation2 + $0x48] sm:$0xff]
      %v373 = vld [vmem:[#allocation2 + $0x50] sm:$0xff]
      %v374 = vld [vmem:[#allocation2 + $0x58] sm:$0xff]
      %v375 = vld [vmem:[#allocation2 + $0x60] sm:$0xff]
      %v376 = vld [vmem:[#allocation2 + $0x68] sm:$0xff]
      %v377 = vld [vmem:[#allocation2 + $0x70] sm:$0xff]
      %v378 = vld [vmem:[#allocation2 + $0x78] sm:$0xff]
      %v379 = vld [vmem:[#allocation2 + $0x80] sm:$0xff]
      %v380 = vld [vmem:[#allocation2 + $0x88] sm:$0xff]
      %v381 = vld [vmem:[#allocation2 + $0x90] sm:$0xff]
      %v382 = vld [vmem:[#allocation2 + $0x98] sm:$0xff]
      %v383 = vld [vmem:[#allocation2 + $0xa0] sm:$0xff]
      %v384 = vld [vmem:[#allocation2 + $0xa8] sm:$0xff]
      %v385 = vld [vmem:[#allocation2 + $0xb0] sm:$0xff]
      %v386 = vld [vmem:[#allocation2 + $0xb8] sm:$0xff]
      %v387 = vld [vmem:[#allocation2 + $0xc0] sm:$0xff]
      %v388 = vld [vmem:[#allocation2 + $0xc8] sm:$0xff]
      %v389 = vld [vmem:[#allocation2 + $0xd0] sm:$0xff]
      %v390 = vld [vmem:[#allocation2 + $0xd8] sm:$0xff]
      %v391 = vld [vmem:[#allocation2 + $0xe0] sm:$0xff]
      %v392 = vld [vmem:[#allocation2 + $0xe8] sm:$0xff]
      %v393 = vld [vmem:[#allocation2 + $0xf0] sm:$0xff]
      %v394 = vld [vmem:[#allocation2 + $0xf8] sm:$0xff]
      %v395 = vld [vmem:[#allocation2 + $0x100] sm:$0xff]
      %v396 = vld [vmem:[#allocation2 + $0x108] sm:$0xff]
      %v397 = vld [vmem:[#allocation2 + $0x110] sm:$0xff]
      %v398 = vld [vmem:[#allocation2 + $0x118] sm:$0xff]
      %v399 = vld [vmem:[#allocation2 + $0x120] sm:$0xff]
      %v400 = vld [vmem:[#allocation2 + $0x128] sm:$0xff]
      %v401 = vld [vmem:[#allocation2 + $0x130] sm:$0xff]
      %v402 = vld [vmem:[#allocation2 + $0x138] sm:$0xff]
      %v403 = vld [vmem:[%s1] sm:$0xff]
      %v404 = vld [vmem:[%s1 + $0x8] sm:$0xff]
      %v405 = vld [vmem:[%s1 + $0x10] sm:$0xff]
      %v406 = vld [vmem:[%s1 + $0x18] sm:$0xff]
      %v407 = vld [vmem:[%s1 + $0x20] sm:$0xff]
      %v408 = vld [vmem:[%s1 + $0x28] sm:$0xff]
      %v409 = vld [vmem:[%s1 + $0x30] sm:$0xff]
      %v410 = vld [vmem:[%s1 + $0x38] sm:$0xff]
      %v411 = vld [vmem:[%s1 + $0x40] sm:$0xff]
      %v412 = vld [vmem:[%s1 + $0x48] sm:$0xff]
      %v413 = vld [vmem:[%s1 + $0x50] sm:$0xff]
      %v414 = vld [vmem:[%s1 + $0x58] sm:$0xff]
      %v415 = vld [vmem:[%s1 + $0x60] sm:$0xff]
      %v416 = vld [vmem:[%s1 + $0x68] sm:$0xff]
      %v417 = vld [vmem:[%s1 + $0x70] sm:$0xff]
      %v418 = vld [vmem:[%s1 + $0x78] sm:$0xff]
      %419 = vmatprep.subr.mxu0 0.0
      %420 = vmatpush1.msra.mxu0 %v403
      %421 = vmatprep.subr.mxu0 0.0
      %422 = vmatpush1.msra.mxu0 %v404
      %423 = vmatprep.subr.mxu0 0.0
      %424 = vmatpush1.msra.mxu0 %v405
      %425 = vmatprep.subr.mxu0 0.0
      %426 = vmatpush1.msra.mxu0 %v406
      %427 = vmatprep.subr.mxu0 0.0
      %428 = vmatpush1.msra.mxu0 %v407
      %429 = vmatprep.subr.mxu0 0.0
      %430 = vmatpush1.msra.mxu0 %v408
      %431 = vmatprep.subr.mxu0 0.0
      %432 = vmatpush1.msra.mxu0 %v409
      %433 = vmatprep.subr.mxu0 0.0
      %434 = vmatpush1.msra.mxu0 %v410
      %435 = vmatprep.subr.mxu0 0.0
      %436 = vmatpush1.msra.mxu0 %v411
      %437 = vmatprep.subr.mxu0 0.0
      %438 = vmatpush1.msra.mxu0 %v412
      %439 = vmatprep.subr.mxu0 0.0
      %440 = vmatpush1.msra.mxu0 %v413
      %441 = vmatprep.subr.mxu0 0.0
      %442 = vmatpush1.msra.mxu0 %v414
      %443 = vmatprep.subr.mxu0 0.0
      %444 = vmatpush1.msra.mxu0 %v415
      %445 = vmatprep.subr.mxu0 0.0
      %446 = vmatpush1.msra.mxu0 %v416
      %447 = vmatprep.subr.mxu0 0.0
      %448 = vmatpush1.msra.mxu0 %v417
      %449 = vmatprep.subr.mxu0 0.0
      %450 = vmatpush1.msra.mxu0 %v418
      %451 = vmatprep.subr.mxu0 0.0
      %452 = vmatpush1.msra.mxu0 0.0
      %453 = vmatprep.subr.mxu0 0.0
      %454 = vmatpush1.msra.mxu0 0.0
      %455 = vmatprep.subr.mxu0 0.0
      %456 = vmatpush1.msra.mxu0 0.0
      %457 = vmatprep.subr.mxu0 0.0
      %458 = vmatpush1.msra.mxu0 0.0
      %459 = vmatprep.subr.mxu0 0.0
      %460 = vmatpush1.msra.mxu0 0.0
      %461 = vmatprep.subr.mxu0 0.0
      %462 = vmatpush1.msra.mxu0 0.0
      %463 = vmatprep.subr.mxu0 0.0
      %464 = vmatpush1.msra.mxu0 0.0
      %465 = vmatprep.subr.mxu0 0.0
      %466 = vmatpush1.msra.mxu0 0.0
      %467 = vmatprep.subr.mxu0 0.0
      %468 = vmatpush1.msra.mxu0 0.0
      %469 = vmatprep.subr.mxu0 0.0
      %470 = vmatpush1.msra.mxu0 0.0
      %471 = vmatprep.subr.mxu0 0.0
      %472 = vmatpush1.msra.mxu0 0.0
      %473 = vmatprep.subr.mxu0 0.0
      %474 = vmatpush1.msra.mxu0 0.0
      %475 = vmatprep.subr.mxu0 0.0
      %476 = vmatpush1.msra.mxu0 0.0
      %477 = vmatprep.subr.mxu0 0.0
      %478 = vmatpush1.msra.mxu0 0.0
      %479 = vmatprep.subr.mxu0 0.0
      %480 = vmatpush1.msra.mxu0 0.0
      %481 = vmatprep.subr.mxu0 0.0
      %482 = vmatpush1.msra.mxu0 0.0
      %483 = vmatprep.mubr.f32.mxu0 0.0
      %484 = vmatmul.mubr.f32.gmra.mrb[0].mxu0 %v363
      %v485 = vpop.f32.mrb[0].mxu0
      %v486 = vadd.f32 0.0, %v485
      %v487 = vpop.f32.mrb[0].mxu0
      %488 = vmatprep.mubr.f32.mxu0 0.0
      %489 = vmatmul.mubr.f32.gmra.mrb[0].mxu0 %v364
      %v490 = vpop.f32.mrb[0].mxu0
      %v491 = vadd.f32 0.0, %v490
      %v492 = vpop.f32.mrb[0].mxu0
      %493 = vmatprep.mubr.f32.mxu0 0.0
      %494 = vmatmul.mubr.f32.gmra.mrb[0].mxu0 %v365
      %v495 = vpop.f32.mrb[0].mxu0
      %v496 = vadd.f32 0.0, %v495
      %v497 = vpop.f32.mrb[0].mxu0
      %498 = vmatprep.mubr.f32.mxu0 0.0
      %499 = vmatmul.mubr.f32.gmra.mrb[0].mxu0 %v366
      %v500 = vpop.f32.mrb[0].mxu0
      %v501 = vadd.f32 0.0, %v500
      %v502 = vpop.f32.mrb[0].mxu0
      %503 = vmatprep.mubr.f32.mxu0 0.0
      %504 = vmatmul.mubr.f32.gmra.mrb[0].mxu0 %v367
      %v505 = vpop.f32.mrb[0].mxu0
      %v506 = vadd.f32 0.0, %v505
      %v507 = vpop.f32.mrb[0].mxu0
      %508 = vmatprep.mubr.f32.mxu0 0.0
      %509 = vmatmul.mubr.f32.gmra.mrb[0].mxu0 %v368
      %v510 = vpop.f32.mrb[0].mxu0
      %v511 = vadd.f32 0.0, %v510
      %v512 = vpop.f32.mrb[0].mxu0
      %513 = vmatprep.mubr.f32.mxu0 0.0
      %514 = vmatmul.mubr.f32.gmra.mrb[0].mxu0 %v369
      %v515 = vpop.f32.mrb[0].mxu0
      %v516 = vadd.f32 0.0, %v515
      %v517 = vpop.f32.mrb[0].mxu0
      %518 = vmatprep.mubr.f32.mxu0 0.0
      %519 = vmatmul.mubr.f32.gmra.mrb[0].mxu0 %v370
      %v520 = vpop.f32.mrb[0].mxu0
      %v521 = vadd.f32 0.0, %v520
      %v522 = vpop.f32.mrb[0].mxu0
      %523 = vmatprep.mubr.f32.mxu0 0.0
      %524 = vmatmul.mubr.f32.gmra.mrb[0].mxu0 %v371
      %v525 = vpop.f32.mrb[0].mxu0
      %v526 = vadd.f32 0.0, %v525
      %v527 = vpop.f32.mrb[0].mxu0
      %528 = vmatprep.mubr.f32.mxu0 0.0
      %529 = vmatmul.mubr.f32.gmra.mrb[0].mxu0 %v372
      %v530 = vpop.f32.mrb[0].mxu0
      %v531 = vadd.f32 0.0, %v530
      %v532 = vpop.f32.mrb[0].mxu0
      %533 = vmatprep.mubr.f32.mxu0 0.0
      %534 = vmatmul.mubr.f32.gmra.mrb[0].mxu0 %v373
      %v535 = vpop.f32.mrb[0].mxu0
      %v536 = vadd.f32 0.0, %v535
      %v537 = vpop.f32.mrb[0].mxu0
      %538 = vmatprep.mubr.f32.mxu0 0.0
      %539 = vmatmul.mubr.f32.gmra.mrb[0].mxu0 %v374
      %v540 = vpop.f32.mrb[0].mxu0
      %v541 = vadd.f32 0.0, %v540
      %v542 = vpop.f32.mrb[0].mxu0
      %543 = vmatprep.mubr.f32.mxu0 0.0
      %544 = vmatmul.mubr.f32.gmra.mrb[0].mxu0 %v375
      %v545 = vpop.f32.mrb[0].mxu0
      %v546 = vadd.f32 0.0, %v545
      %v547 = vpop.f32.mrb[0].mxu0
      %548 = vmatprep.mubr.f32.mxu0 0.0
      %549 = vmatmul.mubr.f32.gmra.mrb[0].mxu0 %v376
      %v550 = vpop.f32.mrb[0].mxu0
      %v551 = vadd.f32 0.0, %v550
      %v552 = vpop.f32.mrb[0].mxu0
      %553 = vmatprep.mubr.f32.mxu0 0.0
      %554 = vmatmul.mubr.f32.gmra.mrb[0].mxu0 %v377
      %v555 = vpop.f32.mrb[0].mxu0
      %v556 = vadd.f32 0.0, %v555
      %v557 = vpop.f32.mrb[0].mxu0
      %558 = vmatprep.mubr.f32.mxu0 0.0
      %559 = vmatmul.mubr.f32.gmra.mrb[0].mxu0 %v378
      %v560 = vpop.f32.mrb[0].mxu0
      %v561 = vadd.f32 0.0, %v560
      %v562 = vpop.f32.mrb[0].mxu0
      %563 = vmatprep.mubr.f32.mxu0 0.0
      %564 = vmatmul.mubr.f32.gmra.mrb[0].mxu0 %v379
      %v565 = vpop.f32.mrb[0].mxu0
      %v566 = vadd.f32 0.0, %v565
      %v567 = vpop.f32.mrb[0].mxu0
      %568 = vmatprep.mubr.f32.mxu0 0.0
      %569 = vmatmul.mubr.f32.gmra.mrb[0].mxu0 %v380
      %v570 = vpop.f32.mrb[0].mxu0
      %v571 = vadd.f32 0.0, %v570
      %v572 = vpop.f32.mrb[0].mxu0
      %573 = vmatprep.mubr.f32.mxu0 0.0
      %574 = vmatmul.mubr.f32.gmra.mrb[0].mxu0 %v381
      %v575 = vpop.f32.mrb[0].mxu0
      %v576 = vadd.f32 0.0, %v575
      %v577 = vpop.f32.mrb[0].mxu0
      %578 = vmatprep.mubr.f32.mxu0 0.0
      %579 = vmatmul.mubr.f32.gmra.mrb[0].mxu0 %v382
      %v580 = vpop.f32.mrb[0].mxu0
      %v581 = vadd.f32 0.0, %v580
      %v582 = vpop.f32.mrb[0].mxu0
      %583 = vmatprep.mubr.f32.mxu0 0.0
      %584 = vmatmul.mubr.f32.gmra.mrb[0].mxu0 %v383
      %v585 = vpop.f32.mrb[0].mxu0
      %v586 = vadd.f32 0.0, %v585
      %v587 = vpop.f32.mrb[0].mxu0
      %588 = vmatprep.mubr.f32.mxu0 0.0
      %589 = vmatmul.mubr.f32.gmra.mrb[0].mxu0 %v384
      %v590 = vpop.f32.mrb[0].mxu0
      %v591 = vadd.f32 0.0, %v590
      %v592 = vpop.f32.mrb[0].mxu0
      %593 = vmatprep.mubr.f32.mxu0 0.0
      %594 = vmatmul.mubr.f32.gmra.mrb[0].mxu0 %v385
      %v595 = vpop.f32.mrb[0].mxu0
      %v596 = vadd.f32 0.0, %v595
      %v597 = vpop.f32.mrb[0].mxu0
      %598 = vmatprep.mubr.f32.mxu0 0.0
      %599 = vmatmul.mubr.f32.gmra.mrb[0].mxu0 %v386
      %v600 = vpop.f32.mrb[0].mxu0
      %v601 = vadd.f32 0.0, %v600
      %v602 = vpop.f32.mrb[0].mxu0
      %603 = vmatprep.mubr.f32.mxu0 0.0
      %604 = vmatmul.mubr.f32.gmra.mrb[0].mxu0 %v387
      %v605 = vpop.f32.mrb[0].mxu0
      %v606 = vadd.f32 0.0, %v605
      %v607 = vpop.f32.mrb[0].mxu0
      %608 = vmatprep.mubr.f32.mxu0 0.0
      %609 = vmatmul.mubr.f32.gmra.mrb[0].mxu0 %v388
      %v610 = vpop.f32.mrb[0].mxu0
      %v611 = vadd.f32 0.0, %v610
      %v612 = vpop.f32.mrb[0].mxu0
      %613 = vmatprep.mubr.f32.mxu0 0.0
      %614 = vmatmul.mubr.f32.gmra.mrb[0].mxu0 %v389
      %v615 = vpop.f32.mrb[0].mxu0
      %v616 = vadd.f32 0.0, %v615
      %v617 = vpop.f32.mrb[0].mxu0
      %618 = vmatprep.mubr.f32.mxu0 0.0
      %619 = vmatmul.mubr.f32.gmra.mrb[0].mxu0 %v390
      %v620 = vpop.f32.mrb[0].mxu0
      %v621 = vadd.f32 0.0, %v620
      %v622 = vpop.f32.mrb[0].mxu0
      %623 = vmatprep.mubr.f32.mxu0 0.0
      %624 = vmatmul.mubr.f32.gmra.mrb[0].mxu0 %v391
      %v625 = vpop.f32.mrb[0].mxu0
      %v626 = vadd.f32 0.0, %v625
      %v627 = vpop.f32.mrb[0].mxu0
      %628 = vmatprep.mubr.f32.mxu0 0.0
      %629 = vmatmul.mubr.f32.gmra.mrb[0].mxu0 %v392
      %v630 = vpop.f32.mrb[0].mxu0
      %v631 = vadd.f32 0.0, %v630
      %v632 = vpop.f32.mrb[0].mxu0
      %633 = vmatprep.mubr.f32.mxu0 0.0
      %634 = vmatmul.mubr.f32.gmra.mrb[0].mxu0 %v393
      %v635 = vpop.f32.mrb[0].mxu0
      %v636 = vadd.f32 0.0, %v635
      %v637 = vpop.f32.mrb[0].mxu0
      %638 = vmatprep.mubr.f32.mxu0 0.0
      %639 = vmatmul.mubr.f32.gmra.mrb[0].mxu0 %v394
      %v640 = vpop.f32.mrb[0].mxu0
      %v641 = vadd.f32 0.0, %v640
      %v642 = vpop.f32.mrb[0].mxu0
      %643 = vmatprep.mubr.f32.mxu0 0.0
      %644 = vmatmul.mubr.f32.gmra.mrb[0].mxu0 %v395
      %v645 = vpop.f32.mrb[0].mxu0
      %v646 = vadd.f32 0.0, %v645
      %v647 = vpop.f32.mrb[0].mxu0
      %648 = vmatprep.mubr.f32.mxu0 0.0
      %649 = vmatmul.mubr.f32.gmra.mrb[0].mxu0 %v396
      %v650 = vpop.f32.mrb[0].mxu0
      %v651 = vadd.f32 0.0, %v650
      %v652 = vpop.f32.mrb[0].mxu0
      %653 = vmatprep.mubr.f32.mxu0 0.0
      %654 = vmatmul.mubr.f32.gmra.mrb[0].mxu0 %v397
      %v655 = vpop.f32.mrb[0].mxu0
      %v656 = vadd.f32 0.0, %v655
      %v657 = vpop.f32.mrb[0].mxu0
      %658 = vmatprep.mubr.f32.mxu0 0.0
      %659 = vmatmul.mubr.f32.gmra.mrb[0].mxu0 %v398
      %v660 = vpop.f32.mrb[0].mxu0
      %v661 = vadd.f32 0.0, %v660
      %v662 = vpop.f32.mrb[0].mxu0
      %663 = vmatprep.mubr.f32.mxu0 0.0
      %664 = vmatmul.mubr.f32.gmra.mrb[0].mxu0 %v399
      %v665 = vpop.f32.mrb[0].mxu0
      %v666 = vadd.f32 0.0, %v665
      %v667 = vpop.f32.mrb[0].mxu0
      %668 = vmatprep.mubr.f32.mxu0 0.0
      %669 = vmatmul.mubr.f32.gmra.mrb[0].mxu0 %v400
      %v670 = vpop.f32.mrb[0].mxu0
      %v671 = vadd.f32 0.0, %v670
      %v672 = vpop.f32.mrb[0].mxu0
      %673 = vmatprep.mubr.f32.mxu0 0.0
      %674 = vmatmul.mubr.f32.gmra.mrb[0].mxu0 %v401
      %v675 = vpop.f32.mrb[0].mxu0
      %v676 = vadd.f32 0.0, %v675
      %v677 = vpop.f32.mrb[0].mxu0
      %678 = vmatprep.mubr.f32.mxu0 0.0
      %679 = vmatmul.mubr.f32.gmra.mrb[0].mxu0 %v402
      %v680 = vpop.f32.mrb[0].mxu0
      %v681 = vadd.f32 0.0, %v680
      %v682 = vpop.f32.mrb[0].mxu0
      %683 = vdwg.mxu0
      %684 = vst [vmem:[#allocation3] sm:$0xff] %v486
      %685 = vst [vmem:[#allocation3 + $0x8] sm:$0xff] %v491
      %686 = vst [vmem:[#allocation3 + $0x10] sm:$0xff] %v496
      %687 = vst [vmem:[#allocation3 + $0x18] sm:$0xff] %v501
      %688 = vst [vmem:[#allocation3 + $0x20] sm:$0xff] %v506
      %689 = vst [vmem:[#allocation3 + $0x28] sm:$0xff] %v511
      %690 = vst [vmem:[#allocation3 + $0x30] sm:$0xff] %v516
      %691 = vst [vmem:[#allocation3 + $0x38] sm:$0xff] %v521
      %692 = vst [vmem:[#allocation3 + $0x40] sm:$0xff] %v526
      %693 = vst [vmem:[#allocation3 + $0x48] sm:$0xff] %v531
      %694 = vst [vmem:[#allocation3 + $0x50] sm:$0xff] %v536
      %695 = vst [vmem:[#allocation3 + $0x58] sm:$0xff] %v541
      %696 = vst [vmem:[#allocation3 + $0x60] sm:$0xff] %v546
      %697 = vst [vmem:[#allocation3 + $0x68] sm:$0xff] %v551
      %698 = vst [vmem:[#allocation3 + $0x70] sm:$0xff] %v556
      %699 = vst [vmem:[#allocation3 + $0x78] sm:$0xff] %v561
      %700 = vst [vmem:[#allocation3 + $0x80] sm:$0xff] %v566
      %701 = vst [vmem:[#allocation3 + $0x88] sm:$0xff] %v571
      %702 = vst [vmem:[#allocation3 + $0x90] sm:$0xff] %v576
      %703 = vst [vmem:[#allocation3 + $0x98] sm:$0xff] %v581
      %704 = vst [vmem:[#allocation3 + $0xa0] sm:$0xff] %v586
      %705 = vst [vmem:[#allocation3 + $0xa8] sm:$0xff] %v591
      %706 = vst [vmem:[#allocation3 + $0xb0] sm:$0xff] %v596
      %707 = vst [vmem:[#allocation3 + $0xb8] sm:$0xff] %v601
      %708 = vst [vmem:[#allocation3 + $0xc0] sm:$0xff] %v606
      %709 = vst [vmem:[#allocation3 + $0xc8] sm:$0xff] %v611
      %710 = vst [vmem:[#allocation3 + $0xd0] sm:$0xff] %v616
      %711 = vst [vmem:[#allocation3 + $0xd8] sm:$0xff] %v621
      %712 = vst [vmem:[#allocation3 + $0xe0] sm:$0xff] %v626
      %713 = vst [vmem:[#allocation3 + $0xe8] sm:$0xff] %v631
      %714 = vst [vmem:[#allocation3 + $0xf0] sm:$0xff] %v636
      %715 = vst [vmem:[#allocation3 + $0xf8] sm:$0xff] %v641
      %716 = vst [vmem:[#allocation3 + $0x100] sm:$0xff] %v646
      %717 = vst [vmem:[#allocation3 + $0x108] sm:$0xff] %v651
      %718 = vst [vmem:[#allocation3 + $0x110] sm:$0xff] %v656
      %719 = vst [vmem:[#allocation3 + $0x118] sm:$0xff] %v661
      %720 = vst [vmem:[#allocation3 + $0x120] sm:$0xff] %v666
      %721 = vst [vmem:[#allocation3 + $0x128] sm:$0xff] %v671
      %722 = vst [vmem:[#allocation3 + $0x130] sm:$0xff] %v676
      %723 = vst [vmem:[#allocation3 + $0x138] sm:$0xff] %v681
      %s724 = scalar_lea.vmem %s1, 128
      %v725 = vld [vmem:[%s724] sm:$0xff]
      %v726 = vld [vmem:[%s724 + $0x8] sm:$0xff]
      %v727 = vld [vmem:[%s724 + $0x10] sm:$0xff]
      %v728 = vld [vmem:[%s724 + $0x18] sm:$0xff]
      %v729 = vld [vmem:[%s724 + $0x20] sm:$0xff]
      %v730 = vld [vmem:[%s724 + $0x28] sm:$0xff]
      %v731 = vld [vmem:[%s724 + $0x30] sm:$0xff]
      %v732 = vld [vmem:[%s724 + $0x38] sm:$0xff]
      %v733 = vld [vmem:[%s724 + $0x40] sm:$0xff]
      %v734 = vld [vmem:[%s724 + $0x48] sm:$0xff]
      %v735 = vld [vmem:[%s724 + $0x50] sm:$0xff]
      %v736 = vld [vmem:[%s724 + $0x58] sm:$0xff]
      %v737 = vld [vmem:[%s724 + $0x60] sm:$0xff]
      %v738 = vld [vmem:[%s724 + $0x68] sm:$0xff]
      %v739 = vld [vmem:[%s724 + $0x70] sm:$0xff]
      %v740 = vld [vmem:[%s724 + $0x78] sm:$0xff]
      %741 = vmatprep.subr.mxu0 0.0
      %742 = vmatpush1.msra.mxu0 %v725
      %743 = vmatprep.subr.mxu0 0.0
      %744 = vmatpush1.msra.mxu0 %v726
      %745 = vmatprep.subr.mxu0 0.0
      %746 = vmatpush1.msra.mxu0 %v727
      %747 = vmatprep.subr.mxu0 0.0
      %748 = vmatpush1.msra.mxu0 %v728
      %749 = vmatprep.subr.mxu0 0.0
      %750 = vmatpush1.msra.mxu0 %v729
      %751 = vmatprep.subr.mxu0 0.0
      %752 = vmatpush1.msra.mxu0 %v730
      %753 = vmatprep.subr.mxu0 0.0
      %754 = vmatpush1.msra.mxu0 %v731
      %755 = vmatprep.subr.mxu0 0.0
      %756 = vmatpush1.msra.mxu0 %v732
      %757 = vmatprep.subr.mxu0 0.0
      %758 = vmatpush1.msra.mxu0 %v733
      %759 = vmatprep.subr.mxu0 0.0
      %760 = vmatpush1.msra.mxu0 %v734
      %761 = vmatprep.subr.mxu0 0.0
      %762 = vmatpush1.msra.mxu0 %v735
      %763 = vmatprep.subr.mxu0 0.0
      %764 = vmatpush1.msra.mxu0 %v736
      %765 = vmatprep.subr.mxu0 0.0
      %766 = vmatpush1.msra.mxu0 %v737
      %767 = vmatprep.subr.mxu0 0.0
      %768 = vmatpush1.msra.mxu0 %v738
      %769 = vmatprep.subr.mxu0 0.0
      %770 = vmatpush1.msra.mxu0 %v739
      %771 = vmatprep.subr.mxu0 0.0
      %772 = vmatpush1.msra.mxu0 %v740
      %773 = vmatprep.subr.mxu0 0.0
      %774 = vmatpush1.msra.mxu0 0.0
      %775 = vmatprep.subr.mxu0 0.0
      %776 = vmatpush1.msra.mxu0 0.0
      %777 = vmatprep.subr.mxu0 0.0
      %778 = vmatpush1.msra.mxu0 0.0
      %779 = vmatprep.subr.mxu0 0.0
      %780 = vmatpush1.msra.mxu0 0.0
      %781 = vmatprep.subr.mxu0 0.0
      %782 = vmatpush1.msra.mxu0 0.0
      %783 = vmatprep.subr.mxu0 0.0
      %784 = vmatpush1.msra.mxu0 0.0
      %785 = vmatprep.subr.mxu0 0.0
      %786 = vmatpush1.msra.mxu0 0.0
      %787 = vmatprep.subr.mxu0 0.0
      %788 = vmatpush1.msra.mxu0 0.0
      %789 = vmatprep.subr.mxu0 0.0
      %790 = vmatpush1.msra.mxu0 0.0
      %791 = vmatprep.subr.mxu0 0.0
      %792 = vmatpush1.msra.mxu0 0.0
      %793 = vmatprep.subr.mxu0 0.0
      %794 = vmatpush1.msra.mxu0 0.0
      %795 = vmatprep.subr.mxu0 0.0
      %796 = vmatpush1.msra.mxu0 0.0
      %797 = vmatprep.subr.mxu0 0.0
      %798 = vmatpush1.msra.mxu0 0.0
      %799 = vmatprep.subr.mxu0 0.0
      %800 = vmatpush1.msra.mxu0 0.0
      %801 = vmatprep.subr.mxu0 0.0
      %802 = vmatpush1.msra.mxu0 0.0
      %803 = vmatprep.subr.mxu0 0.0
      %804 = vmatpush1.msra.mxu0 0.0
      %805 = vmatprep.mubr.f32.mxu0 0.0
      %806 = vmatmul.mubr.f32.gmra.mrb[0].mxu0 %v363
      %v807 = vpop.f32.mrb[0].mxu0
      %v808 = vadd.f32 0.0, %v807
      %v809 = vpop.f32.mrb[0].mxu0
      %810 = vmatprep.mubr.f32.mxu0 0.0
      %811 = vmatmul.mubr.f32.gmra.mrb[0].mxu0 %v364
      %v812 = vpop.f32.mrb[0].mxu0
      %v813 = vadd.f32 0.0, %v812
      %v814 = vpop.f32.mrb[0].mxu0
      %815 = vmatprep.mubr.f32.mxu0 0.0
      %816 = vmatmul.mubr.f32.gmra.mrb[0].mxu0 %v365
      %v817 = vpop.f32.mrb[0].mxu0
      %v818 = vadd.f32 0.0, %v817
      %v819 = vpop.f32.mrb[0].mxu0
      %820 = vmatprep.mubr.f32.mxu0 0.0
      %821 = vmatmul.mubr.f32.gmra.mrb[0].mxu0 %v366
      %v822 = vpop.f32.mrb[0].mxu0
      %v823 = vadd.f32 0.0, %v822
      %v824 = vpop.f32.mrb[0].mxu0
      %825 = vmatprep.mubr.f32.mxu0 0.0
      %826 = vmatmul.mubr.f32.gmra.mrb[0].mxu0 %v367
      %v827 = vpop.f32.mrb[0].mxu0
      %v828 = vadd.f32 0.0, %v827
      %v829 = vpop.f32.mrb[0].mxu0
      %830 = vmatprep.mubr.f32.mxu0 0.0
      %831 = vmatmul.mubr.f32.gmra.mrb[0].mxu0 %v368
      %v832 = vpop.f32.mrb[0].mxu0
      %v833 = vadd.f32 0.0, %v832
      %v834 = vpop.f32.mrb[0].mxu0
      %835 = vmatprep.mubr.f32.mxu0 0.0
      %836 = vmatmul.mubr.f32.gmra.mrb[0].mxu0 %v369
      %v837 = vpop.f32.mrb[0].mxu0
      %v838 = vadd.f32 0.0, %v837
      %v839 = vpop.f32.mrb[0].mxu0
      %840 = vmatprep.mubr.f32.mxu0 0.0
      %841 = vmatmul.mubr.f32.gmra.mrb[0].mxu0 %v370
      %v842 = vpop.f32.mrb[0].mxu0
      %v843 = vadd.f32 0.0, %v842
      %v844 = vpop.f32.mrb[0].mxu0
      %845 = vmatprep.mubr.f32.mxu0 0.0
      %846 = vmatmul.mubr.f32.gmra.mrb[0].mxu0 %v371
      %v847 = vpop.f32.mrb[0].mxu0
      %v848 = vadd.f32 0.0, %v847
      %v849 = vpop.f32.mrb[0].mxu0
      %850 = vmatprep.mubr.f32.mxu0 0.0
      %851 = vmatmul.mubr.f32.gmra.mrb[0].mxu0 %v372
      %v852 = vpop.f32.mrb[0].mxu0
      %v853 = vadd.f32 0.0, %v852
      %v854 = vpop.f32.mrb[0].mxu0
      %855 = vmatprep.mubr.f32.mxu0 0.0
      %856 = vmatmul.mubr.f32.gmra.mrb[0].mxu0 %v373
      %v857 = vpop.f32.mrb[0].mxu0
      %v858 = vadd.f32 0.0, %v857
      %v859 = vpop.f32.mrb[0].mxu0
      %860 = vmatprep.mubr.f32.mxu0 0.0
      %861 = vmatmul.mubr.f32.gmra.mrb[0].mxu0 %v374
      %v862 = vpop.f32.mrb[0].mxu0
      %v863 = vadd.f32 0.0, %v862
      %v864 = vpop.f32.mrb[0].mxu0
      %865 = vmatprep.mubr.f32.mxu0 0.0
      %866 = vmatmul.mubr.f32.gmra.mrb[0].mxu0 %v375
      %v867 = vpop.f32.mrb[0].mxu0
      %v868 = vadd.f32 0.0, %v867
      %v869 = vpop.f32.mrb[0].mxu0
      %870 = vmatprep.mubr.f32.mxu0 0.0
      %871 = vmatmul.mubr.f32.gmra.mrb[0].mxu0 %v376
      %v872 = vpop.f32.mrb[0].mxu0
      %v873 = vadd.f32 0.0, %v872
      %v874 = vpop.f32.mrb[0].mxu0
      %875 = vmatprep.mubr.f32.mxu0 0.0
      %876 = vmatmul.mubr.f32.gmra.mrb[0].mxu0 %v377
      %v877 = vpop.f32.mrb[0].mxu0
      %v878 = vadd.f32 0.0, %v877
      %v879 = vpop.f32.mrb[0].mxu0
      %880 = vmatprep.mubr.f32.mxu0 0.0
      %881 = vmatmul.mubr.f32.gmra.mrb[0].mxu0 %v378
      %v882 = vpop.f32.mrb[0].mxu0
      %v883 = vadd.f32 0.0, %v882
      %v884 = vpop.f32.mrb[0].mxu0
      %885 = vmatprep.mubr.f32.mxu0 0.0
      %886 = vmatmul.mubr.f32.gmra.mrb[0].mxu0 %v379
      %v887 = vpop.f32.mrb[0].mxu0
      %v888 = vadd.f32 0.0, %v887
      %v889 = vpop.f32.mrb[0].mxu0
      %890 = vmatprep.mubr.f32.mxu0 0.0
      %891 = vmatmul.mubr.f32.gmra.mrb[0].mxu0 %v380
      %v892 = vpop.f32.mrb[0].mxu0
      %v893 = vadd.f32 0.0, %v892
      %v894 = vpop.f32.mrb[0].mxu0
      %895 = vmatprep.mubr.f32.mxu0 0.0
      %896 = vmatmul.mubr.f32.gmra.mrb[0].mxu0 %v381
      %v897 = vpop.f32.mrb[0].mxu0
      %v898 = vadd.f32 0.0, %v897
      %v899 = vpop.f32.mrb[0].mxu0
      %900 = vmatprep.mubr.f32.mxu0 0.0
      %901 = vmatmul.mubr.f32.gmra.mrb[0].mxu0 %v382
      %v902 = vpop.f32.mrb[0].mxu0
      %v903 = vadd.f32 0.0, %v902
      %v904 = vpop.f32.mrb[0].mxu0
      %905 = vmatprep.mubr.f32.mxu0 0.0
      %906 = vmatmul.mubr.f32.gmra.mrb[0].mxu0 %v383
      %v907 = vpop.f32.mrb[0].mxu0
      %v908 = vadd.f32 0.0, %v907
      %v909 = vpop.f32.mrb[0].mxu0
      %910 = vmatprep.mubr.f32.mxu0 0.0
      %911 = vmatmul.mubr.f32.gmra.mrb[0].mxu0 %v384
      %v912 = vpop.f32.mrb[0].mxu0
      %v913 = vadd.f32 0.0, %v912
      %v914 = vpop.f32.mrb[0].mxu0
      %915 = vmatprep.mubr.f32.mxu0 0.0
      %916 = vmatmul.mubr.f32.gmra.mrb[0].mxu0 %v385
      %v917 = vpop.f32.mrb[0].mxu0
      %v918 = vadd.f32 0.0, %v917
      %v919 = vpop.f32.mrb[0].mxu0
      %920 = vmatprep.mubr.f32.mxu0 0.0
      %921 = vmatmul.mubr.f32.gmra.mrb[0].mxu0 %v386
      %v922 = vpop.f32.mrb[0].mxu0
      %v923 = vadd.f32 0.0, %v922
      %v924 = vpop.f32.mrb[0].mxu0
      %925 = vmatprep.mubr.f32.mxu0 0.0
      %926 = vmatmul.mubr.f32.gmra.mrb[0].mxu0 %v387
      %v927 = vpop.f32.mrb[0].mxu0
      %v928 = vadd.f32 0.0, %v927
      %v929 = vpop.f32.mrb[0].mxu0
      %930 = vmatprep.mubr.f32.mxu0 0.0
      %931 = vmatmul.mubr.f32.gmra.mrb[0].mxu0 %v388
      %v932 = vpop.f32.mrb[0].mxu0
      %v933 = vadd.f32 0.0, %v932
      %v934 = vpop.f32.mrb[0].mxu0
      %935 = vmatprep.mubr.f32.mxu0 0.0
      %936 = vmatmul.mubr.f32.gmra.mrb[0].mxu0 %v389
      %v937 = vpop.f32.mrb[0].mxu0
      %v938 = vadd.f32 0.0, %v937
      %v939 = vpop.f32.mrb[0].mxu0
      %940 = vmatprep.mubr.f32.mxu0 0.0
      %941 = vmatmul.mubr.f32.gmra.mrb[0].mxu0 %v390
      %v942 = vpop.f32.mrb[0].mxu0
      %v943 = vadd.f32 0.0, %v942
      %v944 = vpop.f32.mrb[0].mxu0
      %945 = vmatprep.mubr.f32.mxu0 0.0
      %946 = vmatmul.mubr.f32.gmra.mrb[0].mxu0 %v391
      %v947 = vpop.f32.mrb[0].mxu0
      %v948 = vadd.f32 0.0, %v947
      %v949 = vpop.f32.mrb[0].mxu0
      %950 = vmatprep.mubr.f32.mxu0 0.0
      %951 = vmatmul.mubr.f32.gmra.mrb[0].mxu0 %v392
      %v952 = vpop.f32.mrb[0].mxu0
      %v953 = vadd.f32 0.0, %v952
      %v954 = vpop.f32.mrb[0].mxu0
      %955 = vmatprep.mubr.f32.mxu0 0.0
      %956 = vmatmul.mubr.f32.gmra.mrb[0].mxu0 %v393
      %v957 = vpop.f32.mrb[0].mxu0
      %v958 = vadd.f32 0.0, %v957
      %v959 = vpop.f32.mrb[0].mxu0
      %960 = vmatprep.mubr.f32.mxu0 0.0
      %961 = vmatmul.mubr.f32.gmra.mrb[0].mxu0 %v394
      %v962 = vpop.f32.mrb[0].mxu0
      %v963 = vadd.f32 0.0, %v962
      %v964 = vpop.f32.mrb[0].mxu0
      %965 = vmatprep.mubr.f32.mxu0 0.0
      %966 = vmatmul.mubr.f32.gmra.mrb[0].mxu0 %v395
      %v967 = vpop.f32.mrb[0].mxu0
      %v968 = vadd.f32 0.0, %v967
      %v969 = vpop.f32.mrb[0].mxu0
      %970 = vmatprep.mubr.f32.mxu0 0.0
      %971 = vmatmul.mubr.f32.gmra.mrb[0].mxu0 %v396
      %v972 = vpop.f32.mrb[0].mxu0
      %v973 = vadd.f32 0.0, %v972
      %v974 = vpop.f32.mrb[0].mxu0
      %975 = vmatprep.mubr.f32.mxu0 0.0
      %976 = vmatmul.mubr.f32.gmra.mrb[0].mxu0 %v397
      %v977 = vpop.f32.mrb[0].mxu0
      %v978 = vadd.f32 0.0, %v977
      %v979 = vpop.f32.mrb[0].mxu0
      %980 = vmatprep.mubr.f32.mxu0 0.0
      %981 = vmatmul.mubr.f32.gmra.mrb[0].mxu0 %v398
      %v982 = vpop.f32.mrb[0].mxu0
      %v983 = vadd.f32 0.0, %v982
      %v984 = vpop.f32.mrb[0].mxu0
      %985 = vmatprep.mubr.f32.mxu0 0.0
      %986 = vmatmul.mubr.f32.gmra.mrb[0].mxu0 %v399
      %v987 = vpop.f32.mrb[0].mxu0
      %v988 = vadd.f32 0.0, %v987
      %v989 = vpop.f32.mrb[0].mxu0
      %990 = vmatprep.mubr.f32.mxu0 0.0
      %991 = vmatmul.mubr.f32.gmra.mrb[0].mxu0 %v400
      %v992 = vpop.f32.mrb[0].mxu0
      %v993 = vadd.f32 0.0, %v992
      %v994 = vpop.f32.mrb[0].mxu0
      %995 = vmatprep.mubr.f32.mxu0 0.0
      %996 = vmatmul.mubr.f32.gmra.mrb[0].mxu0 %v401
      %v997 = vpop.f32.mrb[0].mxu0
      %v998 = vadd.f32 0.0, %v997
      %v999 = vpop.f32.mrb[0].mxu0
      %1000 = vmatprep.mubr.f32.mxu0 0.0
      %1001 = vmatmul.mubr.f32.gmra.mrb[0].mxu0 %v402
      %v1002 = vpop.f32.mrb[0].mxu0
      %v1003 = vadd.f32 0.0, %v1002
      %v1004 = vpop.f32.mrb[0].mxu0
      %1005 = vdwg.mxu0
      %s1006 = scalar_lea.vmem [#allocation3], 320
      %1007 = vst [vmem:[%s1006] sm:$0xff] %v808
      %1008 = vst [vmem:[%s1006 + $0x8] sm:$0xff] %v813
      %1009 = vst [vmem:[%s1006 + $0x10] sm:$0xff] %v818
      %1010 = vst [vmem:[%s1006 + $0x18] sm:$0xff] %v823
      %1011 = vst [vmem:[%s1006 + $0x20] sm:$0xff] %v828
      %1012 = vst [vmem:[%s1006 + $0x28] sm:$0xff] %v833
      %1013 = vst [vmem:[%s1006 + $0x30] sm:$0xff] %v838
      %1014 = vst [vmem:[%s1006 + $0x38] sm:$0xff] %v843
      %1015 = vst [vmem:[%s1006 + $0x40] sm:$0xff] %v848
      %1016 = vst [vmem:[%s1006 + $0x48] sm:$0xff] %v853
      %1017 = vst [vmem:[%s1006 + $0x50] sm:$0xff] %v858
      %1018 = vst [vmem:[%s1006 + $0x58] sm:$0xff] %v863
      %1019 = vst [vmem:[%s1006 + $0x60] sm:$0xff] %v868
      %1020 = vst [vmem:[%s1006 + $0x68] sm:$0xff] %v873
      %1021 = vst [vmem:[%s1006 + $0x70] sm:$0xff] %v878
      %1022 = vst [vmem:[%s1006 + $0x78] sm:$0xff] %v883
      %1023 = vst [vmem:[%s1006 + $0x80] sm:$0xff] %v888
      %1024 = vst [vmem:[%s1006 + $0x88] sm:$0xff] %v893
      %1025 = vst [vmem:[%s1006 + $0x90] sm:$0xff] %v898
      %1026 = vst [vmem:[%s1006 + $0x98] sm:$0xff] %v903
      %1027 = vst [vmem:[%s1006 + $0xa0] sm:$0xff] %v908
      %1028 = vst [vmem:[%s1006 + $0xa8] sm:$0xff] %v913
      %1029 = vst [vmem:[%s1006 + $0xb0] sm:$0xff] %v918
      %1030 = vst [vmem:[%s1006 + $0xb8] sm:$0xff] %v923
      %1031 = vst [vmem:[%s1006 + $0xc0] sm:$0xff] %v928
      %1032 = vst [vmem:[%s1006 + $0xc8] sm:$0xff] %v933
      %1033 = vst [vmem:[%s1006 + $0xd0] sm:$0xff] %v938
      %1034 = vst [vmem:[%s1006 + $0xd8] sm:$0xff] %v943
      %1035 = vst [vmem:[%s1006 + $0xe0] sm:$0xff] %v948
      %1036 = vst [vmem:[%s1006 + $0xe8] sm:$0xff] %v953
      %1037 = vst [vmem:[%s1006 + $0xf0] sm:$0xff] %v958
      %1038 = vst [vmem:[%s1006 + $0xf8] sm:$0xff] %v963
      %1039 = vst [vmem:[%s1006 + $0x100] sm:$0xff] %v968
      %1040 = vst [vmem:[%s1006 + $0x108] sm:$0xff] %v973
      %1041 = vst [vmem:[%s1006 + $0x110] sm:$0xff] %v978
      %1042 = vst [vmem:[%s1006 + $0x118] sm:$0xff] %v983
      %1043 = vst [vmem:[%s1006 + $0x120] sm:$0xff] %v988
      %1044 = vst [vmem:[%s1006 + $0x128] sm:$0xff] %v993
      %1045 = vst [vmem:[%s1006 + $0x130] sm:$0xff] %v998
      %1046 = vst [vmem:[%s1006 + $0x138] sm:$0xff] %v1003
      %s1047 = scalar_lea.vmem %s1, 256
      %v1048 = vld [vmem:[%s1047] sm:$0xff]
      %v1049 = vld [vmem:[%s1047 + $0x8] sm:$0xff]
      %v1050 = vld [vmem:[%s1047 + $0x10] sm:$0xff]
      %v1051 = vld [vmem:[%s1047 + $0x18] sm:$0xff]
      %v1052 = vld [vmem:[%s1047 + $0x20] sm:$0xff]
      %v1053 = vld [vmem:[%s1047 + $0x28] sm:$0xff]
      %v1054 = vld [vmem:[%s1047 + $0x30] sm:$0xff]
      %v1055 = vld [vmem:[%s1047 + $0x38] sm:$0xff]
      %v1056 = vld [vmem:[%s1047 + $0x40] sm:$0xff]
      %v1057 = vld [vmem:[%s1047 + $0x48] sm:$0xff]
      %v1058 = vld [vmem:[%s1047 + $0x50] sm:$0xff]
      %v1059 = vld [vmem:[%s1047 + $0x58] sm:$0xff]
      %v1060 = vld [vmem:[%s1047 + $0x60] sm:$0xff]
      %v1061 = vld [vmem:[%s1047 + $0x68] sm:$0xff]
      %v1062 = vld [vmem:[%s1047 + $0x70] sm:$0xff]
      %v1063 = vld [vmem:[%s1047 + $0x78] sm:$0xff]
      %1064 = vmatprep.subr.mxu0 0.0
      %1065 = vmatpush1.msra.mxu0 %v1048
      %1066 = vmatprep.subr.mxu0 0.0
      %1067 = vmatpush1.msra.mxu0 %v1049
      %1068 = vmatprep.subr.mxu0 0.0
      %1069 = vmatpush1.msra.mxu0 %v1050
      %1070 = vmatprep.subr.mxu0 0.0
      %1071 = vmatpush1.msra.mxu0 %v1051
      %1072 = vmatprep.subr.mxu0 0.0
      %1073 = vmatpush1.msra.mxu0 %v1052
      %1074 = vmatprep.subr.mxu0 0.0
      %1075 = vmatpush1.msra.mxu0 %v1053
      %1076 = vmatprep.subr.mxu0 0.0
      %1077 = vmatpush1.msra.mxu0 %v1054
      %1078 = vmatprep.subr.mxu0 0.0
      %1079 = vmatpush1.msra.mxu0 %v1055
      %1080 = vmatprep.subr.mxu0 0.0
      %1081 = vmatpush1.msra.mxu0 %v1056
      %1082 = vmatprep.subr.mxu0 0.0
      %1083 = vmatpush1.msra.mxu0 %v1057
      %1084 = vmatprep.subr.mxu0 0.0
      %1085 = vmatpush1.msra.mxu0 %v1058
      %1086 = vmatprep.subr.mxu0 0.0
      %1087 = vmatpush1.msra.mxu0 %v1059
      %1088 = vmatprep.subr.mxu0 0.0
      %1089 = vmatpush1.msra.mxu0 %v1060
      %1090 = vmatprep.subr.mxu0 0.0
      %1091 = vmatpush1.msra.mxu0 %v1061
      %1092 = vmatprep.subr.mxu0 0.0
      %1093 = vmatpush1.msra.mxu0 %v1062
      %1094 = vmatprep.subr.mxu0 0.0
      %1095 = vmatpush1.msra.mxu0 %v1063
      %1096 = vmatprep.subr.mxu0 0.0
      %1097 = vmatpush1.msra.mxu0 0.0
      %1098 = vmatprep.subr.mxu0 0.0
      %1099 = vmatpush1.msra.mxu0 0.0
      %1100 = vmatprep.subr.mxu0 0.0
      %1101 = vmatpush1.msra.mxu0 0.0
      %1102 = vmatprep.subr.mxu0 0.0
      %1103 = vmatpush1.msra.mxu0 0.0
      %1104 = vmatprep.subr.mxu0 0.0
      %1105 = vmatpush1.msra.mxu0 0.0
      %1106 = vmatprep.subr.mxu0 0.0
      %1107 = vmatpush1.msra.mxu0 0.0
      %1108 = vmatprep.subr.mxu0 0.0
      %1109 = vmatpush1.msra.mxu0 0.0
      %1110 = vmatprep.subr.mxu0 0.0
      %1111 = vmatpush1.msra.mxu0 0.0
      %1112 = vmatprep.subr.mxu0 0.0
      %1113 = vmatpush1.msra.mxu0 0.0
      %1114 = vmatprep.subr.mxu0 0.0
      %1115 = vmatpush1.msra.mxu0 0.0
      %1116 = vmatprep.subr.mxu0 0.0
      %1117 = vmatpush1.msra.mxu0 0.0
      %1118 = vmatprep.subr.mxu0 0.0
      %1119 = vmatpush1.msra.mxu0 0.0
      %1120 = vmatprep.subr.mxu0 0.0
      %1121 = vmatpush1.msra.mxu0 0.0
      %1122 = vmatprep.subr.mxu0 0.0
      %1123 = vmatpush1.msra.mxu0 0.0
      %1124 = vmatprep.subr.mxu0 0.0
      %1125 = vmatpush1.msra.mxu0 0.0
      %1126 = vmatprep.subr.mxu0 0.0
      %1127 = vmatpush1.msra.mxu0 0.0
      %1128 = vmatprep.mubr.f32.mxu0 0.0
      %1129 = vmatmul.mubr.f32.gmra.mrb[0].mxu0 %v363
      %v1130 = vpop.f32.mrb[0].mxu0
      %v1131 = vadd.f32 0.0, %v1130
      %v1132 = vpop.f32.mrb[0].mxu0
      %1133 = vmatprep.mubr.f32.mxu0 0.0
      %1134 = vmatmul.mubr.f32.gmra.mrb[0].mxu0 %v364
      %v1135 = vpop.f32.mrb[0].mxu0
      %v1136 = vadd.f32 0.0, %v1135
      %v1137 = vpop.f32.mrb[0].mxu0
      %1138 = vmatprep.mubr.f32.mxu0 0.0
      %1139 = vmatmul.mubr.f32.gmra.mrb[0].mxu0 %v365
      %v1140 = vpop.f32.mrb[0].mxu0
      %v1141 = vadd.f32 0.0, %v1140
      %v1142 = vpop.f32.mrb[0].mxu0
      %1143 = vmatprep.mubr.f32.mxu0 0.0
      %1144 = vmatmul.mubr.f32.gmra.mrb[0].mxu0 %v366
      %v1145 = vpop.f32.mrb[0].mxu0
      %v1146 = vadd.f32 0.0, %v1145
      %v1147 = vpop.f32.mrb[0].mxu0
      %1148 = vmatprep.mubr.f32.mxu0 0.0
      %1149 = vmatmul.mubr.f32.gmra.mrb[0].mxu0 %v367
      %v1150 = vpop.f32.mrb[0].mxu0
      %v1151 = vadd.f32 0.0, %v1150
      %v1152 = vpop.f32.mrb[0].mxu0
      %1153 = vmatprep.mubr.f32.mxu0 0.0
      %1154 = vmatmul.mubr.f32.gmra.mrb[0].mxu0 %v368
      %v1155 = vpop.f32.mrb[0].mxu0
      %v1156 = vadd.f32 0.0, %v1155
      %v1157 = vpop.f32.mrb[0].mxu0
      %1158 = vmatprep.mubr.f32.mxu0 0.0
      %1159 = vmatmul.mubr.f32.gmra.mrb[0].mxu0 %v369
      %v1160 = vpop.f32.mrb[0].mxu0
      %v1161 = vadd.f32 0.0, %v1160
      %v1162 = vpop.f32.mrb[0].mxu0
      %1163 = vmatprep.mubr.f32.mxu0 0.0
      %1164 = vmatmul.mubr.f32.gmra.mrb[0].mxu0 %v370
      %v1165 = vpop.f32.mrb[0].mxu0
      %v1166 = vadd.f32 0.0, %v1165
      %v1167 = vpop.f32.mrb[0].mxu0
      %1168 = vmatprep.mubr.f32.mxu0 0.0
      %1169 = vmatmul.mubr.f32.gmra.mrb[0].mxu0 %v371
      %v1170 = vpop.f32.mrb[0].mxu0
      %v1171 = vadd.f32 0.0, %v1170
      %v1172 = vpop.f32.mrb[0].mxu0
      %1173 = vmatprep.mubr.f32.mxu0 0.0
      %1174 = vmatmul.mubr.f32.gmra.mrb[0].mxu0 %v372
      %v1175 = vpop.f32.mrb[0].mxu0
      %v1176 = vadd.f32 0.0, %v1175
      %v1177 = vpop.f32.mrb[0].mxu0
      %1178 = vmatprep.mubr.f32.mxu0 0.0
      %1179 = vmatmul.mubr.f32.gmra.mrb[0].mxu0 %v373
      %v1180 = vpop.f32.mrb[0].mxu0
      %v1181 = vadd.f32 0.0, %v1180
      %v1182 = vpop.f32.mrb[0].mxu0
      %1183 = vmatprep.mubr.f32.mxu0 0.0
      %1184 = vmatmul.mubr.f32.gmra.mrb[0].mxu0 %v374
      %v1185 = vpop.f32.mrb[0].mxu0
      %v1186 = vadd.f32 0.0, %v1185
      %v1187 = vpop.f32.mrb[0].mxu0
      %1188 = vmatprep.mubr.f32.mxu0 0.0
      %1189 = vmatmul.mubr.f32.gmra.mrb[0].mxu0 %v375
      %v1190 = vpop.f32.mrb[0].mxu0
      %v1191 = vadd.f32 0.0, %v1190
      %v1192 = vpop.f32.mrb[0].mxu0
      %1193 = vmatprep.mubr.f32.mxu0 0.0
      %1194 = vmatmul.mubr.f32.gmra.mrb[0].mxu0 %v376
      %v1195 = vpop.f32.mrb[0].mxu0
      %v1196 = vadd.f32 0.0, %v1195
      %v1197 = vpop.f32.mrb[0].mxu0
      %1198 = vmatprep.mubr.f32.mxu0 0.0
      %1199 = vmatmul.mubr.f32.gmra.mrb[0].mxu0 %v377
      %v1200 = vpop.f32.mrb[0].mxu0
      %v1201 = vadd.f32 0.0, %v1200
      %v1202 = vpop.f32.mrb[0].mxu0
      %1203 = vmatprep.mubr.f32.mxu0 0.0
      %1204 = vmatmul.mubr.f32.gmra.mrb[0].mxu0 %v378
      %v1205 = vpop.f32.mrb[0].mxu0
      %v1206 = vadd.f32 0.0, %v1205
      %v1207 = vpop.f32.mrb[0].mxu0
      %1208 = vmatprep.mubr.f32.mxu0 0.0
      %1209 = vmatmul.mubr.f32.gmra.mrb[0].mxu0 %v379
      %v1210 = vpop.f32.mrb[0].mxu0
      %v1211 = vadd.f32 0.0, %v1210
      %v1212 = vpop.f32.mrb[0].mxu0
      %1213 = vmatprep.mubr.f32.mxu0 0.0
      %1214 = vmatmul.mubr.f32.gmra.mrb[0].mxu0 %v380
      %v1215 = vpop.f32.mrb[0].mxu0
      %v1216 = vadd.f32 0.0, %v1215
      %v1217 = vpop.f32.mrb[0].mxu0
      %1218 = vmatprep.mubr.f32.mxu0 0.0
      %1219 = vmatmul.mubr.f32.gmra.mrb[0].mxu0 %v381
      %v1220 = vpop.f32.mrb[0].mxu0
      %v1221 = vadd.f32 0.0, %v1220
      %v1222 = vpop.f32.mrb[0].mxu0
      %1223 = vmatprep.mubr.f32.mxu0 0.0
      %1224 = vmatmul.mubr.f32.gmra.mrb[0].mxu0 %v382
      %v1225 = vpop.f32.mrb[0].mxu0
      %v1226 = vadd.f32 0.0, %v1225
      %v1227 = vpop.f32.mrb[0].mxu0
      %1228 = vmatprep.mubr.f32.mxu0 0.0
      %1229 = vmatmul.mubr.f32.gmra.mrb[0].mxu0 %v383
      %v1230 = vpop.f32.mrb[0].mxu0
      %v1231 = vadd.f32 0.0, %v1230
      %v1232 = vpop.f32.mrb[0].mxu0
      %1233 = vmatprep.mubr.f32.mxu0 0.0
      %1234 = vmatmul.mubr.f32.gmra.mrb[0].mxu0 %v384
      %v1235 = vpop.f32.mrb[0].mxu0
      %v1236 = vadd.f32 0.0, %v1235
      %v1237 = vpop.f32.mrb[0].mxu0
      %1238 = vmatprep.mubr.f32.mxu0 0.0
      %1239 = vmatmul.mubr.f32.gmra.mrb[0].mxu0 %v385
      %v1240 = vpop.f32.mrb[0].mxu0
      %v1241 = vadd.f32 0.0, %v1240
      %v1242 = vpop.f32.mrb[0].mxu0
      %1243 = vmatprep.mubr.f32.mxu0 0.0
      %1244 = vmatmul.mubr.f32.gmra.mrb[0].mxu0 %v386
      %v1245 = vpop.f32.mrb[0].mxu0
      %v1246 = vadd.f32 0.0, %v1245
      %v1247 = vpop.f32.mrb[0].mxu0
      %1248 = vmatprep.mubr.f32.mxu0 0.0
      %1249 = vmatmul.mubr.f32.gmra.mrb[0].mxu0 %v387
      %v1250 = vpop.f32.mrb[0].mxu0
      %v1251 = vadd.f32 0.0, %v1250
      %v1252 = vpop.f32.mrb[0].mxu0
      %1253 = vmatprep.mubr.f32.mxu0 0.0
      %1254 = vmatmul.mubr.f32.gmra.mrb[0].mxu0 %v388
      %v1255 = vpop.f32.mrb[0].mxu0
      %v1256 = vadd.f32 0.0, %v1255
      %v1257 = vpop.f32.mrb[0].mxu0
      %1258 = vmatprep.mubr.f32.mxu0 0.0
      %1259 = vmatmul.mubr.f32.gmra.mrb[0].mxu0 %v389
      %v1260 = vpop.f32.mrb[0].mxu0
      %v1261 = vadd.f32 0.0, %v1260
      %v1262 = vpop.f32.mrb[0].mxu0
      %1263 = vmatprep.mubr.f32.mxu0 0.0
      %1264 = vmatmul.mubr.f32.gmra.mrb[0].mxu0 %v390
      %v1265 = vpop.f32.mrb[0].mxu0
      %v1266 = vadd.f32 0.0, %v1265
      %v1267 = vpop.f32.mrb[0].mxu0
      %1268 = vmatprep.mubr.f32.mxu0 0.0
      %1269 = vmatmul.mubr.f32.gmra.mrb[0].mxu0 %v391
      %v1270 = vpop.f32.mrb[0].mxu0
      %v1271 = vadd.f32 0.0, %v1270
      %v1272 = vpop.f32.mrb[0].mxu0
      %1273 = vmatprep.mubr.f32.mxu0 0.0
      %1274 = vmatmul.mubr.f32.gmra.mrb[0].mxu0 %v392
      %v1275 = vpop.f32.mrb[0].mxu0
      %v1276 = vadd.f32 0.0, %v1275
      %v1277 = vpop.f32.mrb[0].mxu0
      %1278 = vmatprep.mubr.f32.mxu0 0.0
      %1279 = vmatmul.mubr.f32.gmra.mrb[0].mxu0 %v393
      %v1280 = vpop.f32.mrb[0].mxu0
      %v1281 = vadd.f32 0.0, %v1280
      %v1282 = vpop.f32.mrb[0].mxu0
      %1283 = vmatprep.mubr.f32.mxu0 0.0
      %1284 = vmatmul.mubr.f32.gmra.mrb[0].mxu0 %v394
      %v1285 = vpop.f32.mrb[0].mxu0
      %v1286 = vadd.f32 0.0, %v1285
      %v1287 = vpop.f32.mrb[0].mxu0
      %1288 = vmatprep.mubr.f32.mxu0 0.0
      %1289 = vmatmul.mubr.f32.gmra.mrb[0].mxu0 %v395
      %v1290 = vpop.f32.mrb[0].mxu0
      %v1291 = vadd.f32 0.0, %v1290
      %v1292 = vpop.f32.mrb[0].mxu0
      %1293 = vmatprep.mubr.f32.mxu0 0.0
      %1294 = vmatmul.mubr.f32.gmra.mrb[0].mxu0 %v396
      %v1295 = vpop.f32.mrb[0].mxu0
      %v1296 = vadd.f32 0.0, %v1295
      %v1297 = vpop.f32.mrb[0].mxu0
      %1298 = vmatprep.mubr.f32.mxu0 0.0
      %1299 = vmatmul.mubr.f32.gmra.mrb[0].mxu0 %v397
      %v1300 = vpop.f32.mrb[0].mxu0
      %v1301 = vadd.f32 0.0, %v1300
      %v1302 = vpop.f32.mrb[0].mxu0
      %1303 = vmatprep.mubr.f32.mxu0 0.0
      %1304 = vmatmul.mubr.f32.gmra.mrb[0].mxu0 %v398
      %v1305 = vpop.f32.mrb[0].mxu0
      %v1306 = vadd.f32 0.0, %v1305
      %v1307 = vpop.f32.mrb[0].mxu0
      %1308 = vmatprep.mubr.f32.mxu0 0.0
      %1309 = vmatmul.mubr.f32.gmra.mrb[0].mxu0 %v399
      %v1310 = vpop.f32.mrb[0].mxu0
      %v1311 = vadd.f32 0.0, %v1310
      %v1312 = vpop.f32.mrb[0].mxu0
      %1313 = vmatprep.mubr.f32.mxu0 0.0
      %1314 = vmatmul.mubr.f32.gmra.mrb[0].mxu0 %v400
      %v1315 = vpop.f32.mrb[0].mxu0
      %v1316 = vadd.f32 0.0, %v1315
      %v1317 = vpop.f32.mrb[0].mxu0
      %1318 = vmatprep.mubr.f32.mxu0 0.0
      %1319 = vmatmul.mubr.f32.gmra.mrb[0].mxu0 %v401
      %v1320 = vpop.f32.mrb[0].mxu0
      %v1321 = vadd.f32 0.0, %v1320
      %v1322 = vpop.f32.mrb[0].mxu0
      %1323 = vmatprep.mubr.f32.mxu0 0.0
      %1324 = vmatmul.mubr.f32.gmra.mrb[0].mxu0 %v402
      %v1325 = vpop.f32.mrb[0].mxu0
      %v1326 = vadd.f32 0.0, %v1325
      %v1327 = vpop.f32.mrb[0].mxu0
      %1328 = vdwg.mxu0
      %s1329 = scalar_lea.vmem [#allocation3], 640
      %1330 = vst [vmem:[%s1329] sm:$0xff] %v1131
      %1331 = vst [vmem:[%s1329 + $0x8] sm:$0xff] %v1136
      %1332 = vst [vmem:[%s1329 + $0x10] sm:$0xff] %v1141
      %1333 = vst [vmem:[%s1329 + $0x18] sm:$0xff] %v1146
      %1334 = vst [vmem:[%s1329 + $0x20] sm:$0xff] %v1151
      %1335 = vst [vmem:[%s1329 + $0x28] sm:$0xff] %v1156
      %1336 = vst [vmem:[%s1329 + $0x30] sm:$0xff] %v1161
      %1337 = vst [vmem:[%s1329 + $0x38] sm:$0xff] %v1166
      %1338 = vst [vmem:[%s1329 + $0x40] sm:$0xff] %v1171
      %1339 = vst [vmem:[%s1329 + $0x48] sm:$0xff] %v1176
      %1340 = vst [vmem:[%s1329 + $0x50] sm:$0xff] %v1181
      %1341 = vst [vmem:[%s1329 + $0x58] sm:$0xff] %v1186
      %1342 = vst [vmem:[%s1329 + $0x60] sm:$0xff] %v1191
      %1343 = vst [vmem:[%s1329 + $0x68] sm:$0xff] %v1196
      %1344 = vst [vmem:[%s1329 + $0x70] sm:$0xff] %v1201
      %1345 = vst [vmem:[%s1329 + $0x78] sm:$0xff] %v1206
      %1346 = vst [vmem:[%s1329 + $0x80] sm:$0xff] %v1211
      %1347 = vst [vmem:[%s1329 + $0x88] sm:$0xff] %v1216
      %1348 = vst [vmem:[%s1329 + $0x90] sm:$0xff] %v1221
      %1349 = vst [vmem:[%s1329 + $0x98] sm:$0xff] %v1226
      %1350 = vst [vmem:[%s1329 + $0xa0] sm:$0xff] %v1231
      %1351 = vst [vmem:[%s1329 + $0xa8] sm:$0xff] %v1236
      %1352 = vst [vmem:[%s1329 + $0xb0] sm:$0xff] %v1241
      %1353 = vst [vmem:[%s1329 + $0xb8] sm:$0xff] %v1246
      %1354 = vst [vmem:[%s1329 + $0xc0] sm:$0xff] %v1251
      %1355 = vst [vmem:[%s1329 + $0xc8] sm:$0xff] %v1256
      %1356 = vst [vmem:[%s1329 + $0xd0] sm:$0xff] %v1261
      %1357 = vst [vmem:[%s1329 + $0xd8] sm:$0xff] %v1266
      %1358 = vst [vmem:[%s1329 + $0xe0] sm:$0xff] %v1271
      %1359 = vst [vmem:[%s1329 + $0xe8] sm:$0xff] %v1276
      %1360 = vst [vmem:[%s1329 + $0xf0] sm:$0xff] %v1281
      %1361 = vst [vmem:[%s1329 + $0xf8] sm:$0xff] %v1286
      %1362 = vst [vmem:[%s1329 + $0x100] sm:$0xff] %v1291
      %1363 = vst [vmem:[%s1329 + $0x108] sm:$0xff] %v1296
      %1364 = vst [vmem:[%s1329 + $0x110] sm:$0xff] %v1301
      %1365 = vst [vmem:[%s1329 + $0x118] sm:$0xff] %v1306
      %1366 = vst [vmem:[%s1329 + $0x120] sm:$0xff] %v1311
      %1367 = vst [vmem:[%s1329 + $0x128] sm:$0xff] %v1316
      %1368 = vst [vmem:[%s1329 + $0x130] sm:$0xff] %v1321
      %1369 = vst [vmem:[%s1329 + $0x138] sm:$0xff] %v1326
      %s1370 = scalar_lea.vmem [#allocation2], 40
      %v1371 = vld [vmem:[%s1370] sm:$0xff]
      %v1372 = vld [vmem:[%s1370 + $0x8] sm:$0xff]
      %v1373 = vld [vmem:[%s1370 + $0x10] sm:$0xff]
      %v1374 = vld [vmem:[%s1370 + $0x18] sm:$0xff]
      %v1375 = vld [vmem:[%s1370 + $0x20] sm:$0xff]
      %v1376 = vld [vmem:[%s1370 + $0x28] sm:$0xff]
      %v1377 = vld [vmem:[%s1370 + $0x30] sm:$0xff]
      %v1378 = vld [vmem:[%s1370 + $0x38] sm:$0xff]
      %v1379 = vld [vmem:[%s1370 + $0x40] sm:$0xff]
      %v1380 = vld [vmem:[%s1370 + $0x48] sm:$0xff]
      %v1381 = vld [vmem:[%s1370 + $0x50] sm:$0xff]
      %v1382 = vld [vmem:[%s1370 + $0x58] sm:$0xff]
      %v1383 = vld [vmem:[%s1370 + $0x60] sm:$0xff]
      %v1384 = vld [vmem:[%s1370 + $0x68] sm:$0xff]
      %v1385 = vld [vmem:[%s1370 + $0x70] sm:$0xff]
      %v1386 = vld [vmem:[%s1370 + $0x78] sm:$0xff]
      %v1387 = vld [vmem:[%s1370 + $0x80] sm:$0xff]
      %v1388 = vld [vmem:[%s1370 + $0x88] sm:$0xff]
      %v1389 = vld [vmem:[%s1370 + $0x90] sm:$0xff]
      %v1390 = vld [vmem:[%s1370 + $0x98] sm:$0xff]
      %v1391 = vld [vmem:[%s1370 + $0xa0] sm:$0xff]
      %v1392 = vld [vmem:[%s1370 + $0xa8] sm:$0xff]
      %v1393 = vld [vmem:[%s1370 + $0xb0] sm:$0xff]
      %v1394 = vld [vmem:[%s1370 + $0xb8] sm:$0xff]
      %v1395 = vld [vmem:[%s1370 + $0xc0] sm:$0xff]
      %v1396 = vld [vmem:[%s1370 + $0xc8] sm:$0xff]
      %v1397 = vld [vmem:[%s1370 + $0xd0] sm:$0xff]
      %v1398 = vld [vmem:[%s1370 + $0xd8] sm:$0xff]
      %v1399 = vld [vmem:[%s1370 + $0xe0] sm:$0xff]
      %v1400 = vld [vmem:[%s1370 + $0xe8] sm:$0xff]
      %v1401 = vld [vmem:[%s1370 + $0xf0] sm:$0xff]
      %v1402 = vld [vmem:[%s1370 + $0xf8] sm:$0xff]
      %v1403 = vld [vmem:[%s1370 + $0x100] sm:$0xff]
      %v1404 = vld [vmem:[%s1370 + $0x108] sm:$0xff]
      %v1405 = vld [vmem:[%s1370 + $0x110] sm:$0xff]
      %v1406 = vld [vmem:[%s1370 + $0x118] sm:$0xff]
      %v1407 = vld [vmem:[%s1370 + $0x120] sm:$0xff]
      %v1408 = vld [vmem:[%s1370 + $0x128] sm:$0xff]
      %v1409 = vld [vmem:[%s1370 + $0x130] sm:$0xff]
      %v1410 = vld [vmem:[%s1370 + $0x138] sm:$0xff]
      %s1411 = scalar_lea.vmem %s1, 384
      %v1412 = vld [vmem:[%s1411] sm:$0xff]
      %v1413 = vld [vmem:[%s1411 + $0x8] sm:$0xff]
      %v1414 = vld [vmem:[%s1411 + $0x10] sm:$0xff]
      %v1415 = vld [vmem:[%s1411 + $0x18] sm:$0xff]
      %v1416 = vld [vmem:[%s1411 + $0x20] sm:$0xff]
      %v1417 = vld [vmem:[%s1411 + $0x28] sm:$0xff]
      %v1418 = vld [vmem:[%s1411 + $0x30] sm:$0xff]
      %v1419 = vld [vmem:[%s1411 + $0x38] sm:$0xff]
      %v1420 = vld [vmem:[%s1411 + $0x40] sm:$0xff]
      %v1421 = vld [vmem:[%s1411 + $0x48] sm:$0xff]
      %v1422 = vld [vmem:[%s1411 + $0x50] sm:$0xff]
      %v1423 = vld [vmem:[%s1411 + $0x58] sm:$0xff]
      %v1424 = vld [vmem:[%s1411 + $0x60] sm:$0xff]
      %v1425 = vld [vmem:[%s1411 + $0x68] sm:$0xff]
      %v1426 = vld [vmem:[%s1411 + $0x70] sm:$0xff]
      %v1427 = vld [vmem:[%s1411 + $0x78] sm:$0xff]
      %1428 = vmatprep.subr.mxu0 0.0
      %1429 = vmatpush1.msra.mxu0 %v1412
      %1430 = vmatprep.subr.mxu0 0.0
      %1431 = vmatpush1.msra.mxu0 %v1413
      %1432 = vmatprep.subr.mxu0 0.0
      %1433 = vmatpush1.msra.mxu0 %v1414
      %1434 = vmatprep.subr.mxu0 0.0
      %1435 = vmatpush1.msra.mxu0 %v1415
      %1436 = vmatprep.subr.mxu0 0.0
      %1437 = vmatpush1.msra.mxu0 %v1416
      %1438 = vmatprep.subr.mxu0 0.0
      %1439 = vmatpush1.msra.mxu0 %v1417
      %1440 = vmatprep.subr.mxu0 0.0
      %1441 = vmatpush1.msra.mxu0 %v1418
      %1442 = vmatprep.subr.mxu0 0.0
      %1443 = vmatpush1.msra.mxu0 %v1419
      %1444 = vmatprep.subr.mxu0 0.0
      %1445 = vmatpush1.msra.mxu0 %v1420
      %1446 = vmatprep.subr.mxu0 0.0
      %1447 = vmatpush1.msra.mxu0 %v1421
      %1448 = vmatprep.subr.mxu0 0.0
      %1449 = vmatpush1.msra.mxu0 %v1422
      %1450 = vmatprep.subr.mxu0 0.0
      %1451 = vmatpush1.msra.mxu0 %v1423
      %1452 = vmatprep.subr.mxu0 0.0
      %1453 = vmatpush1.msra.mxu0 %v1424
      %1454 = vmatprep.subr.mxu0 0.0
      %1455 = vmatpush1.msra.mxu0 %v1425
      %1456 = vmatprep.subr.mxu0 0.0
      %1457 = vmatpush1.msra.mxu0 %v1426
      %1458 = vmatprep.subr.mxu0 0.0
      %1459 = vmatpush1.msra.mxu0 %v1427
      %1460 = vmatprep.subr.mxu0 0.0
      %1461 = vmatpush1.msra.mxu0 0.0
      %1462 = vmatprep.subr.mxu0 0.0
      %1463 = vmatpush1.msra.mxu0 0.0
      %1464 = vmatprep.subr.mxu0 0.0
      %1465 = vmatpush1.msra.mxu0 0.0
      %1466 = vmatprep.subr.mxu0 0.0
      %1467 = vmatpush1.msra.mxu0 0.0
      %1468 = vmatprep.subr.mxu0 0.0
      %1469 = vmatpush1.msra.mxu0 0.0
      %1470 = vmatprep.subr.mxu0 0.0
      %1471 = vmatpush1.msra.mxu0 0.0
      %1472 = vmatprep.subr.mxu0 0.0
      %1473 = vmatpush1.msra.mxu0 0.0
      %1474 = vmatprep.subr.mxu0 0.0
      %1475 = vmatpush1.msra.mxu0 0.0
      %1476 = vmatprep.subr.mxu0 0.0
      %1477 = vmatpush1.msra.mxu0 0.0
      %1478 = vmatprep.subr.mxu0 0.0
      %1479 = vmatpush1.msra.mxu0 0.0
      %1480 = vmatprep.subr.mxu0 0.0
      %1481 = vmatpush1.msra.mxu0 0.0
      %1482 = vmatprep.subr.mxu0 0.0
      %1483 = vmatpush1.msra.mxu0 0.0
      %1484 = vmatprep.subr.mxu0 0.0
      %1485 = vmatpush1.msra.mxu0 0.0
      %1486 = vmatprep.subr.mxu0 0.0
      %1487 = vmatpush1.msra.mxu0 0.0
      %1488 = vmatprep.subr.mxu0 0.0
      %1489 = vmatpush1.msra.mxu0 0.0
      %1490 = vmatprep.subr.mxu0 0.0
      %1491 = vmatpush1.msra.mxu0 0.0
      %1492 = vmatprep.mubr.f32.mxu0 0.0
      %1493 = vmatmul.mubr.f32.gmra.mrb[0].mxu0 %v1371
      %v1494 = vpop.f32.mrb[0].mxu0
      %v1495 = vadd.f32 0.0, %v1494
      %v1496 = vpop.f32.mrb[0].mxu0
      %1497 = vmatprep.mubr.f32.mxu0 0.0
      %1498 = vmatmul.mubr.f32.gmra.mrb[0].mxu0 %v1372
      %v1499 = vpop.f32.mrb[0].mxu0
      %v1500 = vadd.f32 0.0, %v1499
      %v1501 = vpop.f32.mrb[0].mxu0
      %1502 = vmatprep.mubr.f32.mxu0 0.0
      %1503 = vmatmul.mubr.f32.gmra.mrb[0].mxu0 %v1373
      %v1504 = vpop.f32.mrb[0].mxu0
      %v1505 = vadd.f32 0.0, %v1504
      %v1506 = vpop.f32.mrb[0].mxu0
      %1507 = vmatprep.mubr.f32.mxu0 0.0
      %1508 = vmatmul.mubr.f32.gmra.mrb[0].mxu0 %v1374
      %v1509 = vpop.f32.mrb[0].mxu0
      %v1510 = vadd.f32 0.0, %v1509
      %v1511 = vpop.f32.mrb[0].mxu0
      %1512 = vmatprep.mubr.f32.mxu0 0.0
      %1513 = vmatmul.mubr.f32.gmra.mrb[0].mxu0 %v1375
      %v1514 = vpop.f32.mrb[0].mxu0
      %v1515 = vadd.f32 0.0, %v1514
      %v1516 = vpop.f32.mrb[0].mxu0
      %1517 = vmatprep.mubr.f32.mxu0 0.0
      %1518 = vmatmul.mubr.f32.gmra.mrb[0].mxu0 %v1376
      %v1519 = vpop.f32.mrb[0].mxu0
      %v1520 = vadd.f32 0.0, %v1519
      %v1521 = vpop.f32.mrb[0].mxu0
      %1522 = vmatprep.mubr.f32.mxu0 0.0
      %1523 = vmatmul.mubr.f32.gmra.mrb[0].mxu0 %v1377
      %v1524 = vpop.f32.mrb[0].mxu0
      %v1525 = vadd.f32 0.0, %v1524
      %v1526 = vpop.f32.mrb[0].mxu0
      %1527 = vmatprep.mubr.f32.mxu0 0.0
      %1528 = vmatmul.mubr.f32.gmra.mrb[0].mxu0 %v1378
      %v1529 = vpop.f32.mrb[0].mxu0
      %v1530 = vadd.f32 0.0, %v1529
      %v1531 = vpop.f32.mrb[0].mxu0
      %1532 = vmatprep.mubr.f32.mxu0 0.0
      %1533 = vmatmul.mubr.f32.gmra.mrb[0].mxu0 %v1379
      %v1534 = vpop.f32.mrb[0].mxu0
      %v1535 = vadd.f32 0.0, %v1534
      %v1536 = vpop.f32.mrb[0].mxu0
      %1537 = vmatprep.mubr.f32.mxu0 0.0
      %1538 = vmatmul.mubr.f32.gmra.mrb[0].mxu0 %v1380
      %v1539 = vpop.f32.mrb[0].mxu0
      %v1540 = vadd.f32 0.0, %v1539
      %v1541 = vpop.f32.mrb[0].mxu0
      %1542 = vmatprep.mubr.f32.mxu0 0.0
      %1543 = vmatmul.mubr.f32.gmra.mrb[0].mxu0 %v1381
      %v1544 = vpop.f32.mrb[0].mxu0
      %v1545 = vadd.f32 0.0, %v1544
      %v1546 = vpop.f32.mrb[0].mxu0
      %1547 = vmatprep.mubr.f32.mxu0 0.0
      %1548 = vmatmul.mubr.f32.gmra.mrb[0].mxu0 %v1382
      %v1549 = vpop.f32.mrb[0].mxu0
      %v1550 = vadd.f32 0.0, %v1549
      %v1551 = vpop.f32.mrb[0].mxu0
      %1552 = vmatprep.mubr.f32.mxu0 0.0
      %1553 = vmatmul.mubr.f32.gmra.mrb[0].mxu0 %v1383
      %v1554 = vpop.f32.mrb[0].mxu0
      %v1555 = vadd.f32 0.0, %v1554
      %v1556 = vpop.f32.mrb[0].mxu0
      %1557 = vmatprep.mubr.f32.mxu0 0.0
      %1558 = vmatmul.mubr.f32.gmra.mrb[0].mxu0 %v1384
      %v1559 = vpop.f32.mrb[0].mxu0
      %v1560 = vadd.f32 0.0, %v1559
      %v1561 = vpop.f32.mrb[0].mxu0
      %1562 = vmatprep.mubr.f32.mxu0 0.0
      %1563 = vmatmul.mubr.f32.gmra.mrb[0].mxu0 %v1385
      %v1564 = vpop.f32.mrb[0].mxu0
      %v1565 = vadd.f32 0.0, %v1564
      %v1566 = vpop.f32.mrb[0].mxu0
      %1567 = vmatprep.mubr.f32.mxu0 0.0
      %1568 = vmatmul.mubr.f32.gmra.mrb[0].mxu0 %v1386
      %v1569 = vpop.f32.mrb[0].mxu0
      %v1570 = vadd.f32 0.0, %v1569
      %v1571 = vpop.f32.mrb[0].mxu0
      %1572 = vmatprep.mubr.f32.mxu0 0.0
      %1573 = vmatmul.mubr.f32.gmra.mrb[0].mxu0 %v1387
      %v1574 = vpop.f32.mrb[0].mxu0
      %v1575 = vadd.f32 0.0, %v1574
      %v1576 = vpop.f32.mrb[0].mxu0
      %1577 = vmatprep.mubr.f32.mxu0 0.0
      %1578 = vmatmul.mubr.f32.gmra.mrb[0].mxu0 %v1388
      %v1579 = vpop.f32.mrb[0].mxu0
      %v1580 = vadd.f32 0.0, %v1579
      %v1581 = vpop.f32.mrb[0].mxu0
      %1582 = vmatprep.mubr.f32.mxu0 0.0
      %1583 = vmatmul.mubr.f32.gmra.mrb[0].mxu0 %v1389
      %v1584 = vpop.f32.mrb[0].mxu0
      %v1585 = vadd.f32 0.0, %v1584
      %v1586 = vpop.f32.mrb[0].mxu0
      %1587 = vmatprep.mubr.f32.mxu0 0.0
      %1588 = vmatmul.mubr.f32.gmra.mrb[0].mxu0 %v1390
      %v1589 = vpop.f32.mrb[0].mxu0
      %v1590 = vadd.f32 0.0, %v1589
      %v1591 = vpop.f32.mrb[0].mxu0
      %1592 = vmatprep.mubr.f32.mxu0 0.0
      %1593 = vmatmul.mubr.f32.gmra.mrb[0].mxu0 %v1391
      %v1594 = vpop.f32.mrb[0].mxu0
      %v1595 = vadd.f32 0.0, %v1594
      %v1596 = vpop.f32.mrb[0].mxu0
      %1597 = vmatprep.mubr.f32.mxu0 0.0
      %1598 = vmatmul.mubr.f32.gmra.mrb[0].mxu0 %v1392
      %v1599 = vpop.f32.mrb[0].mxu0
      %v1600 = vadd.f32 0.0, %v1599
      %v1601 = vpop.f32.mrb[0].mxu0
      %1602 = vmatprep.mubr.f32.mxu0 0.0
      %1603 = vmatmul.mubr.f32.gmra.mrb[0].mxu0 %v1393
      %v1604 = vpop.f32.mrb[0].mxu0
      %v1605 = vadd.f32 0.0, %v1604
      %v1606 = vpop.f32.mrb[0].mxu0
      %1607 = vmatprep.mubr.f32.mxu0 0.0
      %1608 = vmatmul.mubr.f32.gmra.mrb[0].mxu0 %v1394
      %v1609 = vpop.f32.mrb[0].mxu0
      %v1610 = vadd.f32 0.0, %v1609
      %v1611 = vpop.f32.mrb[0].mxu0
      %1612 = vmatprep.mubr.f32.mxu0 0.0
      %1613 = vmatmul.mubr.f32.gmra.mrb[0].mxu0 %v1395
      %v1614 = vpop.f32.mrb[0].mxu0
      %v1615 = vadd.f32 0.0, %v1614
      %v1616 = vpop.f32.mrb[0].mxu0
      %1617 = vmatprep.mubr.f32.mxu0 0.0
      %1618 = vmatmul.mubr.f32.gmra.mrb[0].mxu0 %v1396
      %v1619 = vpop.f32.mrb[0].mxu0
      %v1620 = vadd.f32 0.0, %v1619
      %v1621 = vpop.f32.mrb[0].mxu0
      %1622 = vmatprep.mubr.f32.mxu0 0.0
      %1623 = vmatmul.mubr.f32.gmra.mrb[0].mxu0 %v1397
      %v1624 = vpop.f32.mrb[0].mxu0
      %v1625 = vadd.f32 0.0, %v1624
      %v1626 = vpop.f32.mrb[0].mxu0
      %1627 = vmatprep.mubr.f32.mxu0 0.0
      %1628 = vmatmul.mubr.f32.gmra.mrb[0].mxu0 %v1398
      %v1629 = vpop.f32.mrb[0].mxu0
      %v1630 = vadd.f32 0.0, %v1629
      %v1631 = vpop.f32.mrb[0].mxu0
      %1632 = vmatprep.mubr.f32.mxu0 0.0
      %1633 = vmatmul.mubr.f32.gmra.mrb[0].mxu0 %v1399
      %v1634 = vpop.f32.mrb[0].mxu0
      %v1635 = vadd.f32 0.0, %v1634
      %v1636 = vpop.f32.mrb[0].mxu0
      %1637 = vmatprep.mubr.f32.mxu0 0.0
      %1638 = vmatmul.mubr.f32.gmra.mrb[0].mxu0 %v1400
      %v1639 = vpop.f32.mrb[0].mxu0
      %v1640 = vadd.f32 0.0, %v1639
      %v1641 = vpop.f32.mrb[0].mxu0
      %1642 = vmatprep.mubr.f32.mxu0 0.0
      %1643 = vmatmul.mubr.f32.gmra.mrb[0].mxu0 %v1401
      %v1644 = vpop.f32.mrb[0].mxu0
      %v1645 = vadd.f32 0.0, %v1644
      %v1646 = vpop.f32.mrb[0].mxu0
      %1647 = vmatprep.mubr.f32.mxu0 0.0
      %1648 = vmatmul.mubr.f32.gmra.mrb[0].mxu0 %v1402
      %v1649 = vpop.f32.mrb[0].mxu0
      %v1650 = vadd.f32 0.0, %v1649
      %v1651 = vpop.f32.mrb[0].mxu0
      %1652 = vmatprep.mubr.f32.mxu0 0.0
      %1653 = vmatmul.mubr.f32.gmra.mrb[0].mxu0 %v1403
      %v1654 = vpop.f32.mrb[0].mxu0
      %v1655 = vadd.f32 0.0, %v1654
      %v1656 = vpop.f32.mrb[0].mxu0
      %1657 = vmatprep.mubr.f32.mxu0 0.0
      %1658 = vmatmul.mubr.f32.gmra.mrb[0].mxu0 %v1404
      %v1659 = vpop.f32.mrb[0].mxu0
      %v1660 = vadd.f32 0.0, %v1659
      %v1661 = vpop.f32.mrb[0].mxu0
      %1662 = vmatprep.mubr.f32.mxu0 0.0
      %1663 = vmatmul.mubr.f32.gmra.mrb[0].mxu0 %v1405
      %v1664 = vpop.f32.mrb[0].mxu0
      %v1665 = vadd.f32 0.0, %v1664
      %v1666 = vpop.f32.mrb[0].mxu0
      %1667 = vmatprep.mubr.f32.mxu0 0.0
      %1668 = vmatmul.mubr.f32.gmra.mrb[0].mxu0 %v1406
      %v1669 = vpop.f32.mrb[0].mxu0
      %v1670 = vadd.f32 0.0, %v1669
      %v1671 = vpop.f32.mrb[0].mxu0
      %1672 = vmatprep.mubr.f32.mxu0 0.0
      %1673 = vmatmul.mubr.f32.gmra.mrb[0].mxu0 %v1407
      %v1674 = vpop.f32.mrb[0].mxu0
      %v1675 = vadd.f32 0.0, %v1674
      %v1676 = vpop.f32.mrb[0].mxu0
      %1677 = vmatprep.mubr.f32.mxu0 0.0
      %1678 = vmatmul.mubr.f32.gmra.mrb[0].mxu0 %v1408
      %v1679 = vpop.f32.mrb[0].mxu0
      %v1680 = vadd.f32 0.0, %v1679
      %v1681 = vpop.f32.mrb[0].mxu0
      %1682 = vmatprep.mubr.f32.mxu0 0.0
      %1683 = vmatmul.mubr.f32.gmra.mrb[0].mxu0 %v1409
      %v1684 = vpop.f32.mrb[0].mxu0
      %v1685 = vadd.f32 0.0, %v1684
      %v1686 = vpop.f32.mrb[0].mxu0
      %1687 = vmatprep.mubr.f32.mxu0 0.0
      %1688 = vmatmul.mubr.f32.gmra.mrb[0].mxu0 %v1410
      %v1689 = vpop.f32.mrb[0].mxu0
      %v1690 = vadd.f32 0.0, %v1689
      %v1691 = vpop.f32.mrb[0].mxu0
      %1692 = vdwg.mxu0
      %v1693 = vld [vmem:[#allocation3] sm:$0xff]
      %v1694 = vld [vmem:[#allocation3 + $0x8] sm:$0xff]
      %v1695 = vld [vmem:[#allocation3 + $0x10] sm:$0xff]
      %v1696 = vld [vmem:[#allocation3 + $0x18] sm:$0xff]
      %v1697 = vld [vmem:[#allocation3 + $0x20] sm:$0xff]
      %v1698 = vld [vmem:[#allocation3 + $0x28] sm:$0xff]
      %v1699 = vld [vmem:[#allocation3 + $0x30] sm:$0xff]
      %v1700 = vld [vmem:[#allocation3 + $0x38] sm:$0xff]
      %v1701 = vld [vmem:[#allocation3 + $0x40] sm:$0xff]
      %v1702 = vld [vmem:[#allocation3 + $0x48] sm:$0xff]
      %v1703 = vld [vmem:[#allocation3 + $0x50] sm:$0xff]
      %v1704 = vld [vmem:[#allocation3 + $0x58] sm:$0xff]
      %v1705 = vld [vmem:[#allocation3 + $0x60] sm:$0xff]
      %v1706 = vld [vmem:[#allocation3 + $0x68] sm:$0xff]
      %v1707 = vld [vmem:[#allocation3 + $0x70] sm:$0xff]
      %v1708 = vld [vmem:[#allocation3 + $0x78] sm:$0xff]
      %v1709 = vld [vmem:[#allocation3 + $0x80] sm:$0xff]
      %v1710 = vld [vmem:[#allocation3 + $0x88] sm:$0xff]
      %v1711 = vld [vmem:[#allocation3 + $0x90] sm:$0xff]
      %v1712 = vld [vmem:[#allocation3 + $0x98] sm:$0xff]
      %v1713 = vld [vmem:[#allocation3 + $0xa0] sm:$0xff]
      %v1714 = vld [vmem:[#allocation3 + $0xa8] sm:$0xff]
      %v1715 = vld [vmem:[#allocation3 + $0xb0] sm:$0xff]
      %v1716 = vld [vmem:[#allocation3 + $0xb8] sm:$0xff]
      %v1717 = vld [vmem:[#allocation3 + $0xc0] sm:$0xff]
      %v1718 = vld [vmem:[#allocation3 + $0xc8] sm:$0xff]
      %v1719 = vld [vmem:[#allocation3 + $0xd0] sm:$0xff]
      %v1720 = vld [vmem:[#allocation3 + $0xd8] sm:$0xff]
      %v1721 = vld [vmem:[#allocation3 + $0xe0] sm:$0xff]
      %v1722 = vld [vmem:[#allocation3 + $0xe8] sm:$0xff]
      %v1723 = vld [vmem:[#allocation3 + $0xf0] sm:$0xff]
      %v1724 = vld [vmem:[#allocation3 + $0xf8] sm:$0xff]
      %v1725 = vld [vmem:[#allocation3 + $0x100] sm:$0xff]
      %v1726 = vld [vmem:[#allocation3 + $0x108] sm:$0xff]
      %v1727 = vld [vmem:[#allocation3 + $0x110] sm:$0xff]
      %v1728 = vld [vmem:[#allocation3 + $0x118] sm:$0xff]
      %v1729 = vld [vmem:[#allocation3 + $0x120] sm:$0xff]
      %v1730 = vld [vmem:[#allocation3 + $0x128] sm:$0xff]
      %v1731 = vld [vmem:[#allocation3 + $0x130] sm:$0xff]
      %v1732 = vld [vmem:[#allocation3 + $0x138] sm:$0xff]
      %v1733 = vadd.f32 %v1693, %v1495
      %v1734 = vadd.f32 %v1694, %v1500
      %v1735 = vadd.f32 %v1695, %v1505
      %v1736 = vadd.f32 %v1696, %v1510
      %v1737 = vadd.f32 %v1697, %v1515
      %v1738 = vadd.f32 %v1698, %v1520
      %v1739 = vadd.f32 %v1699, %v1525
      %v1740 = vadd.f32 %v1700, %v1530
      %v1741 = vadd.f32 %v1701, %v1535
      %v1742 = vadd.f32 %v1702, %v1540
      %v1743 = vadd.f32 %v1703, %v1545
      %v1744 = vadd.f32 %v1704, %v1550
      %v1745 = vadd.f32 %v1705, %v1555
      %v1746 = vadd.f32 %v1706, %v1560
      %v1747 = vadd.f32 %v1707, %v1565
      %v1748 = vadd.f32 %v1708, %v1570
      %v1749 = vadd.f32 %v1709, %v1575
      %v1750 = vadd.f32 %v1710, %v1580
      %v1751 = vadd.f32 %v1711, %v1585
      %v1752 = vadd.f32 %v1712, %v1590
      %v1753 = vadd.f32 %v1713, %v1595
      %v1754 = vadd.f32 %v1714, %v1600
      %v1755 = vadd.f32 %v1715, %v1605
      %v1756 = vadd.f32 %v1716, %v1610
      %v1757 = vadd.f32 %v1717, %v1615
      %v1758 = vadd.f32 %v1718, %v1620
      %v1759 = vadd.f32 %v1719, %v1625
      %v1760 = vadd.f32 %v1720, %v1630
      %v1761 = vadd.f32 %v1721, %v1635
      %v1762 = vadd.f32 %v1722, %v1640
      %v1763 = vadd.f32 %v1723, %v1645
      %v1764 = vadd.f32 %v1724, %v1650
      %v1765 = vadd.f32 %v1725, %v1655
      %v1766 = vadd.f32 %v1726, %v1660
      %v1767 = vadd.f32 %v1727, %v1665
      %v1768 = vadd.f32 %v1728, %v1670
      %v1769 = vadd.f32 %v1729, %v1675
      %v1770 = vadd.f32 %v1730, %v1680
      %v1771 = vadd.f32 %v1731, %v1685
      %v1772 = vadd.f32 %v1732, %v1690
      %1773 = vst [vmem:[#allocation3] sm:$0xff] %v1733
      %1774 = vst [vmem:[#allocation3 + $0x8] sm:$0xff] %v1734
      %1775 = vst [vmem:[#allocation3 + $0x10] sm:$0xff] %v1735
      %1776 = vst [vmem:[#allocation3 + $0x18] sm:$0xff] %v1736
      %1777 = vst [vmem:[#allocation3 + $0x20] sm:$0xff] %v1737
      %1778 = vst [vmem:[#allocation3 + $0x28] sm:$0xff] %v1738
      %1779 = vst [vmem:[#allocation3 + $0x30] sm:$0xff] %v1739
      %1780 = vst [vmem:[#allocation3 + $0x38] sm:$0xff] %v1740
      %1781 = vst [vmem:[#allocation3 + $0x40] sm:$0xff] %v1741
      %1782 = vst [vmem:[#allocation3 + $0x48] sm:$0xff] %v1742
      %1783 = vst [vmem:[#allocation3 + $0x50] sm:$0xff] %v1743
      %1784 = vst [vmem:[#allocation3 + $0x58] sm:$0xff] %v1744
      %1785 = vst [vmem:[#allocation3 + $0x60] sm:$0xff] %v1745
      %1786 = vst [vmem:[#allocation3 + $0x68] sm:$0xff] %v1746
      %1787 = vst [vmem:[#allocation3 + $0x70] sm:$0xff] %v1747
      %1788 = vst [vmem:[#allocation3 + $0x78] sm:$0xff] %v1748
      %1789 = vst [vmem:[#allocation3 + $0x80] sm:$0xff] %v1749
      %1790 = vst [vmem:[#allocation3 + $0x88] sm:$0xff] %v1750
      %1791 = vst [vmem:[#allocation3 + $0x90] sm:$0xff] %v1751
      %1792 = vst [vmem:[#allocation3 + $0x98] sm:$0xff] %v1752
      %1793 = vst [vmem:[#allocation3 + $0xa0] sm:$0xff] %v1753
      %1794 = vst [vmem:[#allocation3 + $0xa8] sm:$0xff] %v1754
      %1795 = vst [vmem:[#allocation3 + $0xb0] sm:$0xff] %v1755
      %1796 = vst [vmem:[#allocation3 + $0xb8] sm:$0xff] %v1756
      %1797 = vst [vmem:[#allocation3 + $0xc0] sm:$0xff] %v1757
      %1798 = vst [vmem:[#allocation3 + $0xc8] sm:$0xff] %v1758
      %1799 = vst [vmem:[#allocation3 + $0xd0] sm:$0xff] %v1759
      %1800 = vst [vmem:[#allocation3 + $0xd8] sm:$0xff] %v1760
      %1801 = vst [vmem:[#allocation3 + $0xe0] sm:$0xff] %v1761
      %1802 = vst [vmem:[#allocation3 + $0xe8] sm:$0xff] %v1762
      %1803 = vst [vmem:[#allocation3 + $0xf0] sm:$0xff] %v1763
      %1804 = vst [vmem:[#allocation3 + $0xf8] sm:$0xff] %v1764
      %1805 = vst [vmem:[#allocation3 + $0x100] sm:$0xff] %v1765
      %1806 = vst [vmem:[#allocation3 + $0x108] sm:$0xff] %v1766
      %1807 = vst [vmem:[#allocation3 + $0x110] sm:$0xff] %v1767
      %1808 = vst [vmem:[#allocation3 + $0x118] sm:$0xff] %v1768
      %1809 = vst [vmem:[#allocation3 + $0x120] sm:$0xff] %v1769
      %1810 = vst [vmem:[#allocation3 + $0x128] sm:$0xff] %v1770
      %1811 = vst [vmem:[#allocation3 + $0x130] sm:$0xff] %v1771
      %1812 = vst [vmem:[#allocation3 + $0x138] sm:$0xff] %v1772
      %s1813 = scalar_lea.vmem %s1, 512
      %v1814 = vld [vmem:[%s1813] sm:$0xff]
      %v1815 = vld [vmem:[%s1813 + $0x8] sm:$0xff]
      %v1816 = vld [vmem:[%s1813 + $0x10] sm:$0xff]
      %v1817 = vld [vmem:[%s1813 + $0x18] sm:$0xff]
      %v1818 = vld [vmem:[%s1813 + $0x20] sm:$0xff]
      %v1819 = vld [vmem:[%s1813 + $0x28] sm:$0xff]
      %v1820 = vld [vmem:[%s1813 + $0x30] sm:$0xff]
      %v1821 = vld [vmem:[%s1813 + $0x38] sm:$0xff]
      %v1822 = vld [vmem:[%s1813 + $0x40] sm:$0xff]
      %v1823 = vld [vmem:[%s1813 + $0x48] sm:$0xff]
      %v1824 = vld [vmem:[%s1813 + $0x50] sm:$0xff]
      %v1825 = vld [vmem:[%s1813 + $0x58] sm:$0xff]
      %v1826 = vld [vmem:[%s1813 + $0x60] sm:$0xff]
      %v1827 = vld [vmem:[%s1813 + $0x68] sm:$0xff]
      %v1828 = vld [vmem:[%s1813 + $0x70] sm:$0xff]
      %v1829 = vld [vmem:[%s1813 + $0x78] sm:$0xff]
      %1830 = vmatprep.subr.mxu0 0.0
      %1831 = vmatpush1.msra.mxu0 %v1814
      %1832 = vmatprep.subr.mxu0 0.0
      %1833 = vmatpush1.msra.mxu0 %v1815
      %1834 = vmatprep.subr.mxu0 0.0
      %1835 = vmatpush1.msra.mxu0 %v1816
      %1836 = vmatprep.subr.mxu0 0.0
      %1837 = vmatpush1.msra.mxu0 %v1817
      %1838 = vmatprep.subr.mxu0 0.0
      %1839 = vmatpush1.msra.mxu0 %v1818
      %1840 = vmatprep.subr.mxu0 0.0
      %1841 = vmatpush1.msra.mxu0 %v1819
      %1842 = vmatprep.subr.mxu0 0.0
      %1843 = vmatpush1.msra.mxu0 %v1820
      %1844 = vmatprep.subr.mxu0 0.0
      %1845 = vmatpush1.msra.mxu0 %v1821
      %1846 = vmatprep.subr.mxu0 0.0
      %1847 = vmatpush1.msra.mxu0 %v1822
      %1848 = vmatprep.subr.mxu0 0.0
      %1849 = vmatpush1.msra.mxu0 %v1823
      %1850 = vmatprep.subr.mxu0 0.0
      %1851 = vmatpush1.msra.mxu0 %v1824
      %1852 = vmatprep.subr.mxu0 0.0
      %1853 = vmatpush1.msra.mxu0 %v1825
      %1854 = vmatprep.subr.mxu0 0.0
      %1855 = vmatpush1.msra.mxu0 %v1826
      %1856 = vmatprep.subr.mxu0 0.0
      %1857 = vmatpush1.msra.mxu0 %v1827
      %1858 = vmatprep.subr.mxu0 0.0
      %1859 = vmatpush1.msra.mxu0 %v1828
      %1860 = vmatprep.subr.mxu0 0.0
      %1861 = vmatpush1.msra.mxu0 %v1829
      %1862 = vmatprep.subr.mxu0 0.0
      %1863 = vmatpush1.msra.mxu0 0.0
      %1864 = vmatprep.subr.mxu0 0.0
      %1865 = vmatpush1.msra.mxu0 0.0
      %1866 = vmatprep.subr.mxu0 0.0
      %1867 = vmatpush1.msra.mxu0 0.0
      %1868 = vmatprep.subr.mxu0 0.0
      %1869 = vmatpush1.msra.mxu0 0.0
      %1870 = vmatprep.subr.mxu0 0.0
      %1871 = vmatpush1.msra.mxu0 0.0
      %1872 = vmatprep.subr.mxu0 0.0
      %1873 = vmatpush1.msra.mxu0 0.0
      %1874 = vmatprep.subr.mxu0 0.0
      %1875 = vmatpush1.msra.mxu0 0.0
      %1876 = vmatprep.subr.mxu0 0.0
      %1877 = vmatpush1.msra.mxu0 0.0
      %1878 = vmatprep.subr.mxu0 0.0
      %1879 = vmatpush1.msra.mxu0 0.0
      %1880 = vmatprep.subr.mxu0 0.0
      %1881 = vmatpush1.msra.mxu0 0.0
      %1882 = vmatprep.subr.mxu0 0.0
      %1883 = vmatpush1.msra.mxu0 0.0
      %1884 = vmatprep.subr.mxu0 0.0
      %1885 = vmatpush1.msra.mxu0 0.0
      %1886 = vmatprep.subr.mxu0 0.0
      %1887 = vmatpush1.msra.mxu0 0.0
      %1888 = vmatprep.subr.mxu0 0.0
      %1889 = vmatpush1.msra.mxu0 0.0
      %1890 = vmatprep.subr.mxu0 0.0
      %1891 = vmatpush1.msra.mxu0 0.0
      %1892 = vmatprep.subr.mxu0 0.0
      %1893 = vmatpush1.msra.mxu0 0.0
      %1894 = vmatprep.mubr.f32.mxu0 0.0
      %1895 = vmatmul.mubr.f32.gmra.mrb[0].mxu0 %v1371
      %v1896 = vpop.f32.mrb[0].mxu0
      %v1897 = vadd.f32 0.0, %v1896
      %v1898 = vpop.f32.mrb[0].mxu0
      %1899 = vmatprep.mubr.f32.mxu0 0.0
      %1900 = vmatmul.mubr.f32.gmra.mrb[0].mxu0 %v1372
      %v1901 = vpop.f32.mrb[0].mxu0
      %v1902 = vadd.f32 0.0, %v1901
      %v1903 = vpop.f32.mrb[0].mxu0
      %1904 = vmatprep.mubr.f32.mxu0 0.0
      %1905 = vmatmul.mubr.f32.gmra.mrb[0].mxu0 %v1373
      %v1906 = vpop.f32.mrb[0].mxu0
      %v1907 = vadd.f32 0.0, %v1906
      %v1908 = vpop.f32.mrb[0].mxu0
      %1909 = vmatprep.mubr.f32.mxu0 0.0
      %1910 = vmatmul.mubr.f32.gmra.mrb[0].mxu0 %v1374
      %v1911 = vpop.f32.mrb[0].mxu0
      %v1912 = vadd.f32 0.0, %v1911
      %v1913 = vpop.f32.mrb[0].mxu0
      %1914 = vmatprep.mubr.f32.mxu0 0.0
      %1915 = vmatmul.mubr.f32.gmra.mrb[0].mxu0 %v1375
      %v1916 = vpop.f32.mrb[0].mxu0
      %v1917 = vadd.f32 0.0, %v1916
      %v1918 = vpop.f32.mrb[0].mxu0
      %1919 = vmatprep.mubr.f32.mxu0 0.0
      %1920 = vmatmul.mubr.f32.gmra.mrb[0].mxu0 %v1376
      %v1921 = vpop.f32.mrb[0].mxu0
      %v1922 = vadd.f32 0.0, %v1921
      %v1923 = vpop.f32.mrb[0].mxu0
      %1924 = vmatprep.mubr.f32.mxu0 0.0
      %1925 = vmatmul.mubr.f32.gmra.mrb[0].mxu0 %v1377
      %v1926 = vpop.f32.mrb[0].mxu0
      %v1927 = vadd.f32 0.0, %v1926
      %v1928 = vpop.f32.mrb[0].mxu0
      %1929 = vmatprep.mubr.f32.mxu0 0.0
      %1930 = vmatmul.mubr.f32.gmra.mrb[0].mxu0 %v1378
      %v1931 = vpop.f32.mrb[0].mxu0
      %v1932 = vadd.f32 0.0, %v1931
      %v1933 = vpop.f32.mrb[0].mxu0
      %1934 = vmatprep.mubr.f32.mxu0 0.0
      %1935 = vmatmul.mubr.f32.gmra.mrb[0].mxu0 %v1379
      %v1936 = vpop.f32.mrb[0].mxu0
      %v1937 = vadd.f32 0.0, %v1936
      %v1938 = vpop.f32.mrb[0].mxu0
      %1939 = vmatprep.mubr.f32.mxu0 0.0
      %1940 = vmatmul.mubr.f32.gmra.mrb[0].mxu0 %v1380
      %v1941 = vpop.f32.mrb[0].mxu0
      %v1942 = vadd.f32 0.0, %v1941
      %v1943 = vpop.f32.mrb[0].mxu0
      %1944 = vmatprep.mubr.f32.mxu0 0.0
      %1945 = vmatmul.mubr.f32.gmra.mrb[0].mxu0 %v1381
      %v1946 = vpop.f32.mrb[0].mxu0
      %v1947 = vadd.f32 0.0, %v1946
      %v1948 = vpop.f32.mrb[0].mxu0
      %1949 = vmatprep.mubr.f32.mxu0 0.0
      %1950 = vmatmul.mubr.f32.gmra.mrb[0].mxu0 %v1382
      %v1951 = vpop.f32.mrb[0].mxu0
      %v1952 = vadd.f32 0.0, %v1951
      %v1953 = vpop.f32.mrb[0].mxu0
      %1954 = vmatprep.mubr.f32.mxu0 0.0
      %1955 = vmatmul.mubr.f32.gmra.mrb[0].mxu0 %v1383
      %v1956 = vpop.f32.mrb[0].mxu0
      %v1957 = vadd.f32 0.0, %v1956
      %v1958 = vpop.f32.mrb[0].mxu0
      %1959 = vmatprep.mubr.f32.mxu0 0.0
      %1960 = vmatmul.mubr.f32.gmra.mrb[0].mxu0 %v1384
      %v1961 = vpop.f32.mrb[0].mxu0
      %v1962 = vadd.f32 0.0, %v1961
      %v1963 = vpop.f32.mrb[0].mxu0
      %1964 = vmatprep.mubr.f32.mxu0 0.0
      %1965 = vmatmul.mubr.f32.gmra.mrb[0].mxu0 %v1385
      %v1966 = vpop.f32.mrb[0].mxu0
      %v1967 = vadd.f32 0.0, %v1966
      %v1968 = vpop.f32.mrb[0].mxu0
      %1969 = vmatprep.mubr.f32.mxu0 0.0
      %1970 = vmatmul.mubr.f32.gmra.mrb[0].mxu0 %v1386
      %v1971 = vpop.f32.mrb[0].mxu0
      %v1972 = vadd.f32 0.0, %v1971
      %v1973 = vpop.f32.mrb[0].mxu0
      %1974 = vmatprep.mubr.f32.mxu0 0.0
      %1975 = vmatmul.mubr.f32.gmra.mrb[0].mxu0 %v1387
      %v1976 = vpop.f32.mrb[0].mxu0
      %v1977 = vadd.f32 0.0, %v1976
      %v1978 = vpop.f32.mrb[0].mxu0
      %1979 = vmatprep.mubr.f32.mxu0 0.0
      %1980 = vmatmul.mubr.f32.gmra.mrb[0].mxu0 %v1388
      %v1981 = vpop.f32.mrb[0].mxu0
      %v1982 = vadd.f32 0.0, %v1981
      %v1983 = vpop.f32.mrb[0].mxu0
      %1984 = vmatprep.mubr.f32.mxu0 0.0
      %1985 = vmatmul.mubr.f32.gmra.mrb[0].mxu0 %v1389
      %v1986 = vpop.f32.mrb[0].mxu0
      %v1987 = vadd.f32 0.0, %v1986
      %v1988 = vpop.f32.mrb[0].mxu0
      %1989 = vmatprep.mubr.f32.mxu0 0.0
      %1990 = vmatmul.mubr.f32.gmra.mrb[0].mxu0 %v1390
      %v1991 = vpop.f32.mrb[0].mxu0
      %v1992 = vadd.f32 0.0, %v1991
      %v1993 = vpop.f32.mrb[0].mxu0
      %1994 = vmatprep.mubr.f32.mxu0 0.0
      %1995 = vmatmul.mubr.f32.gmra.mrb[0].mxu0 %v1391
      %v1996 = vpop.f32.mrb[0].mxu0
      %v1997 = vadd.f32 0.0, %v1996
      %v1998 = vpop.f32.mrb[0].mxu0
      %1999 = vmatprep.mubr.f32.mxu0 0.0
      %2000 = vmatmul.mubr.f32.gmra.mrb[0].mxu0 %v1392
      %v2001 = vpop.f32.mrb[0].mxu0
      %v2002 = vadd.f32 0.0, %v2001
      %v2003 = vpop.f32.mrb[0].mxu0
      %2004 = vmatprep.mubr.f32.mxu0 0.0
      %2005 = vmatmul.mubr.f32.gmra.mrb[0].mxu0 %v1393
      %v2006 = vpop.f32.mrb[0].mxu0
      %v2007 = vadd.f32 0.0, %v2006
      %v2008 = vpop.f32.mrb[0].mxu0
      %2009 = vmatprep.mubr.f32.mxu0 0.0
      %2010 = vmatmul.mubr.f32.gmra.mrb[0].mxu0 %v1394
      %v2011 = vpop.f32.mrb[0].mxu0
      %v2012 = vadd.f32 0.0, %v2011
      %v2013 = vpop.f32.mrb[0].mxu0
      %2014 = vmatprep.mubr.f32.mxu0 0.0
      %2015 = vmatmul.mubr.f32.gmra.mrb[0].mxu0 %v1395
      %v2016 = vpop.f32.mrb[0].mxu0
      %v2017 = vadd.f32 0.0, %v2016
      %v2018 = vpop.f32.mrb[0].mxu0
      %2019 = vmatprep.mubr.f32.mxu0 0.0
      %2020 = vmatmul.mubr.f32.gmra.mrb[0].mxu0 %v1396
      %v2021 = vpop.f32.mrb[0].mxu0
      %v2022 = vadd.f32 0.0, %v2021
      %v2023 = vpop.f32.mrb[0].mxu0
      %2024 = vmatprep.mubr.f32.mxu0 0.0
      %2025 = vmatmul.mubr.f32.gmra.mrb[0].mxu0 %v1397
      %v2026 = vpop.f32.mrb[0].mxu0
      %v2027 = vadd.f32 0.0, %v2026
      %v2028 = vpop.f32.mrb[0].mxu0
      %2029 = vmatprep.mubr.f32.mxu0 0.0
      %2030 = vmatmul.mubr.f32.gmra.mrb[0].mxu0 %v1398
      %v2031 = vpop.f32.mrb[0].mxu0
      %v2032 = vadd.f32 0.0, %v2031
      %v2033 = vpop.f32.mrb[0].mxu0
      %2034 = vmatprep.mubr.f32.mxu0 0.0
      %2035 = vmatmul.mubr.f32.gmra.mrb[0].mxu0 %v1399
      %v2036 = vpop.f32.mrb[0].mxu0
      %v2037 = vadd.f32 0.0, %v2036
      %v2038 = vpop.f32.mrb[0].mxu0
      %2039 = vmatprep.mubr.f32.mxu0 0.0
      %2040 = vmatmul.mubr.f32.gmra.mrb[0].mxu0 %v1400
      %v2041 = vpop.f32.mrb[0].mxu0
      %v2042 = vadd.f32 0.0, %v2041
      %v2043 = vpop.f32.mrb[0].mxu0
      %2044 = vmatprep.mubr.f32.mxu0 0.0
      %2045 = vmatmul.mubr.f32.gmra.mrb[0].mxu0 %v1401
      %v2046 = vpop.f32.mrb[0].mxu0
      %v2047 = vadd.f32 0.0, %v2046
      %v2048 = vpop.f32.mrb[0].mxu0
      %2049 = vmatprep.mubr.f32.mxu0 0.0
      %2050 = vmatmul.mubr.f32.gmra.mrb[0].mxu0 %v1402
      %v2051 = vpop.f32.mrb[0].mxu0
      %v2052 = vadd.f32 0.0, %v2051
      %v2053 = vpop.f32.mrb[0].mxu0
      %2054 = vmatprep.mubr.f32.mxu0 0.0
      %2055 = vmatmul.mubr.f32.gmra.mrb[0].mxu0 %v1403
      %v2056 = vpop.f32.mrb[0].mxu0
      %v2057 = vadd.f32 0.0, %v2056
      %v2058 = vpop.f32.mrb[0].mxu0
      %2059 = vmatprep.mubr.f32.mxu0 0.0
      %2060 = vmatmul.mubr.f32.gmra.mrb[0].mxu0 %v1404
      %v2061 = vpop.f32.mrb[0].mxu0
      %v2062 = vadd.f32 0.0, %v2061
      %v2063 = vpop.f32.mrb[0].mxu0
      %2064 = vmatprep.mubr.f32.mxu0 0.0
      %2065 = vmatmul.mubr.f32.gmra.mrb[0].mxu0 %v1405
      %v2066 = vpop.f32.mrb[0].mxu0
      %v2067 = vadd.f32 0.0, %v2066
      %v2068 = vpop.f32.mrb[0].mxu0
      %2069 = vmatprep.mubr.f32.mxu0 0.0
      %2070 = vmatmul.mubr.f32.gmra.mrb[0].mxu0 %v1406
      %v2071 = vpop.f32.mrb[0].mxu0
      %v2072 = vadd.f32 0.0, %v2071
      %v2073 = vpop.f32.mrb[0].mxu0
      %2074 = vmatprep.mubr.f32.mxu0 0.0
      %2075 = vmatmul.mubr.f32.gmra.mrb[0].mxu0 %v1407
      %v2076 = vpop.f32.mrb[0].mxu0
      %v2077 = vadd.f32 0.0, %v2076
      %v2078 = vpop.f32.mrb[0].mxu0
      %2079 = vmatprep.mubr.f32.mxu0 0.0
      %2080 = vmatmul.mubr.f32.gmra.mrb[0].mxu0 %v1408
      %v2081 = vpop.f32.mrb[0].mxu0
      %v2082 = vadd.f32 0.0, %v2081
      %v2083 = vpop.f32.mrb[0].mxu0
      %2084 = vmatprep.mubr.f32.mxu0 0.0
      %2085 = vmatmul.mubr.f32.gmra.mrb[0].mxu0 %v1409
      %v2086 = vpop.f32.mrb[0].mxu0
      %v2087 = vadd.f32 0.0, %v2086
      %v2088 = vpop.f32.mrb[0].mxu0
      %2089 = vmatprep.mubr.f32.mxu0 0.0
      %2090 = vmatmul.mubr.f32.gmra.mrb[0].mxu0 %v1410
      %v2091 = vpop.f32.mrb[0].mxu0
      %v2092 = vadd.f32 0.0, %v2091
      %v2093 = vpop.f32.mrb[0].mxu0
      %2094 = vdwg.mxu0
      %v2095 = vld [vmem:[%s1006] sm:$0xff]
      %v2096 = vld [vmem:[%s1006 + $0x8] sm:$0xff]
      %v2097 = vld [vmem:[%s1006 + $0x10] sm:$0xff]
      %v2098 = vld [vmem:[%s1006 + $0x18] sm:$0xff]
      %v2099 = vld [vmem:[%s1006 + $0x20] sm:$0xff]
      %v2100 = vld [vmem:[%s1006 + $0x28] sm:$0xff]
      %v2101 = vld [vmem:[%s1006 + $0x30] sm:$0xff]
      %v2102 = vld [vmem:[%s1006 + $0x38] sm:$0xff]
      %v2103 = vld [vmem:[%s1006 + $0x40] sm:$0xff]
      %v2104 = vld [vmem:[%s1006 + $0x48] sm:$0xff]
      %v2105 = vld [vmem:[%s1006 + $0x50] sm:$0xff]
      %v2106 = vld [vmem:[%s1006 + $0x58] sm:$0xff]
      %v2107 = vld [vmem:[%s1006 + $0x60] sm:$0xff]
      %v2108 = vld [vmem:[%s1006 + $0x68] sm:$0xff]
      %v2109 = vld [vmem:[%s1006 + $0x70] sm:$0xff]
      %v2110 = vld [vmem:[%s1006 + $0x78] sm:$0xff]
      %v2111 = vld [vmem:[%s1006 + $0x80] sm:$0xff]
      %v2112 = vld [vmem:[%s1006 + $0x88] sm:$0xff]
      %v2113 = vld [vmem:[%s1006 + $0x90] sm:$0xff]
      %v2114 = vld [vmem:[%s1006 + $0x98] sm:$0xff]
      %v2115 = vld [vmem:[%s1006 + $0xa0] sm:$0xff]
      %v2116 = vld [vmem:[%s1006 + $0xa8] sm:$0xff]
      %v2117 = vld [vmem:[%s1006 + $0xb0] sm:$0xff]
      %v2118 = vld [vmem:[%s1006 + $0xb8] sm:$0xff]
      %v2119 = vld [vmem:[%s1006 + $0xc0] sm:$0xff]
      %v2120 = vld [vmem:[%s1006 + $0xc8] sm:$0xff]
      %v2121 = vld [vmem:[%s1006 + $0xd0] sm:$0xff]
      %v2122 = vld [vmem:[%s1006 + $0xd8] sm:$0xff]
      %v2123 = vld [vmem:[%s1006 + $0xe0] sm:$0xff]
      %v2124 = vld [vmem:[%s1006 + $0xe8] sm:$0xff]
      %v2125 = vld [vmem:[%s1006 + $0xf0] sm:$0xff]
      %v2126 = vld [vmem:[%s1006 + $0xf8] sm:$0xff]
      %v2127 = vld [vmem:[%s1006 + $0x100] sm:$0xff]
      %v2128 = vld [vmem:[%s1006 + $0x108] sm:$0xff]
      %v2129 = vld [vmem:[%s1006 + $0x110] sm:$0xff]
      %v2130 = vld [vmem:[%s1006 + $0x118] sm:$0xff]
      %v2131 = vld [vmem:[%s1006 + $0x120] sm:$0xff]
      %v2132 = vld [vmem:[%s1006 + $0x128] sm:$0xff]
      %v2133 = vld [vmem:[%s1006 + $0x130] sm:$0xff]
      %v2134 = vld [vmem:[%s1006 + $0x138] sm:$0xff]
      %v2135 = vadd.f32 %v2095, %v1897
      %v2136 = vadd.f32 %v2096, %v1902
      %v2137 = vadd.f32 %v2097, %v1907
      %v2138 = vadd.f32 %v2098, %v1912
      %v2139 = vadd.f32 %v2099, %v1917
      %v2140 = vadd.f32 %v2100, %v1922
      %v2141 = vadd.f32 %v2101, %v1927
      %v2142 = vadd.f32 %v2102, %v1932
      %v2143 = vadd.f32 %v2103, %v1937
      %v2144 = vadd.f32 %v2104, %v1942
      %v2145 = vadd.f32 %v2105, %v1947
      %v2146 = vadd.f32 %v2106, %v1952
      %v2147 = vadd.f32 %v2107, %v1957
      %v2148 = vadd.f32 %v2108, %v1962
      %v2149 = vadd.f32 %v2109, %v1967
      %v2150 = vadd.f32 %v2110, %v1972
      %v2151 = vadd.f32 %v2111, %v1977
      %v2152 = vadd.f32 %v2112, %v1982
      %v2153 = vadd.f32 %v2113, %v1987
      %v2154 = vadd.f32 %v2114, %v1992
      %v2155 = vadd.f32 %v2115, %v1997
      %v2156 = vadd.f32 %v2116, %v2002
      %v2157 = vadd.f32 %v2117, %v2007
      %v2158 = vadd.f32 %v2118, %v2012
      %v2159 = vadd.f32 %v2119, %v2017
      %v2160 = vadd.f32 %v2120, %v2022
      %v2161 = vadd.f32 %v2121, %v2027
      %v2162 = vadd.f32 %v2122, %v2032
      %v2163 = vadd.f32 %v2123, %v2037
      %v2164 = vadd.f32 %v2124, %v2042
      %v2165 = vadd.f32 %v2125, %v2047
      %v2166 = vadd.f32 %v2126, %v2052
      %v2167 = vadd.f32 %v2127, %v2057
      %v2168 = vadd.f32 %v2128, %v2062
      %v2169 = vadd.f32 %v2129, %v2067
      %v2170 = vadd.f32 %v2130, %v2072
      %v2171 = vadd.f32 %v2131, %v2077
      %v2172 = vadd.f32 %v2132, %v2082
      %v2173 = vadd.f32 %v2133, %v2087
      %v2174 = vadd.f32 %v2134, %v2092
      %2175 = vst [vmem:[%s1006] sm:$0xff] %v2135
      %2176 = vst [vmem:[%s1006 + $0x8] sm:$0xff] %v2136
      %2177 = vst [vmem:[%s1006 + $0x10] sm:$0xff] %v2137
      %2178 = vst [vmem:[%s1006 + $0x18] sm:$0xff] %v2138
      %2179 = vst [vmem:[%s1006 + $0x20] sm:$0xff] %v2139
      %2180 = vst [vmem:[%s1006 + $0x28] sm:$0xff] %v2140
      %2181 = vst [vmem:[%s1006 + $0x30] sm:$0xff] %v2141
      %2182 = vst [vmem:[%s1006 + $0x38] sm:$0xff] %v2142
      %2183 = vst [vmem:[%s1006 + $0x40] sm:$0xff] %v2143
      %2184 = vst [vmem:[%s1006 + $0x48] sm:$0xff] %v2144
      %2185 = vst [vmem:[%s1006 + $0x50] sm:$0xff] %v2145
      %2186 = vst [vmem:[%s1006 + $0x58] sm:$0xff] %v2146
      %2187 = vst [vmem:[%s1006 + $0x60] sm:$0xff] %v2147
      %2188 = vst [vmem:[%s1006 + $0x68] sm:$0xff] %v2148
      %2189 = vst [vmem:[%s1006 + $0x70] sm:$0xff] %v2149
      %2190 = vst [vmem:[%s1006 + $0x78] sm:$0xff] %v2150
      %2191 = vst [vmem:[%s1006 + $0x80] sm:$0xff] %v2151
      %2192 = vst [vmem:[%s1006 + $0x88] sm:$0xff] %v2152
      %2193 = vst [vmem:[%s1006 + $0x90] sm:$0xff] %v2153
      %2194 = vst [vmem:[%s1006 + $0x98] sm:$0xff] %v2154
      %2195 = vst [vmem:[%s1006 + $0xa0] sm:$0xff] %v2155
      %2196 = vst [vmem:[%s1006 + $0xa8] sm:$0xff] %v2156
      %2197 = vst [vmem:[%s1006 + $0xb0] sm:$0xff] %v2157
      %2198 = vst [vmem:[%s1006 + $0xb8] sm:$0xff] %v2158
      %2199 = vst [vmem:[%s1006 + $0xc0] sm:$0xff] %v2159
      %2200 = vst [vmem:[%s1006 + $0xc8] sm:$0xff] %v2160
      %2201 = vst [vmem:[%s1006 + $0xd0] sm:$0xff] %v2161
      %2202 = vst [vmem:[%s1006 + $0xd8] sm:$0xff] %v2162
      %2203 = vst [vmem:[%s1006 + $0xe0] sm:$0xff] %v2163
      %2204 = vst [vmem:[%s1006 + $0xe8] sm:$0xff] %v2164
      %2205 = vst [vmem:[%s1006 + $0xf0] sm:$0xff] %v2165
      %2206 = vst [vmem:[%s1006 + $0xf8] sm:$0xff] %v2166
      %2207 = vst [vmem:[%s1006 + $0x100] sm:$0xff] %v2167
      %2208 = vst [vmem:[%s1006 + $0x108] sm:$0xff] %v2168
      %2209 = vst [vmem:[%s1006 + $0x110] sm:$0xff] %v2169
      %2210 = vst [vmem:[%s1006 + $0x118] sm:$0xff] %v2170
      %2211 = vst [vmem:[%s1006 + $0x120] sm:$0xff] %v2171
      %2212 = vst [vmem:[%s1006 + $0x128] sm:$0xff] %v2172
      %2213 = vst [vmem:[%s1006 + $0x130] sm:$0xff] %v2173
      %2214 = vst [vmem:[%s1006 + $0x138] sm:$0xff] %v2174
      %s2215 = scalar_lea.vmem %s1, 640
      %v2216 = vld [vmem:[%s2215] sm:$0xff]
      %v2217 = vld [vmem:[%s2215 + $0x8] sm:$0xff]
      %v2218 = vld [vmem:[%s2215 + $0x10] sm:$0xff]
      %v2219 = vld [vmem:[%s2215 + $0x18] sm:$0xff]
      %v2220 = vld [vmem:[%s2215 + $0x20] sm:$0xff]
      %v2221 = vld [vmem:[%s2215 + $0x28] sm:$0xff]
      %v2222 = vld [vmem:[%s2215 + $0x30] sm:$0xff]
      %v2223 = vld [vmem:[%s2215 + $0x38] sm:$0xff]
      %v2224 = vld [vmem:[%s2215 + $0x40] sm:$0xff]
      %v2225 = vld [vmem:[%s2215 + $0x48] sm:$0xff]
      %v2226 = vld [vmem:[%s2215 + $0x50] sm:$0xff]
      %v2227 = vld [vmem:[%s2215 + $0x58] sm:$0xff]
      %v2228 = vld [vmem:[%s2215 + $0x60] sm:$0xff]
      %v2229 = vld [vmem:[%s2215 + $0x68] sm:$0xff]
      %v2230 = vld [vmem:[%s2215 + $0x70] sm:$0xff]
      %v2231 = vld [vmem:[%s2215 + $0x78] sm:$0xff]
      %2232 = vmatprep.subr.mxu0 0.0
      %2233 = vmatpush1.msra.mxu0 %v2216
      %2234 = vmatprep.subr.mxu0 0.0
      %2235 = vmatpush1.msra.mxu0 %v2217
      %2236 = vmatprep.subr.mxu0 0.0
      %2237 = vmatpush1.msra.mxu0 %v2218
      %2238 = vmatprep.subr.mxu0 0.0
      %2239 = vmatpush1.msra.mxu0 %v2219
      %2240 = vmatprep.subr.mxu0 0.0
      %2241 = vmatpush1.msra.mxu0 %v2220
      %2242 = vmatprep.subr.mxu0 0.0
      %2243 = vmatpush1.msra.mxu0 %v2221
      %2244 = vmatprep.subr.mxu0 0.0
      %2245 = vmatpush1.msra.mxu0 %v2222
      %2246 = vmatprep.subr.mxu0 0.0
      %2247 = vmatpush1.msra.mxu0 %v2223
      %2248 = vmatprep.subr.mxu0 0.0
      %2249 = vmatpush1.msra.mxu0 %v2224
      %2250 = vmatprep.subr.mxu0 0.0
      %2251 = vmatpush1.msra.mxu0 %v2225
      %2252 = vmatprep.subr.mxu0 0.0
      %2253 = vmatpush1.msra.mxu0 %v2226
      %2254 = vmatprep.subr.mxu0 0.0
      %2255 = vmatpush1.msra.mxu0 %v2227
      %2256 = vmatprep.subr.mxu0 0.0
      %2257 = vmatpush1.msra.mxu0 %v2228
      %2258 = vmatprep.subr.mxu0 0.0
      %2259 = vmatpush1.msra.mxu0 %v2229
      %2260 = vmatprep.subr.mxu0 0.0
      %2261 = vmatpush1.msra.mxu0 %v2230
      %2262 = vmatprep.subr.mxu0 0.0
      %2263 = vmatpush1.msra.mxu0 %v2231
      %2264 = vmatprep.subr.mxu0 0.0
      %2265 = vmatpush1.msra.mxu0 0.0
      %2266 = vmatprep.subr.mxu0 0.0
      %2267 = vmatpush1.msra.mxu0 0.0
      %2268 = vmatprep.subr.mxu0 0.0
      %2269 = vmatpush1.msra.mxu0 0.0
      %2270 = vmatprep.subr.mxu0 0.0
      %2271 = vmatpush1.msra.mxu0 0.0
      %2272 = vmatprep.subr.mxu0 0.0
      %2273 = vmatpush1.msra.mxu0 0.0
      %2274 = vmatprep.subr.mxu0 0.0
      %2275 = vmatpush1.msra.mxu0 0.0
      %2276 = vmatprep.subr.mxu0 0.0
      %2277 = vmatpush1.msra.mxu0 0.0
      %2278 = vmatprep.subr.mxu0 0.0
      %2279 = vmatpush1.msra.mxu0 0.0
      %2280 = vmatprep.subr.mxu0 0.0
      %2281 = vmatpush1.msra.mxu0 0.0
      %2282 = vmatprep.subr.mxu0 0.0
      %2283 = vmatpush1.msra.mxu0 0.0
      %2284 = vmatprep.subr.mxu0 0.0
      %2285 = vmatpush1.msra.mxu0 0.0
      %2286 = vmatprep.subr.mxu0 0.0
      %2287 = vmatpush1.msra.mxu0 0.0
      %2288 = vmatprep.subr.mxu0 0.0
      %2289 = vmatpush1.msra.mxu0 0.0
      %2290 = vmatprep.subr.mxu0 0.0
      %2291 = vmatpush1.msra.mxu0 0.0
      %2292 = vmatprep.subr.mxu0 0.0
      %2293 = vmatpush1.msra.mxu0 0.0
      %2294 = vmatprep.subr.mxu0 0.0
      %2295 = vmatpush1.msra.mxu0 0.0
      %2296 = vmatprep.mubr.f32.mxu0 0.0
      %2297 = vmatmul.mubr.f32.gmra.mrb[0].mxu0 %v1371
      %v2298 = vpop.f32.mrb[0].mxu0
      %v2299 = vadd.f32 0.0, %v2298
      %v2300 = vpop.f32.mrb[0].mxu0
      %2301 = vmatprep.mubr.f32.mxu0 0.0
      %2302 = vmatmul.mubr.f32.gmra.mrb[0].mxu0 %v1372
      %v2303 = vpop.f32.mrb[0].mxu0
      %v2304 = vadd.f32 0.0, %v2303
      %v2305 = vpop.f32.mrb[0].mxu0
      %2306 = vmatprep.mubr.f32.mxu0 0.0
      %2307 = vmatmul.mubr.f32.gmra.mrb[0].mxu0 %v1373
      %v2308 = vpop.f32.mrb[0].mxu0
      %v2309 = vadd.f32 0.0, %v2308
      %v2310 = vpop.f32.mrb[0].mxu0
      %2311 = vmatprep.mubr.f32.mxu0 0.0
      %2312 = vmatmul.mubr.f32.gmra.mrb[0].mxu0 %v1374
      %v2313 = vpop.f32.mrb[0].mxu0
      %v2314 = vadd.f32 0.0, %v2313
      %v2315 = vpop.f32.mrb[0].mxu0
      %2316 = vmatprep.mubr.f32.mxu0 0.0
      %2317 = vmatmul.mubr.f32.gmra.mrb[0].mxu0 %v1375
      %v2318 = vpop.f32.mrb[0].mxu0
      %v2319 = vadd.f32 0.0, %v2318
      %v2320 = vpop.f32.mrb[0].mxu0
      %2321 = vmatprep.mubr.f32.mxu0 0.0
      %2322 = vmatmul.mubr.f32.gmra.mrb[0].mxu0 %v1376
      %v2323 = vpop.f32.mrb[0].mxu0
      %v2324 = vadd.f32 0.0, %v2323
      %v2325 = vpop.f32.mrb[0].mxu0
      %2326 = vmatprep.mubr.f32.mxu0 0.0
      %2327 = vmatmul.mubr.f32.gmra.mrb[0].mxu0 %v1377
      %v2328 = vpop.f32.mrb[0].mxu0
      %v2329 = vadd.f32 0.0, %v2328
      %v2330 = vpop.f32.mrb[0].mxu0
      %2331 = vmatprep.mubr.f32.mxu0 0.0
      %2332 = vmatmul.mubr.f32.gmra.mrb[0].mxu0 %v1378
      %v2333 = vpop.f32.mrb[0].mxu0
      %v2334 = vadd.f32 0.0, %v2333
      %v2335 = vpop.f32.mrb[0].mxu0
      %2336 = vmatprep.mubr.f32.mxu0 0.0
      %2337 = vmatmul.mubr.f32.gmra.mrb[0].mxu0 %v1379
      %v2338 = vpop.f32.mrb[0].mxu0
      %v2339 = vadd.f32 0.0, %v2338
      %v2340 = vpop.f32.mrb[0].mxu0
      %2341 = vmatprep.mubr.f32.mxu0 0.0
      %2342 = vmatmul.mubr.f32.gmra.mrb[0].mxu0 %v1380
      %v2343 = vpop.f32.mrb[0].mxu0
      %v2344 = vadd.f32 0.0, %v2343
      %v2345 = vpop.f32.mrb[0].mxu0
      %2346 = vmatprep.mubr.f32.mxu0 0.0
      %2347 = vmatmul.mubr.f32.gmra.mrb[0].mxu0 %v1381
      %v2348 = vpop.f32.mrb[0].mxu0
      %v2349 = vadd.f32 0.0, %v2348
      %v2350 = vpop.f32.mrb[0].mxu0
      %2351 = vmatprep.mubr.f32.mxu0 0.0
      %2352 = vmatmul.mubr.f32.gmra.mrb[0].mxu0 %v1382
      %v2353 = vpop.f32.mrb[0].mxu0
      %v2354 = vadd.f32 0.0, %v2353
      %v2355 = vpop.f32.mrb[0].mxu0
      %2356 = vmatprep.mubr.f32.mxu0 0.0
      %2357 = vmatmul.mubr.f32.gmra.mrb[0].mxu0 %v1383
      %v2358 = vpop.f32.mrb[0].mxu0
      %v2359 = vadd.f32 0.0, %v2358
      %v2360 = vpop.f32.mrb[0].mxu0
      %2361 = vmatprep.mubr.f32.mxu0 0.0
      %2362 = vmatmul.mubr.f32.gmra.mrb[0].mxu0 %v1384
      %v2363 = vpop.f32.mrb[0].mxu0
      %v2364 = vadd.f32 0.0, %v2363
      %v2365 = vpop.f32.mrb[0].mxu0
      %2366 = vmatprep.mubr.f32.mxu0 0.0
      %2367 = vmatmul.mubr.f32.gmra.mrb[0].mxu0 %v1385
      %v2368 = vpop.f32.mrb[0].mxu0
      %v2369 = vadd.f32 0.0, %v2368
      %v2370 = vpop.f32.mrb[0].mxu0
      %2371 = vmatprep.mubr.f32.mxu0 0.0
      %2372 = vmatmul.mubr.f32.gmra.mrb[0].mxu0 %v1386
      %v2373 = vpop.f32.mrb[0].mxu0
      %v2374 = vadd.f32 0.0, %v2373
      %v2375 = vpop.f32.mrb[0].mxu0
      %2376 = vmatprep.mubr.f32.mxu0 0.0
      %2377 = vmatmul.mubr.f32.gmra.mrb[0].mxu0 %v1387
      %v2378 = vpop.f32.mrb[0].mxu0
      %v2379 = vadd.f32 0.0, %v2378
      %v2380 = vpop.f32.mrb[0].mxu0
      %2381 = vmatprep.mubr.f32.mxu0 0.0
      %2382 = vmatmul.mubr.f32.gmra.mrb[0].mxu0 %v1388
      %v2383 = vpop.f32.mrb[0].mxu0
      %v2384 = vadd.f32 0.0, %v2383
      %v2385 = vpop.f32.mrb[0].mxu0
      %2386 = vmatprep.mubr.f32.mxu0 0.0
      %2387 = vmatmul.mubr.f32.gmra.mrb[0].mxu0 %v1389
      %v2388 = vpop.f32.mrb[0].mxu0
      %v2389 = vadd.f32 0.0, %v2388
      %v2390 = vpop.f32.mrb[0].mxu0
      %2391 = vmatprep.mubr.f32.mxu0 0.0
      %2392 = vmatmul.mubr.f32.gmra.mrb[0].mxu0 %v1390
      %v2393 = vpop.f32.mrb[0].mxu0
      %v2394 = vadd.f32 0.0, %v2393
      %v2395 = vpop.f32.mrb[0].mxu0
      %2396 = vmatprep.mubr.f32.mxu0 0.0
      %2397 = vmatmul.mubr.f32.gmra.mrb[0].mxu0 %v1391
      %v2398 = vpop.f32.mrb[0].mxu0
      %v2399 = vadd.f32 0.0, %v2398
      %v2400 = vpop.f32.mrb[0].mxu0
      %2401 = vmatprep.mubr.f32.mxu0 0.0
      %2402 = vmatmul.mubr.f32.gmra.mrb[0].mxu0 %v1392
      %v2403 = vpop.f32.mrb[0].mxu0
      %v2404 = vadd.f32 0.0, %v2403
      %v2405 = vpop.f32.mrb[0].mxu0
      %2406 = vmatprep.mubr.f32.mxu0 0.0
      %2407 = vmatmul.mubr.f32.gmra.mrb[0].mxu0 %v1393
      %v2408 = vpop.f32.mrb[0].mxu0
      %v2409 = vadd.f32 0.0, %v2408
      %v2410 = vpop.f32.mrb[0].mxu0
      %2411 = vmatprep.mubr.f32.mxu0 0.0
      %2412 = vmatmul.mubr.f32.gmra.mrb[0].mxu0 %v1394
      %v2413 = vpop.f32.mrb[0].mxu0
      %v2414 = vadd.f32 0.0, %v2413
      %v2415 = vpop.f32.mrb[0].mxu0
      %2416 = vmatprep.mubr.f32.mxu0 0.0
      %2417 = vmatmul.mubr.f32.gmra.mrb[0].mxu0 %v1395
      %v2418 = vpop.f32.mrb[0].mxu0
      %v2419 = vadd.f32 0.0, %v2418
      %v2420 = vpop.f32.mrb[0].mxu0
      %2421 = vmatprep.mubr.f32.mxu0 0.0
      %2422 = vmatmul.mubr.f32.gmra.mrb[0].mxu0 %v1396
      %v2423 = vpop.f32.mrb[0].mxu0
      %v2424 = vadd.f32 0.0, %v2423
      %v2425 = vpop.f32.mrb[0].mxu0
      %2426 = vmatprep.mubr.f32.mxu0 0.0
      %2427 = vmatmul.mubr.f32.gmra.mrb[0].mxu0 %v1397
      %v2428 = vpop.f32.mrb[0].mxu0
      %v2429 = vadd.f32 0.0, %v2428
      %v2430 = vpop.f32.mrb[0].mxu0
      %2431 = vmatprep.mubr.f32.mxu0 0.0
      %2432 = vmatmul.mubr.f32.gmra.mrb[0].mxu0 %v1398
      %v2433 = vpop.f32.mrb[0].mxu0
      %v2434 = vadd.f32 0.0, %v2433
      %v2435 = vpop.f32.mrb[0].mxu0
      %2436 = vmatprep.mubr.f32.mxu0 0.0
      %2437 = vmatmul.mubr.f32.gmra.mrb[0].mxu0 %v1399
      %v2438 = vpop.f32.mrb[0].mxu0
      %v2439 = vadd.f32 0.0, %v2438
      %v2440 = vpop.f32.mrb[0].mxu0
      %2441 = vmatprep.mubr.f32.mxu0 0.0
      %2442 = vmatmul.mubr.f32.gmra.mrb[0].mxu0 %v1400
      %v2443 = vpop.f32.mrb[0].mxu0
      %v2444 = vadd.f32 0.0, %v2443
      %v2445 = vpop.f32.mrb[0].mxu0
      %2446 = vmatprep.mubr.f32.mxu0 0.0
      %2447 = vmatmul.mubr.f32.gmra.mrb[0].mxu0 %v1401
      %v2448 = vpop.f32.mrb[0].mxu0
      %v2449 = vadd.f32 0.0, %v2448
      %v2450 = vpop.f32.mrb[0].mxu0
      %2451 = vmatprep.mubr.f32.mxu0 0.0
      %2452 = vmatmul.mubr.f32.gmra.mrb[0].mxu0 %v1402
      %v2453 = vpop.f32.mrb[0].mxu0
      %v2454 = vadd.f32 0.0, %v2453
      %v2455 = vpop.f32.mrb[0].mxu0
      %2456 = vmatprep.mubr.f32.mxu0 0.0
      %2457 = vmatmul.mubr.f32.gmra.mrb[0].mxu0 %v1403
      %v2458 = vpop.f32.mrb[0].mxu0
      %v2459 = vadd.f32 0.0, %v2458
      %v2460 = vpop.f32.mrb[0].mxu0
      %2461 = vmatprep.mubr.f32.mxu0 0.0
      %2462 = vmatmul.mubr.f32.gmra.mrb[0].mxu0 %v1404
      %v2463 = vpop.f32.mrb[0].mxu0
      %v2464 = vadd.f32 0.0, %v2463
      %v2465 = vpop.f32.mrb[0].mxu0
      %2466 = vmatprep.mubr.f32.mxu0 0.0
      %2467 = vmatmul.mubr.f32.gmra.mrb[0].mxu0 %v1405
      %v2468 = vpop.f32.mrb[0].mxu0
      %v2469 = vadd.f32 0.0, %v2468
      %v2470 = vpop.f32.mrb[0].mxu0
      %2471 = vmatprep.mubr.f32.mxu0 0.0
      %2472 = vmatmul.mubr.f32.gmra.mrb[0].mxu0 %v1406
      %v2473 = vpop.f32.mrb[0].mxu0
      %v2474 = vadd.f32 0.0, %v2473
      %v2475 = vpop.f32.mrb[0].mxu0
      %2476 = vmatprep.mubr.f32.mxu0 0.0
      %2477 = vmatmul.mubr.f32.gmra.mrb[0].mxu0 %v1407
      %v2478 = vpop.f32.mrb[0].mxu0
      %v2479 = vadd.f32 0.0, %v2478
      %v2480 = vpop.f32.mrb[0].mxu0
      %2481 = vmatprep.mubr.f32.mxu0 0.0
      %2482 = vmatmul.mubr.f32.gmra.mrb[0].mxu0 %v1408
      %v2483 = vpop.f32.mrb[0].mxu0
      %v2484 = vadd.f32 0.0, %v2483
      %v2485 = vpop.f32.mrb[0].mxu0
      %2486 = vmatprep.mubr.f32.mxu0 0.0
      %2487 = vmatmul.mubr.f32.gmra.mrb[0].mxu0 %v1409
      %v2488 = vpop.f32.mrb[0].mxu0
      %v2489 = vadd.f32 0.0, %v2488
      %v2490 = vpop.f32.mrb[0].mxu0
      %2491 = vmatprep.mubr.f32.mxu0 0.0
      %2492 = vmatmul.mubr.f32.gmra.mrb[0].mxu0 %v1410
      %v2493 = vpop.f32.mrb[0].mxu0
      %v2494 = vadd.f32 0.0, %v2493
      %v2495 = vpop.f32.mrb[0].mxu0
      %2496 = vdwg.mxu0
      %v2497 = vld [vmem:[%s1329] sm:$0xff]
      %v2498 = vld [vmem:[%s1329 + $0x8] sm:$0xff]
      %v2499 = vld [vmem:[%s1329 + $0x10] sm:$0xff]
      %v2500 = vld [vmem:[%s1329 + $0x18] sm:$0xff]
      %v2501 = vld [vmem:[%s1329 + $0x20] sm:$0xff]
      %v2502 = vld [vmem:[%s1329 + $0x28] sm:$0xff]
      %v2503 = vld [vmem:[%s1329 + $0x30] sm:$0xff]
      %v2504 = vld [vmem:[%s1329 + $0x38] sm:$0xff]
      %v2505 = vld [vmem:[%s1329 + $0x40] sm:$0xff]
      %v2506 = vld [vmem:[%s1329 + $0x48] sm:$0xff]
      %v2507 = vld [vmem:[%s1329 + $0x50] sm:$0xff]
      %v2508 = vld [vmem:[%s1329 + $0x58] sm:$0xff]
      %v2509 = vld [vmem:[%s1329 + $0x60] sm:$0xff]
      %v2510 = vld [vmem:[%s1329 + $0x68] sm:$0xff]
      %v2511 = vld [vmem:[%s1329 + $0x70] sm:$0xff]
      %v2512 = vld [vmem:[%s1329 + $0x78] sm:$0xff]
      %v2513 = vld [vmem:[%s1329 + $0x80] sm:$0xff]
      %v2514 = vld [vmem:[%s1329 + $0x88] sm:$0xff]
      %v2515 = vld [vmem:[%s1329 + $0x90] sm:$0xff]
      %v2516 = vld [vmem:[%s1329 + $0x98] sm:$0xff]
      %v2517 = vld [vmem:[%s1329 + $0xa0] sm:$0xff]
      %v2518 = vld [vmem:[%s1329 + $0xa8] sm:$0xff]
      %v2519 = vld [vmem:[%s1329 + $0xb0] sm:$0xff]
      %v2520 = vld [vmem:[%s1329 + $0xb8] sm:$0xff]
      %v2521 = vld [vmem:[%s1329 + $0xc0] sm:$0xff]
      %v2522 = vld [vmem:[%s1329 + $0xc8] sm:$0xff]
      %v2523 = vld [vmem:[%s1329 + $0xd0] sm:$0xff]
      %v2524 = vld [vmem:[%s1329 + $0xd8] sm:$0xff]
      %v2525 = vld [vmem:[%s1329 + $0xe0] sm:$0xff]
      %v2526 = vld [vmem:[%s1329 + $0xe8] sm:$0xff]
      %v2527 = vld [vmem:[%s1329 + $0xf0] sm:$0xff]
      %v2528 = vld [vmem:[%s1329 + $0xf8] sm:$0xff]
      %v2529 = vld [vmem:[%s1329 + $0x100] sm:$0xff]
      %v2530 = vld [vmem:[%s1329 + $0x108] sm:$0xff]
      %v2531 = vld [vmem:[%s1329 + $0x110] sm:$0xff]
      %v2532 = vld [vmem:[%s1329 + $0x118] sm:$0xff]
      %v2533 = vld [vmem:[%s1329 + $0x120] sm:$0xff]
      %v2534 = vld [vmem:[%s1329 + $0x128] sm:$0xff]
      %v2535 = vld [vmem:[%s1329 + $0x130] sm:$0xff]
      %v2536 = vld [vmem:[%s1329 + $0x138] sm:$0xff]
      %v2537 = vadd.f32 %v2497, %v2299
      %v2538 = vadd.f32 %v2498, %v2304
      %v2539 = vadd.f32 %v2499, %v2309
      %v2540 = vadd.f32 %v2500, %v2314
      %v2541 = vadd.f32 %v2501, %v2319
      %v2542 = vadd.f32 %v2502, %v2324
      %v2543 = vadd.f32 %v2503, %v2329
      %v2544 = vadd.f32 %v2504, %v2334
      %v2545 = vadd.f32 %v2505, %v2339
      %v2546 = vadd.f32 %v2506, %v2344
      %v2547 = vadd.f32 %v2507, %v2349
      %v2548 = vadd.f32 %v2508, %v2354
      %v2549 = vadd.f32 %v2509, %v2359
      %v2550 = vadd.f32 %v2510, %v2364
      %v2551 = vadd.f32 %v2511, %v2369
      %v2552 = vadd.f32 %v2512, %v2374
      %v2553 = vadd.f32 %v2513, %v2379
      %v2554 = vadd.f32 %v2514, %v2384
      %v2555 = vadd.f32 %v2515, %v2389
      %v2556 = vadd.f32 %v2516, %v2394
      %v2557 = vadd.f32 %v2517, %v2399
      %v2558 = vadd.f32 %v2518, %v2404
      %v2559 = vadd.f32 %v2519, %v2409
      %v2560 = vadd.f32 %v2520, %v2414
      %v2561 = vadd.f32 %v2521, %v2419
      %v2562 = vadd.f32 %v2522, %v2424
      %v2563 = vadd.f32 %v2523, %v2429
      %v2564 = vadd.f32 %v2524, %v2434
      %v2565 = vadd.f32 %v2525, %v2439
      %v2566 = vadd.f32 %v2526, %v2444
      %v2567 = vadd.f32 %v2527, %v2449
      %v2568 = vadd.f32 %v2528, %v2454
      %v2569 = vadd.f32 %v2529, %v2459
      %v2570 = vadd.f32 %v2530, %v2464
      %v2571 = vadd.f32 %v2531, %v2469
      %v2572 = vadd.f32 %v2532, %v2474
      %v2573 = vadd.f32 %v2533, %v2479
      %v2574 = vadd.f32 %v2534, %v2484
      %v2575 = vadd.f32 %v2535, %v2489
      %v2576 = vadd.f32 %v2536, %v2494
      %2577 = vst [vmem:[%s1329] sm:$0xff] %v2537
      %2578 = vst [vmem:[%s1329 + $0x8] sm:$0xff] %v2538
      %2579 = vst [vmem:[%s1329 + $0x10] sm:$0xff] %v2539
      %2580 = vst [vmem:[%s1329 + $0x18] sm:$0xff] %v2540
      %2581 = vst [vmem:[%s1329 + $0x20] sm:$0xff] %v2541
      %2582 = vst [vmem:[%s1329 + $0x28] sm:$0xff] %v2542
      %2583 = vst [vmem:[%s1329 + $0x30] sm:$0xff] %v2543
      %2584 = vst [vmem:[%s1329 + $0x38] sm:$0xff] %v2544
      %2585 = vst [vmem:[%s1329 + $0x40] sm:$0xff] %v2545
      %2586 = vst [vmem:[%s1329 + $0x48] sm:$0xff] %v2546
      %2587 = vst [vmem:[%s1329 + $0x50] sm:$0xff] %v2547
      %2588 = vst [vmem:[%s1329 + $0x58] sm:$0xff] %v2548
      %2589 = vst [vmem:[%s1329 + $0x60] sm:$0xff] %v2549
      %2590 = vst [vmem:[%s1329 + $0x68] sm:$0xff] %v2550
      %2591 = vst [vmem:[%s1329 + $0x70] sm:$0xff] %v2551
      %2592 = vst [vmem:[%s1329 + $0x78] sm:$0xff] %v2552
      %2593 = vst [vmem:[%s1329 + $0x80] sm:$0xff] %v2553
      %2594 = vst [vmem:[%s1329 + $0x88] sm:$0xff] %v2554
      %2595 = vst [vmem:[%s1329 + $0x90] sm:$0xff] %v2555
      %2596 = vst [vmem:[%s1329 + $0x98] sm:$0xff] %v2556
      %2597 = vst [vmem:[%s1329 + $0xa0] sm:$0xff] %v2557
      %2598 = vst [vmem:[%s1329 + $0xa8] sm:$0xff] %v2558
      %2599 = vst [vmem:[%s1329 + $0xb0] sm:$0xff] %v2559
      %2600 = vst [vmem:[%s1329 + $0xb8] sm:$0xff] %v2560
      %2601 = vst [vmem:[%s1329 + $0xc0] sm:$0xff] %v2561
      %2602 = vst [vmem:[%s1329 + $0xc8] sm:$0xff] %v2562
      %2603 = vst [vmem:[%s1329 + $0xd0] sm:$0xff] %v2563
      %2604 = vst [vmem:[%s1329 + $0xd8] sm:$0xff] %v2564
      %2605 = vst [vmem:[%s1329 + $0xe0] sm:$0xff] %v2565
      %2606 = vst [vmem:[%s1329 + $0xe8] sm:$0xff] %v2566
      %2607 = vst [vmem:[%s1329 + $0xf0] sm:$0xff] %v2567
      %2608 = vst [vmem:[%s1329 + $0xf8] sm:$0xff] %v2568
      %2609 = vst [vmem:[%s1329 + $0x100] sm:$0xff] %v2569
      %2610 = vst [vmem:[%s1329 + $0x108] sm:$0xff] %v2570
      %2611 = vst [vmem:[%s1329 + $0x110] sm:$0xff] %v2571
      %2612 = vst [vmem:[%s1329 + $0x118] sm:$0xff] %v2572
      %2613 = vst [vmem:[%s1329 + $0x120] sm:$0xff] %v2573
      %2614 = vst [vmem:[%s1329 + $0x128] sm:$0xff] %v2574
      %2615 = vst [vmem:[%s1329 + $0x130] sm:$0xff] %v2575
      %2616 = vst [vmem:[%s1329 + $0x138] sm:$0xff] %v2576
      %s2617 = scalar_lea.vmem [#allocation2], 80
      %v2618 = vld [vmem:[%s2617] sm:$0xff]
      %v2619 = vld [vmem:[%s2617 + $0x8] sm:$0xff]
      %v2620 = vld [vmem:[%s2617 + $0x10] sm:$0xff]
      %v2621 = vld [vmem:[%s2617 + $0x18] sm:$0xff]
      %v2622 = vld [vmem:[%s2617 + $0x20] sm:$0xff]
      %v2623 = vld [vmem:[%s2617 + $0x28] sm:$0xff]
      %v2624 = vld [vmem:[%s2617 + $0x30] sm:$0xff]
      %v2625 = vld [vmem:[%s2617 + $0x38] sm:$0xff]
      %v2626 = vld [vmem:[%s2617 + $0x40] sm:$0xff]
      %v2627 = vld [vmem:[%s2617 + $0x48] sm:$0xff]
      %v2628 = vld [vmem:[%s2617 + $0x50] sm:$0xff]
      %v2629 = vld [vmem:[%s2617 + $0x58] sm:$0xff]
      %v2630 = vld [vmem:[%s2617 + $0x60] sm:$0xff]
      %v2631 = vld [vmem:[%s2617 + $0x68] sm:$0xff]
      %v2632 = vld [vmem:[%s2617 + $0x70] sm:$0xff]
      %v2633 = vld [vmem:[%s2617 + $0x78] sm:$0xff]
      %v2634 = vld [vmem:[%s2617 + $0x80] sm:$0xff]
      %v2635 = vld [vmem:[%s2617 + $0x88] sm:$0xff]
      %v2636 = vld [vmem:[%s2617 + $0x90] sm:$0xff]
      %v2637 = vld [vmem:[%s2617 + $0x98] sm:$0xff]
      %v2638 = vld [vmem:[%s2617 + $0xa0] sm:$0xff]
      %v2639 = vld [vmem:[%s2617 + $0xa8] sm:$0xff]
      %v2640 = vld [vmem:[%s2617 + $0xb0] sm:$0xff]
      %v2641 = vld [vmem:[%s2617 + $0xb8] sm:$0xff]
      %v2642 = vld [vmem:[%s2617 + $0xc0] sm:$0xff]
      %v2643 = vld [vmem:[%s2617 + $0xc8] sm:$0xff]
      %v2644 = vld [vmem:[%s2617 + $0xd0] sm:$0xff]
      %v2645 = vld [vmem:[%s2617 + $0xd8] sm:$0xff]
      %v2646 = vld [vmem:[%s2617 + $0xe0] sm:$0xff]
      %v2647 = vld [vmem:[%s2617 + $0xe8] sm:$0xff]
      %v2648 = vld [vmem:[%s2617 + $0xf0] sm:$0xff]
      %v2649 = vld [vmem:[%s2617 + $0xf8] sm:$0xff]
      %v2650 = vld [vmem:[%s2617 + $0x100] sm:$0xff]
      %v2651 = vld [vmem:[%s2617 + $0x108] sm:$0xff]
      %v2652 = vld [vmem:[%s2617 + $0x110] sm:$0xff]
      %v2653 = vld [vmem:[%s2617 + $0x118] sm:$0xff]
      %v2654 = vld [vmem:[%s2617 + $0x120] sm:$0xff]
      %v2655 = vld [vmem:[%s2617 + $0x128] sm:$0xff]
      %v2656 = vld [vmem:[%s2617 + $0x130] sm:$0xff]
      %v2657 = vld [vmem:[%s2617 + $0x138] sm:$0xff]
      %s2658 = scalar_lea.vmem %s1, 768
      %v2659 = vld [vmem:[%s2658] sm:$0xff]
      %v2660 = vld [vmem:[%s2658 + $0x8] sm:$0xff]
      %v2661 = vld [vmem:[%s2658 + $0x10] sm:$0xff]
      %v2662 = vld [vmem:[%s2658 + $0x18] sm:$0xff]
      %v2663 = vld [vmem:[%s2658 + $0x20] sm:$0xff]
      %v2664 = vld [vmem:[%s2658 + $0x28] sm:$0xff]
      %v2665 = vld [vmem:[%s2658 + $0x30] sm:$0xff]
      %v2666 = vld [vmem:[%s2658 + $0x38] sm:$0xff]
      %v2667 = vld [vmem:[%s2658 + $0x40] sm:$0xff]
      %v2668 = vld [vmem:[%s2658 + $0x48] sm:$0xff]
      %v2669 = vld [vmem:[%s2658 + $0x50] sm:$0xff]
      %v2670 = vld [vmem:[%s2658 + $0x58] sm:$0xff]
      %v2671 = vld [vmem:[%s2658 + $0x60] sm:$0xff]
      %v2672 = vld [vmem:[%s2658 + $0x68] sm:$0xff]
      %v2673 = vld [vmem:[%s2658 + $0x70] sm:$0xff]
      %v2674 = vld [vmem:[%s2658 + $0x78] sm:$0xff]
      %2675 = vmatprep.subr.mxu0 0.0
      %2676 = vmatpush1.msra.mxu0 %v2659
      %2677 = vmatprep.subr.mxu0 0.0
      %2678 = vmatpush1.msra.mxu0 %v2660
      %2679 = vmatprep.subr.mxu0 0.0
      %2680 = vmatpush1.msra.mxu0 %v2661
      %2681 = vmatprep.subr.mxu0 0.0
      %2682 = vmatpush1.msra.mxu0 %v2662
      %2683 = vmatprep.subr.mxu0 0.0
      %2684 = vmatpush1.msra.mxu0 %v2663
      %2685 = vmatprep.subr.mxu0 0.0
      %2686 = vmatpush1.msra.mxu0 %v2664
      %2687 = vmatprep.subr.mxu0 0.0
      %2688 = vmatpush1.msra.mxu0 %v2665
      %2689 = vmatprep.subr.mxu0 0.0
      %2690 = vmatpush1.msra.mxu0 %v2666
      %2691 = vmatprep.subr.mxu0 0.0
      %2692 = vmatpush1.msra.mxu0 %v2667
      %2693 = vmatprep.subr.mxu0 0.0
      %2694 = vmatpush1.msra.mxu0 %v2668
      %2695 = vmatprep.subr.mxu0 0.0
      %2696 = vmatpush1.msra.mxu0 %v2669
      %2697 = vmatprep.subr.mxu0 0.0
      %2698 = vmatpush1.msra.mxu0 %v2670
      %2699 = vmatprep.subr.mxu0 0.0
      %2700 = vmatpush1.msra.mxu0 %v2671
      %2701 = vmatprep.subr.mxu0 0.0
      %2702 = vmatpush1.msra.mxu0 %v2672
      %2703 = vmatprep.subr.mxu0 0.0
      %2704 = vmatpush1.msra.mxu0 %v2673
      %2705 = vmatprep.subr.mxu0 0.0
      %2706 = vmatpush1.msra.mxu0 %v2674
      %2707 = vmatprep.subr.mxu0 0.0
      %2708 = vmatpush1.msra.mxu0 0.0
      %2709 = vmatprep.subr.mxu0 0.0
      %2710 = vmatpush1.msra.mxu0 0.0
      %2711 = vmatprep.subr.mxu0 0.0
      %2712 = vmatpush1.msra.mxu0 0.0
      %2713 = vmatprep.subr.mxu0 0.0
      %2714 = vmatpush1.msra.mxu0 0.0
      %2715 = vmatprep.subr.mxu0 0.0
      %2716 = vmatpush1.msra.mxu0 0.0
      %2717 = vmatprep.subr.mxu0 0.0
      %2718 = vmatpush1.msra.mxu0 0.0
      %2719 = vmatprep.subr.mxu0 0.0
      %2720 = vmatpush1.msra.mxu0 0.0
      %2721 = vmatprep.subr.mxu0 0.0
      %2722 = vmatpush1.msra.mxu0 0.0
      %2723 = vmatprep.subr.mxu0 0.0
      %2724 = vmatpush1.msra.mxu0 0.0
      %2725 = vmatprep.subr.mxu0 0.0
      %2726 = vmatpush1.msra.mxu0 0.0
      %2727 = vmatprep.subr.mxu0 0.0
      %2728 = vmatpush1.msra.mxu0 0.0
      %2729 = vmatprep.subr.mxu0 0.0
      %2730 = vmatpush1.msra.mxu0 0.0
      %2731 = vmatprep.subr.mxu0 0.0
      %2732 = vmatpush1.msra.mxu0 0.0
      %2733 = vmatprep.subr.mxu0 0.0
      %2734 = vmatpush1.msra.mxu0 0.0
      %2735 = vmatprep.subr.mxu0 0.0
      %2736 = vmatpush1.msra.mxu0 0.0
      %2737 = vmatprep.subr.mxu0 0.0
      %2738 = vmatpush1.msra.mxu0 0.0
      %2739 = vmatprep.mubr.f32.mxu0 0.0
      %2740 = vmatmul.mubr.f32.gmra.mrb[0].mxu0 %v2618
      %v2741 = vpop.f32.mrb[0].mxu0
      %v2742 = vadd.f32 0.0, %v2741
      %v2743 = vpop.f32.mrb[0].mxu0
      %2744 = vmatprep.mubr.f32.mxu0 0.0
      %2745 = vmatmul.mubr.f32.gmra.mrb[0].mxu0 %v2619
      %v2746 = vpop.f32.mrb[0].mxu0
      %v2747 = vadd.f32 0.0, %v2746
      %v2748 = vpop.f32.mrb[0].mxu0
      %2749 = vmatprep.mubr.f32.mxu0 0.0
      %2750 = vmatmul.mubr.f32.gmra.mrb[0].mxu0 %v2620
      %v2751 = vpop.f32.mrb[0].mxu0
      %v2752 = vadd.f32 0.0, %v2751
      %v2753 = vpop.f32.mrb[0].mxu0
      %2754 = vmatprep.mubr.f32.mxu0 0.0
      %2755 = vmatmul.mubr.f32.gmra.mrb[0].mxu0 %v2621
      %v2756 = vpop.f32.mrb[0].mxu0
      %v2757 = vadd.f32 0.0, %v2756
      %v2758 = vpop.f32.mrb[0].mxu0
      %2759 = vmatprep.mubr.f32.mxu0 0.0
      %2760 = vmatmul.mubr.f32.gmra.mrb[0].mxu0 %v2622
      %v2761 = vpop.f32.mrb[0].mxu0
      %v2762 = vadd.f32 0.0, %v2761
      %v2763 = vpop.f32.mrb[0].mxu0
      %2764 = vmatprep.mubr.f32.mxu0 0.0
      %2765 = vmatmul.mubr.f32.gmra.mrb[0].mxu0 %v2623
      %v2766 = vpop.f32.mrb[0].mxu0
      %v2767 = vadd.f32 0.0, %v2766
      %v2768 = vpop.f32.mrb[0].mxu0
      %2769 = vmatprep.mubr.f32.mxu0 0.0
      %2770 = vmatmul.mubr.f32.gmra.mrb[0].mxu0 %v2624
      %v2771 = vpop.f32.mrb[0].mxu0
      %v2772 = vadd.f32 0.0, %v2771
      %v2773 = vpop.f32.mrb[0].mxu0
      %2774 = vmatprep.mubr.f32.mxu0 0.0
      %2775 = vmatmul.mubr.f32.gmra.mrb[0].mxu0 %v2625
      %v2776 = vpop.f32.mrb[0].mxu0
      %v2777 = vadd.f32 0.0, %v2776
      %v2778 = vpop.f32.mrb[0].mxu0
      %2779 = vmatprep.mubr.f32.mxu0 0.0
      %2780 = vmatmul.mubr.f32.gmra.mrb[0].mxu0 %v2626
      %v2781 = vpop.f32.mrb[0].mxu0
      %v2782 = vadd.f32 0.0, %v2781
      %v2783 = vpop.f32.mrb[0].mxu0
      %2784 = vmatprep.mubr.f32.mxu0 0.0
      %2785 = vmatmul.mubr.f32.gmra.mrb[0].mxu0 %v2627
      %v2786 = vpop.f32.mrb[0].mxu0
      %v2787 = vadd.f32 0.0, %v2786
      %v2788 = vpop.f32.mrb[0].mxu0
      %2789 = vmatprep.mubr.f32.mxu0 0.0
      %2790 = vmatmul.mubr.f32.gmra.mrb[0].mxu0 %v2628
      %v2791 = vpop.f32.mrb[0].mxu0
      %v2792 = vadd.f32 0.0, %v2791
      %v2793 = vpop.f32.mrb[0].mxu0
      %2794 = vmatprep.mubr.f32.mxu0 0.0
      %2795 = vmatmul.mubr.f32.gmra.mrb[0].mxu0 %v2629
      %v2796 = vpop.f32.mrb[0].mxu0
      %v2797 = vadd.f32 0.0, %v2796
      %v2798 = vpop.f32.mrb[0].mxu0
      %2799 = vmatprep.mubr.f32.mxu0 0.0
      %2800 = vmatmul.mubr.f32.gmra.mrb[0].mxu0 %v2630
      %v2801 = vpop.f32.mrb[0].mxu0
      %v2802 = vadd.f32 0.0, %v2801
      %v2803 = vpop.f32.mrb[0].mxu0
      %2804 = vmatprep.mubr.f32.mxu0 0.0
      %2805 = vmatmul.mubr.f32.gmra.mrb[0].mxu0 %v2631
      %v2806 = vpop.f32.mrb[0].mxu0
      %v2807 = vadd.f32 0.0, %v2806
      %v2808 = vpop.f32.mrb[0].mxu0
      %2809 = vmatprep.mubr.f32.mxu0 0.0
      %2810 = vmatmul.mubr.f32.gmra.mrb[0].mxu0 %v2632
      %v2811 = vpop.f32.mrb[0].mxu0
      %v2812 = vadd.f32 0.0, %v2811
      %v2813 = vpop.f32.mrb[0].mxu0
      %2814 = vmatprep.mubr.f32.mxu0 0.0
      %2815 = vmatmul.mubr.f32.gmra.mrb[0].mxu0 %v2633
      %v2816 = vpop.f32.mrb[0].mxu0
      %v2817 = vadd.f32 0.0, %v2816
      %v2818 = vpop.f32.mrb[0].mxu0
      %2819 = vmatprep.mubr.f32.mxu0 0.0
      %2820 = vmatmul.mubr.f32.gmra.mrb[0].mxu0 %v2634
      %v2821 = vpop.f32.mrb[0].mxu0
      %v2822 = vadd.f32 0.0, %v2821
      %v2823 = vpop.f32.mrb[0].mxu0
      %2824 = vmatprep.mubr.f32.mxu0 0.0
      %2825 = vmatmul.mubr.f32.gmra.mrb[0].mxu0 %v2635
      %v2826 = vpop.f32.mrb[0].mxu0
      %v2827 = vadd.f32 0.0, %v2826
      %v2828 = vpop.f32.mrb[0].mxu0
      %2829 = vmatprep.mubr.f32.mxu0 0.0
      %2830 = vmatmul.mubr.f32.gmra.mrb[0].mxu0 %v2636
      %v2831 = vpop.f32.mrb[0].mxu0
      %v2832 = vadd.f32 0.0, %v2831
      %v2833 = vpop.f32.mrb[0].mxu0
      %2834 = vmatprep.mubr.f32.mxu0 0.0
      %2835 = vmatmul.mubr.f32.gmra.mrb[0].mxu0 %v2637
      %v2836 = vpop.f32.mrb[0].mxu0
      %v2837 = vadd.f32 0.0, %v2836
      %v2838 = vpop.f32.mrb[0].mxu0
      %2839 = vmatprep.mubr.f32.mxu0 0.0
      %2840 = vmatmul.mubr.f32.gmra.mrb[0].mxu0 %v2638
      %v2841 = vpop.f32.mrb[0].mxu0
      %v2842 = vadd.f32 0.0, %v2841
      %v2843 = vpop.f32.mrb[0].mxu0
      %2844 = vmatprep.mubr.f32.mxu0 0.0
      %2845 = vmatmul.mubr.f32.gmra.mrb[0].mxu0 %v2639
      %v2846 = vpop.f32.mrb[0].mxu0
      %v2847 = vadd.f32 0.0, %v2846
      %v2848 = vpop.f32.mrb[0].mxu0
      %2849 = vmatprep.mubr.f32.mxu0 0.0
      %2850 = vmatmul.mubr.f32.gmra.mrb[0].mxu0 %v2640
      %v2851 = vpop.f32.mrb[0].mxu0
      %v2852 = vadd.f32 0.0, %v2851
      %v2853 = vpop.f32.mrb[0].mxu0
      %2854 = vmatprep.mubr.f32.mxu0 0.0
      %2855 = vmatmul.mubr.f32.gmra.mrb[0].mxu0 %v2641
      %v2856 = vpop.f32.mrb[0].mxu0
      %v2857 = vadd.f32 0.0, %v2856
      %v2858 = vpop.f32.mrb[0].mxu0
      %2859 = vmatprep.mubr.f32.mxu0 0.0
      %2860 = vmatmul.mubr.f32.gmra.mrb[0].mxu0 %v2642
      %v2861 = vpop.f32.mrb[0].mxu0
      %v2862 = vadd.f32 0.0, %v2861
      %v2863 = vpop.f32.mrb[0].mxu0
      %2864 = vmatprep.mubr.f32.mxu0 0.0
      %2865 = vmatmul.mubr.f32.gmra.mrb[0].mxu0 %v2643
      %v2866 = vpop.f32.mrb[0].mxu0
      %v2867 = vadd.f32 0.0, %v2866
      %v2868 = vpop.f32.mrb[0].mxu0
      %2869 = vmatprep.mubr.f32.mxu0 0.0
      %2870 = vmatmul.mubr.f32.gmra.mrb[0].mxu0 %v2644
      %v2871 = vpop.f32.mrb[0].mxu0
      %v2872 = vadd.f32 0.0, %v2871
      %v2873 = vpop.f32.mrb[0].mxu0
      %2874 = vmatprep.mubr.f32.mxu0 0.0
      %2875 = vmatmul.mubr.f32.gmra.mrb[0].mxu0 %v2645
      %v2876 = vpop.f32.mrb[0].mxu0
      %v2877 = vadd.f32 0.0, %v2876
      %v2878 = vpop.f32.mrb[0].mxu0
      %2879 = vmatprep.mubr.f32.mxu0 0.0
      %2880 = vmatmul.mubr.f32.gmra.mrb[0].mxu0 %v2646
      %v2881 = vpop.f32.mrb[0].mxu0
      %v2882 = vadd.f32 0.0, %v2881
      %v2883 = vpop.f32.mrb[0].mxu0
      %2884 = vmatprep.mubr.f32.mxu0 0.0
      %2885 = vmatmul.mubr.f32.gmra.mrb[0].mxu0 %v2647
      %v2886 = vpop.f32.mrb[0].mxu0
      %v2887 = vadd.f32 0.0, %v2886
      %v2888 = vpop.f32.mrb[0].mxu0
      %2889 = vmatprep.mubr.f32.mxu0 0.0
      %2890 = vmatmul.mubr.f32.gmra.mrb[0].mxu0 %v2648
      %v2891 = vpop.f32.mrb[0].mxu0
      %v2892 = vadd.f32 0.0, %v2891
      %v2893 = vpop.f32.mrb[0].mxu0
      %2894 = vmatprep.mubr.f32.mxu0 0.0
      %2895 = vmatmul.mubr.f32.gmra.mrb[0].mxu0 %v2649
      %v2896 = vpop.f32.mrb[0].mxu0
      %v2897 = vadd.f32 0.0, %v2896
      %v2898 = vpop.f32.mrb[0].mxu0
      %2899 = vmatprep.mubr.f32.mxu0 0.0
      %2900 = vmatmul.mubr.f32.gmra.mrb[0].mxu0 %v2650
      %v2901 = vpop.f32.mrb[0].mxu0
      %v2902 = vadd.f32 0.0, %v2901
      %v2903 = vpop.f32.mrb[0].mxu0
      %2904 = vmatprep.mubr.f32.mxu0 0.0
      %2905 = vmatmul.mubr.f32.gmra.mrb[0].mxu0 %v2651
      %v2906 = vpop.f32.mrb[0].mxu0
      %v2907 = vadd.f32 0.0, %v2906
      %v2908 = vpop.f32.mrb[0].mxu0
      %2909 = vmatprep.mubr.f32.mxu0 0.0
      %2910 = vmatmul.mubr.f32.gmra.mrb[0].mxu0 %v2652
      %v2911 = vpop.f32.mrb[0].mxu0
      %v2912 = vadd.f32 0.0, %v2911
      %v2913 = vpop.f32.mrb[0].mxu0
      %2914 = vmatprep.mubr.f32.mxu0 0.0
      %2915 = vmatmul.mubr.f32.gmra.mrb[0].mxu0 %v2653
      %v2916 = vpop.f32.mrb[0].mxu0
      %v2917 = vadd.f32 0.0, %v2916
      %v2918 = vpop.f32.mrb[0].mxu0
      %2919 = vmatprep.mubr.f32.mxu0 0.0
      %2920 = vmatmul.mubr.f32.gmra.mrb[0].mxu0 %v2654
      %v2921 = vpop.f32.mrb[0].mxu0
      %v2922 = vadd.f32 0.0, %v2921
      %v2923 = vpop.f32.mrb[0].mxu0
      %2924 = vmatprep.mubr.f32.mxu0 0.0
      %2925 = vmatmul.mubr.f32.gmra.mrb[0].mxu0 %v2655
      %v2926 = vpop.f32.mrb[0].mxu0
      %v2927 = vadd.f32 0.0, %v2926
      %v2928 = vpop.f32.mrb[0].mxu0
      %2929 = vmatprep.mubr.f32.mxu0 0.0
      %2930 = vmatmul.mubr.f32.gmra.mrb[0].mxu0 %v2656
      %v2931 = vpop.f32.mrb[0].mxu0
      %v2932 = vadd.f32 0.0, %v2931
      %v2933 = vpop.f32.mrb[0].mxu0
      %2934 = vmatprep.mubr.f32.mxu0 0.0
      %2935 = vmatmul.mubr.f32.gmra.mrb[0].mxu0 %v2657
      %v2936 = vpop.f32.mrb[0].mxu0
      %v2937 = vadd.f32 0.0, %v2936
      %v2938 = vpop.f32.mrb[0].mxu0
      %2939 = vdwg.mxu0
      %v2940 = vld [vmem:[#allocation3] sm:$0xff]
      %v2941 = vld [vmem:[#allocation3 + $0x8] sm:$0xff]
      %v2942 = vld [vmem:[#allocation3 + $0x10] sm:$0xff]
      %v2943 = vld [vmem:[#allocation3 + $0x18] sm:$0xff]
      %v2944 = vld [vmem:[#allocation3 + $0x20] sm:$0xff]
      %v2945 = vld [vmem:[#allocation3 + $0x28] sm:$0xff]
      %v2946 = vld [vmem:[#allocation3 + $0x30] sm:$0xff]
      %v2947 = vld [vmem:[#allocation3 + $0x38] sm:$0xff]
      %v2948 = vld [vmem:[#allocation3 + $0x40] sm:$0xff]
      %v2949 = vld [vmem:[#allocation3 + $0x48] sm:$0xff]
      %v2950 = vld [vmem:[#allocation3 + $0x50] sm:$0xff]
      %v2951 = vld [vmem:[#allocation3 + $0x58] sm:$0xff]
      %v2952 = vld [vmem:[#allocation3 + $0x60] sm:$0xff]
      %v2953 = vld [vmem:[#allocation3 + $0x68] sm:$0xff]
      %v2954 = vld [vmem:[#allocation3 + $0x70] sm:$0xff]
      %v2955 = vld [vmem:[#allocation3 + $0x78] sm:$0xff]
      %v2956 = vld [vmem:[#allocation3 + $0x80] sm:$0xff]
      %v2957 = vld [vmem:[#allocation3 + $0x88] sm:$0xff]
      %v2958 = vld [vmem:[#allocation3 + $0x90] sm:$0xff]
      %v2959 = vld [vmem:[#allocation3 + $0x98] sm:$0xff]
      %v2960 = vld [vmem:[#allocation3 + $0xa0] sm:$0xff]
      %v2961 = vld [vmem:[#allocation3 + $0xa8] sm:$0xff]
      %v2962 = vld [vmem:[#allocation3 + $0xb0] sm:$0xff]
      %v2963 = vld [vmem:[#allocation3 + $0xb8] sm:$0xff]
      %v2964 = vld [vmem:[#allocation3 + $0xc0] sm:$0xff]
      %v2965 = vld [vmem:[#allocation3 + $0xc8] sm:$0xff]
      %v2966 = vld [vmem:[#allocation3 + $0xd0] sm:$0xff]
      %v2967 = vld [vmem:[#allocation3 + $0xd8] sm:$0xff]
      %v2968 = vld [vmem:[#allocation3 + $0xe0] sm:$0xff]
      %v2969 = vld [vmem:[#allocation3 + $0xe8] sm:$0xff]
      %v2970 = vld [vmem:[#allocation3 + $0xf0] sm:$0xff]
      %v2971 = vld [vmem:[#allocation3 + $0xf8] sm:$0xff]
      %v2972 = vld [vmem:[#allocation3 + $0x100] sm:$0xff]
      %v2973 = vld [vmem:[#allocation3 + $0x108] sm:$0xff]
      %v2974 = vld [vmem:[#allocation3 + $0x110] sm:$0xff]
      %v2975 = vld [vmem:[#allocation3 + $0x118] sm:$0xff]
      %v2976 = vld [vmem:[#allocation3 + $0x120] sm:$0xff]
      %v2977 = vld [vmem:[#allocation3 + $0x128] sm:$0xff]
      %v2978 = vld [vmem:[#allocation3 + $0x130] sm:$0xff]
      %v2979 = vld [vmem:[#allocation3 + $0x138] sm:$0xff]
      %v2980 = vadd.f32 %v2940, %v2742
      %v2981 = vadd.f32 %v2941, %v2747
      %v2982 = vadd.f32 %v2942, %v2752
      %v2983 = vadd.f32 %v2943, %v2757
      %v2984 = vadd.f32 %v2944, %v2762
      %v2985 = vadd.f32 %v2945, %v2767
      %v2986 = vadd.f32 %v2946, %v2772
      %v2987 = vadd.f32 %v2947, %v2777
      %v2988 = vadd.f32 %v2948, %v2782
      %v2989 = vadd.f32 %v2949, %v2787
      %v2990 = vadd.f32 %v2950, %v2792
      %v2991 = vadd.f32 %v2951, %v2797
      %v2992 = vadd.f32 %v2952, %v2802
      %v2993 = vadd.f32 %v2953, %v2807
      %v2994 = vadd.f32 %v2954, %v2812
      %v2995 = vadd.f32 %v2955, %v2817
      %v2996 = vadd.f32 %v2956, %v2822
      %v2997 = vadd.f32 %v2957, %v2827
      %v2998 = vadd.f32 %v2958, %v2832
      %v2999 = vadd.f32 %v2959, %v2837
      %v3000 = vadd.f32 %v2960, %v2842
      %v3001 = vadd.f32 %v2961, %v2847
      %v3002 = vadd.f32 %v2962, %v2852
      %v3003 = vadd.f32 %v2963, %v2857
      %v3004 = vadd.f32 %v2964, %v2862
      %v3005 = vadd.f32 %v2965, %v2867
      %v3006 = vadd.f32 %v2966, %v2872
      %v3007 = vadd.f32 %v2967, %v2877
      %v3008 = vadd.f32 %v2968, %v2882
      %v3009 = vadd.f32 %v2969, %v2887
      %v3010 = vadd.f32 %v2970, %v2892
      %v3011 = vadd.f32 %v2971, %v2897
      %v3012 = vadd.f32 %v2972, %v2902
      %v3013 = vadd.f32 %v2973, %v2907
      %v3014 = vadd.f32 %v2974, %v2912
      %v3015 = vadd.f32 %v2975, %v2917
      %v3016 = vadd.f32 %v2976, %v2922
      %v3017 = vadd.f32 %v2977, %v2927
      %v3018 = vadd.f32 %v2978, %v2932
      %v3019 = vadd.f32 %v2979, %v2937
      %3020 = vst [vmem:[#allocation3] sm:$0xff] %v2980
      %3021 = vst [vmem:[#allocation3 + $0x8] sm:$0xff] %v2981
      %3022 = vst [vmem:[#allocation3 + $0x10] sm:$0xff] %v2982
      %3023 = vst [vmem:[#allocation3 + $0x18] sm:$0xff] %v2983
      %3024 = vst [vmem:[#allocation3 + $0x20] sm:$0xff] %v2984
      %3025 = vst [vmem:[#allocation3 + $0x28] sm:$0xff] %v2985
      %3026 = vst [vmem:[#allocation3 + $0x30] sm:$0xff] %v2986
      %3027 = vst [vmem:[#allocation3 + $0x38] sm:$0xff] %v2987
      %3028 = vst [vmem:[#allocation3 + $0x40] sm:$0xff] %v2988
      %3029 = vst [vmem:[#allocation3 + $0x48] sm:$0xff] %v2989
      %3030 = vst [vmem:[#allocation3 + $0x50] sm:$0xff] %v2990
      %3031 = vst [vmem:[#allocation3 + $0x58] sm:$0xff] %v2991
      %3032 = vst [vmem:[#allocation3 + $0x60] sm:$0xff] %v2992
      %3033 = vst [vmem:[#allocation3 + $0x68] sm:$0xff] %v2993
      %3034 = vst [vmem:[#allocation3 + $0x70] sm:$0xff] %v2994
      %3035 = vst [vmem:[#allocation3 + $0x78] sm:$0xff] %v2995
      %3036 = vst [vmem:[#allocation3 + $0x80] sm:$0xff] %v2996
      %3037 = vst [vmem:[#allocation3 + $0x88] sm:$0xff] %v2997
      %3038 = vst [vmem:[#allocation3 + $0x90] sm:$0xff] %v2998
      %3039 = vst [vmem:[#allocation3 + $0x98] sm:$0xff] %v2999
      %3040 = vst [vmem:[#allocation3 + $0xa0] sm:$0xff] %v3000
      %3041 = vst [vmem:[#allocation3 + $0xa8] sm:$0xff] %v3001
      %3042 = vst [vmem:[#allocation3 + $0xb0] sm:$0xff] %v3002
      %3043 = vst [vmem:[#allocation3 + $0xb8] sm:$0xff] %v3003
      %3044 = vst [vmem:[#allocation3 + $0xc0] sm:$0xff] %v3004
      %3045 = vst [vmem:[#allocation3 + $0xc8] sm:$0xff] %v3005
      %3046 = vst [vmem:[#allocation3 + $0xd0] sm:$0xff] %v3006
      %3047 = vst [vmem:[#allocation3 + $0xd8] sm:$0xff] %v3007
      %3048 = vst [vmem:[#allocation3 + $0xe0] sm:$0xff] %v3008
      %3049 = vst [vmem:[#allocation3 + $0xe8] sm:$0xff] %v3009
      %3050 = vst [vmem:[#allocation3 + $0xf0] sm:$0xff] %v3010
      %3051 = vst [vmem:[#allocation3 + $0xf8] sm:$0xff] %v3011
      %3052 = vst [vmem:[#allocation3 + $0x100] sm:$0xff] %v3012
      %3053 = vst [vmem:[#allocation3 + $0x108] sm:$0xff] %v3013
      %3054 = vst [vmem:[#allocation3 + $0x110] sm:$0xff] %v3014
      %3055 = vst [vmem:[#allocation3 + $0x118] sm:$0xff] %v3015
      %3056 = vst [vmem:[#allocation3 + $0x120] sm:$0xff] %v3016
      %3057 = vst [vmem:[#allocation3 + $0x128] sm:$0xff] %v3017
      %3058 = vst [vmem:[#allocation3 + $0x130] sm:$0xff] %v3018
      %3059 = vst [vmem:[#allocation3 + $0x138] sm:$0xff] %v3019
      %s3060 = scalar_lea.vmem %s1, 896
      %v3061 = vld [vmem:[%s3060] sm:$0xff]
      %v3062 = vld [vmem:[%s3060 + $0x8] sm:$0xff]
      %v3063 = vld [vmem:[%s3060 + $0x10] sm:$0xff]
      %v3064 = vld [vmem:[%s3060 + $0x18] sm:$0xff]
      %v3065 = vld [vmem:[%s3060 + $0x20] sm:$0xff]
      %v3066 = vld [vmem:[%s3060 + $0x28] sm:$0xff]
      %v3067 = vld [vmem:[%s3060 + $0x30] sm:$0xff]
      %v3068 = vld [vmem:[%s3060 + $0x38] sm:$0xff]
      %v3069 = vld [vmem:[%s3060 + $0x40] sm:$0xff]
      %v3070 = vld [vmem:[%s3060 + $0x48] sm:$0xff]
      %v3071 = vld [vmem:[%s3060 + $0x50] sm:$0xff]
      %v3072 = vld [vmem:[%s3060 + $0x58] sm:$0xff]
      %v3073 = vld [vmem:[%s3060 + $0x60] sm:$0xff]
      %v3074 = vld [vmem:[%s3060 + $0x68] sm:$0xff]
      %v3075 = vld [vmem:[%s3060 + $0x70] sm:$0xff]
      %v3076 = vld [vmem:[%s3060 + $0x78] sm:$0xff]
      %3077 = vmatprep.subr.mxu0 0.0
      %3078 = vmatpush1.msra.mxu0 %v3061
      %3079 = vmatprep.subr.mxu0 0.0
      %3080 = vmatpush1.msra.mxu0 %v3062
      %3081 = vmatprep.subr.mxu0 0.0
      %3082 = vmatpush1.msra.mxu0 %v3063
      %3083 = vmatprep.subr.mxu0 0.0
      %3084 = vmatpush1.msra.mxu0 %v3064
      %3085 = vmatprep.subr.mxu0 0.0
      %3086 = vmatpush1.msra.mxu0 %v3065
      %3087 = vmatprep.subr.mxu0 0.0
      %3088 = vmatpush1.msra.mxu0 %v3066
      %3089 = vmatprep.subr.mxu0 0.0
      %3090 = vmatpush1.msra.mxu0 %v3067
      %3091 = vmatprep.subr.mxu0 0.0
      %3092 = vmatpush1.msra.mxu0 %v3068
      %3093 = vmatprep.subr.mxu0 0.0
      %3094 = vmatpush1.msra.mxu0 %v3069
      %3095 = vmatprep.subr.mxu0 0.0
      %3096 = vmatpush1.msra.mxu0 %v3070
      %3097 = vmatprep.subr.mxu0 0.0
      %3098 = vmatpush1.msra.mxu0 %v3071
      %3099 = vmatprep.subr.mxu0 0.0
      %3100 = vmatpush1.msra.mxu0 %v3072
      %3101 = vmatprep.subr.mxu0 0.0
      %3102 = vmatpush1.msra.mxu0 %v3073
      %3103 = vmatprep.subr.mxu0 0.0
      %3104 = vmatpush1.msra.mxu0 %v3074
      %3105 = vmatprep.subr.mxu0 0.0
      %3106 = vmatpush1.msra.mxu0 %v3075
      %3107 = vmatprep.subr.mxu0 0.0
      %3108 = vmatpush1.msra.mxu0 %v3076
      %3109 = vmatprep.subr.mxu0 0.0
      %3110 = vmatpush1.msra.mxu0 0.0
      %3111 = vmatprep.subr.mxu0 0.0
      %3112 = vmatpush1.msra.mxu0 0.0
      %3113 = vmatprep.subr.mxu0 0.0
      %3114 = vmatpush1.msra.mxu0 0.0
      %3115 = vmatprep.subr.mxu0 0.0
      %3116 = vmatpush1.msra.mxu0 0.0
      %3117 = vmatprep.subr.mxu0 0.0
      %3118 = vmatpush1.msra.mxu0 0.0
      %3119 = vmatprep.subr.mxu0 0.0
      %3120 = vmatpush1.msra.mxu0 0.0
      %3121 = vmatprep.subr.mxu0 0.0
      %3122 = vmatpush1.msra.mxu0 0.0
      %3123 = vmatprep.subr.mxu0 0.0
      %3124 = vmatpush1.msra.mxu0 0.0
      %3125 = vmatprep.subr.mxu0 0.0
      %3126 = vmatpush1.msra.mxu0 0.0
      %3127 = vmatprep.subr.mxu0 0.0
      %3128 = vmatpush1.msra.mxu0 0.0
      %3129 = vmatprep.subr.mxu0 0.0
      %3130 = vmatpush1.msra.mxu0 0.0
      %3131 = vmatprep.subr.mxu0 0.0
      %3132 = vmatpush1.msra.mxu0 0.0
      %3133 = vmatprep.subr.mxu0 0.0
      %3134 = vmatpush1.msra.mxu0 0.0
      %3135 = vmatprep.subr.mxu0 0.0
      %3136 = vmatpush1.msra.mxu0 0.0
      %3137 = vmatprep.subr.mxu0 0.0
      %3138 = vmatpush1.msra.mxu0 0.0
      %3139 = vmatprep.subr.mxu0 0.0
      %3140 = vmatpush1.msra.mxu0 0.0
      %3141 = vmatprep.mubr.f32.mxu0 0.0
      %3142 = vmatmul.mubr.f32.gmra.mrb[0].mxu0 %v2618
      %v3143 = vpop.f32.mrb[0].mxu0
      %v3144 = vadd.f32 0.0, %v3143
      %v3145 = vpop.f32.mrb[0].mxu0
      %3146 = vmatprep.mubr.f32.mxu0 0.0
      %3147 = vmatmul.mubr.f32.gmra.mrb[0].mxu0 %v2619
      %v3148 = vpop.f32.mrb[0].mxu0
      %v3149 = vadd.f32 0.0, %v3148
      %v3150 = vpop.f32.mrb[0].mxu0
      %3151 = vmatprep.mubr.f32.mxu0 0.0
      %3152 = vmatmul.mubr.f32.gmra.mrb[0].mxu0 %v2620
      %v3153 = vpop.f32.mrb[0].mxu0
      %v3154 = vadd.f32 0.0, %v3153
      %v3155 = vpop.f32.mrb[0].mxu0
      %3156 = vmatprep.mubr.f32.mxu0 0.0
      %3157 = vmatmul.mubr.f32.gmra.mrb[0].mxu0 %v2621
      %v3158 = vpop.f32.mrb[0].mxu0
      %v3159 = vadd.f32 0.0, %v3158
      %v3160 = vpop.f32.mrb[0].mxu0
      %3161 = vmatprep.mubr.f32.mxu0 0.0
      %3162 = vmatmul.mubr.f32.gmra.mrb[0].mxu0 %v2622
      %v3163 = vpop.f32.mrb[0].mxu0
      %v3164 = vadd.f32 0.0, %v3163
      %v3165 = vpop.f32.mrb[0].mxu0
      %3166 = vmatprep.mubr.f32.mxu0 0.0
      %3167 = vmatmul.mubr.f32.gmra.mrb[0].mxu0 %v2623
      %v3168 = vpop.f32.mrb[0].mxu0
      %v3169 = vadd.f32 0.0, %v3168
      %v3170 = vpop.f32.mrb[0].mxu0
      %3171 = vmatprep.mubr.f32.mxu0 0.0
      %3172 = vmatmul.mubr.f32.gmra.mrb[0].mxu0 %v2624
      %v3173 = vpop.f32.mrb[0].mxu0
      %v3174 = vadd.f32 0.0, %v3173
      %v3175 = vpop.f32.mrb[0].mxu0
      %3176 = vmatprep.mubr.f32.mxu0 0.0
      %3177 = vmatmul.mubr.f32.gmra.mrb[0].mxu0 %v2625
      %v3178 = vpop.f32.mrb[0].mxu0
      %v3179 = vadd.f32 0.0, %v3178
      %v3180 = vpop.f32.mrb[0].mxu0
      %3181 = vmatprep.mubr.f32.mxu0 0.0
      %3182 = vmatmul.mubr.f32.gmra.mrb[0].mxu0 %v2626
      %v3183 = vpop.f32.mrb[0].mxu0
      %v3184 = vadd.f32 0.0, %v3183
      %v3185 = vpop.f32.mrb[0].mxu0
      %3186 = vmatprep.mubr.f32.mxu0 0.0
      %3187 = vmatmul.mubr.f32.gmra.mrb[0].mxu0 %v2627
      %v3188 = vpop.f32.mrb[0].mxu0
      %v3189 = vadd.f32 0.0, %v3188
      %v3190 = vpop.f32.mrb[0].mxu0
      %3191 = vmatprep.mubr.f32.mxu0 0.0
      %3192 = vmatmul.mubr.f32.gmra.mrb[0].mxu0 %v2628
      %v3193 = vpop.f32.mrb[0].mxu0
      %v3194 = vadd.f32 0.0, %v3193
      %v3195 = vpop.f32.mrb[0].mxu0
      %3196 = vmatprep.mubr.f32.mxu0 0.0
      %3197 = vmatmul.mubr.f32.gmra.mrb[0].mxu0 %v2629
      %v3198 = vpop.f32.mrb[0].mxu0
      %v3199 = vadd.f32 0.0, %v3198
      %v3200 = vpop.f32.mrb[0].mxu0
      %3201 = vmatprep.mubr.f32.mxu0 0.0
      %3202 = vmatmul.mubr.f32.gmra.mrb[0].mxu0 %v2630
      %v3203 = vpop.f32.mrb[0].mxu0
      %v3204 = vadd.f32 0.0, %v3203
      %v3205 = vpop.f32.mrb[0].mxu0
      %3206 = vmatprep.mubr.f32.mxu0 0.0
      %3207 = vmatmul.mubr.f32.gmra.mrb[0].mxu0 %v2631
      %v3208 = vpop.f32.mrb[0].mxu0
      %v3209 = vadd.f32 0.0, %v3208
      %v3210 = vpop.f32.mrb[0].mxu0
      %3211 = vmatprep.mubr.f32.mxu0 0.0
      %3212 = vmatmul.mubr.f32.gmra.mrb[0].mxu0 %v2632
      %v3213 = vpop.f32.mrb[0].mxu0
      %v3214 = vadd.f32 0.0, %v3213
      %v3215 = vpop.f32.mrb[0].mxu0
      %3216 = vmatprep.mubr.f32.mxu0 0.0
      %3217 = vmatmul.mubr.f32.gmra.mrb[0].mxu0 %v2633
      %v3218 = vpop.f32.mrb[0].mxu0
      %v3219 = vadd.f32 0.0, %v3218
      %v3220 = vpop.f32.mrb[0].mxu0
      %3221 = vmatprep.mubr.f32.mxu0 0.0
      %3222 = vmatmul.mubr.f32.gmra.mrb[0].mxu0 %v2634
      %v3223 = vpop.f32.mrb[0].mxu0
      %v3224 = vadd.f32 0.0, %v3223
      %v3225 = vpop.f32.mrb[0].mxu0
      %3226 = vmatprep.mubr.f32.mxu0 0.0
      %3227 = vmatmul.mubr.f32.gmra.mrb[0].mxu0 %v2635
      %v3228 = vpop.f32.mrb[0].mxu0
      %v3229 = vadd.f32 0.0, %v3228
      %v3230 = vpop.f32.mrb[0].mxu0
      %3231 = vmatprep.mubr.f32.mxu0 0.0
      %3232 = vmatmul.mubr.f32.gmra.mrb[0].mxu0 %v2636
      %v3233 = vpop.f32.mrb[0].mxu0
      %v3234 = vadd.f32 0.0, %v3233
      %v3235 = vpop.f32.mrb[0].mxu0
      %3236 = vmatprep.mubr.f32.mxu0 0.0
      %3237 = vmatmul.mubr.f32.gmra.mrb[0].mxu0 %v2637
      %v3238 = vpop.f32.mrb[0].mxu0
      %v3239 = vadd.f32 0.0, %v3238
      %v3240 = vpop.f32.mrb[0].mxu0
      %3241 = vmatprep.mubr.f32.mxu0 0.0
      %3242 = vmatmul.mubr.f32.gmra.mrb[0].mxu0 %v2638
      %v3243 = vpop.f32.mrb[0].mxu0
      %v3244 = vadd.f32 0.0, %v3243
      %v3245 = vpop.f32.mrb[0].mxu0
      %3246 = vmatprep.mubr.f32.mxu0 0.0
      %3247 = vmatmul.mubr.f32.gmra.mrb[0].mxu0 %v2639
      %v3248 = vpop.f32.mrb[0].mxu0
      %v3249 = vadd.f32 0.0, %v3248
      %v3250 = vpop.f32.mrb[0].mxu0
      %3251 = vmatprep.mubr.f32.mxu0 0.0
      %3252 = vmatmul.mubr.f32.gmra.mrb[0].mxu0 %v2640
      %v3253 = vpop.f32.mrb[0].mxu0
      %v3254 = vadd.f32 0.0, %v3253
      %v3255 = vpop.f32.mrb[0].mxu0
      %3256 = vmatprep.mubr.f32.mxu0 0.0
      %3257 = vmatmul.mubr.f32.gmra.mrb[0].mxu0 %v2641
      %v3258 = vpop.f32.mrb[0].mxu0
      %v3259 = vadd.f32 0.0, %v3258
      %v3260 = vpop.f32.mrb[0].mxu0
      %3261 = vmatprep.mubr.f32.mxu0 0.0
      %3262 = vmatmul.mubr.f32.gmra.mrb[0].mxu0 %v2642
      %v3263 = vpop.f32.mrb[0].mxu0
      %v3264 = vadd.f32 0.0, %v3263
      %v3265 = vpop.f32.mrb[0].mxu0
      %3266 = vmatprep.mubr.f32.mxu0 0.0
      %3267 = vmatmul.mubr.f32.gmra.mrb[0].mxu0 %v2643
      %v3268 = vpop.f32.mrb[0].mxu0
      %v3269 = vadd.f32 0.0, %v3268
      %v3270 = vpop.f32.mrb[0].mxu0
      %3271 = vmatprep.mubr.f32.mxu0 0.0
      %3272 = vmatmul.mubr.f32.gmra.mrb[0].mxu0 %v2644
      %v3273 = vpop.f32.mrb[0].mxu0
      %v3274 = vadd.f32 0.0, %v3273
      %v3275 = vpop.f32.mrb[0].mxu0
      %3276 = vmatprep.mubr.f32.mxu0 0.0
      %3277 = vmatmul.mubr.f32.gmra.mrb[0].mxu0 %v2645
      %v3278 = vpop.f32.mrb[0].mxu0
      %v3279 = vadd.f32 0.0, %v3278
      %v3280 = vpop.f32.mrb[0].mxu0
      %3281 = vmatprep.mubr.f32.mxu0 0.0
      %3282 = vmatmul.mubr.f32.gmra.mrb[0].mxu0 %v2646
      %v3283 = vpop.f32.mrb[0].mxu0
      %v3284 = vadd.f32 0.0, %v3283
      %v3285 = vpop.f32.mrb[0].mxu0
      %3286 = vmatprep.mubr.f32.mxu0 0.0
      %3287 = vmatmul.mubr.f32.gmra.mrb[0].mxu0 %v2647
      %v3288 = vpop.f32.mrb[0].mxu0
      %v3289 = vadd.f32 0.0, %v3288
      %v3290 = vpop.f32.mrb[0].mxu0
      %3291 = vmatprep.mubr.f32.mxu0 0.0
      %3292 = vmatmul.mubr.f32.gmra.mrb[0].mxu0 %v2648
      %v3293 = vpop.f32.mrb[0].mxu0
      %v3294 = vadd.f32 0.0, %v3293
      %v3295 = vpop.f32.mrb[0].mxu0
      %3296 = vmatprep.mubr.f32.mxu0 0.0
      %3297 = vmatmul.mubr.f32.gmra.mrb[0].mxu0 %v2649
      %v3298 = vpop.f32.mrb[0].mxu0
      %v3299 = vadd.f32 0.0, %v3298
      %v3300 = vpop.f32.mrb[0].mxu0
      %3301 = vmatprep.mubr.f32.mxu0 0.0
      %3302 = vmatmul.mubr.f32.gmra.mrb[0].mxu0 %v2650
      %v3303 = vpop.f32.mrb[0].mxu0
      %v3304 = vadd.f32 0.0, %v3303
      %v3305 = vpop.f32.mrb[0].mxu0
      %3306 = vmatprep.mubr.f32.mxu0 0.0
      %3307 = vmatmul.mubr.f32.gmra.mrb[0].mxu0 %v2651
      %v3308 = vpop.f32.mrb[0].mxu0
      %v3309 = vadd.f32 0.0, %v3308
      %v3310 = vpop.f32.mrb[0].mxu0
      %3311 = vmatprep.mubr.f32.mxu0 0.0
      %3312 = vmatmul.mubr.f32.gmra.mrb[0].mxu0 %v2652
      %v3313 = vpop.f32.mrb[0].mxu0
      %v3314 = vadd.f32 0.0, %v3313
      %v3315 = vpop.f32.mrb[0].mxu0
      %3316 = vmatprep.mubr.f32.mxu0 0.0
      %3317 = vmatmul.mubr.f32.gmra.mrb[0].mxu0 %v2653
      %v3318 = vpop.f32.mrb[0].mxu0
      %v3319 = vadd.f32 0.0, %v3318
      %v3320 = vpop.f32.mrb[0].mxu0
      %3321 = vmatprep.mubr.f32.mxu0 0.0
      %3322 = vmatmul.mubr.f32.gmra.mrb[0].mxu0 %v2654
      %v3323 = vpop.f32.mrb[0].mxu0
      %v3324 = vadd.f32 0.0, %v3323
      %v3325 = vpop.f32.mrb[0].mxu0
      %3326 = vmatprep.mubr.f32.mxu0 0.0
      %3327 = vmatmul.mubr.f32.gmra.mrb[0].mxu0 %v2655
      %v3328 = vpop.f32.mrb[0].mxu0
      %v3329 = vadd.f32 0.0, %v3328
      %v3330 = vpop.f32.mrb[0].mxu0
      %3331 = vmatprep.mubr.f32.mxu0 0.0
      %3332 = vmatmul.mubr.f32.gmra.mrb[0].mxu0 %v2656
      %v3333 = vpop.f32.mrb[0].mxu0
      %v3334 = vadd.f32 0.0, %v3333
      %v3335 = vpop.f32.mrb[0].mxu0
      %3336 = vmatprep.mubr.f32.mxu0 0.0
      %3337 = vmatmul.mubr.f32.gmra.mrb[0].mxu0 %v2657
      %v3338 = vpop.f32.mrb[0].mxu0
      %v3339 = vadd.f32 0.0, %v3338
      %v3340 = vpop.f32.mrb[0].mxu0
      %3341 = vdwg.mxu0
      %v3342 = vld [vmem:[%s1006] sm:$0xff]
      %v3343 = vld [vmem:[%s1006 + $0x8] sm:$0xff]
      %v3344 = vld [vmem:[%s1006 + $0x10] sm:$0xff]
      %v3345 = vld [vmem:[%s1006 + $0x18] sm:$0xff]
      %v3346 = vld [vmem:[%s1006 + $0x20] sm:$0xff]
      %v3347 = vld [vmem:[%s1006 + $0x28] sm:$0xff]
      %v3348 = vld [vmem:[%s1006 + $0x30] sm:$0xff]
      %v3349 = vld [vmem:[%s1006 + $0x38] sm:$0xff]
      %v3350 = vld [vmem:[%s1006 + $0x40] sm:$0xff]
      %v3351 = vld [vmem:[%s1006 + $0x48] sm:$0xff]
      %v3352 = vld [vmem:[%s1006 + $0x50] sm:$0xff]
      %v3353 = vld [vmem:[%s1006 + $0x58] sm:$0xff]
      %v3354 = vld [vmem:[%s1006 + $0x60] sm:$0xff]
      %v3355 = vld [vmem:[%s1006 + $0x68] sm:$0xff]
      %v3356 = vld [vmem:[%s1006 + $0x70] sm:$0xff]
      %v3357 = vld [vmem:[%s1006 + $0x78] sm:$0xff]
      %v3358 = vld [vmem:[%s1006 + $0x80] sm:$0xff]
      %v3359 = vld [vmem:[%s1006 + $0x88] sm:$0xff]
      %v3360 = vld [vmem:[%s1006 + $0x90] sm:$0xff]
      %v3361 = vld [vmem:[%s1006 + $0x98] sm:$0xff]
      %v3362 = vld [vmem:[%s1006 + $0xa0] sm:$0xff]
      %v3363 = vld [vmem:[%s1006 + $0xa8] sm:$0xff]
      %v3364 = vld [vmem:[%s1006 + $0xb0] sm:$0xff]
      %v3365 = vld [vmem:[%s1006 + $0xb8] sm:$0xff]
      %v3366 = vld [vmem:[%s1006 + $0xc0] sm:$0xff]
      %v3367 = vld [vmem:[%s1006 + $0xc8] sm:$0xff]
      %v3368 = vld [vmem:[%s1006 + $0xd0] sm:$0xff]
      %v3369 = vld [vmem:[%s1006 + $0xd8] sm:$0xff]
      %v3370 = vld [vmem:[%s1006 + $0xe0] sm:$0xff]
      %v3371 = vld [vmem:[%s1006 + $0xe8] sm:$0xff]
      %v3372 = vld [vmem:[%s1006 + $0xf0] sm:$0xff]
      %v3373 = vld [vmem:[%s1006 + $0xf8] sm:$0xff]
      %v3374 = vld [vmem:[%s1006 + $0x100] sm:$0xff]
      %v3375 = vld [vmem:[%s1006 + $0x108] sm:$0xff]
      %v3376 = vld [vmem:[%s1006 + $0x110] sm:$0xff]
      %v3377 = vld [vmem:[%s1006 + $0x118] sm:$0xff]
      %v3378 = vld [vmem:[%s1006 + $0x120] sm:$0xff]
      %v3379 = vld [vmem:[%s1006 + $0x128] sm:$0xff]
      %v3380 = vld [vmem:[%s1006 + $0x130] sm:$0xff]
      %v3381 = vld [vmem:[%s1006 + $0x138] sm:$0xff]
      %v3382 = vadd.f32 %v3342, %v3144
      %v3383 = vadd.f32 %v3343, %v3149
      %v3384 = vadd.f32 %v3344, %v3154
      %v3385 = vadd.f32 %v3345, %v3159
      %v3386 = vadd.f32 %v3346, %v3164
      %v3387 = vadd.f32 %v3347, %v3169
      %v3388 = vadd.f32 %v3348, %v3174
      %v3389 = vadd.f32 %v3349, %v3179
      %v3390 = vadd.f32 %v3350, %v3184
      %v3391 = vadd.f32 %v3351, %v3189
      %v3392 = vadd.f32 %v3352, %v3194
      %v3393 = vadd.f32 %v3353, %v3199
      %v3394 = vadd.f32 %v3354, %v3204
      %v3395 = vadd.f32 %v3355, %v3209
      %v3396 = vadd.f32 %v3356, %v3214
      %v3397 = vadd.f32 %v3357, %v3219
      %v3398 = vadd.f32 %v3358, %v3224
      %v3399 = vadd.f32 %v3359, %v3229
      %v3400 = vadd.f32 %v3360, %v3234
      %v3401 = vadd.f32 %v3361, %v3239
      %v3402 = vadd.f32 %v3362, %v3244
      %v3403 = vadd.f32 %v3363, %v3249
      %v3404 = vadd.f32 %v3364, %v3254
      %v3405 = vadd.f32 %v3365, %v3259
      %v3406 = vadd.f32 %v3366, %v3264
      %v3407 = vadd.f32 %v3367, %v3269
      %v3408 = vadd.f32 %v3368, %v3274
      %v3409 = vadd.f32 %v3369, %v3279
      %v3410 = vadd.f32 %v3370, %v3284
      %v3411 = vadd.f32 %v3371, %v3289
      %v3412 = vadd.f32 %v3372, %v3294
      %v3413 = vadd.f32 %v3373, %v3299
      %v3414 = vadd.f32 %v3374, %v3304
      %v3415 = vadd.f32 %v3375, %v3309
      %v3416 = vadd.f32 %v3376, %v3314
      %v3417 = vadd.f32 %v3377, %v3319
      %v3418 = vadd.f32 %v3378, %v3324
      %v3419 = vadd.f32 %v3379, %v3329
      %v3420 = vadd.f32 %v3380, %v3334
      %v3421 = vadd.f32 %v3381, %v3339
      %3422 = vst [vmem:[%s1006] sm:$0xff] %v3382
      %3423 = vst [vmem:[%s1006 + $0x8] sm:$0xff] %v3383
      %3424 = vst [vmem:[%s1006 + $0x10] sm:$0xff] %v3384
      %3425 = vst [vmem:[%s1006 + $0x18] sm:$0xff] %v3385
      %3426 = vst [vmem:[%s1006 + $0x20] sm:$0xff] %v3386
      %3427 = vst [vmem:[%s1006 + $0x28] sm:$0xff] %v3387
      %3428 = vst [vmem:[%s1006 + $0x30] sm:$0xff] %v3388
      %3429 = vst [vmem:[%s1006 + $0x38] sm:$0xff] %v3389
      %3430 = vst [vmem:[%s1006 + $0x40] sm:$0xff] %v3390
      %3431 = vst [vmem:[%s1006 + $0x48] sm:$0xff] %v3391
      %3432 = vst [vmem:[%s1006 + $0x50] sm:$0xff] %v3392
      %3433 = vst [vmem:[%s1006 + $0x58] sm:$0xff] %v3393
      %3434 = vst [vmem:[%s1006 + $0x60] sm:$0xff] %v3394
      %3435 = vst [vmem:[%s1006 + $0x68] sm:$0xff] %v3395
      %3436 = vst [vmem:[%s1006 + $0x70] sm:$0xff] %v3396
      %3437 = vst [vmem:[%s1006 + $0x78] sm:$0xff] %v3397
      %3438 = vst [vmem:[%s1006 + $0x80] sm:$0xff] %v3398
      %3439 = vst [vmem:[%s1006 + $0x88] sm:$0xff] %v3399
      %3440 = vst [vmem:[%s1006 + $0x90] sm:$0xff] %v3400
      %3441 = vst [vmem:[%s1006 + $0x98] sm:$0xff] %v3401
      %3442 = vst [vmem:[%s1006 + $0xa0] sm:$0xff] %v3402
      %3443 = vst [vmem:[%s1006 + $0xa8] sm:$0xff] %v3403
      %3444 = vst [vmem:[%s1006 + $0xb0] sm:$0xff] %v3404
      %3445 = vst [vmem:[%s1006 + $0xb8] sm:$0xff] %v3405
      %3446 = vst [vmem:[%s1006 + $0xc0] sm:$0xff] %v3406
      %3447 = vst [vmem:[%s1006 + $0xc8] sm:$0xff] %v3407
      %3448 = vst [vmem:[%s1006 + $0xd0] sm:$0xff] %v3408
      %3449 = vst [vmem:[%s1006 + $0xd8] sm:$0xff] %v3409
      %3450 = vst [vmem:[%s1006 + $0xe0] sm:$0xff] %v3410
      %3451 = vst [vmem:[%s1006 + $0xe8] sm:$0xff] %v3411
      %3452 = vst [vmem:[%s1006 + $0xf0] sm:$0xff] %v3412
      %3453 = vst [vmem:[%s1006 + $0xf8] sm:$0xff] %v3413
      %3454 = vst [vmem:[%s1006 + $0x100] sm:$0xff] %v3414
      %3455 = vst [vmem:[%s1006 + $0x108] sm:$0xff] %v3415
      %3456 = vst [vmem:[%s1006 + $0x110] sm:$0xff] %v3416
      %3457 = vst [vmem:[%s1006 + $0x118] sm:$0xff] %v3417
      %3458 = vst [vmem:[%s1006 + $0x120] sm:$0xff] %v3418
      %3459 = vst [vmem:[%s1006 + $0x128] sm:$0xff] %v3419
      %3460 = vst [vmem:[%s1006 + $0x130] sm:$0xff] %v3420
      %3461 = vst [vmem:[%s1006 + $0x138] sm:$0xff] %v3421
      %s3462 = scalar_lea.vmem %s1, 1024
      %v3463 = vld [vmem:[%s3462] sm:$0xff]
      %v3464 = vld [vmem:[%s3462 + $0x8] sm:$0xff]
      %v3465 = vld [vmem:[%s3462 + $0x10] sm:$0xff]
      %v3466 = vld [vmem:[%s3462 + $0x18] sm:$0xff]
      %v3467 = vld [vmem:[%s3462 + $0x20] sm:$0xff]
      %v3468 = vld [vmem:[%s3462 + $0x28] sm:$0xff]
      %v3469 = vld [vmem:[%s3462 + $0x30] sm:$0xff]
      %v3470 = vld [vmem:[%s3462 + $0x38] sm:$0xff]
      %v3471 = vld [vmem:[%s3462 + $0x40] sm:$0xff]
      %v3472 = vld [vmem:[%s3462 + $0x48] sm:$0xff]
      %v3473 = vld [vmem:[%s3462 + $0x50] sm:$0xff]
      %v3474 = vld [vmem:[%s3462 + $0x58] sm:$0xff]
      %v3475 = vld [vmem:[%s3462 + $0x60] sm:$0xff]
      %v3476 = vld [vmem:[%s3462 + $0x68] sm:$0xff]
      %v3477 = vld [vmem:[%s3462 + $0x70] sm:$0xff]
      %v3478 = vld [vmem:[%s3462 + $0x78] sm:$0xff]
      %3479 = vmatprep.subr.mxu0 0.0
      %3480 = vmatpush1.msra.mxu0 %v3463
      %3481 = vmatprep.subr.mxu0 0.0
      %3482 = vmatpush1.msra.mxu0 %v3464
      %3483 = vmatprep.subr.mxu0 0.0
      %3484 = vmatpush1.msra.mxu0 %v3465
      %3485 = vmatprep.subr.mxu0 0.0
      %3486 = vmatpush1.msra.mxu0 %v3466
      %3487 = vmatprep.subr.mxu0 0.0
      %3488 = vmatpush1.msra.mxu0 %v3467
      %3489 = vmatprep.subr.mxu0 0.0
      %3490 = vmatpush1.msra.mxu0 %v3468
      %3491 = vmatprep.subr.mxu0 0.0
      %3492 = vmatpush1.msra.mxu0 %v3469
      %3493 = vmatprep.subr.mxu0 0.0
      %3494 = vmatpush1.msra.mxu0 %v3470
      %3495 = vmatprep.subr.mxu0 0.0
      %3496 = vmatpush1.msra.mxu0 %v3471
      %3497 = vmatprep.subr.mxu0 0.0
      %3498 = vmatpush1.msra.mxu0 %v3472
      %3499 = vmatprep.subr.mxu0 0.0
      %3500 = vmatpush1.msra.mxu0 %v3473
      %3501 = vmatprep.subr.mxu0 0.0
      %3502 = vmatpush1.msra.mxu0 %v3474
      %3503 = vmatprep.subr.mxu0 0.0
      %3504 = vmatpush1.msra.mxu0 %v3475
      %3505 = vmatprep.subr.mxu0 0.0
      %3506 = vmatpush1.msra.mxu0 %v3476
      %3507 = vmatprep.subr.mxu0 0.0
      %3508 = vmatpush1.msra.mxu0 %v3477
      %3509 = vmatprep.subr.mxu0 0.0
      %3510 = vmatpush1.msra.mxu0 %v3478
      %3511 = vmatprep.subr.mxu0 0.0
      %3512 = vmatpush1.msra.mxu0 0.0
      %3513 = vmatprep.subr.mxu0 0.0
      %3514 = vmatpush1.msra.mxu0 0.0
      %3515 = vmatprep.subr.mxu0 0.0
      %3516 = vmatpush1.msra.mxu0 0.0
      %3517 = vmatprep.subr.mxu0 0.0
      %3518 = vmatpush1.msra.mxu0 0.0
      %3519 = vmatprep.subr.mxu0 0.0
      %3520 = vmatpush1.msra.mxu0 0.0
      %3521 = vmatprep.subr.mxu0 0.0
      %3522 = vmatpush1.msra.mxu0 0.0
      %3523 = vmatprep.subr.mxu0 0.0
      %3524 = vmatpush1.msra.mxu0 0.0
      %3525 = vmatprep.subr.mxu0 0.0
      %3526 = vmatpush1.msra.mxu0 0.0
      %3527 = vmatprep.subr.mxu0 0.0
      %3528 = vmatpush1.msra.mxu0 0.0
      %3529 = vmatprep.subr.mxu0 0.0
      %3530 = vmatpush1.msra.mxu0 0.0
      %3531 = vmatprep.subr.mxu0 0.0
      %3532 = vmatpush1.msra.mxu0 0.0
      %3533 = vmatprep.subr.mxu0 0.0
      %3534 = vmatpush1.msra.mxu0 0.0
      %3535 = vmatprep.subr.mxu0 0.0
      %3536 = vmatpush1.msra.mxu0 0.0
      %3537 = vmatprep.subr.mxu0 0.0
      %3538 = vmatpush1.msra.mxu0 0.0
      %3539 = vmatprep.subr.mxu0 0.0
      %3540 = vmatpush1.msra.mxu0 0.0
      %3541 = vmatprep.subr.mxu0 0.0
      %3542 = vmatpush1.msra.mxu0 0.0
      %3543 = vmatprep.mubr.f32.mxu0 0.0
      %3544 = vmatmul.mubr.f32.gmra.mrb[0].mxu0 %v2618
      %v3545 = vpop.f32.mrb[0].mxu0
      %v3546 = vadd.f32 0.0, %v3545
      %v3547 = vpop.f32.mrb[0].mxu0
      %3548 = vmatprep.mubr.f32.mxu0 0.0
      %3549 = vmatmul.mubr.f32.gmra.mrb[0].mxu0 %v2619
      %v3550 = vpop.f32.mrb[0].mxu0
      %v3551 = vadd.f32 0.0, %v3550
      %v3552 = vpop.f32.mrb[0].mxu0
      %3553 = vmatprep.mubr.f32.mxu0 0.0
      %3554 = vmatmul.mubr.f32.gmra.mrb[0].mxu0 %v2620
      %v3555 = vpop.f32.mrb[0].mxu0
      %v3556 = vadd.f32 0.0, %v3555
      %v3557 = vpop.f32.mrb[0].mxu0
      %3558 = vmatprep.mubr.f32.mxu0 0.0
      %3559 = vmatmul.mubr.f32.gmra.mrb[0].mxu0 %v2621
      %v3560 = vpop.f32.mrb[0].mxu0
      %v3561 = vadd.f32 0.0, %v3560
      %v3562 = vpop.f32.mrb[0].mxu0
      %3563 = vmatprep.mubr.f32.mxu0 0.0
      %3564 = vmatmul.mubr.f32.gmra.mrb[0].mxu0 %v2622
      %v3565 = vpop.f32.mrb[0].mxu0
      %v3566 = vadd.f32 0.0, %v3565
      %v3567 = vpop.f32.mrb[0].mxu0
      %3568 = vmatprep.mubr.f32.mxu0 0.0
      %3569 = vmatmul.mubr.f32.gmra.mrb[0].mxu0 %v2623
      %v3570 = vpop.f32.mrb[0].mxu0
      %v3571 = vadd.f32 0.0, %v3570
      %v3572 = vpop.f32.mrb[0].mxu0
      %3573 = vmatprep.mubr.f32.mxu0 0.0
      %3574 = vmatmul.mubr.f32.gmra.mrb[0].mxu0 %v2624
      %v3575 = vpop.f32.mrb[0].mxu0
      %v3576 = vadd.f32 0.0, %v3575
      %v3577 = vpop.f32.mrb[0].mxu0
      %3578 = vmatprep.mubr.f32.mxu0 0.0
      %3579 = vmatmul.mubr.f32.gmra.mrb[0].mxu0 %v2625
      %v3580 = vpop.f32.mrb[0].mxu0
      %v3581 = vadd.f32 0.0, %v3580
      %v3582 = vpop.f32.mrb[0].mxu0
      %3583 = vmatprep.mubr.f32.mxu0 0.0
      %3584 = vmatmul.mubr.f32.gmra.mrb[0].mxu0 %v2626
      %v3585 = vpop.f32.mrb[0].mxu0
      %v3586 = vadd.f32 0.0, %v3585
      %v3587 = vpop.f32.mrb[0].mxu0
      %3588 = vmatprep.mubr.f32.mxu0 0.0
      %3589 = vmatmul.mubr.f32.gmra.mrb[0].mxu0 %v2627
      %v3590 = vpop.f32.mrb[0].mxu0
      %v3591 = vadd.f32 0.0, %v3590
      %v3592 = vpop.f32.mrb[0].mxu0
      %3593 = vmatprep.mubr.f32.mxu0 0.0
      %3594 = vmatmul.mubr.f32.gmra.mrb[0].mxu0 %v2628
      %v3595 = vpop.f32.mrb[0].mxu0
      %v3596 = vadd.f32 0.0, %v3595
      %v3597 = vpop.f32.mrb[0].mxu0
      %3598 = vmatprep.mubr.f32.mxu0 0.0
      %3599 = vmatmul.mubr.f32.gmra.mrb[0].mxu0 %v2629
      %v3600 = vpop.f32.mrb[0].mxu0
      %v3601 = vadd.f32 0.0, %v3600
      %v3602 = vpop.f32.mrb[0].mxu0
      %3603 = vmatprep.mubr.f32.mxu0 0.0
      %3604 = vmatmul.mubr.f32.gmra.mrb[0].mxu0 %v2630
      %v3605 = vpop.f32.mrb[0].mxu0
      %v3606 = vadd.f32 0.0, %v3605
      %v3607 = vpop.f32.mrb[0].mxu0
      %3608 = vmatprep.mubr.f32.mxu0 0.0
      %3609 = vmatmul.mubr.f32.gmra.mrb[0].mxu0 %v2631
      %v3610 = vpop.f32.mrb[0].mxu0
      %v3611 = vadd.f32 0.0, %v3610
      %v3612 = vpop.f32.mrb[0].mxu0
      %3613 = vmatprep.mubr.f32.mxu0 0.0
      %3614 = vmatmul.mubr.f32.gmra.mrb[0].mxu0 %v2632
      %v3615 = vpop.f32.mrb[0].mxu0
      %v3616 = vadd.f32 0.0, %v3615
      %v3617 = vpop.f32.mrb[0].mxu0
      %3618 = vmatprep.mubr.f32.mxu0 0.0
      %3619 = vmatmul.mubr.f32.gmra.mrb[0].mxu0 %v2633
      %v3620 = vpop.f32.mrb[0].mxu0
      %v3621 = vadd.f32 0.0, %v3620
      %v3622 = vpop.f32.mrb[0].mxu0
      %3623 = vmatprep.mubr.f32.mxu0 0.0
      %3624 = vmatmul.mubr.f32.gmra.mrb[0].mxu0 %v2634
      %v3625 = vpop.f32.mrb[0].mxu0
      %v3626 = vadd.f32 0.0, %v3625
      %v3627 = vpop.f32.mrb[0].mxu0
      %3628 = vmatprep.mubr.f32.mxu0 0.0
      %3629 = vmatmul.mubr.f32.gmra.mrb[0].mxu0 %v2635
      %v3630 = vpop.f32.mrb[0].mxu0
      %v3631 = vadd.f32 0.0, %v3630
      %v3632 = vpop.f32.mrb[0].mxu0
      %3633 = vmatprep.mubr.f32.mxu0 0.0
      %3634 = vmatmul.mubr.f32.gmra.mrb[0].mxu0 %v2636
      %v3635 = vpop.f32.mrb[0].mxu0
      %v3636 = vadd.f32 0.0, %v3635
      %v3637 = vpop.f32.mrb[0].mxu0
      %3638 = vmatprep.mubr.f32.mxu0 0.0
      %3639 = vmatmul.mubr.f32.gmra.mrb[0].mxu0 %v2637
      %v3640 = vpop.f32.mrb[0].mxu0
      %v3641 = vadd.f32 0.0, %v3640
      %v3642 = vpop.f32.mrb[0].mxu0
      %3643 = vmatprep.mubr.f32.mxu0 0.0
      %3644 = vmatmul.mubr.f32.gmra.mrb[0].mxu0 %v2638
      %v3645 = vpop.f32.mrb[0].mxu0
      %v3646 = vadd.f32 0.0, %v3645
      %v3647 = vpop.f32.mrb[0].mxu0
      %3648 = vmatprep.mubr.f32.mxu0 0.0
      %3649 = vmatmul.mubr.f32.gmra.mrb[0].mxu0 %v2639
      %v3650 = vpop.f32.mrb[0].mxu0
      %v3651 = vadd.f32 0.0, %v3650
      %v3652 = vpop.f32.mrb[0].mxu0
      %3653 = vmatprep.mubr.f32.mxu0 0.0
      %3654 = vmatmul.mubr.f32.gmra.mrb[0].mxu0 %v2640
      %v3655 = vpop.f32.mrb[0].mxu0
      %v3656 = vadd.f32 0.0, %v3655
      %v3657 = vpop.f32.mrb[0].mxu0
      %3658 = vmatprep.mubr.f32.mxu0 0.0
      %3659 = vmatmul.mubr.f32.gmra.mrb[0].mxu0 %v2641
      %v3660 = vpop.f32.mrb[0].mxu0
      %v3661 = vadd.f32 0.0, %v3660
      %v3662 = vpop.f32.mrb[0].mxu0
      %3663 = vmatprep.mubr.f32.mxu0 0.0
      %3664 = vmatmul.mubr.f32.gmra.mrb[0].mxu0 %v2642
      %v3665 = vpop.f32.mrb[0].mxu0
      %v3666 = vadd.f32 0.0, %v3665
      %v3667 = vpop.f32.mrb[0].mxu0
      %3668 = vmatprep.mubr.f32.mxu0 0.0
      %3669 = vmatmul.mubr.f32.gmra.mrb[0].mxu0 %v2643
      %v3670 = vpop.f32.mrb[0].mxu0
      %v3671 = vadd.f32 0.0, %v3670
      %v3672 = vpop.f32.mrb[0].mxu0
      %3673 = vmatprep.mubr.f32.mxu0 0.0
      %3674 = vmatmul.mubr.f32.gmra.mrb[0].mxu0 %v2644
      %v3675 = vpop.f32.mrb[0].mxu0
      %v3676 = vadd.f32 0.0, %v3675
      %v3677 = vpop.f32.mrb[0].mxu0
      %3678 = vmatprep.mubr.f32.mxu0 0.0
      %3679 = vmatmul.mubr.f32.gmra.mrb[0].mxu0 %v2645
      %v3680 = vpop.f32.mrb[0].mxu0
      %v3681 = vadd.f32 0.0, %v3680
      %v3682 = vpop.f32.mrb[0].mxu0
      %3683 = vmatprep.mubr.f32.mxu0 0.0
      %3684 = vmatmul.mubr.f32.gmra.mrb[0].mxu0 %v2646
      %v3685 = vpop.f32.mrb[0].mxu0
      %v3686 = vadd.f32 0.0, %v3685
      %v3687 = vpop.f32.mrb[0].mxu0
      %3688 = vmatprep.mubr.f32.mxu0 0.0
      %3689 = vmatmul.mubr.f32.gmra.mrb[0].mxu0 %v2647
      %v3690 = vpop.f32.mrb[0].mxu0
      %v3691 = vadd.f32 0.0, %v3690
      %v3692 = vpop.f32.mrb[0].mxu0
      %3693 = vmatprep.mubr.f32.mxu0 0.0
      %3694 = vmatmul.mubr.f32.gmra.mrb[0].mxu0 %v2648
      %v3695 = vpop.f32.mrb[0].mxu0
      %v3696 = vadd.f32 0.0, %v3695
      %v3697 = vpop.f32.mrb[0].mxu0
      %3698 = vmatprep.mubr.f32.mxu0 0.0
      %3699 = vmatmul.mubr.f32.gmra.mrb[0].mxu0 %v2649
      %v3700 = vpop.f32.mrb[0].mxu0
      %v3701 = vadd.f32 0.0, %v3700
      %v3702 = vpop.f32.mrb[0].mxu0
      %3703 = vmatprep.mubr.f32.mxu0 0.0
      %3704 = vmatmul.mubr.f32.gmra.mrb[0].mxu0 %v2650
      %v3705 = vpop.f32.mrb[0].mxu0
      %v3706 = vadd.f32 0.0, %v3705
      %v3707 = vpop.f32.mrb[0].mxu0
      %3708 = vmatprep.mubr.f32.mxu0 0.0
      %3709 = vmatmul.mubr.f32.gmra.mrb[0].mxu0 %v2651
      %v3710 = vpop.f32.mrb[0].mxu0
      %v3711 = vadd.f32 0.0, %v3710
      %v3712 = vpop.f32.mrb[0].mxu0
      %3713 = vmatprep.mubr.f32.mxu0 0.0
      %3714 = vmatmul.mubr.f32.gmra.mrb[0].mxu0 %v2652
      %v3715 = vpop.f32.mrb[0].mxu0
      %v3716 = vadd.f32 0.0, %v3715
      %v3717 = vpop.f32.mrb[0].mxu0
      %3718 = vmatprep.mubr.f32.mxu0 0.0
      %3719 = vmatmul.mubr.f32.gmra.mrb[0].mxu0 %v2653
      %v3720 = vpop.f32.mrb[0].mxu0
      %v3721 = vadd.f32 0.0, %v3720
      %v3722 = vpop.f32.mrb[0].mxu0
      %3723 = vmatprep.mubr.f32.mxu0 0.0
      %3724 = vmatmul.mubr.f32.gmra.mrb[0].mxu0 %v2654
      %v3725 = vpop.f32.mrb[0].mxu0
      %v3726 = vadd.f32 0.0, %v3725
      %v3727 = vpop.f32.mrb[0].mxu0
      %3728 = vmatprep.mubr.f32.mxu0 0.0
      %3729 = vmatmul.mubr.f32.gmra.mrb[0].mxu0 %v2655
      %v3730 = vpop.f32.mrb[0].mxu0
      %v3731 = vadd.f32 0.0, %v3730
      %v3732 = vpop.f32.mrb[0].mxu0
      %3733 = vmatprep.mubr.f32.mxu0 0.0
      %3734 = vmatmul.mubr.f32.gmra.mrb[0].mxu0 %v2656
      %v3735 = vpop.f32.mrb[0].mxu0
      %v3736 = vadd.f32 0.0, %v3735
      %v3737 = vpop.f32.mrb[0].mxu0
      %3738 = vmatprep.mubr.f32.mxu0 0.0
      %3739 = vmatmul.mubr.f32.gmra.mrb[0].mxu0 %v2657
      %v3740 = vpop.f32.mrb[0].mxu0
      %v3741 = vadd.f32 0.0, %v3740
      %v3742 = vpop.f32.mrb[0].mxu0
      %3743 = vdwg.mxu0
      %v3744 = vld [vmem:[%s1329] sm:$0xff]
      %v3745 = vld [vmem:[%s1329 + $0x8] sm:$0xff]
      %v3746 = vld [vmem:[%s1329 + $0x10] sm:$0xff]
      %v3747 = vld [vmem:[%s1329 + $0x18] sm:$0xff]
      %v3748 = vld [vmem:[%s1329 + $0x20] sm:$0xff]
      %v3749 = vld [vmem:[%s1329 + $0x28] sm:$0xff]
      %v3750 = vld [vmem:[%s1329 + $0x30] sm:$0xff]
      %v3751 = vld [vmem:[%s1329 + $0x38] sm:$0xff]
      %v3752 = vld [vmem:[%s1329 + $0x40] sm:$0xff]
      %v3753 = vld [vmem:[%s1329 + $0x48] sm:$0xff]
      %v3754 = vld [vmem:[%s1329 + $0x50] sm:$0xff]
      %v3755 = vld [vmem:[%s1329 + $0x58] sm:$0xff]
      %v3756 = vld [vmem:[%s1329 + $0x60] sm:$0xff]
      %v3757 = vld [vmem:[%s1329 + $0x68] sm:$0xff]
      %v3758 = vld [vmem:[%s1329 + $0x70] sm:$0xff]
      %v3759 = vld [vmem:[%s1329 + $0x78] sm:$0xff]
      %v3760 = vld [vmem:[%s1329 + $0x80] sm:$0xff]
      %v3761 = vld [vmem:[%s1329 + $0x88] sm:$0xff]
      %v3762 = vld [vmem:[%s1329 + $0x90] sm:$0xff]
      %v3763 = vld [vmem:[%s1329 + $0x98] sm:$0xff]
      %v3764 = vld [vmem:[%s1329 + $0xa0] sm:$0xff]
      %v3765 = vld [vmem:[%s1329 + $0xa8] sm:$0xff]
      %v3766 = vld [vmem:[%s1329 + $0xb0] sm:$0xff]
      %v3767 = vld [vmem:[%s1329 + $0xb8] sm:$0xff]
      %v3768 = vld [vmem:[%s1329 + $0xc0] sm:$0xff]
      %v3769 = vld [vmem:[%s1329 + $0xc8] sm:$0xff]
      %v3770 = vld [vmem:[%s1329 + $0xd0] sm:$0xff]
      %v3771 = vld [vmem:[%s1329 + $0xd8] sm:$0xff]
      %v3772 = vld [vmem:[%s1329 + $0xe0] sm:$0xff]
      %v3773 = vld [vmem:[%s1329 + $0xe8] sm:$0xff]
      %v3774 = vld [vmem:[%s1329 + $0xf0] sm:$0xff]
      %v3775 = vld [vmem:[%s1329 + $0xf8] sm:$0xff]
      %v3776 = vld [vmem:[%s1329 + $0x100] sm:$0xff]
      %v3777 = vld [vmem:[%s1329 + $0x108] sm:$0xff]
      %v3778 = vld [vmem:[%s1329 + $0x110] sm:$0xff]
      %v3779 = vld [vmem:[%s1329 + $0x118] sm:$0xff]
      %v3780 = vld [vmem:[%s1329 + $0x120] sm:$0xff]
      %v3781 = vld [vmem:[%s1329 + $0x128] sm:$0xff]
      %v3782 = vld [vmem:[%s1329 + $0x130] sm:$0xff]
      %v3783 = vld [vmem:[%s1329 + $0x138] sm:$0xff]
      %v3784 = vadd.f32 %v3744, %v3546
      %v3785 = vadd.f32 %v3745, %v3551
      %v3786 = vadd.f32 %v3746, %v3556
      %v3787 = vadd.f32 %v3747, %v3561
      %v3788 = vadd.f32 %v3748, %v3566
      %v3789 = vadd.f32 %v3749, %v3571
      %v3790 = vadd.f32 %v3750, %v3576
      %v3791 = vadd.f32 %v3751, %v3581
      %v3792 = vadd.f32 %v3752, %v3586
      %v3793 = vadd.f32 %v3753, %v3591
      %v3794 = vadd.f32 %v3754, %v3596
      %v3795 = vadd.f32 %v3755, %v3601
      %v3796 = vadd.f32 %v3756, %v3606
      %v3797 = vadd.f32 %v3757, %v3611
      %v3798 = vadd.f32 %v3758, %v3616
      %v3799 = vadd.f32 %v3759, %v3621
      %v3800 = vadd.f32 %v3760, %v3626
      %v3801 = vadd.f32 %v3761, %v3631
      %v3802 = vadd.f32 %v3762, %v3636
      %v3803 = vadd.f32 %v3763, %v3641
      %v3804 = vadd.f32 %v3764, %v3646
      %v3805 = vadd.f32 %v3765, %v3651
      %v3806 = vadd.f32 %v3766, %v3656
      %v3807 = vadd.f32 %v3767, %v3661
      %v3808 = vadd.f32 %v3768, %v3666
      %v3809 = vadd.f32 %v3769, %v3671
      %v3810 = vadd.f32 %v3770, %v3676
      %v3811 = vadd.f32 %v3771, %v3681
      %v3812 = vadd.f32 %v3772, %v3686
      %v3813 = vadd.f32 %v3773, %v3691
      %v3814 = vadd.f32 %v3774, %v3696
      %v3815 = vadd.f32 %v3775, %v3701
      %v3816 = vadd.f32 %v3776, %v3706
      %v3817 = vadd.f32 %v3777, %v3711
      %v3818 = vadd.f32 %v3778, %v3716
      %v3819 = vadd.f32 %v3779, %v3721
      %v3820 = vadd.f32 %v3780, %v3726
      %v3821 = vadd.f32 %v3781, %v3731
      %v3822 = vadd.f32 %v3782, %v3736
      %v3823 = vadd.f32 %v3783, %v3741
      %3824 = vst [vmem:[%s1329] sm:$0xff] %v3784
      %3825 = vst [vmem:[%s1329 + $0x8] sm:$0xff] %v3785
      %3826 = vst [vmem:[%s1329 + $0x10] sm:$0xff] %v3786
      %3827 = vst [vmem:[%s1329 + $0x18] sm:$0xff] %v3787
      %3828 = vst [vmem:[%s1329 + $0x20] sm:$0xff] %v3788
      %3829 = vst [vmem:[%s1329 + $0x28] sm:$0xff] %v3789
      %3830 = vst [vmem:[%s1329 + $0x30] sm:$0xff] %v3790
      %3831 = vst [vmem:[%s1329 + $0x38] sm:$0xff] %v3791
      %3832 = vst [vmem:[%s1329 + $0x40] sm:$0xff] %v3792
      %3833 = vst [vmem:[%s1329 + $0x48] sm:$0xff] %v3793
      %3834 = vst [vmem:[%s1329 + $0x50] sm:$0xff] %v3794
      %3835 = vst [vmem:[%s1329 + $0x58] sm:$0xff] %v3795
      %3836 = vst [vmem:[%s1329 + $0x60] sm:$0xff] %v3796
      %3837 = vst [vmem:[%s1329 + $0x68] sm:$0xff] %v3797
      %3838 = vst [vmem:[%s1329 + $0x70] sm:$0xff] %v3798
      %3839 = vst [vmem:[%s1329 + $0x78] sm:$0xff] %v3799
      %3840 = vst [vmem:[%s1329 + $0x80] sm:$0xff] %v3800
      %3841 = vst [vmem:[%s1329 + $0x88] sm:$0xff] %v3801
      %3842 = vst [vmem:[%s1329 + $0x90] sm:$0xff] %v3802
      %3843 = vst [vmem:[%s1329 + $0x98] sm:$0xff] %v3803
      %3844 = vst [vmem:[%s1329 + $0xa0] sm:$0xff] %v3804
      %3845 = vst [vmem:[%s1329 + $0xa8] sm:$0xff] %v3805
      %3846 = vst [vmem:[%s1329 + $0xb0] sm:$0xff] %v3806
      %3847 = vst [vmem:[%s1329 + $0xb8] sm:$0xff] %v3807
      %3848 = vst [vmem:[%s1329 + $0xc0] sm:$0xff] %v3808
      %3849 = vst [vmem:[%s1329 + $0xc8] sm:$0xff] %v3809
      %3850 = vst [vmem:[%s1329 + $0xd0] sm:$0xff] %v3810
      %3851 = vst [vmem:[%s1329 + $0xd8] sm:$0xff] %v3811
      %3852 = vst [vmem:[%s1329 + $0xe0] sm:$0xff] %v3812
      %3853 = vst [vmem:[%s1329 + $0xe8] sm:$0xff] %v3813
      %3854 = vst [vmem:[%s1329 + $0xf0] sm:$0xff] %v3814
      %3855 = vst [vmem:[%s1329 + $0xf8] sm:$0xff] %v3815
      %3856 = vst [vmem:[%s1329 + $0x100] sm:$0xff] %v3816
      %3857 = vst [vmem:[%s1329 + $0x108] sm:$0xff] %v3817
      %3858 = vst [vmem:[%s1329 + $0x110] sm:$0xff] %v3818
      %3859 = vst [vmem:[%s1329 + $0x118] sm:$0xff] %v3819
      %3860 = vst [vmem:[%s1329 + $0x120] sm:$0xff] %v3820
      %3861 = vst [vmem:[%s1329 + $0x128] sm:$0xff] %v3821
      %3862 = vst [vmem:[%s1329 + $0x130] sm:$0xff] %v3822
      %3863 = vst [vmem:[%s1329 + $0x138] sm:$0xff] %v3823
      %v3864 = vld [vmem:[#allocation3] sm:$0xff]
      %v3865 = vld [vmem:[#allocation3 + $0x8] sm:$0xff]
      %v3866 = vld [vmem:[#allocation3 + $0x10] sm:$0xff]
      %v3867 = vld [vmem:[#allocation3 + $0x18] sm:$0xff]
      %v3868 = vld [vmem:[#allocation3 + $0x28] sm:$0xff]
      %v3869 = vld [vmem:[#allocation3 + $0x30] sm:$0xff]
      %v3870 = vld [vmem:[#allocation3 + $0x38] sm:$0xff]
      %v3871 = vld [vmem:[#allocation3 + $0x40] sm:$0xff]
      %v3872 = vld [vmem:[#allocation3 + $0x50] sm:$0xff]
      %v3873 = vld [vmem:[#allocation3 + $0x58] sm:$0xff]
      %v3874 = vld [vmem:[#allocation3 + $0x60] sm:$0xff]
      %v3875 = vld [vmem:[#allocation3 + $0x68] sm:$0xff]
      %v3876 = vld [vmem:[#allocation3 + $0x78] sm:$0xff]
      %v3877 = vld [vmem:[#allocation3 + $0x80] sm:$0xff]
      %v3878 = vld [vmem:[#allocation3 + $0x88] sm:$0xff]
      %v3879 = vld [vmem:[#allocation3 + $0x90] sm:$0xff]
      %v3880 = vld [vmem:[#allocation3 + $0xa0] sm:$0xff]
      %v3881 = vld [vmem:[#allocation3 + $0xa8] sm:$0xff]
      %v3882 = vld [vmem:[#allocation3 + $0xb0] sm:$0xff]
      %v3883 = vld [vmem:[#allocation3 + $0xb8] sm:$0xff]
      %v3884 = vld [vmem:[#allocation3 + $0xc8] sm:$0xff]
      %v3885 = vld [vmem:[#allocation3 + $0xd0] sm:$0xff]
      %v3886 = vld [vmem:[#allocation3 + $0xd8] sm:$0xff]
      %v3887 = vld [vmem:[#allocation3 + $0xe0] sm:$0xff]
      %v3888 = vld [vmem:[#allocation3 + $0xf0] sm:$0xff]
      %v3889 = vld [vmem:[#allocation3 + $0xf8] sm:$0xff]
      %v3890 = vld [vmem:[#allocation3 + $0x100] sm:$0xff]
      %v3891 = vld [vmem:[#allocation3 + $0x108] sm:$0xff]
      %v3892 = vld [vmem:[#allocation3 + $0x118] sm:$0xff]
      %v3893 = vld [vmem:[#allocation3 + $0x120] sm:$0xff]
      %v3894 = vld [vmem:[#allocation3 + $0x128] sm:$0xff]
      %v3895 = vld [vmem:[#allocation3 + $0x130] sm:$0xff]
      %v3896 = vld [vmem:[%s1006] sm:$0xff]
      %v3897 = vld [vmem:[%s1006 + $0x8] sm:$0xff]
      %v3898 = vld [vmem:[%s1006 + $0x10] sm:$0xff]
      %v3899 = vld [vmem:[%s1006 + $0x18] sm:$0xff]
      %v3900 = vld [vmem:[%s1006 + $0x20] sm:$0xff]
      %v3901 = vld [vmem:[%s1006 + $0x28] sm:$0xff]
      %v3902 = vld [vmem:[%s1006 + $0x30] sm:$0xff]
      %v3903 = vld [vmem:[%s1006 + $0x38] sm:$0xff]
      %v3904 = vld [vmem:[%s1006 + $0x40] sm:$0xff]
      %v3905 = vld [vmem:[%s1006 + $0x48] sm:$0xff]
      %v3906 = vld [vmem:[%s1006 + $0x50] sm:$0xff]
      %v3907 = vld [vmem:[%s1006 + $0x58] sm:$0xff]
      %v3908 = vld [vmem:[%s1006 + $0x60] sm:$0xff]
      %v3909 = vld [vmem:[%s1006 + $0x68] sm:$0xff]
      %v3910 = vld [vmem:[%s1006 + $0x70] sm:$0xff]
      %v3911 = vld [vmem:[%s1006 + $0x78] sm:$0xff]
      %v3912 = vld [vmem:[%s1006 + $0x80] sm:$0xff]
      %v3913 = vld [vmem:[%s1006 + $0x88] sm:$0xff]
      %v3914 = vld [vmem:[%s1006 + $0x90] sm:$0xff]
      %v3915 = vld [vmem:[%s1006 + $0x98] sm:$0xff]
      %v3916 = vld [vmem:[%s1006 + $0xa0] sm:$0xff]
      %v3917 = vld [vmem:[%s1006 + $0xa8] sm:$0xff]
      %v3918 = vld [vmem:[%s1006 + $0xb0] sm:$0xff]
      %v3919 = vld [vmem:[%s1006 + $0xb8] sm:$0xff]
      %v3920 = vld [vmem:[%s1006 + $0xc0] sm:$0xff]
      %v3921 = vld [vmem:[%s1006 + $0xc8] sm:$0xff]
      %v3922 = vld [vmem:[%s1006 + $0xd0] sm:$0xff]
      %v3923 = vld [vmem:[%s1006 + $0xd8] sm:$0xff]
      %v3924 = vld [vmem:[%s1006 + $0xe0] sm:$0xff]
      %v3925 = vld [vmem:[%s1006 + $0xe8] sm:$0xff]
      %v3926 = vld [vmem:[%s1006 + $0xf0] sm:$0xff]
      %v3927 = vld [vmem:[%s1006 + $0xf8] sm:$0xff]
      %v3928 = vld [vmem:[%s1006 + $0x100] sm:$0xff]
      %v3929 = vld [vmem:[%s1006 + $0x108] sm:$0xff]
      %v3930 = vld [vmem:[%s1006 + $0x110] sm:$0xff]
      %v3931 = vld [vmem:[%s1006 + $0x118] sm:$0xff]
      %v3932 = vld [vmem:[%s1006 + $0x120] sm:$0xff]
      %v3933 = vld [vmem:[%s1006 + $0x128] sm:$0xff]
      %v3934 = vld [vmem:[%s1006 + $0x130] sm:$0xff]
      %v3935 = vld [vmem:[%s1006 + $0x138] sm:$0xff]
      %v3936 = vld [vmem:[%s1329] sm:$0xff]
      %v3937 = vld [vmem:[%s1329 + $0x8] sm:$0xff]
      %v3938 = vld [vmem:[%s1329 + $0x10] sm:$0xff]
      %v3939 = vld [vmem:[%s1329 + $0x18] sm:$0xff]
      %v3940 = vld [vmem:[%s1329 + $0x20] sm:$0xff]
      %v3941 = vld [vmem:[%s1329 + $0x28] sm:$0xff]
      %v3942 = vld [vmem:[%s1329 + $0x30] sm:$0xff]
      %v3943 = vld [vmem:[%s1329 + $0x38] sm:$0xff]
      %v3944 = vld [vmem:[%s1329 + $0x40] sm:$0xff]
      %v3945 = vld [vmem:[%s1329 + $0x48] sm:$0xff]
      %v3946 = vld [vmem:[%s1329 + $0x50] sm:$0xff]
      %v3947 = vld [vmem:[%s1329 + $0x58] sm:$0xff]
      %v3948 = vld [vmem:[%s1329 + $0x60] sm:$0xff]
      %v3949 = vld [vmem:[%s1329 + $0x68] sm:$0xff]
      %v3950 = vld [vmem:[%s1329 + $0x70] sm:$0xff]
      %v3951 = vld [vmem:[%s1329 + $0x78] sm:$0xff]
      %v3952 = vld [vmem:[%s1329 + $0x80] sm:$0xff]
      %v3953 = vld [vmem:[%s1329 + $0x88] sm:$0xff]
      %v3954 = vld [vmem:[%s1329 + $0x90] sm:$0xff]
      %v3955 = vld [vmem:[%s1329 + $0x98] sm:$0xff]
      %v3956 = vld [vmem:[%s1329 + $0xa0] sm:$0xff]
      %v3957 = vld [vmem:[%s1329 + $0xa8] sm:$0xff]
      %v3958 = vld [vmem:[%s1329 + $0xb0] sm:$0xff]
      %v3959 = vld [vmem:[%s1329 + $0xb8] sm:$0xff]
      %v3960 = vld [vmem:[%s1329 + $0xc0] sm:$0xff]
      %v3961 = vld [vmem:[%s1329 + $0xc8] sm:$0xff]
      %v3962 = vld [vmem:[%s1329 + $0xd0] sm:$0xff]
      %v3963 = vld [vmem:[%s1329 + $0xd8] sm:$0xff]
      %v3964 = vld [vmem:[%s1329 + $0xe0] sm:$0xff]
      %v3965 = vld [vmem:[%s1329 + $0xe8] sm:$0xff]
      %v3966 = vld [vmem:[%s1329 + $0xf0] sm:$0xff]
      %v3967 = vld [vmem:[%s1329 + $0xf8] sm:$0xff]
      %v3968 = vld [vmem:[%s1329 + $0x100] sm:$0xff]
      %v3969 = vld [vmem:[%s1329 + $0x108] sm:$0xff]
      %v3970 = vld [vmem:[%s1329 + $0x110] sm:$0xff]
      %v3971 = vld [vmem:[%s1329 + $0x118] sm:$0xff]
      %v3972 = vld [vmem:[%s1329 + $0x120] sm:$0xff]
      %v3973 = vld [vmem:[%s1329 + $0x128] sm:$0xff]
      %v3974 = vld [vmem:[%s1329 + $0x130] sm:$0xff]
      %v3975 = vld [vmem:[%s1329 + $0x138] sm:$0xff]
      %vm4016 = vcmask 1046528
      %v4017 = vrot.slane %v3896, 1
      %v4018 = vrot.slane %v3897, 1
      %v4019 = vsel %vm4016, %v4017, %v4018
      %v4020 = vrot.slane %v3898, 1
      %v4021 = vsel %vm4016, %v4018, %v4020
      %v4022 = vrot.slane %v3899, 1
      %v4023 = vsel %vm4016, %v4020, %v4022
      %v4024 = vrot.slane %v3900, 1
      %v4025 = vsel %vm4016, %v4022, %v4024
      %v4026 = vrot.slane %v3901, 1
      %v4027 = vrot.slane %v3902, 1
      %v4028 = vsel %vm4016, %v4026, %v4027
      %v4029 = vrot.slane %v3903, 1
      %v4030 = vsel %vm4016, %v4027, %v4029
      %v4031 = vrot.slane %v3904, 1
      %v4032 = vsel %vm4016, %v4029, %v4031
      %v4033 = vrot.slane %v3905, 1
      %v4034 = vsel %vm4016, %v4031, %v4033
      %v4035 = vrot.slane %v3906, 1
      %v4036 = vrot.slane %v3907, 1
      %v4037 = vsel %vm4016, %v4035, %v4036
      %v4038 = vrot.slane %v3908, 1
      %v4039 = vsel %vm4016, %v4036, %v4038
      %v4040 = vrot.slane %v3909, 1
      %v4041 = vsel %vm4016, %v4038, %v4040
      %v4042 = vrot.slane %v3910, 1
      %v4043 = vsel %vm4016, %v4040, %v4042
      %v4044 = vrot.slane %v3911, 1
      %v4045 = vrot.slane %v3912, 1
      %v4046 = vsel %vm4016, %v4044, %v4045
      %v4047 = vrot.slane %v3913, 1
      %v4048 = vsel %vm4016, %v4045, %v4047
      %v4049 = vrot.slane %v3914, 1
      %v4050 = vsel %vm4016, %v4047, %v4049
      %v4051 = vrot.slane %v3915, 1
      %v4052 = vsel %vm4016, %v4049, %v4051
      %v4053 = vrot.slane %v3916, 1
      %v4054 = vrot.slane %v3917, 1
      %v4055 = vsel %vm4016, %v4053, %v4054
      %v4056 = vrot.slane %v3918, 1
      %v4057 = vsel %vm4016, %v4054, %v4056
      %v4058 = vrot.slane %v3919, 1
      %v4059 = vsel %vm4016, %v4056, %v4058
      %v4060 = vrot.slane %v3920, 1
      %v4061 = vsel %vm4016, %v4058, %v4060
      %v4062 = vrot.slane %v3921, 1
      %v4063 = vrot.slane %v3922, 1
      %v4064 = vsel %vm4016, %v4062, %v4063
      %v4065 = vrot.slane %v3923, 1
      %v4066 = vsel %vm4016, %v4063, %v4065
      %v4067 = vrot.slane %v3924, 1
      %v4068 = vsel %vm4016, %v4065, %v4067
      %v4069 = vrot.slane %v3925, 1
      %v4070 = vsel %vm4016, %v4067, %v4069
      %v4071 = vrot.slane %v3926, 1
      %v4072 = vrot.slane %v3927, 1
      %v4073 = vsel %vm4016, %v4071, %v4072
      %v4074 = vrot.slane %v3928, 1
      %v4075 = vsel %vm4016, %v4072, %v4074
      %v4076 = vrot.slane %v3929, 1
      %v4077 = vsel %vm4016, %v4074, %v4076
      %v4078 = vrot.slane %v3930, 1
      %v4079 = vsel %vm4016, %v4076, %v4078
      %v4080 = vrot.slane %v3931, 1
      %v4081 = vrot.slane %v3932, 1
      %v4082 = vsel %vm4016, %v4080, %v4081
      %v4083 = vrot.slane %v3933, 1
      %v4084 = vsel %vm4016, %v4081, %v4083
      %v4085 = vrot.slane %v3934, 1
      %v4086 = vsel %vm4016, %v4083, %v4085
      %v4087 = vrot.slane %v3935, 1
      %v4088 = vsel %vm4016, %v4085, %v4087
      %v4121 = vadd.f32 %v3864, %v4019
      %v4122 = vadd.f32 %v3865, %v4021
      %v4123 = vadd.f32 %v3866, %v4023
      %v4124 = vadd.f32 %v3867, %v4025
      %v4125 = vadd.f32 %v3868, %v4028
      %v4126 = vadd.f32 %v3869, %v4030
      %v4127 = vadd.f32 %v3870, %v4032
      %v4128 = vadd.f32 %v3871, %v4034
      %v4129 = vadd.f32 %v3872, %v4037
      %v4130 = vadd.f32 %v3873, %v4039
      %v4131 = vadd.f32 %v3874, %v4041
      %v4132 = vadd.f32 %v3875, %v4043
      %v4133 = vadd.f32 %v3876, %v4046
      %v4134 = vadd.f32 %v3877, %v4048
      %v4135 = vadd.f32 %v3878, %v4050
      %v4136 = vadd.f32 %v3879, %v4052
      %v4137 = vadd.f32 %v3880, %v4055
      %v4138 = vadd.f32 %v3881, %v4057
      %v4139 = vadd.f32 %v3882, %v4059
      %v4140 = vadd.f32 %v3883, %v4061
      %v4141 = vadd.f32 %v3884, %v4064
      %v4142 = vadd.f32 %v3885, %v4066
      %v4143 = vadd.f32 %v3886, %v4068
      %v4144 = vadd.f32 %v3887, %v4070
      %v4145 = vadd.f32 %v3888, %v4073
      %v4146 = vadd.f32 %v3889, %v4075
      %v4147 = vadd.f32 %v3890, %v4077
      %v4148 = vadd.f32 %v3891, %v4079
      %v4149 = vadd.f32 %v3892, %v4082
      %v4150 = vadd.f32 %v3893, %v4084
      %v4151 = vadd.f32 %v3894, %v4086
      %v4152 = vadd.f32 %v3895, %v4088
      %vm4193 = vcmask 1045504
      %v4194 = vrot.slane %v3936, 2
      %v4195 = vrot.slane %v3937, 2
      %v4196 = vsel %vm4193, %v4194, %v4195
      %v4197 = vrot.slane %v3938, 2
      %v4198 = vsel %vm4193, %v4195, %v4197
      %v4199 = vrot.slane %v3939, 2
      %v4200 = vsel %vm4193, %v4197, %v4199
      %v4201 = vrot.slane %v3940, 2
      %v4202 = vsel %vm4193, %v4199, %v4201
      %v4203 = vrot.slane %v3941, 2
      %v4204 = vrot.slane %v3942, 2
      %v4205 = vsel %vm4193, %v4203, %v4204
      %v4206 = vrot.slane %v3943, 2
      %v4207 = vsel %vm4193, %v4204, %v4206
      %v4208 = vrot.slane %v3944, 2
      %v4209 = vsel %vm4193, %v4206, %v4208
      %v4210 = vrot.slane %v3945, 2
      %v4211 = vsel %vm4193, %v4208, %v4210
      %v4212 = vrot.slane %v3946, 2
      %v4213 = vrot.slane %v3947, 2
      %v4214 = vsel %vm4193, %v4212, %v4213
      %v4215 = vrot.slane %v3948, 2
      %v4216 = vsel %vm4193, %v4213, %v4215
      %v4217 = vrot.slane %v3949, 2
      %v4218 = vsel %vm4193, %v4215, %v4217
      %v4219 = vrot.slane %v3950, 2
      %v4220 = vsel %vm4193, %v4217, %v4219
      %v4221 = vrot.slane %v3951, 2
      %v4222 = vrot.slane %v3952, 2
      %v4223 = vsel %vm4193, %v4221, %v4222
      %v4224 = vrot.slane %v3953, 2
      %v4225 = vsel %vm4193, %v4222, %v4224
      %v4226 = vrot.slane %v3954, 2
      %v4227 = vsel %vm4193, %v4224, %v4226
      %v4228 = vrot.slane %v3955, 2
      %v4229 = vsel %vm4193, %v4226, %v4228
      %v4230 = vrot.slane %v3956, 2
      %v4231 = vrot.slane %v3957, 2
      %v4232 = vsel %vm4193, %v4230, %v4231
      %v4233 = vrot.slane %v3958, 2
      %v4234 = vsel %vm4193, %v4231, %v4233
      %v4235 = vrot.slane %v3959, 2
      %v4236 = vsel %vm4193, %v4233, %v4235
      %v4237 = vrot.slane %v3960, 2
      %v4238 = vsel %vm4193, %v4235, %v4237
      %v4239 = vrot.slane %v3961, 2
      %v4240 = vrot.slane %v3962, 2
      %v4241 = vsel %vm4193, %v4239, %v4240
      %v4242 = vrot.slane %v3963, 2
      %v4243 = vsel %vm4193, %v4240, %v4242
      %v4244 = vrot.slane %v3964, 2
      %v4245 = vsel %vm4193, %v4242, %v4244
      %v4246 = vrot.slane %v3965, 2
      %v4247 = vsel %vm4193, %v4244, %v4246
      %v4248 = vrot.slane %v3966, 2
      %v4249 = vrot.slane %v3967, 2
      %v4250 = vsel %vm4193, %v4248, %v4249
      %v4251 = vrot.slane %v3968, 2
      %v4252 = vsel %vm4193, %v4249, %v4251
      %v4253 = vrot.slane %v3969, 2
      %v4254 = vsel %vm4193, %v4251, %v4253
      %v4255 = vrot.slane %v3970, 2
      %v4256 = vsel %vm4193, %v4253, %v4255
      %v4257 = vrot.slane %v3971, 2
      %v4258 = vrot.slane %v3972, 2
      %v4259 = vsel %vm4193, %v4257, %v4258
      %v4260 = vrot.slane %v3973, 2
      %v4261 = vsel %vm4193, %v4258, %v4260
      %v4262 = vrot.slane %v3974, 2
      %v4263 = vsel %vm4193, %v4260, %v4262
      %v4264 = vrot.slane %v3975, 2
      %v4265 = vsel %vm4193, %v4262, %v4264
      %v4298 = vadd.f32 %v4121, %v4196
      %v4299 = vadd.f32 %v4122, %v4198
      %v4300 = vadd.f32 %v4123, %v4200
      %v4301 = vadd.f32 %v4124, %v4202
      %v4302 = vadd.f32 %v4125, %v4205
      %v4303 = vadd.f32 %v4126, %v4207
      %v4304 = vadd.f32 %v4127, %v4209
      %v4305 = vadd.f32 %v4128, %v4211
      %v4306 = vadd.f32 %v4129, %v4214
      %v4307 = vadd.f32 %v4130, %v4216
      %v4308 = vadd.f32 %v4131, %v4218
      %v4309 = vadd.f32 %v4132, %v4220
      %v4310 = vadd.f32 %v4133, %v4223
      %v4311 = vadd.f32 %v4134, %v4225
      %v4312 = vadd.f32 %v4135, %v4227
      %v4313 = vadd.f32 %v4136, %v4229
      %v4314 = vadd.f32 %v4137, %v4232
      %v4315 = vadd.f32 %v4138, %v4234
      %v4316 = vadd.f32 %v4139, %v4236
      %v4317 = vadd.f32 %v4140, %v4238
      %v4318 = vadd.f32 %v4141, %v4241
      %v4319 = vadd.f32 %v4142, %v4243
      %v4320 = vadd.f32 %v4143, %v4245
      %v4321 = vadd.f32 %v4144, %v4247
      %v4322 = vadd.f32 %v4145, %v4250
      %v4323 = vadd.f32 %v4146, %v4252
      %v4324 = vadd.f32 %v4147, %v4254
      %v4325 = vadd.f32 %v4148, %v4256
      %v4326 = vadd.f32 %v4149, %v4259
      %v4327 = vadd.f32 %v4150, %v4261
      %v4328 = vadd.f32 %v4151, %v4263
      %v4329 = vadd.f32 %v4152, %v4265
      %v4330 = vadd.f32 %v4298, %v4299
      %v4331 = vadd.f32 %v4330, %v4300
      %v4332 = vadd.f32 %v4331, %v4301
      %v4333 = vadd.f32 %v4332, %v4302
      %v4334 = vadd.f32 %v4333, %v4303
      %v4335 = vadd.f32 %v4334, %v4304
      %v4336 = vadd.f32 %v4335, %v4305
      %v4337 = vadd.f32 %v4336, %v4306
      %v4338 = vadd.f32 %v4337, %v4307
      %v4339 = vadd.f32 %v4338, %v4308
      %v4340 = vadd.f32 %v4339, %v4309
      %v4341 = vadd.f32 %v4340, %v4310
      %v4342 = vadd.f32 %v4341, %v4311
      %v4343 = vadd.f32 %v4342, %v4312
      %v4344 = vadd.f32 %v4343, %v4313
      %v4345 = vadd.f32 %v4344, %v4314
      %v4346 = vadd.f32 %v4345, %v4315
      %v4347 = vadd.f32 %v4346, %v4316
      %v4348 = vadd.f32 %v4347, %v4317
      %v4349 = vadd.f32 %v4348, %v4318
      %v4350 = vadd.f32 %v4349, %v4319
      %v4351 = vadd.f32 %v4350, %v4320
      %v4352 = vadd.f32 %v4351, %v4321
      %v4353 = vadd.f32 %v4352, %v4322
      %v4354 = vadd.f32 %v4353, %v4323
      %v4355 = vadd.f32 %v4354, %v4324
      %v4356 = vadd.f32 %v4355, %v4325
      %v4357 = vadd.f32 %v4356, %v4326
      %v4358 = vadd.f32 %v4357, %v4327
      %v4359 = vadd.f32 %v4358, %v4328
      %v4360 = vadd.f32 %v4359, %v4329
      %v4361 = vrot.slane %v4360, 4
      %v4362 = vadd.f32 %v4360, %v4361
      %v4363 = vrot.slane %v4362, 2
      %v4364 = vadd.f32 %v4362, %v4363
      %v4365 = vrot.slane %v4364, 1
      %v4366 = vadd.f32 %v4364, %v4365
      %4367 = vst [vmem:[%s206] sm:$0x1] %v4366
      %v4368 = vmul.f32 %v4298, %v4298
      %v4369 = vmul.f32 %v4299, %v4299
      %v4370 = vmul.f32 %v4300, %v4300
      %v4371 = vmul.f32 %v4301, %v4301
      %v4372 = vmul.f32 %v4302, %v4302
      %v4373 = vmul.f32 %v4303, %v4303
      %v4374 = vmul.f32 %v4304, %v4304
      %v4375 = vmul.f32 %v4305, %v4305
      %v4376 = vmul.f32 %v4306, %v4306
      %v4377 = vmul.f32 %v4307, %v4307
      %v4378 = vmul.f32 %v4308, %v4308
      %v4379 = vmul.f32 %v4309, %v4309
      %v4380 = vmul.f32 %v4310, %v4310
      %v4381 = vmul.f32 %v4311, %v4311
      %v4382 = vmul.f32 %v4312, %v4312
      %v4383 = vmul.f32 %v4313, %v4313
      %v4384 = vmul.f32 %v4314, %v4314
      %v4385 = vmul.f32 %v4315, %v4315
      %v4386 = vmul.f32 %v4316, %v4316
      %v4387 = vmul.f32 %v4317, %v4317
      %v4388 = vmul.f32 %v4318, %v4318
      %v4389 = vmul.f32 %v4319, %v4319
      %v4390 = vmul.f32 %v4320, %v4320
      %v4391 = vmul.f32 %v4321, %v4321
      %v4392 = vmul.f32 %v4322, %v4322
      %v4393 = vmul.f32 %v4323, %v4323
      %v4394 = vmul.f32 %v4324, %v4324
      %v4395 = vmul.f32 %v4325, %v4325
      %v4396 = vmul.f32 %v4326, %v4326
      %v4397 = vmul.f32 %v4327, %v4327
      %v4398 = vmul.f32 %v4328, %v4328
      %v4399 = vmul.f32 %v4329, %v4329
      %v4400 = vadd.f32 %v4368, %v4369
      %v4401 = vadd.f32 %v4400, %v4370
      %v4402 = vadd.f32 %v4401, %v4371
      %v4403 = vadd.f32 %v4402, %v4372
      %v4404 = vadd.f32 %v4403, %v4373
      %v4405 = vadd.f32 %v4404, %v4374
      %v4406 = vadd.f32 %v4405, %v4375
      %v4407 = vadd.f32 %v4406, %v4376
      %v4408 = vadd.f32 %v4407, %v4377
      %v4409 = vadd.f32 %v4408, %v4378
      %v4410 = vadd.f32 %v4409, %v4379
      %v4411 = vadd.f32 %v4410, %v4380
      %v4412 = vadd.f32 %v4411, %v4381
      %v4413 = vadd.f32 %v4412, %v4382
      %v4414 = vadd.f32 %v4413, %v4383
      %v4415 = vadd.f32 %v4414, %v4384
      %v4416 = vadd.f32 %v4415, %v4385
      %v4417 = vadd.f32 %v4416, %v4386
      %v4418 = vadd.f32 %v4417, %v4387
      %v4419 = vadd.f32 %v4418, %v4388
      %v4420 = vadd.f32 %v4419, %v4389
      %v4421 = vadd.f32 %v4420, %v4390
      %v4422 = vadd.f32 %v4421, %v4391
      %v4423 = vadd.f32 %v4422, %v4392
      %v4424 = vadd.f32 %v4423, %v4393
      %v4425 = vadd.f32 %v4424, %v4394
      %v4426 = vadd.f32 %v4425, %v4395
      %v4427 = vadd.f32 %v4426, %v4396
      %v4428 = vadd.f32 %v4427, %v4397
      %v4429 = vadd.f32 %v4428, %v4398
      %v4430 = vadd.f32 %v4429, %v4399
      %v4431 = vrot.slane %v4430, 4
      %v4432 = vadd.f32 %v4430, %v4431
      %v4433 = vrot.slane %v4432, 2
      %v4434 = vadd.f32 %v4432, %v4433
      %v4435 = vrot.slane %v4434, 1
      %v4436 = vadd.f32 %v4434, %v4435
      %4437 = vst [vmem:[%s213] sm:$0x1] %v4436
      %4438 = vst [vmem:[%s198] sm:$0xff] %v4298
      %4439 = vst [vmem:[%s198 + $0x8] sm:$0xff] %v4299
      %4440 = vst [vmem:[%s198 + $0x10] sm:$0xff] %v4300
      %4441 = vst [vmem:[%s198 + $0x18] sm:$0xff] %v4301
      %4442 = vst [vmem:[%s198 + $0x20] sm:$0xff] %v4302
      %4443 = vst [vmem:[%s198 + $0x28] sm:$0xff] %v4303
      %4444 = vst [vmem:[%s198 + $0x30] sm:$0xff] %v4304
      %4445 = vst [vmem:[%s198 + $0x38] sm:$0xff] %v4305
      %4446 = vst [vmem:[%s198 + $0x40] sm:$0xff] %v4306
      %4447 = vst [vmem:[%s198 + $0x48] sm:$0xff] %v4307
      %4448 = vst [vmem:[%s198 + $0x50] sm:$0xff] %v4308
      %4449 = vst [vmem:[%s198 + $0x58] sm:$0xff] %v4309
      %4450 = vst [vmem:[%s198 + $0x60] sm:$0xff] %v4310
      %4451 = vst [vmem:[%s198 + $0x68] sm:$0xff] %v4311
      %4452 = vst [vmem:[%s198 + $0x70] sm:$0xff] %v4312
      %4453 = vst [vmem:[%s198 + $0x78] sm:$0xff] %v4313
      %4454 = vst [vmem:[%s198 + $0x80] sm:$0xff] %v4314
      %4455 = vst [vmem:[%s198 + $0x88] sm:$0xff] %v4315
      %4456 = vst [vmem:[%s198 + $0x90] sm:$0xff] %v4316
      %4457 = vst [vmem:[%s198 + $0x98] sm:$0xff] %v4317
      %4458 = vst [vmem:[%s198 + $0xa0] sm:$0xff] %v4318
      %4459 = vst [vmem:[%s198 + $0xa8] sm:$0xff] %v4319
      %4460 = vst [vmem:[%s198 + $0xb0] sm:$0xff] %v4320
      %4461 = vst [vmem:[%s198 + $0xb8] sm:$0xff] %v4321
      %4462 = vst [vmem:[%s198 + $0xc0] sm:$0xff] %v4322
      %4463 = vst [vmem:[%s198 + $0xc8] sm:$0xff] %v4323
      %4464 = vst [vmem:[%s198 + $0xd0] sm:$0xff] %v4324
      %4465 = vst [vmem:[%s198 + $0xd8] sm:$0xff] %v4325
      %4466 = vst [vmem:[%s198 + $0xe0] sm:$0xff] %v4326
      %4467 = vst [vmem:[%s198 + $0xe8] sm:$0xff] %v4327
      %4468 = vst [vmem:[%s198 + $0xf0] sm:$0xff] %v4328
      %4469 = vst [vmem:[%s198 + $0xf8] sm:$0xff] %v4329
      %s4470 = smul.u32 8, %s21
      %p4471 = scmp.lt.s32.totalorder %s20, 1
      %s4472 = scalar_select %p4471, %s20, 1
      %p4473 = scmp.lt.s32.totalorder %s4470, 31
      %s4474 = scalar_select %p4473, %s4470, 31
      %s4475 = smul.addr %s4474, 4
      %s4476 = smul.addr %s4472, 128
      %s4477 = sadd.s32 %s4475, %s4476
      %s4478 = smul.addr %s4477, 8
      %s4479 = scalar_lea.vmem %s2, %s4478
      %p4480 = scmp.lt.s32.totalorder %s20, 1
      %s4481 = scalar_select %p4480, %s20, 1
      %p4482 = scmp.lt.s32.totalorder %s21, 3
      %s4483 = scalar_select %p4482, %s21, 3
      %s4484 = smul.addr %s4481, 4
      %s4485 = sadd.s32 %s4483, %s4484
      %s4486 = scalar_lea.vmem %s3, %s4485
      %p4487 = scmp.lt.s32.totalorder %s20, 1
      %s4488 = scalar_select %p4487, %s20, 1
      %p4489 = scmp.lt.s32.totalorder %s21, 3
      %s4490 = scalar_select %p4489, %s21, 3
      %s4491 = smul.addr %s4488, 4
      %s4492 = sadd.s32 %s4490, %s4491
      %s4493 = scalar_lea.vmem %s4, %s4492
      // Predicated region
      $region60: #{multi_up_block_forward.6} parent=23 // pred_check
        %p4494 = pneg %p69
      $region61: #{multi_up_block_forward.6} parent=23 // pred_check_branch
        %4496 = sbr.rel (%p4494) target = $region63
      $region62: #{multi_up_block_forward.6} parent=23 // pred_region
        %s4497 = smul.u32 8, %s21
      $region63: #{multi_up_block_forward.6} parent=23 // pred_fallthru
        _
      // Predicated region
      $region64: #{multi_up_block_forward.6} parent=23 // pred_check
        %p4498 = pneg %p97
      $region65: #{multi_up_block_forward.6} parent=23 // pred_check_branch
        %4500 = sbr.rel (%p4498) target = $region67
      $region66: #{multi_up_block_forward.6} parent=23 // pred_region
        _
      $region67: #{multi_up_block_forward.6} parent=23 // pred_fallthru
        _
      // Predicated region
      $region68: #{multi_up_block_forward.6} parent=23 // pred_check
        %p4501 = pneg %p125
      $region69: #{multi_up_block_forward.6} parent=23 // pred_check_branch
        %4503 = sbr.rel (%p4501) target = $region71
      $region70: #{multi_up_block_forward.6} parent=23 // pred_region
        _
      $region71: #{multi_up_block_forward.6} parent=23 // pred_fallthru
        _
    $region24: #{multi_up_block_forward.6} parent=5 // pred_fallthru
      _
    %p4504 = scmp.le.s32.totalorder 2, %s11
    // Predicated region
    $region72: #{multi_up_block_forward.6} parent=5 // pred_check
      %p4505 = pneg %p4504
    $region73: #{multi_up_block_forward.6} parent=5 // pred_check_branch
      %4507 = sbr.rel (%p4505) target = $region75
    $region74: #{multi_up_block_forward.6} parent=5 // pred_region
      %s4508 = ssub.s32 %s11, 2
      // Predicated region
      $region76: #{multi_up_block_forward.6} parent=74 // pred_check
        %p4509 = pneg %p75
      $region77: #{multi_up_block_forward.6} parent=74 // pred_check_branch
        %4511 = sbr.rel (%p4509) target = $region79
      $region78: #{multi_up_block_forward.6} parent=74 // pred_region
        %s4512 = smul.u32 8, %s23
        %p4513 = scmp.lt.s32.totalorder %s22, 1
        %s4514 = scalar_select %p4513, %s22, 1
        %p4515 = scmp.lt.s32.totalorder %s4512, 31
        %s4516 = scalar_select %p4515, %s4512, 31
        %s4517 = smul.addr %s4516, 4
        %s4518 = smul.addr %s4514, 128
        %s4519 = sadd.s32 %s4517, %s4518
        %s4520 = smul.addr %s4519, 8
        %s4521 = scalar_lea.vmem %s2, %s4520
      $region79: #{multi_up_block_forward.6} parent=74 // pred_fallthru
        _
      // Predicated region
      $region80: #{multi_up_block_forward.6} parent=74 // pred_check
        %p4522 = pneg %p103
      $region81: #{multi_up_block_forward.6} parent=74 // pred_check_branch
        %4524 = sbr.rel (%p4522) target = $region83
      $region82: #{multi_up_block_forward.6} parent=74 // pred_region
        %p4525 = scmp.lt.s32.totalorder %s22, 1
        %s4526 = scalar_select %p4525, %s22, 1
        %p4527 = scmp.lt.s32.totalorder %s23, 3
        %s4528 = scalar_select %p4527, %s23, 3
        %s4529 = smul.addr %s4526, 4
        %s4530 = sadd.s32 %s4528, %s4529
        %s4531 = scalar_lea.vmem %s3, %s4530
      $region83: #{multi_up_block_forward.6} parent=74 // pred_fallthru
        _
      // Predicated region
      $region84: #{multi_up_block_forward.6} parent=74 // pred_check
        %p4532 = pneg %p131
      $region85: #{multi_up_block_forward.6} parent=74 // pred_check_branch
        %4534 = sbr.rel (%p4532) target = $region87
      $region86: #{multi_up_block_forward.6} parent=74 // pred_region
        %p4535 = scmp.lt.s32.totalorder %s22, 1
        %s4536 = scalar_select %p4535, %s22, 1
        %p4537 = scmp.lt.s32.totalorder %s23, 3
        %s4538 = scalar_select %p4537, %s23, 3
        %s4539 = smul.addr %s4536, 4
        %s4540 = sadd.s32 %s4538, %s4539
        %s4541 = scalar_lea.vmem %s4, %s4540
      $region87: #{multi_up_block_forward.6} parent=74 // pred_fallthru
        _
    $region75: #{multi_up_block_forward.6} parent=5 // pred_fallthru
      _
  $region6: #{multi_up_block_forward.6} parent=0 // loop_footer
    %s15 = sadd.s32 1, %s11
  $region7: #{multi_up_block_forward.6} parent=0 // loop_footer_branch
    %10 = sbr.rel target = $region3
  $region8: #{multi_up_block_forward.6} parent=0 // loop_exit
    _

</llo_original>
